<compile_context>
chip_gen: v7x
topology: tpu7x:2x2x1
jax: 0.10.0
libtpu: 0.0.40
codegen_flags: <defaults>
</compile_context>

<pallas_src>
import numpy as np
import jax
import jax.numpy as jnp
from jax import lax
from jax.experimental import pallas as pl
from jax.experimental.pallas import tpu as pltpu


def _round_up(x, m):
    return ((x + m - 1) // m) * m


def _bilinear_taps(in_size, out_size):
    """Static per-output 2-tap (index, weight) tables reproducing
    torch.nn.Upsample(mode='bilinear', align_corners=True) along one axis."""
    los, his, w0s, w1s = [], [], [], []
    for p in range(out_size):
        src = p * (in_size - 1) / (out_size - 1) if out_size > 1 else 0.0
        lo = int(np.clip(int(np.floor(src)), 0, max(in_size - 2, 0)))
        hi = min(lo + 1, in_size - 1)
        frac = float(src - lo)
        los.append(lo)
        his.append(hi)
        w0s.append(1.0 - frac)
        w1s.append(frac)
    return los, his, w0s, w1s


def bilinear_matrix(in_size, out_size):
    """Row-stochastic (out_size, in_size) matrix, same semantics as above
    (used only by the plain-JAX reference)."""
    if out_size == 1:
        m = np.zeros((1, in_size), np.float32)
        m[0, 0] = 1.0
        return jnp.asarray(m)
    src = np.arange(out_size) * (in_size - 1) / (out_size - 1)
    lo = np.clip(np.floor(src).astype(np.int64), 0, max(in_size - 2, 0))
    frac = (src - lo).astype(np.float32)
    m = np.zeros((out_size, in_size), np.float32)
    m[np.arange(out_size), lo] += 1.0 - frac
    m[np.arange(out_size), np.minimum(lo + 1, in_size - 1)] += frac
    return jnp.asarray(m)


def upblock_forward(down, skip, params, eps=1e-5):
    """UpBlock forward (NCHW in / NCHW out, like the PyTorch module).

    Layout conversion + channel padding to lane multiples + bf16 casts happen
    once here in XLA; the Pallas kernel itself is NHWC and lane-dense.
    """
    n, cd, h, w = down.shape
    _, cs, ho, wo = skip.shape
    cout = params['w1'].shape[0]
    cin = cd + cs
    assert params['w1'].shape[1] == cin

    lane = 128
    cdp = _round_up(cd, lane)
    csp = _round_up(cs, lane)
    cinp = cdp + csp
    coutp = _round_up(cout, lane)
    hp, wp = ho + 2, _round_up(wo + 2, 8)

    f32 = jnp.float32
    bf16 = jnp.bfloat16

    # NHWC + zero channel padding, bf16 in HBM (halved DMA bytes).
    down_nhwc = jnp.zeros((n, h, w, cdp), bf16).at[..., :cd].set(
        jnp.transpose(down, (0, 2, 3, 1)).astype(bf16))
    skip_nhwc = jnp.zeros((n, ho, wo, csp), bf16).at[..., :cs].set(
        jnp.transpose(skip, (0, 2, 3, 1)).astype(bf16))

    # fold conv bias + eval-mode BatchNorm into per-channel scale/bias (f32)
    s1 = params['g1'] / jnp.sqrt(params['v1'] + eps)
    b1 = params['be1'] + (params['bc1'] - params['m1']) * s1
    s2 = params['g2'] / jnp.sqrt(params['v2'] + eps)
    b2 = params['be2'] + (params['bc2'] - params['m2']) * s2
    s1p = jnp.zeros((1, coutp), f32).at[0, :cout].set(s1)
    b1p = jnp.zeros((1, coutp), f32).at[0, :cout].set(b1)
    s2p = jnp.zeros((1, coutp), f32).at[0, :cout].set(s2)
    b2p = jnp.zeros((1, coutp), f32).at[0, :cout].set(b2)

    # conv weights (Cout, Cin, 3, 3) -> one bf16 matmul operand per kw shift:
    # wk[kw, ci_lane, kh*coutp + co].  Conv1's `up` and `skip` input-channel
    # blocks live at their own 128-aligned lane offsets -> no concat at all.
    def pack_conv1(w1):
        wt = jnp.transpose(w1, (3, 1, 2, 0))              # (kw, cin, kh, cout)
        wk = jnp.zeros((3, cinp, 3, coutp), f32)
        wk = wk.at[:, :cd, :, :cout].set(wt[:, :cd])
        wk = wk.at[:, cdp:cdp + cs, :, :cout].set(wt[:, cd:])
        return wk.reshape(3, cinp, 3 * coutp).astype(bf16)

    def pack_conv2(w2):
        wt = jnp.transpose(w2, (3, 1, 2, 0))              # (kw, cout, kh, cout)
        wk = jnp.zeros((3, coutp, 3, coutp), f32)
        wk = wk.at[:, :cout, :, :cout].set(wt)
        return wk.reshape(3, coutp, 3 * coutp).astype(bf16)

    wk1 = pack_conv1(params['w1'])
    wk2 = pack_conv2(params['w2'])

    # static <=2-tap bilinear weights per output row / column (compile-time)
    h_lo, h_hi, h_w0, h_w1 = _bilinear_taps(h, ho)
    w_lo, w_hi, w_w0, w_w1 = _bilinear_taps(w, wo)

    def kernel(down_ref, skip_ref, wk1_ref, s1_ref, b1_ref,
               wk2_ref, s2_ref, b2_ref, out_ref,
               tmp_ref, pad1_ref, pad2_ref):
        # ---- refresh the zero halo (bottom rows + right columns) ------------
        # Scratch persists across grid steps but may be per-core when the batch
        # axis is split across TensorCores, so the (small) halo is re-zeroed
        # every step; the interior is fully overwritten below.
        pad1_ref[ho:hp, :, :] = jnp.zeros((hp - ho, wp, cinp), f32)
        pad1_ref[0:ho, wo:wp, :] = jnp.zeros((ho, wp - wo, cinp), f32)
        pad2_ref[ho:hp, :, :] = jnp.zeros((hp - ho, wp, coutp), f32)
        pad2_ref[0:ho, wo:wp, :] = jnp.zeros((ho, wp - wo, coutp), f32)

        # ---- bilinear upsample: two separable 2-tap VPU passes --------------
        # (no MXU, no Kronecker operator; taps are compile-time constants)
        for q in range(wo):                               # width pass
            tmp_ref[:, q, :] = (
                w_w0[q] * down_ref[0, :, w_lo[q], :].astype(f32) +
                w_w1[q] * down_ref[0, :, w_hi[q], :].astype(f32))
        for p in range(ho):                               # height pass
            row = h_w0[p] * tmp_ref[h_lo[p]] + h_w1[p] * tmp_ref[h_hi[p]]
            pad1_ref[p, 0:wo, 0:cdp] = row                # (wo, cdp) f32
        # channel concat == write at a 128-aligned lane offset, no relayout
        pad1_ref[0:ho, 0:wo, cdp:cinp] = skip_ref[0].astype(f32)

        def conv3x3_bn_relu(pad_ref, wk_ref, scale, bias):
            php, pwp, cin_p = pad_ref.shape
            nflat = php * pwp
            nout = wk_ref.shape[-1] // 3
            # kw-shifted copies of the padded image: 2 input rolls
            x1 = pad_ref[...].reshape(nflat, cin_p)       # free outer reshape
            x0 = pltpu.roll(x1, shift=1, axis=0)          # x[i, j-1]
            x2 = pltpu.roll(x1, shift=nflat - 1, axis=0)  # x[i, j+1]
            # one 3x3 conv == 3 lane-dense bf16 MXU matmuls, f32 accumulation
            rc = jnp.dot(x0.astype(bf16), wk_ref[0], preferred_element_type=f32)
            rc = rc + jnp.dot(x1.astype(bf16), wk_ref[1], preferred_element_type=f32)
            rc = rc + jnp.dot(x2.astype(bf16), wk_ref[2], preferred_element_type=f32)
            # kh recombination: init from the center tap, 2 rolls + 2 adds.
            # Wrapped-around rows/cols land in the zero halo, so padding
            # semantics stay exact (garbage only in discarded halo columns).
            acc = rc[:, nout:2 * nout]
            acc = acc + pltpu.roll(rc[:, 0:nout], shift=pwp, axis=0)
            acc = acc + pltpu.roll(rc[:, 2 * nout:], shift=nflat - pwp, axis=0)
            res = acc[:ho * pwp].reshape(ho, pwp, nout)[:, :wo, :]
            # folded conv-bias + eval-mode BN + ReLU (lane-dense f32 FMA)
            return jnp.maximum(res * scale + bias, 0.0)

        y1 = conv3x3_bn_relu(pad1_ref, wk1_ref, s1_ref[...], b1_ref[...])
        pad2_ref[0:ho, 0:wo, :] = y1
        y2 = conv3x3_bn_relu(pad2_ref, wk2_ref, s2_ref[...], b2_ref[...])
        out_ref[0] = y2.astype(out_ref.dtype)

    grid_spec = pltpu.PrefetchScalarGridSpec(
        num_scalar_prefetch=0,
        grid=(n,),
        in_specs=[
            pl.BlockSpec((1, h, w, cdp), lambda b: (b, 0, 0, 0)),
            pl.BlockSpec((1, ho, wo, csp), lambda b: (b, 0, 0, 0)),
            # grid-invariant operands (constant index maps)
            pl.BlockSpec((3, cinp, 3 * coutp), lambda b: (0, 0, 0)),
            pl.BlockSpec((1, coutp), lambda b: (0, 0)),
            pl.BlockSpec((1, coutp), lambda b: (0, 0)),
            pl.BlockSpec((3, coutp, 3 * coutp), lambda b: (0, 0, 0)),
            pl.BlockSpec((1, coutp), lambda b: (0, 0)),
            pl.BlockSpec((1, coutp), lambda b: (0, 0)),
        ],
        out_specs=pl.BlockSpec((1, ho, wo, coutp), lambda b: (b, 0, 0, 0)),
        scratch_shapes=[
            pltpu.VMEM((h, wo, cdp), f32),      # width-upsampled intermediate
            pltpu.VMEM((hp, wp, cinp), f32),    # zero-padded conv1 input
            pltpu.VMEM((hp, wp, coutp), f32),   # zero-padded conv2 input
        ],
    )
    out_nhwc = pl.pallas_call(
        kernel,
        out_shape=jax.ShapeDtypeStruct((n, ho, wo, coutp), f32),
        grid_spec=grid_spec,
        compiler_params=pltpu.CompilerParams(
            dimension_semantics=("parallel",),
            # generous headroom (safe on v7x's 64 MiB physical VMEM); raise
            # toward ~100 MiB on v5e/v6e once spatial tiles grow.
            vmem_limit_bytes=64 * 1024 * 1024),
    )(down_nhwc, skip_nhwc, wk1, s1p, b1p, wk2, s2p, b2p)

    # back to the module's NCHW convention (outside the kernel)
    return jnp.transpose(out_nhwc[..., :cout], (0, 3, 1, 2))


def reference_upblock(down, skip, params, eps=1e-5):
    """Plain-JAX f32 reference with identical (eval-mode BN) semantics."""
    wh = bilinear_matrix(down.shape[2], skip.shape[2])
    ww = bilinear_matrix(down.shape[3], skip.shape[3])
    up = jnp.einsum('ph,nchw,qw->ncpq', wh, down, ww,
                    precision=lax.Precision.HIGHEST)
    x = jnp.concatenate([up, skip], axis=1)

    def conv_bn_relu(x, w, bc, g, be, m, v):
        y = lax.conv_general_dilated(x, w, (1, 1), ((1, 1), (1, 1)),
                                     dimension_numbers=('NCHW', 'OIHW', 'NCHW'),
                                     precision=lax.Precision.HIGHEST)
        y = y + bc[None, :, None, None]
        y = (y - m[None, :, None, None]) / jnp.sqrt(v[None, :, None, None] + eps)
        y = y * g[None, :, None, None] + be[None, :, None, None]
        return jnp.maximum(y, 0.0)

    y = conv_bn_relu(x, params['w1'], params['bc1'], params['g1'],
                     params['be1'], params['m1'], params['v1'])
    y = conv_bn_relu(y, params['w2'], params['bc2'], params['g2'],
                     params['be2'], params['m2'], params['v2'])
    return y


if __name__ == "__main__":
    # UpBlock(in_channels=8, out_channels=4, up_sample_mode='bilinear')
    N, IN_CH, OUT_CH = 2, 8, 4
    H, W = 8, 8                        # down_input spatial
    HO, WO = 2 * H, 2 * W              # after 2x upsample (matches skip_input)
    CD = IN_CH - OUT_CH                # down_input channels (U-Net convention)
    CS = OUT_CH                        # skip_input channels
    EPS = 1e-5

    keys = jax.random.split(jax.random.PRNGKey(0), 16)

    def q_bf16(x):
        # Pre-quantize test data to bf16-representable values so the f32
        # reference and the bf16-MXU kernel see identical inputs; remaining
        # diffs are only from the kernel's internal bf16 matmul operands.
        return x.astype(jnp.bfloat16).astype(jnp.float32)

    down = q_bf16(jax.random.normal(keys[0], (N, CD, H, W), jnp.float32))
    skip = q_bf16(jax.random.normal(keys[1], (N, CS, HO, WO), jnp.float32))

    # deterministic synthetic parameters (PyTorch shapes)
    p = {
        'w1':  q_bf16(0.2 * jax.random.normal(keys[2], (OUT_CH, IN_CH, 3, 3), jnp.float32)),
        'bc1': 0.1 * jax.random.normal(keys[3], (OUT_CH,), jnp.float32),
        'g1':  1.0 + 0.1 * jax.random.normal(keys[4], (OUT_CH,), jnp.float32),
        'be1': 0.1 * jax.random.normal(keys[5], (OUT_CH,), jnp.float32),
        'm1':  0.05 * jax.random.normal(keys[6], (OUT_CH,), jnp.float32),
        'v1':  jax.random.uniform(keys[7], (OUT_CH,), jnp.float32, 0.5, 1.5),
        'w2':  q_bf16(0.2 * jax.random.normal(keys[8], (OUT_CH, OUT_CH, 3, 3), jnp.float32)),
        'bc2': 0.1 * jax.random.normal(keys[9], (OUT_CH,), jnp.float32),
        'g2':  1.0 + 0.1 * jax.random.normal(keys[10], (OUT_CH,), jnp.float32),
        'be2': 0.1 * jax.random.normal(keys[11], (OUT_CH,), jnp.float32),
        'm2':  0.05 * jax.random.normal(keys[12], (OUT_CH,), jnp.float32),
        'v2':  jax.random.uniform(keys[13], (OUT_CH,), jnp.float32, 0.5, 1.5),
    }

    out = jax.block_until_ready(upblock_forward(down, skip, p, EPS))
    ref = jax.block_until_ready(reference_upblock(down, skip, p, EPS))

    # bf16-operand MXU kernel vs f32 reference: tolerance sized for bf16.
    if not np.allclose(np.asarray(out), np.asarray(ref), atol=4e-2, rtol=2e-2):
        raise AssertionError("Pallas UpBlock output mismatch vs JAX reference")

    print("KERNEL_OK")
</pallas_src>

<mosaic_0001>
module attributes {stable_mosaic.version = 11 : i64} {
  func.func @kernel(%arg0: i32, %arg1: memref<1x8x8x128xbf16, #tpu.memory_space<vmem>>, %arg2: memref<1x16x16x128xbf16, #tpu.memory_space<vmem>>, %arg3: memref<3x256x384xbf16, #tpu.memory_space<vmem>>, %arg4: memref<1x128xf32, #tpu.memory_space<vmem>>, %arg5: memref<1x128xf32, #tpu.memory_space<vmem>>, %arg6: memref<3x128x384xbf16, #tpu.memory_space<vmem>>, %arg7: memref<1x128xf32, #tpu.memory_space<vmem>>, %arg8: memref<1x128xf32, #tpu.memory_space<vmem>>, %arg9: memref<1x16x16x128xf32, #tpu.memory_space<vmem>>, %arg10: memref<8x16x128xf32, #tpu.memory_space<vmem>>, %arg11: memref<18x24x256xf32, #tpu.memory_space<vmem>>, %arg12: memref<18x24x128xf32, #tpu.memory_space<vmem>>) attributes {dimension_semantics = [#tpu.dimension_semantics<parallel>], iteration_bounds = array<i64: 2>, scalar_prefetch = 0 : i64, scratch_operands = 3 : i64, tpu.core_type = #tpu.core_type<tc>, window_params = [{transform_indices = @transform_0, window_bounds = array<i64: 1, 8, 8, 128>}, {transform_indices = @transform_1, window_bounds = array<i64: 1, 16, 16, 128>}, {pipeline_mode = #tpu.pipeline_mode<synchronous>, transform_indices = @transform_2, window_bounds = array<i64: 3, 256, 384>}, {pipeline_mode = #tpu.pipeline_mode<synchronous>, transform_indices = @transform_3, window_bounds = array<i64: 1, 128>}, {pipeline_mode = #tpu.pipeline_mode<synchronous>, transform_indices = @transform_4, window_bounds = array<i64: 1, 128>}, {pipeline_mode = #tpu.pipeline_mode<synchronous>, transform_indices = @transform_5, window_bounds = array<i64: 3, 128, 384>}, {pipeline_mode = #tpu.pipeline_mode<synchronous>, transform_indices = @transform_6, window_bounds = array<i64: 1, 128>}, {pipeline_mode = #tpu.pipeline_mode<synchronous>, transform_indices = @transform_7, window_bounds = array<i64: 1, 128>}, {transform_indices = @transform_8, window_bounds = array<i64: 1, 16, 16, 128>}]} {
    %cst = arith.constant 0.000000e+00 : f32
    %0 = vector.broadcast %cst : f32 to vector<2x24x256xf32>
    %c16 = arith.constant 16 : index
    %c0 = arith.constant 0 : index
    %c0_0 = arith.constant 0 : index
    %1 = vector.load %arg11[%c16, %c0, %c0_0] : memref<18x24x256xf32, #tpu.memory_space<vmem>>, vector<2x24x256xf32>
    tpu.vector_store %arg11[%c16, %c0, %c0_0], %0 {strides = array<i32>} : memref<18x24x256xf32, #tpu.memory_space<vmem>>, vector<2x24x256xf32>,
    %cst_1 = arith.constant 0.000000e+00 : f32
    %2 = vector.broadcast %cst_1 : f32 to vector<16x8x256xf32>
    %c0_2 = arith.constant 0 : index
    %c16_3 = arith.constant 16 : index
    %c0_4 = arith.constant 0 : index
    %3 = vector.load %arg11[%c0_2, %c16_3, %c0_4] : memref<18x24x256xf32, #tpu.memory_space<vmem>>, vector<16x8x256xf32>
    tpu.vector_store %arg11[%c0_2, %c16_3, %c0_4], %2 {strides = array<i32>} : memref<18x24x256xf32, #tpu.memory_space<vmem>>, vector<16x8x256xf32>,
    %cst_5 = arith.constant 0.000000e+00 : f32
    %4 = vector.broadcast %cst_5 : f32 to vector<2x24x128xf32>
    %c16_6 = arith.constant 16 : index
    %c0_7 = arith.constant 0 : index
    %c0_8 = arith.constant 0 : index
    %5 = vector.load %arg12[%c16_6, %c0_7, %c0_8] : memref<18x24x128xf32, #tpu.memory_space<vmem>>, vector<2x24x128xf32>
    tpu.vector_store %arg12[%c16_6, %c0_7, %c0_8], %4 {strides = array<i32>} : memref<18x24x128xf32, #tpu.memory_space<vmem>>, vector<2x24x128xf32>,
    %cst_9 = arith.constant 0.000000e+00 : f32
    %6 = vector.broadcast %cst_9 : f32 to vector<16x8x128xf32>
    %c0_10 = arith.constant 0 : index
    %c16_11 = arith.constant 16 : index
    %c0_12 = arith.constant 0 : index
    %7 = vector.load %arg12[%c0_10, %c16_11, %c0_12] : memref<18x24x128xf32, #tpu.memory_space<vmem>>, vector<16x8x128xf32>
    tpu.vector_store %arg12[%c0_10, %c16_11, %c0_12], %6 {strides = array<i32>} : memref<18x24x128xf32, #tpu.memory_space<vmem>>, vector<16x8x128xf32>,
    %c0_13 = arith.constant 0 : index
    %c0_14 = arith.constant 0 : index
    %c0_15 = arith.constant 0 : index
    %c0_16 = arith.constant 0 : index
    %8 = vector.load %arg1[%c0_13, %c0_14, %c0_15, %c0_16] : memref<1x8x8x128xbf16, #tpu.memory_space<vmem>>, vector<1x8x1x128xbf16>
    %9 = vector.shape_cast %8 : vector<1x8x1x128xbf16> to vector<8x128xbf16>
    %10 = arith.extf %9 : vector<8x128xbf16> to vector<8x128xf32>
    %cst_17 = arith.constant 1.000000e+00 : f32
    %11 = vector.broadcast %cst_17 : f32 to vector<8x128xf32>
    %12 = arith.mulf %11, %10 : vector<8x128xf32>
    %c0_18 = arith.constant 0 : index
    %c0_19 = arith.constant 0 : index
    %c1 = arith.constant 1 : index
    %c0_20 = arith.constant 0 : index
    %13 = vector.load %arg1[%c0_18, %c0_19, %c1, %c0_20] : memref<1x8x8x128xbf16, #tpu.memory_space<vmem>>, vector<1x8x1x128xbf16>
    %14 = vector.shape_cast %13 : vector<1x8x1x128xbf16> to vector<8x128xbf16>
    %15 = arith.extf %14 : vector<8x128xbf16> to vector<8x128xf32>
    %cst_21 = arith.constant 0.000000e+00 : f32
    %16 = vector.broadcast %cst_21 : f32 to vector<8x128xf32>
    %17 = arith.mulf %16, %15 : vector<8x128xf32>
    %18 = arith.addf %12, %17 : vector<8x128xf32>
    %c0_22 = arith.constant 0 : index
    %c0_23 = arith.constant 0 : index
    %c0_24 = arith.constant 0 : index
    %19 = vector.load %arg10[%c0_22, %c0_23, %c0_24] : memref<8x16x128xf32, #tpu.memory_space<vmem>>, vector<8x1x128xf32>
    %20 = vector.shape_cast %19 : vector<8x1x128xf32> to vector<8x128xf32>
    %21 = vector.shape_cast %18 : vector<8x128xf32> to vector<8x1x128xf32>
    tpu.vector_store %arg10[%c0_22, %c0_23, %c0_24], %21 {strides = array<i32>} : memref<8x16x128xf32, #tpu.memory_space<vmem>>, vector<8x1x128xf32>,
    %c0_25 = arith.constant 0 : index
    %c0_26 = arith.constant 0 : index
    %c0_27 = arith.constant 0 : index
    %c0_28 = arith.constant 0 : index
    %22 = vector.load %arg1[%c0_25, %c0_26, %c0_27, %c0_28] : memref<1x8x8x128xbf16, #tpu.memory_space<vmem>>, vector<1x8x1x128xbf16>
    %23 = vector.shape_cast %22 : vector<1x8x1x128xbf16> to vector<8x128xbf16>
    %24 = arith.extf %23 : vector<8x128xbf16> to vector<8x128xf32>
    %cst_29 = arith.constant 0.533333361 : f32
    %25 = vector.broadcast %cst_29 : f32 to vector<8x128xf32>
    %26 = arith.mulf %25, %24 : vector<8x128xf32>
    %c0_30 = arith.constant 0 : index
    %c0_31 = arith.constant 0 : index
    %c1_32 = arith.constant 1 : index
    %c0_33 = arith.constant 0 : index
    %27 = vector.load %arg1[%c0_30, %c0_31, %c1_32, %c0_33] : memref<1x8x8x128xbf16, #tpu.memory_space<vmem>>, vector<1x8x1x128xbf16>
    %28 = vector.shape_cast %27 : vector<1x8x1x128xbf16> to vector<8x128xbf16>
    %29 = arith.extf %28 : vector<8x128xbf16> to vector<8x128xf32>
    %cst_34 = arith.constant 0.466666669 : f32
    %30 = vector.broadcast %cst_34 : f32 to vector<8x128xf32>
    %31 = arith.mulf %30, %29 : vector<8x128xf32>
    %32 = arith.addf %26, %31 : vector<8x128xf32>
    %c0_35 = arith.constant 0 : index
    %c1_36 = arith.constant 1 : index
    %c0_37 = arith.constant 0 : index
    %33 = vector.load %arg10[%c0_35, %c1_36, %c0_37] : memref<8x16x128xf32, #tpu.memory_space<vmem>>, vector<8x1x128xf32>
    %34 = vector.shape_cast %33 : vector<8x1x128xf32> to vector<8x128xf32>
    %35 = vector.shape_cast %32 : vector<8x128xf32> to vector<8x1x128xf32>
    tpu.vector_store %arg10[%c0_35, %c1_36, %c0_37], %35 {strides = array<i32>} : memref<8x16x128xf32, #tpu.memory_space<vmem>>, vector<8x1x128xf32>,
    %c0_38 = arith.constant 0 : index
    %c0_39 = arith.constant 0 : index
    %c0_40 = arith.constant 0 : index
    %c0_41 = arith.constant 0 : index
    %36 = vector.load %arg1[%c0_38, %c0_39, %c0_40, %c0_41] : memref<1x8x8x128xbf16, #tpu.memory_space<vmem>>, vector<1x8x1x128xbf16>
    %37 = vector.shape_cast %36 : vector<1x8x1x128xbf16> to vector<8x128xbf16>
    %38 = arith.extf %37 : vector<8x128xbf16> to vector<8x128xf32>
    %cst_42 = arith.constant 0.0666666701 : f32
    %39 = vector.broadcast %cst_42 : f32 to vector<8x128xf32>
    %40 = arith.mulf %39, %38 : vector<8x128xf32>
    %c0_43 = arith.constant 0 : index
    %c0_44 = arith.constant 0 : index
    %c1_45 = arith.constant 1 : index
    %c0_46 = arith.constant 0 : index
    %41 = vector.load %arg1[%c0_43, %c0_44, %c1_45, %c0_46] : memref<1x8x8x128xbf16, #tpu.memory_space<vmem>>, vector<1x8x1x128xbf16>
    %42 = vector.shape_cast %41 : vector<1x8x1x128xbf16> to vector<8x128xbf16>
    %43 = arith.extf %42 : vector<8x128xbf16> to vector<8x128xf32>
    %cst_47 = arith.constant 0.933333337 : f32
    %44 = vector.broadcast %cst_47 : f32 to vector<8x128xf32>
    %45 = arith.mulf %44, %43 : vector<8x128xf32>
    %46 = arith.addf %40, %45 : vector<8x128xf32>
    %c0_48 = arith.constant 0 : index
    %c2 = arith.constant 2 : index
    %c0_49 = arith.constant 0 : index
    %47 = vector.load %arg10[%c0_48, %c2, %c0_49] : memref<8x16x128xf32, #tpu.memory_space<vmem>>, vector<8x1x128xf32>
    %48 = vector.shape_cast %47 : vector<8x1x128xf32> to vector<8x128xf32>
    %49 = vector.shape_cast %46 : vector<8x128xf32> to vector<8x1x128xf32>
    tpu.vector_store %arg10[%c0_48, %c2, %c0_49], %49 {strides = array<i32>} : memref<8x16x128xf32, #tpu.memory_space<vmem>>, vector<8x1x128xf32>,
    %c0_50 = arith.constant 0 : index
    %c0_51 = arith.constant 0 : index
    %c1_52 = arith.constant 1 : index
    %c0_53 = arith.constant 0 : index
    %50 = vector.load %arg1[%c0_50, %c0_51, %c1_52, %c0_53] : memref<1x8x8x128xbf16, #tpu.memory_space<vmem>>, vector<1x8x1x128xbf16>
    %51 = vector.shape_cast %50 : vector<1x8x1x128xbf16> to vector<8x128xbf16>
    %52 = arith.extf %51 : vector<8x128xbf16> to vector<8x128xf32>
    %cst_54 = arith.constant 6.000000e-01 : f32
    %53 = vector.broadcast %cst_54 : f32 to vector<8x128xf32>
    %54 = arith.mulf %53, %52 : vector<8x128xf32>
    %c0_55 = arith.constant 0 : index
    %c0_56 = arith.constant 0 : index
    %c2_57 = arith.constant 2 : index
    %c0_58 = arith.constant 0 : index
    %55 = vector.load %arg1[%c0_55, %c0_56, %c2_57, %c0_58] : memref<1x8x8x128xbf16, #tpu.memory_space<vmem>>, vector<1x8x1x128xbf16>
    %56 = vector.shape_cast %55 : vector<1x8x1x128xbf16> to vector<8x128xbf16>
    %57 = arith.extf %56 : vector<8x128xbf16> to vector<8x128xf32>
    %cst_59 = arith.constant 4.000000e-01 : f32
    %58 = vector.broadcast %cst_59 : f32 to vector<8x128xf32>
    %59 = arith.mulf %58, %57 : vector<8x128xf32>
    %60 = arith.addf %54, %59 : vector<8x128xf32>
    %c0_60 = arith.constant 0 : index
    %c3 = arith.constant 3 : index
    %c0_61 = arith.constant 0 : index
    %61 = vector.load %arg10[%c0_60, %c3, %c0_61] : memref<8x16x128xf32, #tpu.memory_space<vmem>>, vector<8x1x128xf32>
    %62 = vector.shape_cast %61 : vector<8x1x128xf32> to vector<8x128xf32>
    %63 = vector.shape_cast %60 : vector<8x128xf32> to vector<8x1x128xf32>
    tpu.vector_store %arg10[%c0_60, %c3, %c0_61], %63 {strides = array<i32>} : memref<8x16x128xf32, #tpu.memory_space<vmem>>, vector<8x1x128xf32>,
    %c0_62 = arith.constant 0 : index
    %c0_63 = arith.constant 0 : index
    %c1_64 = arith.constant 1 : index
    %c0_65 = arith.constant 0 : index
    %64 = vector.load %arg1[%c0_62, %c0_63, %c1_64, %c0_65] : memref<1x8x8x128xbf16, #tpu.memory_space<vmem>>, vector<1x8x1x128xbf16>
    %65 = vector.shape_cast %64 : vector<1x8x1x128xbf16> to vector<8x128xbf16>
    %66 = arith.extf %65 : vector<8x128xbf16> to vector<8x128xf32>
    %cst_66 = arith.constant 0.13333334 : f32
    %67 = vector.broadcast %cst_66 : f32 to vector<8x128xf32>
    %68 = arith.mulf %67, %66 : vector<8x128xf32>
    %c0_67 = arith.constant 0 : index
    %c0_68 = arith.constant 0 : index
    %c2_69 = arith.constant 2 : index
    %c0_70 = arith.constant 0 : index
    %69 = vector.load %arg1[%c0_67, %c0_68, %c2_69, %c0_70] : memref<1x8x8x128xbf16, #tpu.memory_space<vmem>>, vector<1x8x1x128xbf16>
    %70 = vector.shape_cast %69 : vector<1x8x1x128xbf16> to vector<8x128xbf16>
    %71 = arith.extf %70 : vector<8x128xbf16> to vector<8x128xf32>
    %cst_71 = arith.constant 0.866666674 : f32
    %72 = vector.broadcast %cst_71 : f32 to vector<8x128xf32>
    %73 = arith.mulf %72, %71 : vector<8x128xf32>
    %74 = arith.addf %68, %73 : vector<8x128xf32>
    %c0_72 = arith.constant 0 : index
    %c4 = arith.constant 4 : index
    %c0_73 = arith.constant 0 : index
    %75 = vector.load %arg10[%c0_72, %c4, %c0_73] : memref<8x16x128xf32, #tpu.memory_space<vmem>>, vector<8x1x128xf32>
    %76 = vector.shape_cast %75 : vector<8x1x128xf32> to vector<8x128xf32>
    %77 = vector.shape_cast %74 : vector<8x128xf32> to vector<8x1x128xf32>
    tpu.vector_store %arg10[%c0_72, %c4, %c0_73], %77 {strides = array<i32>} : memref<8x16x128xf32, #tpu.memory_space<vmem>>, vector<8x1x128xf32>,
    %c0_74 = arith.constant 0 : index
    %c0_75 = arith.constant 0 : index
    %c2_76 = arith.constant 2 : index
    %c0_77 = arith.constant 0 : index
    %78 = vector.load %arg1[%c0_74, %c0_75, %c2_76, %c0_77] : memref<1x8x8x128xbf16, #tpu.memory_space<vmem>>, vector<1x8x1x128xbf16>
    %79 = vector.shape_cast %78 : vector<1x8x1x128xbf16> to vector<8x128xbf16>
    %80 = arith.extf %79 : vector<8x128xbf16> to vector<8x128xf32>
    %cst_78 = arith.constant 0.666666686 : f32
    %81 = vector.broadcast %cst_78 : f32 to vector<8x128xf32>
    %82 = arith.mulf %81, %80 : vector<8x128xf32>
    %c0_79 = arith.constant 0 : index
    %c0_80 = arith.constant 0 : index
    %c3_81 = arith.constant 3 : index
    %c0_82 = arith.constant 0 : index
    %83 = vector.load %arg1[%c0_79, %c0_80, %c3_81, %c0_82] : memref<1x8x8x128xbf16, #tpu.memory_space<vmem>>, vector<1x8x1x128xbf16>
    %84 = vector.shape_cast %83 : vector<1x8x1x128xbf16> to vector<8x128xbf16>
    %85 = arith.extf %84 : vector<8x128xbf16> to vector<8x128xf32>
    %cst_83 = arith.constant 0.333333343 : f32
    %86 = vector.broadcast %cst_83 : f32 to vector<8x128xf32>
    %87 = arith.mulf %86, %85 : vector<8x128xf32>
    %88 = arith.addf %82, %87 : vector<8x128xf32>
    %c0_84 = arith.constant 0 : index
    %c5 = arith.constant 5 : index
    %c0_85 = arith.constant 0 : index
    %89 = vector.load %arg10[%c0_84, %c5, %c0_85] : memref<8x16x128xf32, #tpu.memory_space<vmem>>, vector<8x1x128xf32>
    %90 = vector.shape_cast %89 : vector<8x1x128xf32> to vector<8x128xf32>
    %91 = vector.shape_cast %88 : vector<8x128xf32> to vector<8x1x128xf32>
    tpu.vector_store %arg10[%c0_84, %c5, %c0_85], %91 {strides = array<i32>} : memref<8x16x128xf32, #tpu.memory_space<vmem>>, vector<8x1x128xf32>,
    %c0_86 = arith.constant 0 : index
    %c0_87 = arith.constant 0 : index
    %c2_88 = arith.constant 2 : index
    %c0_89 = arith.constant 0 : index
    %92 = vector.load %arg1[%c0_86, %c0_87, %c2_88, %c0_89] : memref<1x8x8x128xbf16, #tpu.memory_space<vmem>>, vector<1x8x1x128xbf16>
    %93 = vector.shape_cast %92 : vector<1x8x1x128xbf16> to vector<8x128xbf16>
    %94 = arith.extf %93 : vector<8x128xbf16> to vector<8x128xf32>
    %cst_90 = arith.constant 2.000000e-01 : f32
    %95 = vector.broadcast %cst_90 : f32 to vector<8x128xf32>
    %96 = arith.mulf %95, %94 : vector<8x128xf32>
    %c0_91 = arith.constant 0 : index
    %c0_92 = arith.constant 0 : index
    %c3_93 = arith.constant 3 : index
    %c0_94 = arith.constant 0 : index
    %97 = vector.load %arg1[%c0_91, %c0_92, %c3_93, %c0_94] : memref<1x8x8x128xbf16, #tpu.memory_space<vmem>>, vector<1x8x1x128xbf16>
    %98 = vector.shape_cast %97 : vector<1x8x1x128xbf16> to vector<8x128xbf16>
    %99 = arith.extf %98 : vector<8x128xbf16> to vector<8x128xf32>
    %cst_95 = arith.constant 8.000000e-01 : f32
    %100 = vector.broadcast %cst_95 : f32 to vector<8x128xf32>
    %101 = arith.mulf %100, %99 : vector<8x128xf32>
    %102 = arith.addf %96, %101 : vector<8x128xf32>
    %c0_96 = arith.constant 0 : index
    %c6 = arith.constant 6 : index
    %c0_97 = arith.constant 0 : index
    %103 = vector.load %arg10[%c0_96, %c6, %c0_97] : memref<8x16x128xf32, #tpu.memory_space<vmem>>, vector<8x1x128xf32>
    %104 = vector.shape_cast %103 : vector<8x1x128xf32> to vector<8x128xf32>
    %105 = vector.shape_cast %102 : vector<8x128xf32> to vector<8x1x128xf32>
    tpu.vector_store %arg10[%c0_96, %c6, %c0_97], %105 {strides = array<i32>} : memref<8x16x128xf32, #tpu.memory_space<vmem>>, vector<8x1x128xf32>,
    %c0_98 = arith.constant 0 : index
    %c0_99 = arith.constant 0 : index
    %c3_100 = arith.constant 3 : index
    %c0_101 = arith.constant 0 : index
    %106 = vector.load %arg1[%c0_98, %c0_99, %c3_100, %c0_101] : memref<1x8x8x128xbf16, #tpu.memory_space<vmem>>, vector<1x8x1x128xbf16>
    %107 = vector.shape_cast %106 : vector<1x8x1x128xbf16> to vector<8x128xbf16>
    %108 = arith.extf %107 : vector<8x128xbf16> to vector<8x128xf32>
    %cst_102 = arith.constant 0.733333349 : f32
    %109 = vector.broadcast %cst_102 : f32 to vector<8x128xf32>
    %110 = arith.mulf %109, %108 : vector<8x128xf32>
    %c0_103 = arith.constant 0 : index
    %c0_104 = arith.constant 0 : index
    %c4_105 = arith.constant 4 : index
    %c0_106 = arith.constant 0 : index
    %111 = vector.load %arg1[%c0_103, %c0_104, %c4_105, %c0_106] : memref<1x8x8x128xbf16, #tpu.memory_space<vmem>>, vector<1x8x1x128xbf16>
    %112 = vector.shape_cast %111 : vector<1x8x1x128xbf16> to vector<8x128xbf16>
    %113 = arith.extf %112 : vector<8x128xbf16> to vector<8x128xf32>
    %cst_107 = arith.constant 0.266666681 : f32
    %114 = vector.broadcast %cst_107 : f32 to vector<8x128xf32>
    %115 = arith.mulf %114, %113 : vector<8x128xf32>
    %116 = arith.addf %110, %115 : vector<8x128xf32>
    %c0_108 = arith.constant 0 : index
    %c7 = arith.constant 7 : index
    %c0_109 = arith.constant 0 : index
    %117 = vector.load %arg10[%c0_108, %c7, %c0_109] : memref<8x16x128xf32, #tpu.memory_space<vmem>>, vector<8x1x128xf32>
    %118 = vector.shape_cast %117 : vector<8x1x128xf32> to vector<8x128xf32>
    %119 = vector.shape_cast %116 : vector<8x128xf32> to vector<8x1x128xf32>
    tpu.vector_store %arg10[%c0_108, %c7, %c0_109], %119 {strides = array<i32>} : memref<8x16x128xf32, #tpu.memory_space<vmem>>, vector<8x1x128xf32>,
    %c0_110 = arith.constant 0 : index
    %c0_111 = arith.constant 0 : index
    %c3_112 = arith.constant 3 : index
    %c0_113 = arith.constant 0 : index
    %120 = vector.load %arg1[%c0_110, %c0_111, %c3_112, %c0_113] : memref<1x8x8x128xbf16, #tpu.memory_space<vmem>>, vector<1x8x1x128xbf16>
    %121 = vector.shape_cast %120 : vector<1x8x1x128xbf16> to vector<8x128xbf16>
    %122 = arith.extf %121 : vector<8x128xbf16> to vector<8x128xf32>
    %cst_114 = arith.constant 0.266666681 : f32
    %123 = vector.broadcast %cst_114 : f32 to vector<8x128xf32>
    %124 = arith.mulf %123, %122 : vector<8x128xf32>
    %c0_115 = arith.constant 0 : index
    %c0_116 = arith.constant 0 : index
    %c4_117 = arith.constant 4 : index
    %c0_118 = arith.constant 0 : index
    %125 = vector.load %arg1[%c0_115, %c0_116, %c4_117, %c0_118] : memref<1x8x8x128xbf16, #tpu.memory_space<vmem>>, vector<1x8x1x128xbf16>
    %126 = vector.shape_cast %125 : vector<1x8x1x128xbf16> to vector<8x128xbf16>
    %127 = arith.extf %126 : vector<8x128xbf16> to vector<8x128xf32>
    %cst_119 = arith.constant 0.733333349 : f32
    %128 = vector.broadcast %cst_119 : f32 to vector<8x128xf32>
    %129 = arith.mulf %128, %127 : vector<8x128xf32>
    %130 = arith.addf %124, %129 : vector<8x128xf32>
    %c0_120 = arith.constant 0 : index
    %c8 = arith.constant 8 : index
    %c0_121 = arith.constant 0 : index
    %131 = vector.load %arg10[%c0_120, %c8, %c0_121] : memref<8x16x128xf32, #tpu.memory_space<vmem>>, vector<8x1x128xf32>
    %132 = vector.shape_cast %131 : vector<8x1x128xf32> to vector<8x128xf32>
    %133 = vector.shape_cast %130 : vector<8x128xf32> to vector<8x1x128xf32>
    tpu.vector_store %arg10[%c0_120, %c8, %c0_121], %133 {strides = array<i32>} : memref<8x16x128xf32, #tpu.memory_space<vmem>>, vector<8x1x128xf32>,
    %c0_122 = arith.constant 0 : index
    %c0_123 = arith.constant 0 : index
    %c4_124 = arith.constant 4 : index
    %c0_125 = arith.constant 0 : index
    %134 = vector.load %arg1[%c0_122, %c0_123, %c4_124, %c0_125] : memref<1x8x8x128xbf16, #tpu.memory_space<vmem>>, vector<1x8x1x128xbf16>
    %135 = vector.shape_cast %134 : vector<1x8x1x128xbf16> to vector<8x128xbf16>
    %136 = arith.extf %135 : vector<8x128xbf16> to vector<8x128xf32>
    %cst_126 = arith.constant 8.000000e-01 : f32
    %137 = vector.broadcast %cst_126 : f32 to vector<8x128xf32>
    %138 = arith.mulf %137, %136 : vector<8x128xf32>
    %c0_127 = arith.constant 0 : index
    %c0_128 = arith.constant 0 : index
    %c5_129 = arith.constant 5 : index
    %c0_130 = arith.constant 0 : index
    %139 = vector.load %arg1[%c0_127, %c0_128, %c5_129, %c0_130] : memref<1x8x8x128xbf16, #tpu.memory_space<vmem>>, vector<1x8x1x128xbf16>
    %140 = vector.shape_cast %139 : vector<1x8x1x128xbf16> to vector<8x128xbf16>
    %141 = arith.extf %140 : vector<8x128xbf16> to vector<8x128xf32>
    %cst_131 = arith.constant 2.000000e-01 : f32
    %142 = vector.broadcast %cst_131 : f32 to vector<8x128xf32>
    %143 = arith.mulf %142, %141 : vector<8x128xf32>
    %144 = arith.addf %138, %143 : vector<8x128xf32>
    %c0_132 = arith.constant 0 : index
    %c9 = arith.constant 9 : index
    %c0_133 = arith.constant 0 : index
    %145 = vector.load %arg10[%c0_132, %c9, %c0_133] : memref<8x16x128xf32, #tpu.memory_space<vmem>>, vector<8x1x128xf32>
    %146 = vector.shape_cast %145 : vector<8x1x128xf32> to vector<8x128xf32>
    %147 = vector.shape_cast %144 : vector<8x128xf32> to vector<8x1x128xf32>
    tpu.vector_store %arg10[%c0_132, %c9, %c0_133], %147 {strides = array<i32>} : memref<8x16x128xf32, #tpu.memory_space<vmem>>, vector<8x1x128xf32>,
    %c0_134 = arith.constant 0 : index
    %c0_135 = arith.constant 0 : index
    %c4_136 = arith.constant 4 : index
    %c0_137 = arith.constant 0 : index
    %148 = vector.load %arg1[%c0_134, %c0_135, %c4_136, %c0_137] : memref<1x8x8x128xbf16, #tpu.memory_space<vmem>>, vector<1x8x1x128xbf16>
    %149 = vector.shape_cast %148 : vector<1x8x1x128xbf16> to vector<8x128xbf16>
    %150 = arith.extf %149 : vector<8x128xbf16> to vector<8x128xf32>
    %cst_138 = arith.constant 0.333333343 : f32
    %151 = vector.broadcast %cst_138 : f32 to vector<8x128xf32>
    %152 = arith.mulf %151, %150 : vector<8x128xf32>
    %c0_139 = arith.constant 0 : index
    %c0_140 = arith.constant 0 : index
    %c5_141 = arith.constant 5 : index
    %c0_142 = arith.constant 0 : index
    %153 = vector.load %arg1[%c0_139, %c0_140, %c5_141, %c0_142] : memref<1x8x8x128xbf16, #tpu.memory_space<vmem>>, vector<1x8x1x128xbf16>
    %154 = vector.shape_cast %153 : vector<1x8x1x128xbf16> to vector<8x128xbf16>
    %155 = arith.extf %154 : vector<8x128xbf16> to vector<8x128xf32>
    %cst_143 = arith.constant 0.666666686 : f32
    %156 = vector.broadcast %cst_143 : f32 to vector<8x128xf32>
    %157 = arith.mulf %156, %155 : vector<8x128xf32>
    %158 = arith.addf %152, %157 : vector<8x128xf32>
    %c0_144 = arith.constant 0 : index
    %c10 = arith.constant 10 : index
    %c0_145 = arith.constant 0 : index
    %159 = vector.load %arg10[%c0_144, %c10, %c0_145] : memref<8x16x128xf32, #tpu.memory_space<vmem>>, vector<8x1x128xf32>
    %160 = vector.shape_cast %159 : vector<8x1x128xf32> to vector<8x128xf32>
    %161 = vector.shape_cast %158 : vector<8x128xf32> to vector<8x1x128xf32>
    tpu.vector_store %arg10[%c0_144, %c10, %c0_145], %161 {strides = array<i32>} : memref<8x16x128xf32, #tpu.memory_space<vmem>>, vector<8x1x128xf32>,
    %c0_146 = arith.constant 0 : index
    %c0_147 = arith.constant 0 : index
    %c5_148 = arith.constant 5 : index
    %c0_149 = arith.constant 0 : index
    %162 = vector.load %arg1[%c0_146, %c0_147, %c5_148, %c0_149] : memref<1x8x8x128xbf16, #tpu.memory_space<vmem>>, vector<1x8x1x128xbf16>
    %163 = vector.shape_cast %162 : vector<1x8x1x128xbf16> to vector<8x128xbf16>
    %164 = arith.extf %163 : vector<8x128xbf16> to vector<8x128xf32>
    %cst_150 = arith.constant 0.866666674 : f32
    %165 = vector.broadcast %cst_150 : f32 to vector<8x128xf32>
    %166 = arith.mulf %165, %164 : vector<8x128xf32>
    %c0_151 = arith.constant 0 : index
    %c0_152 = arith.constant 0 : index
    %c6_153 = arith.constant 6 : index
    %c0_154 = arith.constant 0 : index
    %167 = vector.load %arg1[%c0_151, %c0_152, %c6_153, %c0_154] : memref<1x8x8x128xbf16, #tpu.memory_space<vmem>>, vector<1x8x1x128xbf16>
    %168 = vector.shape_cast %167 : vector<1x8x1x128xbf16> to vector<8x128xbf16>
    %169 = arith.extf %168 : vector<8x128xbf16> to vector<8x128xf32>
    %cst_155 = arith.constant 0.13333334 : f32
    %170 = vector.broadcast %cst_155 : f32 to vector<8x128xf32>
    %171 = arith.mulf %170, %169 : vector<8x128xf32>
    %172 = arith.addf %166, %171 : vector<8x128xf32>
    %c0_156 = arith.constant 0 : index
    %c11 = arith.constant 11 : index
    %c0_157 = arith.constant 0 : index
    %173 = vector.load %arg10[%c0_156, %c11, %c0_157] : memref<8x16x128xf32, #tpu.memory_space<vmem>>, vector<8x1x128xf32>
    %174 = vector.shape_cast %173 : vector<8x1x128xf32> to vector<8x128xf32>
    %175 = vector.shape_cast %172 : vector<8x128xf32> to vector<8x1x128xf32>
    tpu.vector_store %arg10[%c0_156, %c11, %c0_157], %175 {strides = array<i32>} : memref<8x16x128xf32, #tpu.memory_space<vmem>>, vector<8x1x128xf32>,
    %c0_158 = arith.constant 0 : index
    %c0_159 = arith.constant 0 : index
    %c5_160 = arith.constant 5 : index
    %c0_161 = arith.constant 0 : index
    %176 = vector.load %arg1[%c0_158, %c0_159, %c5_160, %c0_161] : memref<1x8x8x128xbf16, #tpu.memory_space<vmem>>, vector<1x8x1x128xbf16>
    %177 = vector.shape_cast %176 : vector<1x8x1x128xbf16> to vector<8x128xbf16>
    %178 = arith.extf %177 : vector<8x128xbf16> to vector<8x128xf32>
    %cst_162 = arith.constant 4.000000e-01 : f32
    %179 = vector.broadcast %cst_162 : f32 to vector<8x128xf32>
    %180 = arith.mulf %179, %178 : vector<8x128xf32>
    %c0_163 = arith.constant 0 : index
    %c0_164 = arith.constant 0 : index
    %c6_165 = arith.constant 6 : index
    %c0_166 = arith.constant 0 : index
    %181 = vector.load %arg1[%c0_163, %c0_164, %c6_165, %c0_166] : memref<1x8x8x128xbf16, #tpu.memory_space<vmem>>, vector<1x8x1x128xbf16>
    %182 = vector.shape_cast %181 : vector<1x8x1x128xbf16> to vector<8x128xbf16>
    %183 = arith.extf %182 : vector<8x128xbf16> to vector<8x128xf32>
    %cst_167 = arith.constant 6.000000e-01 : f32
    %184 = vector.broadcast %cst_167 : f32 to vector<8x128xf32>
    %185 = arith.mulf %184, %183 : vector<8x128xf32>
    %186 = arith.addf %180, %185 : vector<8x128xf32>
    %c0_168 = arith.constant 0 : index
    %c12 = arith.constant 12 : index
    %c0_169 = arith.constant 0 : index
    %187 = vector.load %arg10[%c0_168, %c12, %c0_169] : memref<8x16x128xf32, #tpu.memory_space<vmem>>, vector<8x1x128xf32>
    %188 = vector.shape_cast %187 : vector<8x1x128xf32> to vector<8x128xf32>
    %189 = vector.shape_cast %186 : vector<8x128xf32> to vector<8x1x128xf32>
    tpu.vector_store %arg10[%c0_168, %c12, %c0_169], %189 {strides = array<i32>} : memref<8x16x128xf32, #tpu.memory_space<vmem>>, vector<8x1x128xf32>,
    %c0_170 = arith.constant 0 : index
    %c0_171 = arith.constant 0 : index
    %c6_172 = arith.constant 6 : index
    %c0_173 = arith.constant 0 : index
    %190 = vector.load %arg1[%c0_170, %c0_171, %c6_172, %c0_173] : memref<1x8x8x128xbf16, #tpu.memory_space<vmem>>, vector<1x8x1x128xbf16>
    %191 = vector.shape_cast %190 : vector<1x8x1x128xbf16> to vector<8x128xbf16>
    %192 = arith.extf %191 : vector<8x128xbf16> to vector<8x128xf32>
    %cst_174 = arith.constant 0.933333337 : f32
    %193 = vector.broadcast %cst_174 : f32 to vector<8x128xf32>
    %194 = arith.mulf %193, %192 : vector<8x128xf32>
    %c0_175 = arith.constant 0 : index
    %c0_176 = arith.constant 0 : index
    %c7_177 = arith.constant 7 : index
    %c0_178 = arith.constant 0 : index
    %195 = vector.load %arg1[%c0_175, %c0_176, %c7_177, %c0_178] : memref<1x8x8x128xbf16, #tpu.memory_space<vmem>>, vector<1x8x1x128xbf16>
    %196 = vector.shape_cast %195 : vector<1x8x1x128xbf16> to vector<8x128xbf16>
    %197 = arith.extf %196 : vector<8x128xbf16> to vector<8x128xf32>
    %cst_179 = arith.constant 0.0666666701 : f32
    %198 = vector.broadcast %cst_179 : f32 to vector<8x128xf32>
    %199 = arith.mulf %198, %197 : vector<8x128xf32>
    %200 = arith.addf %194, %199 : vector<8x128xf32>
    %c0_180 = arith.constant 0 : index
    %c13 = arith.constant 13 : index
    %c0_181 = arith.constant 0 : index
    %201 = vector.load %arg10[%c0_180, %c13, %c0_181] : memref<8x16x128xf32, #tpu.memory_space<vmem>>, vector<8x1x128xf32>
    %202 = vector.shape_cast %201 : vector<8x1x128xf32> to vector<8x128xf32>
    %203 = vector.shape_cast %200 : vector<8x128xf32> to vector<8x1x128xf32>
    tpu.vector_store %arg10[%c0_180, %c13, %c0_181], %203 {strides = array<i32>} : memref<8x16x128xf32, #tpu.memory_space<vmem>>, vector<8x1x128xf32>,
    %c0_182 = arith.constant 0 : index
    %c0_183 = arith.constant 0 : index
    %c6_184 = arith.constant 6 : index
    %c0_185 = arith.constant 0 : index
    %204 = vector.load %arg1[%c0_182, %c0_183, %c6_184, %c0_185] : memref<1x8x8x128xbf16, #tpu.memory_space<vmem>>, vector<1x8x1x128xbf16>
    %205 = vector.shape_cast %204 : vector<1x8x1x128xbf16> to vector<8x128xbf16>
    %206 = arith.extf %205 : vector<8x128xbf16> to vector<8x128xf32>
    %cst_186 = arith.constant 0.466666669 : f32
    %207 = vector.broadcast %cst_186 : f32 to vector<8x128xf32>
    %208 = arith.mulf %207, %206 : vector<8x128xf32>
    %c0_187 = arith.constant 0 : index
    %c0_188 = arith.constant 0 : index
    %c7_189 = arith.constant 7 : index
    %c0_190 = arith.constant 0 : index
    %209 = vector.load %arg1[%c0_187, %c0_188, %c7_189, %c0_190] : memref<1x8x8x128xbf16, #tpu.memory_space<vmem>>, vector<1x8x1x128xbf16>
    %210 = vector.shape_cast %209 : vector<1x8x1x128xbf16> to vector<8x128xbf16>
    %211 = arith.extf %210 : vector<8x128xbf16> to vector<8x128xf32>
    %cst_191 = arith.constant 0.533333361 : f32
    %212 = vector.broadcast %cst_191 : f32 to vector<8x128xf32>
    %213 = arith.mulf %212, %211 : vector<8x128xf32>
    %214 = arith.addf %208, %213 : vector<8x128xf32>
    %c0_192 = arith.constant 0 : index
    %c14 = arith.constant 14 : index
    %c0_193 = arith.constant 0 : index
    %215 = vector.load %arg10[%c0_192, %c14, %c0_193] : memref<8x16x128xf32, #tpu.memory_space<vmem>>, vector<8x1x128xf32>
    %216 = vector.shape_cast %215 : vector<8x1x128xf32> to vector<8x128xf32>
    %217 = vector.shape_cast %214 : vector<8x128xf32> to vector<8x1x128xf32>
    tpu.vector_store %arg10[%c0_192, %c14, %c0_193], %217 {strides = array<i32>} : memref<8x16x128xf32, #tpu.memory_space<vmem>>, vector<8x1x128xf32>,
    %c0_194 = arith.constant 0 : index
    %c0_195 = arith.constant 0 : index
    %c6_196 = arith.constant 6 : index
    %c0_197 = arith.constant 0 : index
    %218 = vector.load %arg1[%c0_194, %c0_195, %c6_196, %c0_197] : memref<1x8x8x128xbf16, #tpu.memory_space<vmem>>, vector<1x8x1x128xbf16>
    %219 = vector.shape_cast %218 : vector<1x8x1x128xbf16> to vector<8x128xbf16>
    %220 = arith.extf %219 : vector<8x128xbf16> to vector<8x128xf32>
    %cst_198 = arith.constant 0.000000e+00 : f32
    %221 = vector.broadcast %cst_198 : f32 to vector<8x128xf32>
    %222 = arith.mulf %221, %220 : vector<8x128xf32>
    %c0_199 = arith.constant 0 : index
    %c0_200 = arith.constant 0 : index
    %c7_201 = arith.constant 7 : index
    %c0_202 = arith.constant 0 : index
    %223 = vector.load %arg1[%c0_199, %c0_200, %c7_201, %c0_202] : memref<1x8x8x128xbf16, #tpu.memory_space<vmem>>, vector<1x8x1x128xbf16>
    %224 = vector.shape_cast %223 : vector<1x8x1x128xbf16> to vector<8x128xbf16>
    %225 = arith.extf %224 : vector<8x128xbf16> to vector<8x128xf32>
    %cst_203 = arith.constant 1.000000e+00 : f32
    %226 = vector.broadcast %cst_203 : f32 to vector<8x128xf32>
    %227 = arith.mulf %226, %225 : vector<8x128xf32>
    %228 = arith.addf %222, %227 : vector<8x128xf32>
    %c0_204 = arith.constant 0 : index
    %c15 = arith.constant 15 : index
    %c0_205 = arith.constant 0 : index
    %229 = vector.load %arg10[%c0_204, %c15, %c0_205] : memref<8x16x128xf32, #tpu.memory_space<vmem>>, vector<8x1x128xf32>
    %230 = vector.shape_cast %229 : vector<8x1x128xf32> to vector<8x128xf32>
    %231 = vector.shape_cast %228 : vector<8x128xf32> to vector<8x1x128xf32>
    tpu.vector_store %arg10[%c0_204, %c15, %c0_205], %231 {strides = array<i32>} : memref<8x16x128xf32, #tpu.memory_space<vmem>>, vector<8x1x128xf32>,
    %c0_206 = arith.constant 0 : index
    %c0_207 = arith.constant 0 : index
    %c0_208 = arith.constant 0 : index
    %232 = vector.load %arg10[%c0_206, %c0_207, %c0_208] : memref<8x16x128xf32, #tpu.memory_space<vmem>>, vector<1x16x128xf32>
    %233 = vector.shape_cast %232 : vector<1x16x128xf32> to vector<16x128xf32>
    %cst_209 = arith.constant 1.000000e+00 : f32
    %234 = vector.broadcast %cst_209 : f32 to vector<16x128xf32>
    %235 = arith.mulf %234, %233 : vector<16x128xf32>
    %c1_210 = arith.constant 1 : index
    %c0_211 = arith.constant 0 : index
    %c0_212 = arith.constant 0 : index
    %236 = vector.load %arg10[%c1_210, %c0_211, %c0_212] : memref<8x16x128xf32, #tpu.memory_space<vmem>>, vector<1x16x128xf32>
    %237 = vector.shape_cast %236 : vector<1x16x128xf32> to vector<16x128xf32>
    %cst_213 = arith.constant 0.000000e+00 : f32
    %238 = vector.broadcast %cst_213 : f32 to vector<16x128xf32>
    %239 = arith.mulf %238, %237 : vector<16x128xf32>
    %240 = arith.addf %235, %239 : vector<16x128xf32>
    %c0_214 = arith.constant 0 : index
    %c0_215 = arith.constant 0 : index
    %c0_216 = arith.constant 0 : index
    %241 = vector.load %arg11[%c0_214, %c0_215, %c0_216] : memref<18x24x256xf32, #tpu.memory_space<vmem>>, vector<1x16x128xf32>
    %242 = vector.shape_cast %241 : vector<1x16x128xf32> to vector<16x128xf32>
    %243 = vector.shape_cast %240 : vector<16x128xf32> to vector<1x16x128xf32>
    tpu.vector_store %arg11[%c0_214, %c0_215, %c0_216], %243 {strides = array<i32>} : memref<18x24x256xf32, #tpu.memory_space<vmem>>, vector<1x16x128xf32>,
    %c0_217 = arith.constant 0 : index
    %c0_218 = arith.constant 0 : index
    %c0_219 = arith.constant 0 : index
    %244 = vector.load %arg10[%c0_217, %c0_218, %c0_219] : memref<8x16x128xf32, #tpu.memory_space<vmem>>, vector<1x16x128xf32>
    %245 = vector.shape_cast %244 : vector<1x16x128xf32> to vector<16x128xf32>
    %cst_220 = arith.constant 0.533333361 : f32
    %246 = vector.broadcast %cst_220 : f32 to vector<16x128xf32>
    %247 = arith.mulf %246, %245 : vector<16x128xf32>
    %c1_221 = arith.constant 1 : index
    %c0_222 = arith.constant 0 : index
    %c0_223 = arith.constant 0 : index
    %248 = vector.load %arg10[%c1_221, %c0_222, %c0_223] : memref<8x16x128xf32, #tpu.memory_space<vmem>>, vector<1x16x128xf32>
    %249 = vector.shape_cast %248 : vector<1x16x128xf32> to vector<16x128xf32>
    %cst_224 = arith.constant 0.466666669 : f32
    %250 = vector.broadcast %cst_224 : f32 to vector<16x128xf32>
    %251 = arith.mulf %250, %249 : vector<16x128xf32>
    %252 = arith.addf %247, %251 : vector<16x128xf32>
    %c1_225 = arith.constant 1 : index
    %c0_226 = arith.constant 0 : index
    %c0_227 = arith.constant 0 : index
    %253 = vector.load %arg11[%c1_225, %c0_226, %c0_227] : memref<18x24x256xf32, #tpu.memory_space<vmem>>, vector<1x16x128xf32>
    %254 = vector.shape_cast %253 : vector<1x16x128xf32> to vector<16x128xf32>
    %255 = vector.shape_cast %252 : vector<16x128xf32> to vector<1x16x128xf32>
    tpu.vector_store %arg11[%c1_225, %c0_226, %c0_227], %255 {strides = array<i32>} : memref<18x24x256xf32, #tpu.memory_space<vmem>>, vector<1x16x128xf32>,
    %c0_228 = arith.constant 0 : index
    %c0_229 = arith.constant 0 : index
    %c0_230 = arith.constant 0 : index
    %256 = vector.load %arg10[%c0_228, %c0_229, %c0_230] : memref<8x16x128xf32, #tpu.memory_space<vmem>>, vector<1x16x128xf32>
    %257 = vector.shape_cast %256 : vector<1x16x128xf32> to vector<16x128xf32>
    %cst_231 = arith.constant 0.0666666701 : f32
    %258 = vector.broadcast %cst_231 : f32 to vector<16x128xf32>
    %259 = arith.mulf %258, %257 : vector<16x128xf32>
    %c1_232 = arith.constant 1 : index
    %c0_233 = arith.constant 0 : index
    %c0_234 = arith.constant 0 : index
    %260 = vector.load %arg10[%c1_232, %c0_233, %c0_234] : memref<8x16x128xf32, #tpu.memory_space<vmem>>, vector<1x16x128xf32>
    %261 = vector.shape_cast %260 : vector<1x16x128xf32> to vector<16x128xf32>
    %cst_235 = arith.constant 0.933333337 : f32
    %262 = vector.broadcast %cst_235 : f32 to vector<16x128xf32>
    %263 = arith.mulf %262, %261 : vector<16x128xf32>
    %264 = arith.addf %259, %263 : vector<16x128xf32>
    %c2_236 = arith.constant 2 : index
    %c0_237 = arith.constant 0 : index
    %c0_238 = arith.constant 0 : index
    %265 = vector.load %arg11[%c2_236, %c0_237, %c0_238] : memref<18x24x256xf32, #tpu.memory_space<vmem>>, vector<1x16x128xf32>
    %266 = vector.shape_cast %265 : vector<1x16x128xf32> to vector<16x128xf32>
    %267 = vector.shape_cast %264 : vector<16x128xf32> to vector<1x16x128xf32>
    tpu.vector_store %arg11[%c2_236, %c0_237, %c0_238], %267 {strides = array<i32>} : memref<18x24x256xf32, #tpu.memory_space<vmem>>, vector<1x16x128xf32>,
    %c1_239 = arith.constant 1 : index
    %c0_240 = arith.constant 0 : index
    %c0_241 = arith.constant 0 : index
    %268 = vector.load %arg10[%c1_239, %c0_240, %c0_241] : memref<8x16x128xf32, #tpu.memory_space<vmem>>, vector<1x16x128xf32>
    %269 = vector.shape_cast %268 : vector<1x16x128xf32> to vector<16x128xf32>
    %cst_242 = arith.constant 6.000000e-01 : f32
    %270 = vector.broadcast %cst_242 : f32 to vector<16x128xf32>
    %271 = arith.mulf %270, %269 : vector<16x128xf32>
    %c2_243 = arith.constant 2 : index
    %c0_244 = arith.constant 0 : index
    %c0_245 = arith.constant 0 : index
    %272 = vector.load %arg10[%c2_243, %c0_244, %c0_245] : memref<8x16x128xf32, #tpu.memory_space<vmem>>, vector<1x16x128xf32>
    %273 = vector.shape_cast %272 : vector<1x16x128xf32> to vector<16x128xf32>
    %cst_246 = arith.constant 4.000000e-01 : f32
    %274 = vector.broadcast %cst_246 : f32 to vector<16x128xf32>
    %275 = arith.mulf %274, %273 : vector<16x128xf32>
    %276 = arith.addf %271, %275 : vector<16x128xf32>
    %c3_247 = arith.constant 3 : index
    %c0_248 = arith.constant 0 : index
    %c0_249 = arith.constant 0 : index
    %277 = vector.load %arg11[%c3_247, %c0_248, %c0_249] : memref<18x24x256xf32, #tpu.memory_space<vmem>>, vector<1x16x128xf32>
    %278 = vector.shape_cast %277 : vector<1x16x128xf32> to vector<16x128xf32>
    %279 = vector.shape_cast %276 : vector<16x128xf32> to vector<1x16x128xf32>
    tpu.vector_store %arg11[%c3_247, %c0_248, %c0_249], %279 {strides = array<i32>} : memref<18x24x256xf32, #tpu.memory_space<vmem>>, vector<1x16x128xf32>,
    %c1_250 = arith.constant 1 : index
    %c0_251 = arith.constant 0 : index
    %c0_252 = arith.constant 0 : index
    %280 = vector.load %arg10[%c1_250, %c0_251, %c0_252] : memref<8x16x128xf32, #tpu.memory_space<vmem>>, vector<1x16x128xf32>
    %281 = vector.shape_cast %280 : vector<1x16x128xf32> to vector<16x128xf32>
    %cst_253 = arith.constant 0.13333334 : f32
    %282 = vector.broadcast %cst_253 : f32 to vector<16x128xf32>
    %283 = arith.mulf %282, %281 : vector<16x128xf32>
    %c2_254 = arith.constant 2 : index
    %c0_255 = arith.constant 0 : index
    %c0_256 = arith.constant 0 : index
    %284 = vector.load %arg10[%c2_254, %c0_255, %c0_256] : memref<8x16x128xf32, #tpu.memory_space<vmem>>, vector<1x16x128xf32>
    %285 = vector.shape_cast %284 : vector<1x16x128xf32> to vector<16x128xf32>
    %cst_257 = arith.constant 0.866666674 : f32
    %286 = vector.broadcast %cst_257 : f32 to vector<16x128xf32>
    %287 = arith.mulf %286, %285 : vector<16x128xf32>
    %288 = arith.addf %283, %287 : vector<16x128xf32>
    %c4_258 = arith.constant 4 : index
    %c0_259 = arith.constant 0 : index
    %c0_260 = arith.constant 0 : index
    %289 = vector.load %arg11[%c4_258, %c0_259, %c0_260] : memref<18x24x256xf32, #tpu.memory_space<vmem>>, vector<1x16x128xf32>
    %290 = vector.shape_cast %289 : vector<1x16x128xf32> to vector<16x128xf32>
    %291 = vector.shape_cast %288 : vector<16x128xf32> to vector<1x16x128xf32>
    tpu.vector_store %arg11[%c4_258, %c0_259, %c0_260], %291 {strides = array<i32>} : memref<18x24x256xf32, #tpu.memory_space<vmem>>, vector<1x16x128xf32>,
    %c2_261 = arith.constant 2 : index
    %c0_262 = arith.constant 0 : index
    %c0_263 = arith.constant 0 : index
    %292 = vector.load %arg10[%c2_261, %c0_262, %c0_263] : memref<8x16x128xf32, #tpu.memory_space<vmem>>, vector<1x16x128xf32>
    %293 = vector.shape_cast %292 : vector<1x16x128xf32> to vector<16x128xf32>
    %cst_264 = arith.constant 0.666666686 : f32
    %294 = vector.broadcast %cst_264 : f32 to vector<16x128xf32>
    %295 = arith.mulf %294, %293 : vector<16x128xf32>
    %c3_265 = arith.constant 3 : index
    %c0_266 = arith.constant 0 : index
    %c0_267 = arith.constant 0 : index
    %296 = vector.load %arg10[%c3_265, %c0_266, %c0_267] : memref<8x16x128xf32, #tpu.memory_space<vmem>>, vector<1x16x128xf32>
    %297 = vector.shape_cast %296 : vector<1x16x128xf32> to vector<16x128xf32>
    %cst_268 = arith.constant 0.333333343 : f32
    %298 = vector.broadcast %cst_268 : f32 to vector<16x128xf32>
    %299 = arith.mulf %298, %297 : vector<16x128xf32>
    %300 = arith.addf %295, %299 : vector<16x128xf32>
    %c5_269 = arith.constant 5 : index
    %c0_270 = arith.constant 0 : index
    %c0_271 = arith.constant 0 : index
    %301 = vector.load %arg11[%c5_269, %c0_270, %c0_271] : memref<18x24x256xf32, #tpu.memory_space<vmem>>, vector<1x16x128xf32>
    %302 = vector.shape_cast %301 : vector<1x16x128xf32> to vector<16x128xf32>
    %303 = vector.shape_cast %300 : vector<16x128xf32> to vector<1x16x128xf32>
    tpu.vector_store %arg11[%c5_269, %c0_270, %c0_271], %303 {strides = array<i32>} : memref<18x24x256xf32, #tpu.memory_space<vmem>>, vector<1x16x128xf32>,
    %c2_272 = arith.constant 2 : index
    %c0_273 = arith.constant 0 : index
    %c0_274 = arith.constant 0 : index
    %304 = vector.load %arg10[%c2_272, %c0_273, %c0_274] : memref<8x16x128xf32, #tpu.memory_space<vmem>>, vector<1x16x128xf32>
    %305 = vector.shape_cast %304 : vector<1x16x128xf32> to vector<16x128xf32>
    %cst_275 = arith.constant 2.000000e-01 : f32
    %306 = vector.broadcast %cst_275 : f32 to vector<16x128xf32>
    %307 = arith.mulf %306, %305 : vector<16x128xf32>
    %c3_276 = arith.constant 3 : index
    %c0_277 = arith.constant 0 : index
    %c0_278 = arith.constant 0 : index
    %308 = vector.load %arg10[%c3_276, %c0_277, %c0_278] : memref<8x16x128xf32, #tpu.memory_space<vmem>>, vector<1x16x128xf32>
    %309 = vector.shape_cast %308 : vector<1x16x128xf32> to vector<16x128xf32>
    %cst_279 = arith.constant 8.000000e-01 : f32
    %310 = vector.broadcast %cst_279 : f32 to vector<16x128xf32>
    %311 = arith.mulf %310, %309 : vector<16x128xf32>
    %312 = arith.addf %307, %311 : vector<16x128xf32>
    %c6_280 = arith.constant 6 : index
    %c0_281 = arith.constant 0 : index
    %c0_282 = arith.constant 0 : index
    %313 = vector.load %arg11[%c6_280, %c0_281, %c0_282] : memref<18x24x256xf32, #tpu.memory_space<vmem>>, vector<1x16x128xf32>
    %314 = vector.shape_cast %313 : vector<1x16x128xf32> to vector<16x128xf32>
    %315 = vector.shape_cast %312 : vector<16x128xf32> to vector<1x16x128xf32>
    tpu.vector_store %arg11[%c6_280, %c0_281, %c0_282], %315 {strides = array<i32>} : memref<18x24x256xf32, #tpu.memory_space<vmem>>, vector<1x16x128xf32>,
    %c3_283 = arith.constant 3 : index
    %c0_284 = arith.constant 0 : index
    %c0_285 = arith.constant 0 : index
    %316 = vector.load %arg10[%c3_283, %c0_284, %c0_285] : memref<8x16x128xf32, #tpu.memory_space<vmem>>, vector<1x16x128xf32>
    %317 = vector.shape_cast %316 : vector<1x16x128xf32> to vector<16x128xf32>
    %cst_286 = arith.constant 0.733333349 : f32
    %318 = vector.broadcast %cst_286 : f32 to vector<16x128xf32>
    %319 = arith.mulf %318, %317 : vector<16x128xf32>
    %c4_287 = arith.constant 4 : index
    %c0_288 = arith.constant 0 : index
    %c0_289 = arith.constant 0 : index
    %320 = vector.load %arg10[%c4_287, %c0_288, %c0_289] : memref<8x16x128xf32, #tpu.memory_space<vmem>>, vector<1x16x128xf32>
    %321 = vector.shape_cast %320 : vector<1x16x128xf32> to vector<16x128xf32>
    %cst_290 = arith.constant 0.266666681 : f32
    %322 = vector.broadcast %cst_290 : f32 to vector<16x128xf32>
    %323 = arith.mulf %322, %321 : vector<16x128xf32>
    %324 = arith.addf %319, %323 : vector<16x128xf32>
    %c7_291 = arith.constant 7 : index
    %c0_292 = arith.constant 0 : index
    %c0_293 = arith.constant 0 : index
    %325 = vector.load %arg11[%c7_291, %c0_292, %c0_293] : memref<18x24x256xf32, #tpu.memory_space<vmem>>, vector<1x16x128xf32>
    %326 = vector.shape_cast %325 : vector<1x16x128xf32> to vector<16x128xf32>
    %327 = vector.shape_cast %324 : vector<16x128xf32> to vector<1x16x128xf32>
    tpu.vector_store %arg11[%c7_291, %c0_292, %c0_293], %327 {strides = array<i32>} : memref<18x24x256xf32, #tpu.memory_space<vmem>>, vector<1x16x128xf32>,
    %c3_294 = arith.constant 3 : index
    %c0_295 = arith.constant 0 : index
    %c0_296 = arith.constant 0 : index
    %328 = vector.load %arg10[%c3_294, %c0_295, %c0_296] : memref<8x16x128xf32, #tpu.memory_space<vmem>>, vector<1x16x128xf32>
    %329 = vector.shape_cast %328 : vector<1x16x128xf32> to vector<16x128xf32>
    %cst_297 = arith.constant 0.266666681 : f32
    %330 = vector.broadcast %cst_297 : f32 to vector<16x128xf32>
    %331 = arith.mulf %330, %329 : vector<16x128xf32>
    %c4_298 = arith.constant 4 : index
    %c0_299 = arith.constant 0 : index
    %c0_300 = arith.constant 0 : index
    %332 = vector.load %arg10[%c4_298, %c0_299, %c0_300] : memref<8x16x128xf32, #tpu.memory_space<vmem>>, vector<1x16x128xf32>
    %333 = vector.shape_cast %332 : vector<1x16x128xf32> to vector<16x128xf32>
    %cst_301 = arith.constant 0.733333349 : f32
    %334 = vector.broadcast %cst_301 : f32 to vector<16x128xf32>
    %335 = arith.mulf %334, %333 : vector<16x128xf32>
    %336 = arith.addf %331, %335 : vector<16x128xf32>
    %c8_302 = arith.constant 8 : index
    %c0_303 = arith.constant 0 : index
    %c0_304 = arith.constant 0 : index
    %337 = vector.load %arg11[%c8_302, %c0_303, %c0_304] : memref<18x24x256xf32, #tpu.memory_space<vmem>>, vector<1x16x128xf32>
    %338 = vector.shape_cast %337 : vector<1x16x128xf32> to vector<16x128xf32>
    %339 = vector.shape_cast %336 : vector<16x128xf32> to vector<1x16x128xf32>
    tpu.vector_store %arg11[%c8_302, %c0_303, %c0_304], %339 {strides = array<i32>} : memref<18x24x256xf32, #tpu.memory_space<vmem>>, vector<1x16x128xf32>,
    %c4_305 = arith.constant 4 : index
    %c0_306 = arith.constant 0 : index
    %c0_307 = arith.constant 0 : index
    %340 = vector.load %arg10[%c4_305, %c0_306, %c0_307] : memref<8x16x128xf32, #tpu.memory_space<vmem>>, vector<1x16x128xf32>
    %341 = vector.shape_cast %340 : vector<1x16x128xf32> to vector<16x128xf32>
    %cst_308 = arith.constant 8.000000e-01 : f32
    %342 = vector.broadcast %cst_308 : f32 to vector<16x128xf32>
    %343 = arith.mulf %342, %341 : vector<16x128xf32>
    %c5_309 = arith.constant 5 : index
    %c0_310 = arith.constant 0 : index
    %c0_311 = arith.constant 0 : index
    %344 = vector.load %arg10[%c5_309, %c0_310, %c0_311] : memref<8x16x128xf32, #tpu.memory_space<vmem>>, vector<1x16x128xf32>
    %345 = vector.shape_cast %344 : vector<1x16x128xf32> to vector<16x128xf32>
    %cst_312 = arith.constant 2.000000e-01 : f32
    %346 = vector.broadcast %cst_312 : f32 to vector<16x128xf32>
    %347 = arith.mulf %346, %345 : vector<16x128xf32>
    %348 = arith.addf %343, %347 : vector<16x128xf32>
    %c9_313 = arith.constant 9 : index
    %c0_314 = arith.constant 0 : index
    %c0_315 = arith.constant 0 : index
    %349 = vector.load %arg11[%c9_313, %c0_314, %c0_315] : memref<18x24x256xf32, #tpu.memory_space<vmem>>, vector<1x16x128xf32>
    %350 = vector.shape_cast %349 : vector<1x16x128xf32> to vector<16x128xf32>
    %351 = vector.shape_cast %348 : vector<16x128xf32> to vector<1x16x128xf32>
    tpu.vector_store %arg11[%c9_313, %c0_314, %c0_315], %351 {strides = array<i32>} : memref<18x24x256xf32, #tpu.memory_space<vmem>>, vector<1x16x128xf32>,
    %c4_316 = arith.constant 4 : index
    %c0_317 = arith.constant 0 : index
    %c0_318 = arith.constant 0 : index
    %352 = vector.load %arg10[%c4_316, %c0_317, %c0_318] : memref<8x16x128xf32, #tpu.memory_space<vmem>>, vector<1x16x128xf32>
    %353 = vector.shape_cast %352 : vector<1x16x128xf32> to vector<16x128xf32>
    %cst_319 = arith.constant 0.333333343 : f32
    %354 = vector.broadcast %cst_319 : f32 to vector<16x128xf32>
    %355 = arith.mulf %354, %353 : vector<16x128xf32>
    %c5_320 = arith.constant 5 : index
    %c0_321 = arith.constant 0 : index
    %c0_322 = arith.constant 0 : index
    %356 = vector.load %arg10[%c5_320, %c0_321, %c0_322] : memref<8x16x128xf32, #tpu.memory_space<vmem>>, vector<1x16x128xf32>
    %357 = vector.shape_cast %356 : vector<1x16x128xf32> to vector<16x128xf32>
    %cst_323 = arith.constant 0.666666686 : f32
    %358 = vector.broadcast %cst_323 : f32 to vector<16x128xf32>
    %359 = arith.mulf %358, %357 : vector<16x128xf32>
    %360 = arith.addf %355, %359 : vector<16x128xf32>
    %c10_324 = arith.constant 10 : index
    %c0_325 = arith.constant 0 : index
    %c0_326 = arith.constant 0 : index
    %361 = vector.load %arg11[%c10_324, %c0_325, %c0_326] : memref<18x24x256xf32, #tpu.memory_space<vmem>>, vector<1x16x128xf32>
    %362 = vector.shape_cast %361 : vector<1x16x128xf32> to vector<16x128xf32>
    %363 = vector.shape_cast %360 : vector<16x128xf32> to vector<1x16x128xf32>
    tpu.vector_store %arg11[%c10_324, %c0_325, %c0_326], %363 {strides = array<i32>} : memref<18x24x256xf32, #tpu.memory_space<vmem>>, vector<1x16x128xf32>,
    %c5_327 = arith.constant 5 : index
    %c0_328 = arith.constant 0 : index
    %c0_329 = arith.constant 0 : index
    %364 = vector.load %arg10[%c5_327, %c0_328, %c0_329] : memref<8x16x128xf32, #tpu.memory_space<vmem>>, vector<1x16x128xf32>
    %365 = vector.shape_cast %364 : vector<1x16x128xf32> to vector<16x128xf32>
    %cst_330 = arith.constant 0.866666674 : f32
    %366 = vector.broadcast %cst_330 : f32 to vector<16x128xf32>
    %367 = arith.mulf %366, %365 : vector<16x128xf32>
    %c6_331 = arith.constant 6 : index
    %c0_332 = arith.constant 0 : index
    %c0_333 = arith.constant 0 : index
    %368 = vector.load %arg10[%c6_331, %c0_332, %c0_333] : memref<8x16x128xf32, #tpu.memory_space<vmem>>, vector<1x16x128xf32>
    %369 = vector.shape_cast %368 : vector<1x16x128xf32> to vector<16x128xf32>
    %cst_334 = arith.constant 0.13333334 : f32
    %370 = vector.broadcast %cst_334 : f32 to vector<16x128xf32>
    %371 = arith.mulf %370, %369 : vector<16x128xf32>
    %372 = arith.addf %367, %371 : vector<16x128xf32>
    %c11_335 = arith.constant 11 : index
    %c0_336 = arith.constant 0 : index
    %c0_337 = arith.constant 0 : index
    %373 = vector.load %arg11[%c11_335, %c0_336, %c0_337] : memref<18x24x256xf32, #tpu.memory_space<vmem>>, vector<1x16x128xf32>
    %374 = vector.shape_cast %373 : vector<1x16x128xf32> to vector<16x128xf32>
    %375 = vector.shape_cast %372 : vector<16x128xf32> to vector<1x16x128xf32>
    tpu.vector_store %arg11[%c11_335, %c0_336, %c0_337], %375 {strides = array<i32>} : memref<18x24x256xf32, #tpu.memory_space<vmem>>, vector<1x16x128xf32>,
    %c5_338 = arith.constant 5 : index
    %c0_339 = arith.constant 0 : index
    %c0_340 = arith.constant 0 : index
    %376 = vector.load %arg10[%c5_338, %c0_339, %c0_340] : memref<8x16x128xf32, #tpu.memory_space<vmem>>, vector<1x16x128xf32>
    %377 = vector.shape_cast %376 : vector<1x16x128xf32> to vector<16x128xf32>
    %cst_341 = arith.constant 4.000000e-01 : f32
    %378 = vector.broadcast %cst_341 : f32 to vector<16x128xf32>
    %379 = arith.mulf %378, %377 : vector<16x128xf32>
    %c6_342 = arith.constant 6 : index
    %c0_343 = arith.constant 0 : index
    %c0_344 = arith.constant 0 : index
    %380 = vector.load %arg10[%c6_342, %c0_343, %c0_344] : memref<8x16x128xf32, #tpu.memory_space<vmem>>, vector<1x16x128xf32>
    %381 = vector.shape_cast %380 : vector<1x16x128xf32> to vector<16x128xf32>
    %cst_345 = arith.constant 6.000000e-01 : f32
    %382 = vector.broadcast %cst_345 : f32 to vector<16x128xf32>
    %383 = arith.mulf %382, %381 : vector<16x128xf32>
    %384 = arith.addf %379, %383 : vector<16x128xf32>
    %c12_346 = arith.constant 12 : index
    %c0_347 = arith.constant 0 : index
    %c0_348 = arith.constant 0 : index
    %385 = vector.load %arg11[%c12_346, %c0_347, %c0_348] : memref<18x24x256xf32, #tpu.memory_space<vmem>>, vector<1x16x128xf32>
    %386 = vector.shape_cast %385 : vector<1x16x128xf32> to vector<16x128xf32>
    %387 = vector.shape_cast %384 : vector<16x128xf32> to vector<1x16x128xf32>
    tpu.vector_store %arg11[%c12_346, %c0_347, %c0_348], %387 {strides = array<i32>} : memref<18x24x256xf32, #tpu.memory_space<vmem>>, vector<1x16x128xf32>,
    %c6_349 = arith.constant 6 : index
    %c0_350 = arith.constant 0 : index
    %c0_351 = arith.constant 0 : index
    %388 = vector.load %arg10[%c6_349, %c0_350, %c0_351] : memref<8x16x128xf32, #tpu.memory_space<vmem>>, vector<1x16x128xf32>
    %389 = vector.shape_cast %388 : vector<1x16x128xf32> to vector<16x128xf32>
    %cst_352 = arith.constant 0.933333337 : f32
    %390 = vector.broadcast %cst_352 : f32 to vector<16x128xf32>
    %391 = arith.mulf %390, %389 : vector<16x128xf32>
    %c7_353 = arith.constant 7 : index
    %c0_354 = arith.constant 0 : index
    %c0_355 = arith.constant 0 : index
    %392 = vector.load %arg10[%c7_353, %c0_354, %c0_355] : memref<8x16x128xf32, #tpu.memory_space<vmem>>, vector<1x16x128xf32>
    %393 = vector.shape_cast %392 : vector<1x16x128xf32> to vector<16x128xf32>
    %cst_356 = arith.constant 0.0666666701 : f32
    %394 = vector.broadcast %cst_356 : f32 to vector<16x128xf32>
    %395 = arith.mulf %394, %393 : vector<16x128xf32>
    %396 = arith.addf %391, %395 : vector<16x128xf32>
    %c13_357 = arith.constant 13 : index
    %c0_358 = arith.constant 0 : index
    %c0_359 = arith.constant 0 : index
    %397 = vector.load %arg11[%c13_357, %c0_358, %c0_359] : memref<18x24x256xf32, #tpu.memory_space<vmem>>, vector<1x16x128xf32>
    %398 = vector.shape_cast %397 : vector<1x16x128xf32> to vector<16x128xf32>
    %399 = vector.shape_cast %396 : vector<16x128xf32> to vector<1x16x128xf32>
    tpu.vector_store %arg11[%c13_357, %c0_358, %c0_359], %399 {strides = array<i32>} : memref<18x24x256xf32, #tpu.memory_space<vmem>>, vector<1x16x128xf32>,
    %c6_360 = arith.constant 6 : index
    %c0_361 = arith.constant 0 : index
    %c0_362 = arith.constant 0 : index
    %400 = vector.load %arg10[%c6_360, %c0_361, %c0_362] : memref<8x16x128xf32, #tpu.memory_space<vmem>>, vector<1x16x128xf32>
    %401 = vector.shape_cast %400 : vector<1x16x128xf32> to vector<16x128xf32>
    %cst_363 = arith.constant 0.466666669 : f32
    %402 = vector.broadcast %cst_363 : f32 to vector<16x128xf32>
    %403 = arith.mulf %402, %401 : vector<16x128xf32>
    %c7_364 = arith.constant 7 : index
    %c0_365 = arith.constant 0 : index
    %c0_366 = arith.constant 0 : index
    %404 = vector.load %arg10[%c7_364, %c0_365, %c0_366] : memref<8x16x128xf32, #tpu.memory_space<vmem>>, vector<1x16x128xf32>
    %405 = vector.shape_cast %404 : vector<1x16x128xf32> to vector<16x128xf32>
    %cst_367 = arith.constant 0.533333361 : f32
    %406 = vector.broadcast %cst_367 : f32 to vector<16x128xf32>
    %407 = arith.mulf %406, %405 : vector<16x128xf32>
    %408 = arith.addf %403, %407 : vector<16x128xf32>
    %c14_368 = arith.constant 14 : index
    %c0_369 = arith.constant 0 : index
    %c0_370 = arith.constant 0 : index
    %409 = vector.load %arg11[%c14_368, %c0_369, %c0_370] : memref<18x24x256xf32, #tpu.memory_space<vmem>>, vector<1x16x128xf32>
    %410 = vector.shape_cast %409 : vector<1x16x128xf32> to vector<16x128xf32>
    %411 = vector.shape_cast %408 : vector<16x128xf32> to vector<1x16x128xf32>
    tpu.vector_store %arg11[%c14_368, %c0_369, %c0_370], %411 {strides = array<i32>} : memref<18x24x256xf32, #tpu.memory_space<vmem>>, vector<1x16x128xf32>,
    %c6_371 = arith.constant 6 : index
    %c0_372 = arith.constant 0 : index
    %c0_373 = arith.constant 0 : index
    %412 = vector.load %arg10[%c6_371, %c0_372, %c0_373] : memref<8x16x128xf32, #tpu.memory_space<vmem>>, vector<1x16x128xf32>
    %413 = vector.shape_cast %412 : vector<1x16x128xf32> to vector<16x128xf32>
    %cst_374 = arith.constant 0.000000e+00 : f32
    %414 = vector.broadcast %cst_374 : f32 to vector<16x128xf32>
    %415 = arith.mulf %414, %413 : vector<16x128xf32>
    %c7_375 = arith.constant 7 : index
    %c0_376 = arith.constant 0 : index
    %c0_377 = arith.constant 0 : index
    %416 = vector.load %arg10[%c7_375, %c0_376, %c0_377] : memref<8x16x128xf32, #tpu.memory_space<vmem>>, vector<1x16x128xf32>
    %417 = vector.shape_cast %416 : vector<1x16x128xf32> to vector<16x128xf32>
    %cst_378 = arith.constant 1.000000e+00 : f32
    %418 = vector.broadcast %cst_378 : f32 to vector<16x128xf32>
    %419 = arith.mulf %418, %417 : vector<16x128xf32>
    %420 = arith.addf %415, %419 : vector<16x128xf32>
    %c15_379 = arith.constant 15 : index
    %c0_380 = arith.constant 0 : index
    %c0_381 = arith.constant 0 : index
    %421 = vector.load %arg11[%c15_379, %c0_380, %c0_381] : memref<18x24x256xf32, #tpu.memory_space<vmem>>, vector<1x16x128xf32>
    %422 = vector.shape_cast %421 : vector<1x16x128xf32> to vector<16x128xf32>
    %423 = vector.shape_cast %420 : vector<16x128xf32> to vector<1x16x128xf32>
    tpu.vector_store %arg11[%c15_379, %c0_380, %c0_381], %423 {strides = array<i32>} : memref<18x24x256xf32, #tpu.memory_space<vmem>>, vector<1x16x128xf32>,
    %c0_382 = arith.constant 0 : index
    %c0_383 = arith.constant 0 : index
    %c0_384 = arith.constant 0 : index
    %c0_385 = arith.constant 0 : index
    %424 = vector.load %arg2[%c0_382, %c0_383, %c0_384, %c0_385] : memref<1x16x16x128xbf16, #tpu.memory_space<vmem>>, vector<1x16x16x128xbf16>
    %425 = vector.shape_cast %424 : vector<1x16x16x128xbf16> to vector<16x16x128xbf16>
    %426 = arith.extf %425 : vector<16x16x128xbf16> to vector<16x16x128xf32>
    %c0_386 = arith.constant 0 : index
    %c0_387 = arith.constant 0 : index
    %c128 = arith.constant 128 : index
    %427 = vector.load %arg11[%c0_386, %c0_387, %c128] : memref<18x24x256xf32, #tpu.memory_space<vmem>>, vector<16x16x128xf32>
    tpu.vector_store %arg11[%c0_386, %c0_387, %c128], %426 {strides = array<i32>} : memref<18x24x256xf32, #tpu.memory_space<vmem>>, vector<16x16x128xf32>,
    %c0_388 = arith.constant 0 : index
    %c0_389 = arith.constant 0 : index
    %428 = vector.load %arg4[%c0_388, %c0_389] : memref<1x128xf32, #tpu.memory_space<vmem>>, vector<1x128xf32>
    %c0_390 = arith.constant 0 : index
    %c0_391 = arith.constant 0 : index
    %429 = vector.load %arg5[%c0_390, %c0_391] : memref<1x128xf32, #tpu.memory_space<vmem>>, vector<1x128xf32>
    %c0_392 = arith.constant 0 : index
    %c0_393 = arith.constant 0 : index
    %c0_394 = arith.constant 0 : index
    %430 = vector.load %arg11[%c0_392, %c0_393, %c0_394] : memref<18x24x256xf32, #tpu.memory_space<vmem>>, vector<18x24x256xf32>
    %431 = vector.shape_cast %430 : vector<18x24x256xf32> to vector<432x256xf32>
    %c1_i32 = arith.constant 1 : i32
    %432 = tpu.dynamic_rotate %431 by %c1_i32 dim 0 : vector<432x256xf32>, i32 -> vector<432x256xf32>
    %c431_i32 = arith.constant 431 : i32
    %433 = tpu.dynamic_rotate %431 by %c431_i32 dim 0 : vector<432x256xf32>, i32 -> vector<432x256xf32>
    %434 = arith.truncf %432 : vector<432x256xf32> to vector<432x256xbf16>
    %c0_395 = arith.constant 0 : index
    %c0_396 = arith.constant 0 : index
    %c0_397 = arith.constant 0 : index
    %435 = vector.load %arg3[%c0_395, %c0_396, %c0_397] : memref<3x256x384xbf16, #tpu.memory_space<vmem>>, vector<1x256x384xbf16>
    %436 = vector.shape_cast %435 : vector<1x256x384xbf16> to vector<256x384xbf16>
    %cst_398 = arith.constant dense<0.000000e+00> : vector<432x384xf32>
    %437 = tpu.matmul %434, %436, %cst_398 {dimension_numbers = #tpu.dot_dimension_numbers<[1], [0], [0], [1], [0, 0, 1, 1], [], []>} : vector<432x256xbf16>, vector<256x384xbf16>, vector<432x384xf32> -> vector<432x384xf32>
    %438 = arith.truncf %431 : vector<432x256xf32> to vector<432x256xbf16>
    %c1_399 = arith.constant 1 : index
    %c0_400 = arith.constant 0 : index
    %c0_401 = arith.constant 0 : index
    %439 = vector.load %arg3[%c1_399, %c0_400, %c0_401] : memref<3x256x384xbf16, #tpu.memory_space<vmem>>, vector<1x256x384xbf16>
    %440 = vector.shape_cast %439 : vector<1x256x384xbf16> to vector<256x384xbf16>
    %cst_402 = arith.constant dense<0.000000e+00> : vector<432x384xf32>
    %441 = tpu.matmul %438, %440, %cst_402 {dimension_numbers = #tpu.dot_dimension_numbers<[1], [0], [0], [1], [0, 0, 1, 1], [], []>} : vector<432x256xbf16>, vector<256x384xbf16>, vector<432x384xf32> -> vector<432x384xf32>
    %442 = arith.addf %437, %441 : vector<432x384xf32>
    %443 = arith.truncf %433 : vector<432x256xf32> to vector<432x256xbf16>
    %c2_403 = arith.constant 2 : index
    %c0_404 = arith.constant 0 : index
    %c0_405 = arith.constant 0 : index
    %444 = vector.load %arg3[%c2_403, %c0_404, %c0_405] : memref<3x256x384xbf16, #tpu.memory_space<vmem>>, vector<1x256x384xbf16>
    %445 = vector.shape_cast %444 : vector<1x256x384xbf16> to vector<256x384xbf16>
    %cst_406 = arith.constant dense<0.000000e+00> : vector<432x384xf32>
    %446 = tpu.matmul %443, %445, %cst_406 {dimension_numbers = #tpu.dot_dimension_numbers<[1], [0], [0], [1], [0, 0, 1, 1], [], []>} : vector<432x256xbf16>, vector<256x384xbf16>, vector<432x384xf32> -> vector<432x384xf32>
    %447 = arith.addf %442, %446 : vector<432x384xf32>
    %448 = vector.extract_strided_slice %447 {offsets = [0, 128], sizes = [432, 128], strides = [1, 1]} : vector<432x384xf32> to vector<432x128xf32>
    %449 = vector.extract_strided_slice %447 {offsets = [0, 0], sizes = [432, 128], strides = [1, 1]} : vector<432x384xf32> to vector<432x128xf32>
    %c24_i32 = arith.constant 24 : i32
    %450 = tpu.dynamic_rotate %449 by %c24_i32 dim 0 : vector<432x128xf32>, i32 -> vector<432x128xf32>
    %451 = arith.addf %448, %450 : vector<432x128xf32>
    %452 = vector.extract_strided_slice %447 {offsets = [0, 256], sizes = [432, 128], strides = [1, 1]} : vector<432x384xf32> to vector<432x128xf32>
    %c408_i32 = arith.constant 408 : i32
    %453 = tpu.dynamic_rotate %452 by %c408_i32 dim 0 : vector<432x128xf32>, i32 -> vector<432x128xf32>
    %454 = arith.addf %451, %453 : vector<432x128xf32>
    %455 = vector.extract_strided_slice %454 {offsets = [0, 0], sizes = [384, 128], strides = [1, 1]} : vector<432x128xf32> to vector<384x128xf32>
    %456 = vector.shape_cast %455 : vector<384x128xf32> to vector<16x24x128xf32>
    %457 = vector.extract_strided_slice %456 {offsets = [0, 0, 0], sizes = [16, 16, 128], strides = [1, 1, 1]} : vector<16x24x128xf32> to vector<16x16x128xf32>
    %458 = vector.shape_cast %428 : vector<1x128xf32> to vector<1x1x128xf32>
    %459 = vector.broadcast %458 : vector<1x1x128xf32> to vector<16x16x128xf32>
    %460 = arith.mulf %457, %459 : vector<16x16x128xf32>
    %461 = vector.shape_cast %429 : vector<1x128xf32> to vector<1x1x128xf32>
    %462 = vector.broadcast %461 : vector<1x1x128xf32> to vector<16x16x128xf32>
    %463 = arith.addf %460, %462 : vector<16x16x128xf32>
    %cst_407 = arith.constant 0.000000e+00 : f32
    %464 = vector.broadcast %cst_407 : f32 to vector<16x16x128xf32>
    %465 = arith.maximumf %463, %464 : vector<16x16x128xf32>
    %c0_408 = arith.constant 0 : index
    %c0_409 = arith.constant 0 : index
    %c0_410 = arith.constant 0 : index
    %466 = vector.load %arg12[%c0_408, %c0_409, %c0_410] : memref<18x24x128xf32, #tpu.memory_space<vmem>>, vector<16x16x128xf32>
    tpu.vector_store %arg12[%c0_408, %c0_409, %c0_410], %465 {strides = array<i32>} : memref<18x24x128xf32, #tpu.memory_space<vmem>>, vector<16x16x128xf32>,
    %c0_411 = arith.constant 0 : index
    %c0_412 = arith.constant 0 : index
    %467 = vector.load %arg7[%c0_411, %c0_412] : memref<1x128xf32, #tpu.memory_space<vmem>>, vector<1x128xf32>
    %c0_413 = arith.constant 0 : index
    %c0_414 = arith.constant 0 : index
    %468 = vector.load %arg8[%c0_413, %c0_414] : memref<1x128xf32, #tpu.memory_space<vmem>>, vector<1x128xf32>
    %c0_415 = arith.constant 0 : index
    %c0_416 = arith.constant 0 : index
    %c0_417 = arith.constant 0 : index
    %469 = vector.load %arg12[%c0_415, %c0_416, %c0_417] : memref<18x24x128xf32, #tpu.memory_space<vmem>>, vector<18x24x128xf32>
    %470 = vector.shape_cast %469 : vector<18x24x128xf32> to vector<432x128xf32>
    %c1_i32_418 = arith.constant 1 : i32
    %471 = tpu.dynamic_rotate %470 by %c1_i32_418 dim 0 : vector<432x128xf32>, i32 -> vector<432x128xf32>
    %c431_i32_419 = arith.constant 431 : i32
    %472 = tpu.dynamic_rotate %470 by %c431_i32_419 dim 0 : vector<432x128xf32>, i32 -> vector<432x128xf32>
    %473 = arith.truncf %471 : vector<432x128xf32> to vector<432x128xbf16>
    %c0_420 = arith.constant 0 : index
    %c0_421 = arith.constant 0 : index
    %c0_422 = arith.constant 0 : index
    %474 = vector.load %arg6[%c0_420, %c0_421, %c0_422] : memref<3x128x384xbf16, #tpu.memory_space<vmem>>, vector<1x128x384xbf16>
    %475 = vector.shape_cast %474 : vector<1x128x384xbf16> to vector<128x384xbf16>
    %cst_423 = arith.constant dense<0.000000e+00> : vector<432x384xf32>
    %476 = tpu.matmul %473, %475, %cst_423 {dimension_numbers = #tpu.dot_dimension_numbers<[1], [0], [0], [1], [0, 0, 1, 1], [], []>} : vector<432x128xbf16>, vector<128x384xbf16>, vector<432x384xf32> -> vector<432x384xf32>
    %477 = arith.truncf %470 : vector<432x128xf32> to vector<432x128xbf16>
    %c1_424 = arith.constant 1 : index
    %c0_425 = arith.constant 0 : index
    %c0_426 = arith.constant 0 : index
    %478 = vector.load %arg6[%c1_424, %c0_425, %c0_426] : memref<3x128x384xbf16, #tpu.memory_space<vmem>>, vector<1x128x384xbf16>
    %479 = vector.shape_cast %478 : vector<1x128x384xbf16> to vector<128x384xbf16>
    %cst_427 = arith.constant dense<0.000000e+00> : vector<432x384xf32>
    %480 = tpu.matmul %477, %479, %cst_427 {dimension_numbers = #tpu.dot_dimension_numbers<[1], [0], [0], [1], [0, 0, 1, 1], [], []>} : vector<432x128xbf16>, vector<128x384xbf16>, vector<432x384xf32> -> vector<432x384xf32>
    %481 = arith.addf %476, %480 : vector<432x384xf32>
    %482 = arith.truncf %472 : vector<432x128xf32> to vector<432x128xbf16>
    %c2_428 = arith.constant 2 : index
    %c0_429 = arith.constant 0 : index
    %c0_430 = arith.constant 0 : index
    %483 = vector.load %arg6[%c2_428, %c0_429, %c0_430] : memref<3x128x384xbf16, #tpu.memory_space<vmem>>, vector<1x128x384xbf16>
    %484 = vector.shape_cast %483 : vector<1x128x384xbf16> to vector<128x384xbf16>
    %cst_431 = arith.constant dense<0.000000e+00> : vector<432x384xf32>
    %485 = tpu.matmul %482, %484, %cst_431 {dimension_numbers = #tpu.dot_dimension_numbers<[1], [0], [0], [1], [0, 0, 1, 1], [], []>} : vector<432x128xbf16>, vector<128x384xbf16>, vector<432x384xf32> -> vector<432x384xf32>
    %486 = arith.addf %481, %485 : vector<432x384xf32>
    %487 = vector.extract_strided_slice %486 {offsets = [0, 128], sizes = [432, 128], strides = [1, 1]} : vector<432x384xf32> to vector<432x128xf32>
    %488 = vector.extract_strided_slice %486 {offsets = [0, 0], sizes = [432, 128], strides = [1, 1]} : vector<432x384xf32> to vector<432x128xf32>
    %c24_i32_432 = arith.constant 24 : i32
    %489 = tpu.dynamic_rotate %488 by %c24_i32_432 dim 0 : vector<432x128xf32>, i32 -> vector<432x128xf32>
    %490 = arith.addf %487, %489 : vector<432x128xf32>
    %491 = vector.extract_strided_slice %486 {offsets = [0, 256], sizes = [432, 128], strides = [1, 1]} : vector<432x384xf32> to vector<432x128xf32>
    %c408_i32_433 = arith.constant 408 : i32
    %492 = tpu.dynamic_rotate %491 by %c408_i32_433 dim 0 : vector<432x128xf32>, i32 -> vector<432x128xf32>
    %493 = arith.addf %490, %492 : vector<432x128xf32>
    %494 = vector.extract_strided_slice %493 {offsets = [0, 0], sizes = [384, 128], strides = [1, 1]} : vector<432x128xf32> to vector<384x128xf32>
    %495 = vector.shape_cast %494 : vector<384x128xf32> to vector<16x24x128xf32>
    %496 = vector.extract_strided_slice %495 {offsets = [0, 0, 0], sizes = [16, 16, 128], strides = [1, 1, 1]} : vector<16x24x128xf32> to vector<16x16x128xf32>
    %497 = vector.shape_cast %467 : vector<1x128xf32> to vector<1x1x128xf32>
    %498 = vector.broadcast %497 : vector<1x1x128xf32> to vector<16x16x128xf32>
    %499 = arith.mulf %496, %498 : vector<16x16x128xf32>
    %500 = vector.shape_cast %468 : vector<1x128xf32> to vector<1x1x128xf32>
    %501 = vector.broadcast %500 : vector<1x1x128xf32> to vector<16x16x128xf32>
    %502 = arith.addf %499, %501 : vector<16x16x128xf32>
    %cst_434 = arith.constant 0.000000e+00 : f32
    %503 = vector.broadcast %cst_434 : f32 to vector<16x16x128xf32>
    %504 = arith.maximumf %502, %503 : vector<16x16x128xf32>
    %c0_435 = arith.constant 0 : index
    %c0_436 = arith.constant 0 : index
    %c0_437 = arith.constant 0 : index
    %c0_438 = arith.constant 0 : index
    %505 = vector.load %arg9[%c0_435, %c0_436, %c0_437, %c0_438] : memref<1x16x16x128xf32, #tpu.memory_space<vmem>>, vector<1x16x16x128xf32>
    %506 = vector.shape_cast %505 : vector<1x16x16x128xf32> to vector<16x16x128xf32>
    %507 = vector.shape_cast %504 : vector<16x16x128xf32> to vector<1x16x16x128xf32>
    tpu.vector_store %arg9[%c0_435, %c0_436, %c0_437, %c0_438], %507 {strides = array<i32>} : memref<1x16x16x128xf32, #tpu.memory_space<vmem>>, vector<1x16x16x128xf32>,
    return
  }
  func.func @transform_0(%arg0: i32) -> (i32, i32, i32, i32) {
    %c0_i32 = arith.constant 0 : i32
    %c0_i32_0 = arith.constant 0 : i32
    %c0_i32_1 = arith.constant 0 : i32
    %c0_i32_2 = arith.constant 0 : i32
    return %arg0, %c0_i32, %c0_i32_0, %c0_i32_1 : i32, i32, i32, i32
  }
  func.func @transform_1(%arg0: i32) -> (i32, i32, i32, i32) {
    %c0_i32 = arith.constant 0 : i32
    %c0_i32_0 = arith.constant 0 : i32
    %c0_i32_1 = arith.constant 0 : i32
    %c0_i32_2 = arith.constant 0 : i32
    return %arg0, %c0_i32, %c0_i32_0, %c0_i32_1 : i32, i32, i32, i32
  }
  func.func @transform_2(%arg0: i32) -> (i32, i32, i32) {
    %c0_i32 = arith.constant 0 : i32
    %c0_i32_0 = arith.constant 0 : i32
    %c0_i32_1 = arith.constant 0 : i32
    %c0_i32_2 = arith.constant 0 : i32
    return %c0_i32, %c0_i32_0, %c0_i32_1 : i32, i32, i32
  }
  func.func @transform_3(%arg0: i32) -> (i32, i32) {
    %c0_i32 = arith.constant 0 : i32
    %c0_i32_0 = arith.constant 0 : i32
    %c0_i32_1 = arith.constant 0 : i32
    return %c0_i32, %c0_i32_0 : i32, i32
  }
  func.func @transform_4(%arg0: i32) -> (i32, i32) {
    %c0_i32 = arith.constant 0 : i32
    %c0_i32_0 = arith.constant 0 : i32
    %c0_i32_1 = arith.constant 0 : i32
    return %c0_i32, %c0_i32_0 : i32, i32
  }
  func.func @transform_5(%arg0: i32) -> (i32, i32, i32) {
    %c0_i32 = arith.constant 0 : i32
    %c0_i32_0 = arith.constant 0 : i32
    %c0_i32_1 = arith.constant 0 : i32
    %c0_i32_2 = arith.constant 0 : i32
    return %c0_i32, %c0_i32_0, %c0_i32_1 : i32, i32, i32
  }
  func.func @transform_6(%arg0: i32) -> (i32, i32) {
    %c0_i32 = arith.constant 0 : i32
    %c0_i32_0 = arith.constant 0 : i32
    %c0_i32_1 = arith.constant 0 : i32
    return %c0_i32, %c0_i32_0 : i32, i32
  }
  func.func @transform_7(%arg0: i32) -> (i32, i32) {
    %c0_i32 = arith.constant 0 : i32
    %c0_i32_0 = arith.constant 0 : i32
    %c0_i32_1 = arith.constant 0 : i32
    return %c0_i32, %c0_i32_0 : i32, i32
  }
  func.func @transform_8(%arg0: i32) -> (i32, i32, i32, i32) {
    %c0_i32 = arith.constant 0 : i32
    %c0_i32_0 = arith.constant 0 : i32
    %c0_i32_1 = arith.constant 0 : i32
    %c0_i32_2 = arith.constant 0 : i32
    return %arg0, %c0_i32, %c0_i32_0, %c0_i32_1 : i32, i32, i32, i32
  }
}

</mosaic_0001>

<llo_original>
// kernel: tpu_custom_call.1
$region0: #{tpu_custom_call.1}
  #allocation0 [shape = 'u32[]', space=smem, size = 0x4, offset = 0x4, fixed_abs, tag = 'smem constant byte address 0x4 - core index']
  #allocation1 [shape = 'u32[144,128]{1,0:T(1,128)}', space=vmem, size = 0x12000, scoped, tag = 'internal scratch']
  #allocation2 [shape = 'f32[8,16,128]{2,1,0:T(8,128)}', space=vmem, size = 0x10000, scoped, tag = 'scratch operand']
  #allocation3 [shape = 'f32[18,24,256]{2,1,0:T(8,128)}', space=vmem, size = 0x6c000, scoped, tag = 'scratch operand']
  #allocation4 [shape = 'f32[18,24,128]{2,1,0:T(8,128)}', space=vmem, size = 0x36000, scoped, tag = 'scratch operand']
  %s0 = inlined_call_operand.hbm [shape: bf16[2,8,8,128], index: 0, kind: input, shape index: {}]
  %s1 = inlined_call_operand.hbm [shape: bf16[2,16,16,128], index: 1, kind: input, shape index: {}]
  %s2 = inlined_call_operand.hbm [shape: bf16[3,256,384], index: 2, kind: input, shape index: {}]
  %s3 = inlined_call_operand.hbm [shape: f32[1,128], index: 3, kind: input, shape index: {}]
  %s4 = inlined_call_operand.hbm [shape: f32[1,128], index: 4, kind: input, shape index: {}]
  %s5 = inlined_call_operand.hbm [shape: bf16[3,128,384], index: 5, kind: input, shape index: {}]
  %s6 = inlined_call_operand.hbm [shape: f32[1,128], index: 6, kind: input, shape index: {}]
  %s7 = inlined_call_operand.hbm [shape: f32[1,128], index: 7, kind: input, shape index: {}]
  %s8 = inlined_call_operand.hbm [shape: f32[2,16,16,128], index: 8, kind: output, shape index: {}]
  %s9 = sld [smem:[#allocation0]]
  $region97: #{tpu_custom_call.1} parent=0
    _
  %s11 = ssub.s32 1, %s9
  %s12 = scalar_select 0, %s11, %s9
  $region1: #{tpu_custom_call.1} parent=0
    #allocation5 [shape = 'u8[32768]{0}', space=vmem, size = 0x8000, scoped, tag = 'input window, operand 0']
    #allocation6 [shape = 's32[2]{0}', space=sflag, size = 0x8, scoped, tag = 'scoped memory for tpu_custom_call.1']
    #allocation7 [shape = 's32[2]{0}', space=sflag, size = 0x8, scoped, tag = 'scoped memory for tpu_custom_call.1']
    #allocation8 [shape = 'u8[131072]{0}', space=vmem, size = 0x20000, scoped, tag = 'input window, operand 1']
    #allocation9 [shape = 's32[2]{0}', space=sflag, size = 0x8, scoped, tag = 'scoped memory for tpu_custom_call.1']
    #allocation10 [shape = 'u8[589824]{0}', space=vmem, size = 0x90000, scoped, tag = 'input window, operand 2, single buffered']
    #allocation11 [shape = 'u8[512]{0}', space=vmem, size = 0x400, scoped, tag = 'input window, operand 3, single buffered']
    #allocation12 [shape = 's32[1]{0}', space=sflag, size = 0x4, scoped, tag = 'scoped memory for tpu_custom_call.1']
    #allocation13 [shape = 'u8[512]{0}', space=vmem, size = 0x400, scoped, tag = 'input window, operand 4, single buffered']
    #allocation14 [shape = 'u8[294912]{0}', space=vmem, size = 0x48000, scoped, tag = 'input window, operand 5, single buffered']
    #allocation15 [shape = 's32[1]{0}', space=sflag, size = 0x4, scoped, tag = 'scoped memory for tpu_custom_call.1']
    #allocation16 [shape = 'u8[512]{0}', space=vmem, size = 0x400, scoped, tag = 'input window, operand 6, single buffered']
    #allocation17 [shape = 'u8[512]{0}', space=vmem, size = 0x400, scoped, tag = 'input window, operand 7, single buffered']
    #allocation18 [shape = 's32[1]{0}', space=sflag, size = 0x4, scoped, tag = 'scoped memory for tpu_custom_call.1']
    #allocation19 [shape = 'u8[262144]{0}', space=vmem, size = 0x40000, scoped, tag = 'output window, operand 0']
    %13 = vsyncpa [#allocation6], 0
    %s14 = scalar_lea.sflag [#allocation6], 1
    %15 = vsyncpa %s14, 0
    %16 = vsyncpa [#allocation9], 0
    %s17 = scalar_lea.sflag [#allocation9], 1
    %18 = vsyncpa %s17, 0
    %19 = vsyncpa [#allocation12], 0
    %20 = vsyncpa [#allocation15], 0
    %21 = vsyncpa [#allocation18], 0
    %22 = vsyncpa [#allocation7], 0
    %s23 = scalar_lea.sflag [#allocation7], 1
    %24 = vsyncpa %s23, 0
    loop: start=0, step=1, limit=4
    $region2: #{tpu_custom_call.1} parent=1 // loop_pre_header
      _
    $region3: #{tpu_custom_call.1} parent=1 // loop_header
      %s26 = sphi 0, %s30
      %p27 = scmp.ge.s32.totalorder %s26, 4
      %s36 = sphi 0, %s38
      %s39 = sphi 0, %s36
      %s40 = sphi 0, %s39
      %s56 = sphi 0, %s40
      %s62 = sphi 0, %s64
      %s65 = sphi 0, %s62
      %s66 = sphi 0, %s65
      %s82 = sphi 0, %s66
      %s86 = sphi 0, %s86
      %s88 = sphi 0, %s86
      %s89 = sphi 0, %s88
      %s103 = sphi 0, %s89
      %s107 = sphi 0, %s107
      %s109 = sphi 0, %s107
      %s110 = sphi 0, %s109
      %s124 = sphi 0, %s110
      %s128 = sphi 0, %s128
      %s130 = sphi 0, %s128
      %s131 = sphi 0, %s130
      %s145 = sphi 0, %s131
      %s149 = sphi 0, %s149
      %s151 = sphi 0, %s149
      %s152 = sphi 0, %s151
      %s166 = sphi 0, %s152
      %s170 = sphi 0, %s170
      %s172 = sphi 0, %s170
      %s173 = sphi 0, %s172
      %s187 = sphi 0, %s173
      %s191 = sphi 0, %s191
      %s193 = sphi 0, %s191
      %s194 = sphi 0, %s193
      %s208 = sphi 0, %s194
      %s214 = sphi 0, %s216
      %s217 = sphi 0, %s214
      %s218 = sphi 0, %s217
      %s234 = sphi 0, %s218
    $region4: #{tpu_custom_call.1} parent=1 // loop_header_branch
      %29 = sbr.rel (%p27) target = $region8
    $region5: #{tpu_custom_call.1} parent=1 // loop_body
      %s31 = ssub.s32 %s26, 1
      %s32 = ssub.s32 %s26, 2
      %s33 = sadd.s32 %s26, 1
      %s34 = ssub.s32 %s26, %s33
      %p35 = scmp.eq.s32.totalorder %s34, 0
      %s37 = sadd.s32 %s36, 1
      %s38 = scalar_select %p35, %s36, %s37
      %p41 = pneg %p35
      %p42 = scmp.eq.s32.totalorder %s26, 1
      %p43 = por %p41, %p42
      %p44 = scmp.ne.s32.totalorder %s36, %s39
      %p45 = scmp.eq.s32.totalorder %s26, 0
      %p46 = por %p44, %p45
      %p47 = scmp.ne.s32.totalorder %s36, %s39
      %p48 = scmp.eq.s32.totalorder %s31, 1
      %p49 = por %p47, %p48
      %p50 = scmp.ne.s32.totalorder %s39, %s40
      %p51 = scmp.eq.s32.totalorder %s31, 0
      %p52 = por %p50, %p51
      %p53 = scmp.ne.s32.totalorder %s39, %s40
      %p54 = scmp.eq.s32.totalorder %s32, 1
      %p55 = por %p53, %p54
      %p57 = scmp.ne.s32.totalorder %s40, %s56
      %p58 = scmp.eq.s32.totalorder %s32, 0
      %p59 = por %p57, %p58
      %s60 = ssub.s32 %s26, %s33
      %p61 = scmp.eq.s32.totalorder %s60, 0
      %s63 = sadd.s32 %s62, 1
      %s64 = scalar_select %p61, %s62, %s63
      %p67 = pneg %p61
      %p68 = scmp.eq.s32.totalorder %s26, 1
      %p69 = por %p67, %p68
      %p70 = scmp.ne.s32.totalorder %s62, %s65
      %p71 = scmp.eq.s32.totalorder %s26, 0
      %p72 = por %p70, %p71
      %p73 = scmp.ne.s32.totalorder %s62, %s65
      %p74 = scmp.eq.s32.totalorder %s31, 1
      %p75 = por %p73, %p74
      %p76 = scmp.ne.s32.totalorder %s65, %s66
      %p77 = scmp.eq.s32.totalorder %s31, 0
      %p78 = por %p76, %p77
      %p79 = scmp.ne.s32.totalorder %s65, %s66
      %p80 = scmp.eq.s32.totalorder %s32, 1
      %p81 = por %p79, %p80
      %p83 = scmp.ne.s32.totalorder %s66, %s82
      %p84 = scmp.eq.s32.totalorder %s32, 0
      %p85 = por %p83, %p84
      %s87 = sadd.s32 %s86, 1
      %p90 = scmp.eq.s32.totalorder %s26, 1
      %p91 = scmp.ne.s32.totalorder %s86, %s88
      %p92 = scmp.eq.s32.totalorder %s26, 0
      %p93 = por %p91, %p92
      %p94 = scmp.ne.s32.totalorder %s86, %s88
      %p95 = scmp.eq.s32.totalorder %s31, 1
      %p96 = por %p94, %p95
      %p97 = scmp.ne.s32.totalorder %s88, %s89
      %p98 = scmp.eq.s32.totalorder %s31, 0
      %p99 = por %p97, %p98
      %p100 = scmp.ne.s32.totalorder %s88, %s89
      %p101 = scmp.eq.s32.totalorder %s32, 1
      %p102 = por %p100, %p101
      %p104 = scmp.ne.s32.totalorder %s89, %s103
      %p105 = scmp.eq.s32.totalorder %s32, 0
      %p106 = por %p104, %p105
      %s108 = sadd.s32 %s107, 1
      %p111 = scmp.eq.s32.totalorder %s26, 1
      %p112 = scmp.ne.s32.totalorder %s107, %s109
      %p113 = scmp.eq.s32.totalorder %s26, 0
      %p114 = por %p112, %p113
      %p115 = scmp.ne.s32.totalorder %s107, %s109
      %p116 = scmp.eq.s32.totalorder %s31, 1
      %p117 = por %p115, %p116
      %p118 = scmp.ne.s32.totalorder %s109, %s110
      %p119 = scmp.eq.s32.totalorder %s31, 0
      %p120 = por %p118, %p119
      %p121 = scmp.ne.s32.totalorder %s109, %s110
      %p122 = scmp.eq.s32.totalorder %s32, 1
      %p123 = por %p121, %p122
      %p125 = scmp.ne.s32.totalorder %s110, %s124
      %p126 = scmp.eq.s32.totalorder %s32, 0
      %p127 = por %p125, %p126
      %s129 = sadd.s32 %s128, 1
      %p132 = scmp.eq.s32.totalorder %s26, 1
      %p133 = scmp.ne.s32.totalorder %s128, %s130
      %p134 = scmp.eq.s32.totalorder %s26, 0
      %p135 = por %p133, %p134
      %p136 = scmp.ne.s32.totalorder %s128, %s130
      %p137 = scmp.eq.s32.totalorder %s31, 1
      %p138 = por %p136, %p137
      %p139 = scmp.ne.s32.totalorder %s130, %s131
      %p140 = scmp.eq.s32.totalorder %s31, 0
      %p141 = por %p139, %p140
      %p142 = scmp.ne.s32.totalorder %s130, %s131
      %p143 = scmp.eq.s32.totalorder %s32, 1
      %p144 = por %p142, %p143
      %p146 = scmp.ne.s32.totalorder %s131, %s145
      %p147 = scmp.eq.s32.totalorder %s32, 0
      %p148 = por %p146, %p147
      %s150 = sadd.s32 %s149, 1
      %p153 = scmp.eq.s32.totalorder %s26, 1
      %p154 = scmp.ne.s32.totalorder %s149, %s151
      %p155 = scmp.eq.s32.totalorder %s26, 0
      %p156 = por %p154, %p155
      %p157 = scmp.ne.s32.totalorder %s149, %s151
      %p158 = scmp.eq.s32.totalorder %s31, 1
      %p159 = por %p157, %p158
      %p160 = scmp.ne.s32.totalorder %s151, %s152
      %p161 = scmp.eq.s32.totalorder %s31, 0
      %p162 = por %p160, %p161
      %p163 = scmp.ne.s32.totalorder %s151, %s152
      %p164 = scmp.eq.s32.totalorder %s32, 1
      %p165 = por %p163, %p164
      %p167 = scmp.ne.s32.totalorder %s152, %s166
      %p168 = scmp.eq.s32.totalorder %s32, 0
      %p169 = por %p167, %p168
      %s171 = sadd.s32 %s170, 1
      %p174 = scmp.eq.s32.totalorder %s26, 1
      %p175 = scmp.ne.s32.totalorder %s170, %s172
      %p176 = scmp.eq.s32.totalorder %s26, 0
      %p177 = por %p175, %p176
      %p178 = scmp.ne.s32.totalorder %s170, %s172
      %p179 = scmp.eq.s32.totalorder %s31, 1
      %p180 = por %p178, %p179
      %p181 = scmp.ne.s32.totalorder %s172, %s173
      %p182 = scmp.eq.s32.totalorder %s31, 0
      %p183 = por %p181, %p182
      %p184 = scmp.ne.s32.totalorder %s172, %s173
      %p185 = scmp.eq.s32.totalorder %s32, 1
      %p186 = por %p184, %p185
      %p188 = scmp.ne.s32.totalorder %s173, %s187
      %p189 = scmp.eq.s32.totalorder %s32, 0
      %p190 = por %p188, %p189
      %s192 = sadd.s32 %s191, 1
      %p195 = scmp.eq.s32.totalorder %s26, 1
      %p196 = scmp.ne.s32.totalorder %s191, %s193
      %p197 = scmp.eq.s32.totalorder %s26, 0
      %p198 = por %p196, %p197
      %p199 = scmp.ne.s32.totalorder %s191, %s193
      %p200 = scmp.eq.s32.totalorder %s31, 1
      %p201 = por %p199, %p200
      %p202 = scmp.ne.s32.totalorder %s193, %s194
      %p203 = scmp.eq.s32.totalorder %s31, 0
      %p204 = por %p202, %p203
      %p205 = scmp.ne.s32.totalorder %s193, %s194
      %p206 = scmp.eq.s32.totalorder %s32, 1
      %p207 = por %p205, %p206
      %p209 = scmp.ne.s32.totalorder %s194, %s208
      %p210 = scmp.eq.s32.totalorder %s32, 0
      %p211 = por %p209, %p210
      %s212 = ssub.s32 %s26, %s33
      %p213 = scmp.eq.s32.totalorder %s212, 0
      %s215 = sadd.s32 %s214, 1
      %s216 = scalar_select %p213, %s214, %s215
      %p219 = pneg %p213
      %p220 = scmp.eq.s32.totalorder %s26, 1
      %p221 = por %p219, %p220
      %p222 = scmp.ne.s32.totalorder %s214, %s217
      %p223 = scmp.eq.s32.totalorder %s26, 0
      %p224 = por %p222, %p223
      %p225 = scmp.ne.s32.totalorder %s214, %s217
      %p226 = scmp.eq.s32.totalorder %s31, 1
      %p227 = por %p225, %p226
      %p228 = scmp.ne.s32.totalorder %s217, %s218
      %p229 = scmp.eq.s32.totalorder %s31, 0
      %p230 = por %p228, %p229
      %p231 = scmp.ne.s32.totalorder %s217, %s218
      %p232 = scmp.eq.s32.totalorder %s32, 1
      %p233 = por %p231, %p232
      %p235 = scmp.ne.s32.totalorder %s218, %s234
      %p236 = scmp.eq.s32.totalorder %s32, 0
      %p237 = por %p235, %p236
      %p238 = scmp.le.s32.totalorder 1, %s26
      %p239 = scmp.lt.s32.totalorder %s26, 3
      %p240 = pnand %p238, %p239
      %p241 = pneg %p240
      // Predicated region
      $region9: #{tpu_custom_call.1} parent=5 // pred_check
        _
      $region10: #{tpu_custom_call.1} parent=5 // pred_check_branch
        %243 = sbr.rel (%p240) target = $region12
      $region11: #{tpu_custom_call.1} parent=5 // pred_region
        %s244 = ssub.s32 %s26, 1
        // Predicated region
        $region13: #{tpu_custom_call.1} parent=11 // pred_check
          %p245 = pneg %p99
        $region14: #{tpu_custom_call.1} parent=11 // pred_check_branch
          %247 = sbr.rel (%p245) target = $region16
        $region15: #{tpu_custom_call.1} parent=11 // pred_region
          %s249 = ssub.s32 18432, 18432
          %250 = vsyncadd [#allocation9], %s249
          %s251 = sshll.u32 [#allocation10], 4
          %s252 = int_to_ptr.vmem [resolvable:$true] %s251
          %257 = dma.hbm_to_vmem [thread:$0]  %s2, 18432, %s252, [#allocation9], 192, 192, 12
        $region16: #{tpu_custom_call.1} parent=11 // pred_fallthru
          _
        // Predicated region
        $region17: #{tpu_custom_call.1} parent=11 // pred_check
          %p258 = pneg %p120
        $region18: #{tpu_custom_call.1} parent=11 // pred_check_branch
          %260 = sbr.rel (%p258) target = $region20
        $region19: #{tpu_custom_call.1} parent=11 // pred_region
          %s262 = ssub.s32 16, 16
          %263 = vsyncadd [#allocation12], %s262
          %s265 = sshll.u32 [#allocation11], 4
          %s266 = int_to_ptr.vmem [resolvable:$true] %s265
          %268 = dma.hbm_to_vmem [thread:$0]  %s3, 16, %s266, [#allocation12]
        $region20: #{tpu_custom_call.1} parent=11 // pred_fallthru
          _
        // Predicated region
        $region21: #{tpu_custom_call.1} parent=11 // pred_check
          %p269 = pneg %p141
        $region22: #{tpu_custom_call.1} parent=11 // pred_check_branch
          %271 = sbr.rel (%p269) target = $region24
        $region23: #{tpu_custom_call.1} parent=11 // pred_region
          %s273 = ssub.s32 16, 16
          %274 = vsyncadd [#allocation12], %s273
          %s276 = sshll.u32 [#allocation13], 4
          %s277 = int_to_ptr.vmem [resolvable:$true] %s276
          %279 = dma.hbm_to_vmem [thread:$0]  %s4, 16, %s277, [#allocation12]
        $region24: #{tpu_custom_call.1} parent=11 // pred_fallthru
          _
        // Predicated region
        $region25: #{tpu_custom_call.1} parent=11 // pred_check
          %p280 = pneg %p162
        $region26: #{tpu_custom_call.1} parent=11 // pred_check_branch
          %282 = sbr.rel (%p280) target = $region28
        $region27: #{tpu_custom_call.1} parent=11 // pred_region
          %s284 = ssub.s32 9216, 9216
          %285 = vsyncadd [#allocation15], %s284
          %s286 = sshll.u32 [#allocation14], 4
          %s287 = int_to_ptr.vmem [resolvable:$true] %s286
          %292 = dma.hbm_to_vmem [thread:$0]  %s5, 9216, %s287, [#allocation15], 192, 192, 12
        $region28: #{tpu_custom_call.1} parent=11 // pred_fallthru
          _
        // Predicated region
        $region29: #{tpu_custom_call.1} parent=11 // pred_check
          %p293 = pneg %p183
        $region30: #{tpu_custom_call.1} parent=11 // pred_check_branch
          %295 = sbr.rel (%p293) target = $region32
        $region31: #{tpu_custom_call.1} parent=11 // pred_region
          %s297 = ssub.s32 16, 16
          %298 = vsyncadd [#allocation15], %s297
          %s300 = sshll.u32 [#allocation16], 4
          %s301 = int_to_ptr.vmem [resolvable:$true] %s300
          %303 = dma.hbm_to_vmem [thread:$0]  %s6, 16, %s301, [#allocation15]
        $region32: #{tpu_custom_call.1} parent=11 // pred_fallthru
          _
        // Predicated region
        $region33: #{tpu_custom_call.1} parent=11 // pred_check
          %p304 = pneg %p204
        $region34: #{tpu_custom_call.1} parent=11 // pred_check_branch
          %306 = sbr.rel (%p304) target = $region36
        $region35: #{tpu_custom_call.1} parent=11 // pred_region
          %s308 = ssub.s32 16, 16
          %309 = vsyncadd [#allocation18], %s308
          %s311 = sshll.u32 [#allocation17], 4
          %s312 = int_to_ptr.vmem [resolvable:$true] %s311
          %314 = dma.hbm_to_vmem [thread:$0]  %s7, 16, %s312, [#allocation18]
        $region36: #{tpu_custom_call.1} parent=11 // pred_fallthru
          _
      $region12: #{tpu_custom_call.1} parent=5 // pred_fallthru
        _
      %p315 = scmp.lt.s32.totalorder %s26, 2
      // Predicated region
      $region37: #{tpu_custom_call.1} parent=5 // pred_check
        %p316 = pneg %p315
      $region38: #{tpu_custom_call.1} parent=5 // pred_check_branch
        %318 = sbr.rel (%p316) target = $region40
      $region39: #{tpu_custom_call.1} parent=5 // pred_region
        // Predicated region
        $region41: #{tpu_custom_call.1} parent=39 // pred_check
          %p319 = pneg %p46
        $region42: #{tpu_custom_call.1} parent=39 // pred_check_branch
          %321 = sbr.rel (%p319) target = $region44
        $region43: #{tpu_custom_call.1} parent=39 // pred_region
          %s322 = sand.u32 %s36, 1
          %s323 = scalar_lea.sflag [#allocation6], %s322
          %s324 = sand.u32 %s36, 1
          %s325 = smul.addr %s324, 32
          %s326 = scalar_lea.vmem [#allocation5], %s325
          %s328 = ssub.s32 512, 512
          %329 = vsyncadd %s323, %s328
          %s330 = smul.addr %s26, 8
          %s331 = smul.addr %s330, 64
          %s332 = scalar_lea.hbm %s0, %s331
          %s333 = sshll.u32 %s326, 4
          %s334 = int_to_ptr.vmem [resolvable:$true] %s333
          %339 = dma.hbm_to_vmem [thread:$0]  %s332, 512, %s334, %s323, 64, 64, 4
        $region44: #{tpu_custom_call.1} parent=39 // pred_fallthru
          _
        // Predicated region
        $region45: #{tpu_custom_call.1} parent=39 // pred_check
          %p340 = pneg %p72
        $region46: #{tpu_custom_call.1} parent=39 // pred_check_branch
          %342 = sbr.rel (%p340) target = $region48
        $region47: #{tpu_custom_call.1} parent=39 // pred_region
          %s343 = sand.u32 %s26, 1
          %s344 = scalar_lea.sflag [#allocation9], %s343
          %s345 = sand.u32 %s62, 1
          %s346 = smul.addr %s345, 128
          %s347 = scalar_lea.vmem [#allocation8], %s346
          %s349 = ssub.s32 2048, 2048
          %350 = vsyncadd %s344, %s349
          %s351 = smul.addr %s26, 32
          %s352 = smul.addr %s351, 64
          %s353 = scalar_lea.hbm %s1, %s352
          %s354 = sshll.u32 %s347, 4
          %s355 = int_to_ptr.vmem [resolvable:$true] %s354
          %360 = dma.hbm_to_vmem [thread:$0]  %s353, 2048, %s355, %s344, 64, 64, 4
        $region48: #{tpu_custom_call.1} parent=39 // pred_fallthru
          _
      $region40: #{tpu_custom_call.1} parent=5 // pred_fallthru
        _
      %p361 = scmp.le.s32.totalorder 1, %s26
      %p362 = scmp.lt.s32.totalorder %s26, 3
      %p363 = pnand %p361, %p362
      %p364 = pneg %p363
      // Predicated region
      $region49: #{tpu_custom_call.1} parent=5 // pred_check
        _
      $region50: #{tpu_custom_call.1} parent=5 // pred_check_branch
        %366 = sbr.rel (%p363) target = $region52
      $region51: #{tpu_custom_call.1} parent=5 // pred_region
        %s367 = ssub.s32 %s26, 1
        %s368 = sand.u32 %s39, 1
        %s369 = scalar_lea.sflag [#allocation6], %s368
        %s370 = sand.u32 %s39, 1
        %s371 = smul.addr %s370, 32
        %s372 = scalar_lea.vmem [#allocation5], %s371
        // Predicated region
        $region53: #{tpu_custom_call.1} parent=51 // pred_check
          %p373 = pneg %p52
        $region54: #{tpu_custom_call.1} parent=51 // pred_check_branch
          %375 = sbr.rel (%p373) target = $region56
        $region55: #{tpu_custom_call.1} parent=51 // pred_region
          %376 = dma.done %s369, 512
        $region56: #{tpu_custom_call.1} parent=51 // pred_fallthru
          _
        %s377 = sand.u32 %s31, 1
        %s378 = scalar_lea.sflag [#allocation9], %s377
        %s379 = sand.u32 %s65, 1
        %s380 = smul.addr %s379, 128
        %s381 = scalar_lea.vmem [#allocation8], %s380
        // Predicated region
        $region57: #{tpu_custom_call.1} parent=51 // pred_check
          %p382 = pneg %p78
        $region58: #{tpu_custom_call.1} parent=51 // pred_check_branch
          %384 = sbr.rel (%p382) target = $region60
        $region59: #{tpu_custom_call.1} parent=51 // pred_region
          %385 = dma.done %s378, 2048
        $region60: #{tpu_custom_call.1} parent=51 // pred_fallthru
          _
        // Predicated region
        $region61: #{tpu_custom_call.1} parent=51 // pred_check
          %p386 = pneg %p99
        $region62: #{tpu_custom_call.1} parent=51 // pred_check_branch
          %388 = sbr.rel (%p386) target = $region64
        $region63: #{tpu_custom_call.1} parent=51 // pred_region
          %389 = dma.done [#allocation9], 18432
        $region64: #{tpu_custom_call.1} parent=51 // pred_fallthru
          _
        // Predicated region
        $region65: #{tpu_custom_call.1} parent=51 // pred_check
          %p390 = pneg %p120
        $region66: #{tpu_custom_call.1} parent=51 // pred_check_branch
          %392 = sbr.rel (%p390) target = $region68
        $region67: #{tpu_custom_call.1} parent=51 // pred_region
          %393 = dma.done [#allocation12], 16
        $region68: #{tpu_custom_call.1} parent=51 // pred_fallthru
          _
        // Predicated region
        $region69: #{tpu_custom_call.1} parent=51 // pred_check
          %p394 = pneg %p141
        $region70: #{tpu_custom_call.1} parent=51 // pred_check_branch
          %396 = sbr.rel (%p394) target = $region72
        $region71: #{tpu_custom_call.1} parent=51 // pred_region
          %397 = dma.done [#allocation12], 16
        $region72: #{tpu_custom_call.1} parent=51 // pred_fallthru
          _
        // Predicated region
        $region73: #{tpu_custom_call.1} parent=51 // pred_check
          %p398 = pneg %p162
        $region74: #{tpu_custom_call.1} parent=51 // pred_check_branch
          %400 = sbr.rel (%p398) target = $region76
        $region75: #{tpu_custom_call.1} parent=51 // pred_region
          %401 = dma.done [#allocation15], 9216
        $region76: #{tpu_custom_call.1} parent=51 // pred_fallthru
          _
        // Predicated region
        $region77: #{tpu_custom_call.1} parent=51 // pred_check
          %p402 = pneg %p183
        $region78: #{tpu_custom_call.1} parent=51 // pred_check_branch
          %404 = sbr.rel (%p402) target = $region80
        $region79: #{tpu_custom_call.1} parent=51 // pred_region
          %405 = dma.done [#allocation15], 16
        $region80: #{tpu_custom_call.1} parent=51 // pred_fallthru
          _
        // Predicated region
        $region81: #{tpu_custom_call.1} parent=51 // pred_check
          %p406 = pneg %p204
        $region82: #{tpu_custom_call.1} parent=51 // pred_check_branch
          %408 = sbr.rel (%p406) target = $region84
        $region83: #{tpu_custom_call.1} parent=51 // pred_region
          %409 = dma.done [#allocation18], 16
        $region84: #{tpu_custom_call.1} parent=51 // pred_fallthru
          _
        %s410 = sand.u32 %s39, 1
        %s411 = scalar_lea.sflag [#allocation6], %s410
        %s412 = sand.u32 %s39, 1
        %s413 = smul.addr %s412, 32
        %s414 = scalar_lea.vmem [#allocation5], %s413
        %p415 = pneg %p52
        %p416 = pneg %p49
        %s417 = sand.u32 %s31, 1
        %s418 = scalar_lea.sflag [#allocation9], %s417
        %s419 = sand.u32 %s65, 1
        %s420 = smul.addr %s419, 128
        %s421 = scalar_lea.vmem [#allocation8], %s420
        %p422 = pneg %p78
        %p423 = pneg %p75
        %p424 = pneg %p99
        %p425 = pneg %p96
        %p426 = pneg %p120
        %p427 = pneg %p117
        %p428 = pneg %p141
        %p429 = pneg %p138
        %p430 = pneg %p162
        %p431 = pneg %p159
        %p432 = pneg %p183
        %p433 = pneg %p180
        %p434 = pneg %p204
        %p435 = pneg %p201
        %p436 = pneg %p230
        %p437 = pneg %p227
        %s438 = sand.u32 %s217, 1
        %s439 = scalar_lea.sflag [#allocation7], %s438
        %s440 = sand.u32 %s217, 1
        %s441 = smul.addr %s440, 256
        %s442 = scalar_lea.vmem [#allocation19], %s441
        %s444 = scalar_lea.vmem [#allocation3], 768
        %445 = vst [vmem:[%s444] sm:$0xff] 0.0
        %446 = vst [vmem:[%s444 + $0x8] sm:$0xff] 0.0
        %447 = vst [vmem:[%s444 + $0x10] sm:$0xff] 0.0
        %448 = vst [vmem:[%s444 + $0x18] sm:$0xff] 0.0
        %449 = vst [vmem:[%s444 + $0x20] sm:$0xff] 0.0
        %450 = vst [vmem:[%s444 + $0x28] sm:$0xff] 0.0
        %451 = vst [vmem:[%s444 + $0x30] sm:$0xff] 0.0
        %452 = vst [vmem:[%s444 + $0x38] sm:$0xff] 0.0
        %453 = vst [vmem:[%s444 + $0x40] sm:$0xff] 0.0
        %454 = vst [vmem:[%s444 + $0x48] sm:$0xff] 0.0
        %455 = vst [vmem:[%s444 + $0x50] sm:$0xff] 0.0
        %456 = vst [vmem:[%s444 + $0x58] sm:$0xff] 0.0
        %457 = vst [vmem:[#allocation3 + $0x20] sm:$0xff] 0.0
        %458 = vst [vmem:[#allocation3 + $0x28] sm:$0xff] 0.0
        %459 = vst [vmem:[#allocation3 + $0x50] sm:$0xff] 0.0
        %460 = vst [vmem:[#allocation3 + $0x58] sm:$0xff] 0.0
        %461 = vst [vmem:[#allocation3 + $0x80] sm:$0xff] 0.0
        %462 = vst [vmem:[#allocation3 + $0x88] sm:$0xff] 0.0
        %463 = vst [vmem:[#allocation3 + $0xb0] sm:$0xff] 0.0
        %464 = vst [vmem:[#allocation3 + $0xb8] sm:$0xff] 0.0
        %465 = vst [vmem:[#allocation3 + $0xe0] sm:$0xff] 0.0
        %466 = vst [vmem:[#allocation3 + $0xe8] sm:$0xff] 0.0
        %467 = vst [vmem:[#allocation3 + $0x110] sm:$0xff] 0.0
        %468 = vst [vmem:[#allocation3 + $0x118] sm:$0xff] 0.0
        %469 = vst [vmem:[#allocation3 + $0x140] sm:$0xff] 0.0
        %470 = vst [vmem:[#allocation3 + $0x148] sm:$0xff] 0.0
        %471 = vst [vmem:[#allocation3 + $0x170] sm:$0xff] 0.0
        %472 = vst [vmem:[#allocation3 + $0x178] sm:$0xff] 0.0
        %473 = vst [vmem:[#allocation3 + $0x1a0] sm:$0xff] 0.0
        %474 = vst [vmem:[#allocation3 + $0x1a8] sm:$0xff] 0.0
        %475 = vst [vmem:[#allocation3 + $0x1d0] sm:$0xff] 0.0
        %476 = vst [vmem:[#allocation3 + $0x1d8] sm:$0xff] 0.0
        %477 = vst [vmem:[#allocation3 + $0x200] sm:$0xff] 0.0
        %478 = vst [vmem:[#allocation3 + $0x208] sm:$0xff] 0.0
        %479 = vst [vmem:[#allocation3 + $0x230] sm:$0xff] 0.0
        %480 = vst [vmem:[#allocation3 + $0x238] sm:$0xff] 0.0
        %481 = vst [vmem:[#allocation3 + $0x260] sm:$0xff] 0.0
        %482 = vst [vmem:[#allocation3 + $0x268] sm:$0xff] 0.0
        %483 = vst [vmem:[#allocation3 + $0x290] sm:$0xff] 0.0
        %484 = vst [vmem:[#allocation3 + $0x298] sm:$0xff] 0.0
        %485 = vst [vmem:[#allocation3 + $0x2c0] sm:$0xff] 0.0
        %486 = vst [vmem:[#allocation3 + $0x2c8] sm:$0xff] 0.0
        %487 = vst [vmem:[#allocation3 + $0x2f0] sm:$0xff] 0.0
        %488 = vst [vmem:[#allocation3 + $0x2f8] sm:$0xff] 0.0
        %s489 = scalar_lea.vmem [#allocation4], 384
        %490 = vst [vmem:[%s489] sm:$0xff] 0.0
        %491 = vst [vmem:[%s489 + $0x8] sm:$0xff] 0.0
        %492 = vst [vmem:[%s489 + $0x10] sm:$0xff] 0.0
        %493 = vst [vmem:[%s489 + $0x18] sm:$0xff] 0.0
        %494 = vst [vmem:[%s489 + $0x20] sm:$0xff] 0.0
        %495 = vst [vmem:[%s489 + $0x28] sm:$0xff] 0.0
        %496 = vst [vmem:[#allocation4 + $0x10] sm:$0xff] 0.0
        %497 = vst [vmem:[#allocation4 + $0x28] sm:$0xff] 0.0
        %498 = vst [vmem:[#allocation4 + $0x40] sm:$0xff] 0.0
        %499 = vst [vmem:[#allocation4 + $0x58] sm:$0xff] 0.0
        %500 = vst [vmem:[#allocation4 + $0x70] sm:$0xff] 0.0
        %501 = vst [vmem:[#allocation4 + $0x88] sm:$0xff] 0.0
        %502 = vst [vmem:[#allocation4 + $0xa0] sm:$0xff] 0.0
        %503 = vst [vmem:[#allocation4 + $0xb8] sm:$0xff] 0.0
        %504 = vst [vmem:[#allocation4 + $0xd0] sm:$0xff] 0.0
        %505 = vst [vmem:[#allocation4 + $0xe8] sm:$0xff] 0.0
        %506 = vst [vmem:[#allocation4 + $0x100] sm:$0xff] 0.0
        %507 = vst [vmem:[#allocation4 + $0x118] sm:$0xff] 0.0
        %508 = vst [vmem:[#allocation4 + $0x130] sm:$0xff] 0.0
        %509 = vst [vmem:[#allocation4 + $0x148] sm:$0xff] 0.0
        %510 = vst [vmem:[#allocation4 + $0x160] sm:$0xff] 0.0
        %511 = vst [vmem:[#allocation4 + $0x178] sm:$0xff] 0.0
        %v512 = vld [vmem:[%s372] sm:$0x1]
        %v513 = vld [vmem:[%s372 + $0x4] sm:$0x1]
        %v514 = vld [vmem:[%s372 + $0x8] sm:$0x1]
        %v515 = vld [vmem:[%s372 + $0xc] sm:$0x1]
        %v516 = vld [vmem:[%s372 + $0x10] sm:$0x1]
        %v517 = vld [vmem:[%s372 + $0x14] sm:$0x1]
        %v518 = vld [vmem:[%s372 + $0x18] sm:$0x1]
        %v519 = vld [vmem:[%s372 + $0x1c] sm:$0x1]
        %v520 = vunpack.c.l.bf16 %v512
        %v521 = vunpack.c.l.bf16 %v513
        %v522 = vunpack.c.l.bf16 %v514
        %v523 = vunpack.c.l.bf16 %v515
        %v524 = vunpack.c.l.bf16 %v516
        %v525 = vunpack.c.l.bf16 %v517
        %v526 = vunpack.c.l.bf16 %v518
        %v527 = vunpack.c.l.bf16 %v519
        %v528 = vmul.f32 %v520, 0.0
        %v529 = vmul.f32 %v521, 0.0
        %v530 = vmul.f32 %v522, 0.0
        %v531 = vmul.f32 %v523, 0.0
        %v532 = vmul.f32 %v524, 0.0
        %v533 = vmul.f32 %v525, 0.0
        %v534 = vmul.f32 %v526, 0.0
        %v535 = vmul.f32 %v527, 0.0
        %v544 = vrot.slane %v528, 1
        %v545 = vrot.slane %v529, 1
        %v546 = vrot.slane %v530, 1
        %v547 = vrot.slane %v531, 1
        %v548 = vrot.slane %v532, 1
        %v549 = vrot.slane %v533, 1
        %v550 = vrot.slane %v534, 1
        %v551 = vrot.slane %v535, 1
        %v560 = vadd.f32 %v520, %v544
        %v561 = vadd.f32 %v521, %v545
        %v562 = vadd.f32 %v522, %v546
        %v563 = vadd.f32 %v523, %v547
        %v564 = vadd.f32 %v524, %v548
        %v565 = vadd.f32 %v525, %v549
        %v566 = vadd.f32 %v526, %v550
        %v567 = vadd.f32 %v527, %v551
        %568 = vst [vmem:[#allocation2] sm:$0x1] %v560
        %569 = vst [vmem:[#allocation2 + $0x10] sm:$0x1] %v561
        %570 = vst [vmem:[#allocation2 + $0x20] sm:$0x1] %v562
        %571 = vst [vmem:[#allocation2 + $0x30] sm:$0x1] %v563
        %572 = vst [vmem:[#allocation2 + $0x40] sm:$0x1] %v564
        %573 = vst [vmem:[#allocation2 + $0x50] sm:$0x1] %v565
        %574 = vst [vmem:[#allocation2 + $0x60] sm:$0x1] %v566
        %575 = vst [vmem:[#allocation2 + $0x70] sm:$0x1] %v567
        %v576 = vld [vmem:[%s372] sm:$0x1]
        %v577 = vld [vmem:[%s372 + $0x4] sm:$0x1]
        %v578 = vld [vmem:[%s372 + $0x8] sm:$0x1]
        %v579 = vld [vmem:[%s372 + $0xc] sm:$0x1]
        %v580 = vld [vmem:[%s372 + $0x10] sm:$0x1]
        %v581 = vld [vmem:[%s372 + $0x14] sm:$0x1]
        %v582 = vld [vmem:[%s372 + $0x18] sm:$0x1]
        %v583 = vld [vmem:[%s372 + $0x1c] sm:$0x1]
        %v584 = vunpack.c.l.bf16 %v576
        %v585 = vunpack.c.l.bf16 %v577
        %v586 = vunpack.c.l.bf16 %v578
        %v587 = vunpack.c.l.bf16 %v579
        %v588 = vunpack.c.l.bf16 %v580
        %v589 = vunpack.c.l.bf16 %v581
        %v590 = vunpack.c.l.bf16 %v582
        %v591 = vunpack.c.l.bf16 %v583
        %v592 = vmul.f32 %v584, 0.53333336
        %v593 = vmul.f32 %v585, 0.53333336
        %v594 = vmul.f32 %v586, 0.53333336
        %v595 = vmul.f32 %v587, 0.53333336
        %v596 = vmul.f32 %v588, 0.53333336
        %v597 = vmul.f32 %v589, 0.53333336
        %v598 = vmul.f32 %v590, 0.53333336
        %v599 = vmul.f32 %v591, 0.53333336
        %v600 = vmul.f32 %v584, 0.46666667
        %v601 = vmul.f32 %v585, 0.46666667
        %v602 = vmul.f32 %v586, 0.46666667
        %v603 = vmul.f32 %v587, 0.46666667
        %v604 = vmul.f32 %v588, 0.46666667
        %v605 = vmul.f32 %v589, 0.46666667
        %v606 = vmul.f32 %v590, 0.46666667
        %v607 = vmul.f32 %v591, 0.46666667
        %v616 = vrot.slane %v600, 1
        %v617 = vrot.slane %v601, 1
        %v618 = vrot.slane %v602, 1
        %v619 = vrot.slane %v603, 1
        %v620 = vrot.slane %v604, 1
        %v621 = vrot.slane %v605, 1
        %v622 = vrot.slane %v606, 1
        %v623 = vrot.slane %v607, 1
        %v632 = vadd.f32 %v592, %v616
        %v633 = vadd.f32 %v593, %v617
        %v634 = vadd.f32 %v594, %v618
        %v635 = vadd.f32 %v595, %v619
        %v636 = vadd.f32 %v596, %v620
        %v637 = vadd.f32 %v597, %v621
        %v638 = vadd.f32 %v598, %v622
        %v639 = vadd.f32 %v599, %v623
        %640 = vst [vmem:[#allocation2 + $0x1] sm:$0x1] %v632
        %641 = vst [vmem:[#allocation2 + $0x11] sm:$0x1] %v633
        %642 = vst [vmem:[#allocation2 + $0x21] sm:$0x1] %v634
        %643 = vst [vmem:[#allocation2 + $0x31] sm:$0x1] %v635
        %644 = vst [vmem:[#allocation2 + $0x41] sm:$0x1] %v636
        %645 = vst [vmem:[#allocation2 + $0x51] sm:$0x1] %v637
        %646 = vst [vmem:[#allocation2 + $0x61] sm:$0x1] %v638
        %647 = vst [vmem:[#allocation2 + $0x71] sm:$0x1] %v639
        %v648 = vld [vmem:[%s372] sm:$0x1]
        %v649 = vld [vmem:[%s372 + $0x4] sm:$0x1]
        %v650 = vld [vmem:[%s372 + $0x8] sm:$0x1]
        %v651 = vld [vmem:[%s372 + $0xc] sm:$0x1]
        %v652 = vld [vmem:[%s372 + $0x10] sm:$0x1]
        %v653 = vld [vmem:[%s372 + $0x14] sm:$0x1]
        %v654 = vld [vmem:[%s372 + $0x18] sm:$0x1]
        %v655 = vld [vmem:[%s372 + $0x1c] sm:$0x1]
        %v656 = vunpack.c.l.bf16 %v648
        %v657 = vunpack.c.l.bf16 %v649
        %v658 = vunpack.c.l.bf16 %v650
        %v659 = vunpack.c.l.bf16 %v651
        %v660 = vunpack.c.l.bf16 %v652
        %v661 = vunpack.c.l.bf16 %v653
        %v662 = vunpack.c.l.bf16 %v654
        %v663 = vunpack.c.l.bf16 %v655
        %v664 = vmul.f32 %v656, 0.06666667
        %v665 = vmul.f32 %v657, 0.06666667
        %v666 = vmul.f32 %v658, 0.06666667
        %v667 = vmul.f32 %v659, 0.06666667
        %v668 = vmul.f32 %v660, 0.06666667
        %v669 = vmul.f32 %v661, 0.06666667
        %v670 = vmul.f32 %v662, 0.06666667
        %v671 = vmul.f32 %v663, 0.06666667
        %v672 = vmul.f32 %v656, 0.93333334
        %v673 = vmul.f32 %v657, 0.93333334
        %v674 = vmul.f32 %v658, 0.93333334
        %v675 = vmul.f32 %v659, 0.93333334
        %v676 = vmul.f32 %v660, 0.93333334
        %v677 = vmul.f32 %v661, 0.93333334
        %v678 = vmul.f32 %v662, 0.93333334
        %v679 = vmul.f32 %v663, 0.93333334
        %v688 = vrot.slane %v672, 1
        %v689 = vrot.slane %v673, 1
        %v690 = vrot.slane %v674, 1
        %v691 = vrot.slane %v675, 1
        %v692 = vrot.slane %v676, 1
        %v693 = vrot.slane %v677, 1
        %v694 = vrot.slane %v678, 1
        %v695 = vrot.slane %v679, 1
        %v704 = vadd.f32 %v664, %v688
        %v705 = vadd.f32 %v665, %v689
        %v706 = vadd.f32 %v666, %v690
        %v707 = vadd.f32 %v667, %v691
        %v708 = vadd.f32 %v668, %v692
        %v709 = vadd.f32 %v669, %v693
        %v710 = vadd.f32 %v670, %v694
        %v711 = vadd.f32 %v671, %v695
        %712 = vst [vmem:[#allocation2 + $0x2] sm:$0x1] %v704
        %713 = vst [vmem:[#allocation2 + $0x12] sm:$0x1] %v705
        %714 = vst [vmem:[#allocation2 + $0x22] sm:$0x1] %v706
        %715 = vst [vmem:[#allocation2 + $0x32] sm:$0x1] %v707
        %716 = vst [vmem:[#allocation2 + $0x42] sm:$0x1] %v708
        %717 = vst [vmem:[#allocation2 + $0x52] sm:$0x1] %v709
        %718 = vst [vmem:[#allocation2 + $0x62] sm:$0x1] %v710
        %719 = vst [vmem:[#allocation2 + $0x72] sm:$0x1] %v711
        %v720 = vld [vmem:[%s372] sm:$0x1]
        %v721 = vld [vmem:[%s372 + $0x4] sm:$0x1]
        %v722 = vld [vmem:[%s372 + $0x8] sm:$0x1]
        %v723 = vld [vmem:[%s372 + $0xc] sm:$0x1]
        %v724 = vld [vmem:[%s372 + $0x10] sm:$0x1]
        %v725 = vld [vmem:[%s372 + $0x14] sm:$0x1]
        %v726 = vld [vmem:[%s372 + $0x18] sm:$0x1]
        %v727 = vld [vmem:[%s372 + $0x1c] sm:$0x1]
        %v728 = vunpack.c.l.bf16 %v720
        %v729 = vunpack.c.l.bf16 %v721
        %v730 = vunpack.c.l.bf16 %v722
        %v731 = vunpack.c.l.bf16 %v723
        %v732 = vunpack.c.l.bf16 %v724
        %v733 = vunpack.c.l.bf16 %v725
        %v734 = vunpack.c.l.bf16 %v726
        %v735 = vunpack.c.l.bf16 %v727
        %v736 = vmul.f32 %v728, 0.6
        %v737 = vmul.f32 %v729, 0.6
        %v738 = vmul.f32 %v730, 0.6
        %v739 = vmul.f32 %v731, 0.6
        %v740 = vmul.f32 %v732, 0.6
        %v741 = vmul.f32 %v733, 0.6
        %v742 = vmul.f32 %v734, 0.6
        %v743 = vmul.f32 %v735, 0.6
        %v744 = vld [vmem:[%s372] sm:$0x2]
        %v745 = vld [vmem:[%s372 + $0x4] sm:$0x2]
        %v746 = vld [vmem:[%s372 + $0x8] sm:$0x2]
        %v747 = vld [vmem:[%s372 + $0xc] sm:$0x2]
        %v748 = vld [vmem:[%s372 + $0x10] sm:$0x2]
        %v749 = vld [vmem:[%s372 + $0x14] sm:$0x2]
        %v750 = vld [vmem:[%s372 + $0x18] sm:$0x2]
        %v751 = vld [vmem:[%s372 + $0x1c] sm:$0x2]
        %v752 = vunpack.c.l.bf16 %v744
        %v753 = vunpack.c.l.bf16 %v745
        %v754 = vunpack.c.l.bf16 %v746
        %v755 = vunpack.c.l.bf16 %v747
        %v756 = vunpack.c.l.bf16 %v748
        %v757 = vunpack.c.l.bf16 %v749
        %v758 = vunpack.c.l.bf16 %v750
        %v759 = vunpack.c.l.bf16 %v751
        %v760 = vmul.f32 %v752, 0.4
        %v761 = vmul.f32 %v753, 0.4
        %v762 = vmul.f32 %v754, 0.4
        %v763 = vmul.f32 %v755, 0.4
        %v764 = vmul.f32 %v756, 0.4
        %v765 = vmul.f32 %v757, 0.4
        %v766 = vmul.f32 %v758, 0.4
        %v767 = vmul.f32 %v759, 0.4
        %v776 = vrot.slane %v760, 1
        %v777 = vrot.slane %v761, 1
        %v778 = vrot.slane %v762, 1
        %v779 = vrot.slane %v763, 1
        %v780 = vrot.slane %v764, 1
        %v781 = vrot.slane %v765, 1
        %v782 = vrot.slane %v766, 1
        %v783 = vrot.slane %v767, 1
        %v792 = vadd.f32 %v736, %v776
        %v793 = vadd.f32 %v737, %v777
        %v794 = vadd.f32 %v738, %v778
        %v795 = vadd.f32 %v739, %v779
        %v796 = vadd.f32 %v740, %v780
        %v797 = vadd.f32 %v741, %v781
        %v798 = vadd.f32 %v742, %v782
        %v799 = vadd.f32 %v743, %v783
        %800 = vst [vmem:[#allocation2 + $0x2] sm:$0x2] %v792
        %801 = vst [vmem:[#allocation2 + $0x12] sm:$0x2] %v793
        %802 = vst [vmem:[#allocation2 + $0x22] sm:$0x2] %v794
        %803 = vst [vmem:[#allocation2 + $0x32] sm:$0x2] %v795
        %804 = vst [vmem:[#allocation2 + $0x42] sm:$0x2] %v796
        %805 = vst [vmem:[#allocation2 + $0x52] sm:$0x2] %v797
        %806 = vst [vmem:[#allocation2 + $0x62] sm:$0x2] %v798
        %807 = vst [vmem:[#allocation2 + $0x72] sm:$0x2] %v799
        %v808 = vld [vmem:[%s372] sm:$0x1]
        %v809 = vld [vmem:[%s372 + $0x4] sm:$0x1]
        %v810 = vld [vmem:[%s372 + $0x8] sm:$0x1]
        %v811 = vld [vmem:[%s372 + $0xc] sm:$0x1]
        %v812 = vld [vmem:[%s372 + $0x10] sm:$0x1]
        %v813 = vld [vmem:[%s372 + $0x14] sm:$0x1]
        %v814 = vld [vmem:[%s372 + $0x18] sm:$0x1]
        %v815 = vld [vmem:[%s372 + $0x1c] sm:$0x1]
        %v816 = vunpack.c.l.bf16 %v808
        %v817 = vunpack.c.l.bf16 %v809
        %v818 = vunpack.c.l.bf16 %v810
        %v819 = vunpack.c.l.bf16 %v811
        %v820 = vunpack.c.l.bf16 %v812
        %v821 = vunpack.c.l.bf16 %v813
        %v822 = vunpack.c.l.bf16 %v814
        %v823 = vunpack.c.l.bf16 %v815
        %v824 = vmul.f32 %v816, 0.13333334
        %v825 = vmul.f32 %v817, 0.13333334
        %v826 = vmul.f32 %v818, 0.13333334
        %v827 = vmul.f32 %v819, 0.13333334
        %v828 = vmul.f32 %v820, 0.13333334
        %v829 = vmul.f32 %v821, 0.13333334
        %v830 = vmul.f32 %v822, 0.13333334
        %v831 = vmul.f32 %v823, 0.13333334
        %v832 = vld [vmem:[%s372] sm:$0x2]
        %v833 = vld [vmem:[%s372 + $0x4] sm:$0x2]
        %v834 = vld [vmem:[%s372 + $0x8] sm:$0x2]
        %v835 = vld [vmem:[%s372 + $0xc] sm:$0x2]
        %v836 = vld [vmem:[%s372 + $0x10] sm:$0x2]
        %v837 = vld [vmem:[%s372 + $0x14] sm:$0x2]
        %v838 = vld [vmem:[%s372 + $0x18] sm:$0x2]
        %v839 = vld [vmem:[%s372 + $0x1c] sm:$0x2]
        %v840 = vunpack.c.l.bf16 %v832
        %v841 = vunpack.c.l.bf16 %v833
        %v842 = vunpack.c.l.bf16 %v834
        %v843 = vunpack.c.l.bf16 %v835
        %v844 = vunpack.c.l.bf16 %v836
        %v845 = vunpack.c.l.bf16 %v837
        %v846 = vunpack.c.l.bf16 %v838
        %v847 = vunpack.c.l.bf16 %v839
        %v848 = vmul.f32 %v840, 0.8666667
        %v849 = vmul.f32 %v841, 0.8666667
        %v850 = vmul.f32 %v842, 0.8666667
        %v851 = vmul.f32 %v843, 0.8666667
        %v852 = vmul.f32 %v844, 0.8666667
        %v853 = vmul.f32 %v845, 0.8666667
        %v854 = vmul.f32 %v846, 0.8666667
        %v855 = vmul.f32 %v847, 0.8666667
        %v864 = vrot.slane %v848, 1
        %v865 = vrot.slane %v849, 1
        %v866 = vrot.slane %v850, 1
        %v867 = vrot.slane %v851, 1
        %v868 = vrot.slane %v852, 1
        %v869 = vrot.slane %v853, 1
        %v870 = vrot.slane %v854, 1
        %v871 = vrot.slane %v855, 1
        %v880 = vadd.f32 %v824, %v864
        %v881 = vadd.f32 %v825, %v865
        %v882 = vadd.f32 %v826, %v866
        %v883 = vadd.f32 %v827, %v867
        %v884 = vadd.f32 %v828, %v868
        %v885 = vadd.f32 %v829, %v869
        %v886 = vadd.f32 %v830, %v870
        %v887 = vadd.f32 %v831, %v871
        %888 = vst [vmem:[#allocation2 + $0x3] sm:$0x2] %v880
        %889 = vst [vmem:[#allocation2 + $0x13] sm:$0x2] %v881
        %890 = vst [vmem:[#allocation2 + $0x23] sm:$0x2] %v882
        %891 = vst [vmem:[#allocation2 + $0x33] sm:$0x2] %v883
        %892 = vst [vmem:[#allocation2 + $0x43] sm:$0x2] %v884
        %893 = vst [vmem:[#allocation2 + $0x53] sm:$0x2] %v885
        %894 = vst [vmem:[#allocation2 + $0x63] sm:$0x2] %v886
        %895 = vst [vmem:[#allocation2 + $0x73] sm:$0x2] %v887
        %v896 = vld [vmem:[%s372] sm:$0x2]
        %v897 = vld [vmem:[%s372 + $0x4] sm:$0x2]
        %v898 = vld [vmem:[%s372 + $0x8] sm:$0x2]
        %v899 = vld [vmem:[%s372 + $0xc] sm:$0x2]
        %v900 = vld [vmem:[%s372 + $0x10] sm:$0x2]
        %v901 = vld [vmem:[%s372 + $0x14] sm:$0x2]
        %v902 = vld [vmem:[%s372 + $0x18] sm:$0x2]
        %v903 = vld [vmem:[%s372 + $0x1c] sm:$0x2]
        %v904 = vunpack.c.l.bf16 %v896
        %v905 = vunpack.c.l.bf16 %v897
        %v906 = vunpack.c.l.bf16 %v898
        %v907 = vunpack.c.l.bf16 %v899
        %v908 = vunpack.c.l.bf16 %v900
        %v909 = vunpack.c.l.bf16 %v901
        %v910 = vunpack.c.l.bf16 %v902
        %v911 = vunpack.c.l.bf16 %v903
        %v912 = vmul.f32 %v904, 0.6666667
        %v913 = vmul.f32 %v905, 0.6666667
        %v914 = vmul.f32 %v906, 0.6666667
        %v915 = vmul.f32 %v907, 0.6666667
        %v916 = vmul.f32 %v908, 0.6666667
        %v917 = vmul.f32 %v909, 0.6666667
        %v918 = vmul.f32 %v910, 0.6666667
        %v919 = vmul.f32 %v911, 0.6666667
        %v920 = vmul.f32 %v904, 0.33333334
        %v921 = vmul.f32 %v905, 0.33333334
        %v922 = vmul.f32 %v906, 0.33333334
        %v923 = vmul.f32 %v907, 0.33333334
        %v924 = vmul.f32 %v908, 0.33333334
        %v925 = vmul.f32 %v909, 0.33333334
        %v926 = vmul.f32 %v910, 0.33333334
        %v927 = vmul.f32 %v911, 0.33333334
        %v936 = vrot.slane %v920, 1
        %v937 = vrot.slane %v921, 1
        %v938 = vrot.slane %v922, 1
        %v939 = vrot.slane %v923, 1
        %v940 = vrot.slane %v924, 1
        %v941 = vrot.slane %v925, 1
        %v942 = vrot.slane %v926, 1
        %v943 = vrot.slane %v927, 1
        %v952 = vadd.f32 %v912, %v936
        %v953 = vadd.f32 %v913, %v937
        %v954 = vadd.f32 %v914, %v938
        %v955 = vadd.f32 %v915, %v939
        %v956 = vadd.f32 %v916, %v940
        %v957 = vadd.f32 %v917, %v941
        %v958 = vadd.f32 %v918, %v942
        %v959 = vadd.f32 %v919, %v943
        %960 = vst [vmem:[#allocation2 + $0x3] sm:$0x4] %v952
        %961 = vst [vmem:[#allocation2 + $0x13] sm:$0x4] %v953
        %962 = vst [vmem:[#allocation2 + $0x23] sm:$0x4] %v954
        %963 = vst [vmem:[#allocation2 + $0x33] sm:$0x4] %v955
        %964 = vst [vmem:[#allocation2 + $0x43] sm:$0x4] %v956
        %965 = vst [vmem:[#allocation2 + $0x53] sm:$0x4] %v957
        %966 = vst [vmem:[#allocation2 + $0x63] sm:$0x4] %v958
        %967 = vst [vmem:[#allocation2 + $0x73] sm:$0x4] %v959
        %v968 = vld [vmem:[%s372] sm:$0x2]
        %v969 = vld [vmem:[%s372 + $0x4] sm:$0x2]
        %v970 = vld [vmem:[%s372 + $0x8] sm:$0x2]
        %v971 = vld [vmem:[%s372 + $0xc] sm:$0x2]
        %v972 = vld [vmem:[%s372 + $0x10] sm:$0x2]
        %v973 = vld [vmem:[%s372 + $0x14] sm:$0x2]
        %v974 = vld [vmem:[%s372 + $0x18] sm:$0x2]
        %v975 = vld [vmem:[%s372 + $0x1c] sm:$0x2]
        %v976 = vunpack.c.l.bf16 %v968
        %v977 = vunpack.c.l.bf16 %v969
        %v978 = vunpack.c.l.bf16 %v970
        %v979 = vunpack.c.l.bf16 %v971
        %v980 = vunpack.c.l.bf16 %v972
        %v981 = vunpack.c.l.bf16 %v973
        %v982 = vunpack.c.l.bf16 %v974
        %v983 = vunpack.c.l.bf16 %v975
        %v984 = vmul.f32 %v976, 0.2
        %v985 = vmul.f32 %v977, 0.2
        %v986 = vmul.f32 %v978, 0.2
        %v987 = vmul.f32 %v979, 0.2
        %v988 = vmul.f32 %v980, 0.2
        %v989 = vmul.f32 %v981, 0.2
        %v990 = vmul.f32 %v982, 0.2
        %v991 = vmul.f32 %v983, 0.2
        %v992 = vmul.f32 %v976, 0.8
        %v993 = vmul.f32 %v977, 0.8
        %v994 = vmul.f32 %v978, 0.8
        %v995 = vmul.f32 %v979, 0.8
        %v996 = vmul.f32 %v980, 0.8
        %v997 = vmul.f32 %v981, 0.8
        %v998 = vmul.f32 %v982, 0.8
        %v999 = vmul.f32 %v983, 0.8
        %v1008 = vrot.slane %v992, 1
        %v1009 = vrot.slane %v993, 1
        %v1010 = vrot.slane %v994, 1
        %v1011 = vrot.slane %v995, 1
        %v1012 = vrot.slane %v996, 1
        %v1013 = vrot.slane %v997, 1
        %v1014 = vrot.slane %v998, 1
        %v1015 = vrot.slane %v999, 1
        %v1024 = vadd.f32 %v984, %v1008
        %v1025 = vadd.f32 %v985, %v1009
        %v1026 = vadd.f32 %v986, %v1010
        %v1027 = vadd.f32 %v987, %v1011
        %v1028 = vadd.f32 %v988, %v1012
        %v1029 = vadd.f32 %v989, %v1013
        %v1030 = vadd.f32 %v990, %v1014
        %v1031 = vadd.f32 %v991, %v1015
        %1032 = vst [vmem:[#allocation2 + $0x4] sm:$0x4] %v1024
        %1033 = vst [vmem:[#allocation2 + $0x14] sm:$0x4] %v1025
        %1034 = vst [vmem:[#allocation2 + $0x24] sm:$0x4] %v1026
        %1035 = vst [vmem:[#allocation2 + $0x34] sm:$0x4] %v1027
        %1036 = vst [vmem:[#allocation2 + $0x44] sm:$0x4] %v1028
        %1037 = vst [vmem:[#allocation2 + $0x54] sm:$0x4] %v1029
        %1038 = vst [vmem:[#allocation2 + $0x64] sm:$0x4] %v1030
        %1039 = vst [vmem:[#allocation2 + $0x74] sm:$0x4] %v1031
        %v1040 = vld [vmem:[%s372] sm:$0x2]
        %v1041 = vld [vmem:[%s372 + $0x4] sm:$0x2]
        %v1042 = vld [vmem:[%s372 + $0x8] sm:$0x2]
        %v1043 = vld [vmem:[%s372 + $0xc] sm:$0x2]
        %v1044 = vld [vmem:[%s372 + $0x10] sm:$0x2]
        %v1045 = vld [vmem:[%s372 + $0x14] sm:$0x2]
        %v1046 = vld [vmem:[%s372 + $0x18] sm:$0x2]
        %v1047 = vld [vmem:[%s372 + $0x1c] sm:$0x2]
        %v1048 = vunpack.c.l.bf16 %v1040
        %v1049 = vunpack.c.l.bf16 %v1041
        %v1050 = vunpack.c.l.bf16 %v1042
        %v1051 = vunpack.c.l.bf16 %v1043
        %v1052 = vunpack.c.l.bf16 %v1044
        %v1053 = vunpack.c.l.bf16 %v1045
        %v1054 = vunpack.c.l.bf16 %v1046
        %v1055 = vunpack.c.l.bf16 %v1047
        %v1056 = vmul.f32 %v1048, 0.73333335
        %v1057 = vmul.f32 %v1049, 0.73333335
        %v1058 = vmul.f32 %v1050, 0.73333335
        %v1059 = vmul.f32 %v1051, 0.73333335
        %v1060 = vmul.f32 %v1052, 0.73333335
        %v1061 = vmul.f32 %v1053, 0.73333335
        %v1062 = vmul.f32 %v1054, 0.73333335
        %v1063 = vmul.f32 %v1055, 0.73333335
        %v1064 = vld [vmem:[%s372] sm:$0x4]
        %v1065 = vld [vmem:[%s372 + $0x4] sm:$0x4]
        %v1066 = vld [vmem:[%s372 + $0x8] sm:$0x4]
        %v1067 = vld [vmem:[%s372 + $0xc] sm:$0x4]
        %v1068 = vld [vmem:[%s372 + $0x10] sm:$0x4]
        %v1069 = vld [vmem:[%s372 + $0x14] sm:$0x4]
        %v1070 = vld [vmem:[%s372 + $0x18] sm:$0x4]
        %v1071 = vld [vmem:[%s372 + $0x1c] sm:$0x4]
        %v1072 = vunpack.c.l.bf16 %v1064
        %v1073 = vunpack.c.l.bf16 %v1065
        %v1074 = vunpack.c.l.bf16 %v1066
        %v1075 = vunpack.c.l.bf16 %v1067
        %v1076 = vunpack.c.l.bf16 %v1068
        %v1077 = vunpack.c.l.bf16 %v1069
        %v1078 = vunpack.c.l.bf16 %v1070
        %v1079 = vunpack.c.l.bf16 %v1071
        %v1080 = vmul.f32 %v1072, 0.26666668
        %v1081 = vmul.f32 %v1073, 0.26666668
        %v1082 = vmul.f32 %v1074, 0.26666668
        %v1083 = vmul.f32 %v1075, 0.26666668
        %v1084 = vmul.f32 %v1076, 0.26666668
        %v1085 = vmul.f32 %v1077, 0.26666668
        %v1086 = vmul.f32 %v1078, 0.26666668
        %v1087 = vmul.f32 %v1079, 0.26666668
        %v1096 = vrot.slane %v1080, 1
        %v1097 = vrot.slane %v1081, 1
        %v1098 = vrot.slane %v1082, 1
        %v1099 = vrot.slane %v1083, 1
        %v1100 = vrot.slane %v1084, 1
        %v1101 = vrot.slane %v1085, 1
        %v1102 = vrot.slane %v1086, 1
        %v1103 = vrot.slane %v1087, 1
        %v1112 = vadd.f32 %v1056, %v1096
        %v1113 = vadd.f32 %v1057, %v1097
        %v1114 = vadd.f32 %v1058, %v1098
        %v1115 = vadd.f32 %v1059, %v1099
        %v1116 = vadd.f32 %v1060, %v1100
        %v1117 = vadd.f32 %v1061, %v1101
        %v1118 = vadd.f32 %v1062, %v1102
        %v1119 = vadd.f32 %v1063, %v1103
        %1120 = vst [vmem:[#allocation2 + $0x4] sm:$0x8] %v1112
        %1121 = vst [vmem:[#allocation2 + $0x14] sm:$0x8] %v1113
        %1122 = vst [vmem:[#allocation2 + $0x24] sm:$0x8] %v1114
        %1123 = vst [vmem:[#allocation2 + $0x34] sm:$0x8] %v1115
        %1124 = vst [vmem:[#allocation2 + $0x44] sm:$0x8] %v1116
        %1125 = vst [vmem:[#allocation2 + $0x54] sm:$0x8] %v1117
        %1126 = vst [vmem:[#allocation2 + $0x64] sm:$0x8] %v1118
        %1127 = vst [vmem:[#allocation2 + $0x74] sm:$0x8] %v1119
        %v1128 = vld [vmem:[%s372] sm:$0x2]
        %v1129 = vld [vmem:[%s372 + $0x4] sm:$0x2]
        %v1130 = vld [vmem:[%s372 + $0x8] sm:$0x2]
        %v1131 = vld [vmem:[%s372 + $0xc] sm:$0x2]
        %v1132 = vld [vmem:[%s372 + $0x10] sm:$0x2]
        %v1133 = vld [vmem:[%s372 + $0x14] sm:$0x2]
        %v1134 = vld [vmem:[%s372 + $0x18] sm:$0x2]
        %v1135 = vld [vmem:[%s372 + $0x1c] sm:$0x2]
        %v1136 = vunpack.c.l.bf16 %v1128
        %v1137 = vunpack.c.l.bf16 %v1129
        %v1138 = vunpack.c.l.bf16 %v1130
        %v1139 = vunpack.c.l.bf16 %v1131
        %v1140 = vunpack.c.l.bf16 %v1132
        %v1141 = vunpack.c.l.bf16 %v1133
        %v1142 = vunpack.c.l.bf16 %v1134
        %v1143 = vunpack.c.l.bf16 %v1135
        %v1144 = vmul.f32 %v1136, 0.26666668
        %v1145 = vmul.f32 %v1137, 0.26666668
        %v1146 = vmul.f32 %v1138, 0.26666668
        %v1147 = vmul.f32 %v1139, 0.26666668
        %v1148 = vmul.f32 %v1140, 0.26666668
        %v1149 = vmul.f32 %v1141, 0.26666668
        %v1150 = vmul.f32 %v1142, 0.26666668
        %v1151 = vmul.f32 %v1143, 0.26666668
        %v1152 = vld [vmem:[%s372] sm:$0x4]
        %v1153 = vld [vmem:[%s372 + $0x4] sm:$0x4]
        %v1154 = vld [vmem:[%s372 + $0x8] sm:$0x4]
        %v1155 = vld [vmem:[%s372 + $0xc] sm:$0x4]
        %v1156 = vld [vmem:[%s372 + $0x10] sm:$0x4]
        %v1157 = vld [vmem:[%s372 + $0x14] sm:$0x4]
        %v1158 = vld [vmem:[%s372 + $0x18] sm:$0x4]
        %v1159 = vld [vmem:[%s372 + $0x1c] sm:$0x4]
        %v1160 = vunpack.c.l.bf16 %v1152
        %v1161 = vunpack.c.l.bf16 %v1153
        %v1162 = vunpack.c.l.bf16 %v1154
        %v1163 = vunpack.c.l.bf16 %v1155
        %v1164 = vunpack.c.l.bf16 %v1156
        %v1165 = vunpack.c.l.bf16 %v1157
        %v1166 = vunpack.c.l.bf16 %v1158
        %v1167 = vunpack.c.l.bf16 %v1159
        %v1168 = vmul.f32 %v1160, 0.73333335
        %v1169 = vmul.f32 %v1161, 0.73333335
        %v1170 = vmul.f32 %v1162, 0.73333335
        %v1171 = vmul.f32 %v1163, 0.73333335
        %v1172 = vmul.f32 %v1164, 0.73333335
        %v1173 = vmul.f32 %v1165, 0.73333335
        %v1174 = vmul.f32 %v1166, 0.73333335
        %v1175 = vmul.f32 %v1167, 0.73333335
        %v1184 = vrot.slane %v1168, 1
        %v1185 = vrot.slane %v1169, 1
        %v1186 = vrot.slane %v1170, 1
        %v1187 = vrot.slane %v1171, 1
        %v1188 = vrot.slane %v1172, 1
        %v1189 = vrot.slane %v1173, 1
        %v1190 = vrot.slane %v1174, 1
        %v1191 = vrot.slane %v1175, 1
        %v1200 = vadd.f32 %v1144, %v1184
        %v1201 = vadd.f32 %v1145, %v1185
        %v1202 = vadd.f32 %v1146, %v1186
        %v1203 = vadd.f32 %v1147, %v1187
        %v1204 = vadd.f32 %v1148, %v1188
        %v1205 = vadd.f32 %v1149, %v1189
        %v1206 = vadd.f32 %v1150, %v1190
        %v1207 = vadd.f32 %v1151, %v1191
        %1208 = vst [vmem:[#allocation2 + $0x5] sm:$0x8] %v1200
        %1209 = vst [vmem:[#allocation2 + $0x15] sm:$0x8] %v1201
        %1210 = vst [vmem:[#allocation2 + $0x25] sm:$0x8] %v1202
        %1211 = vst [vmem:[#allocation2 + $0x35] sm:$0x8] %v1203
        %1212 = vst [vmem:[#allocation2 + $0x45] sm:$0x8] %v1204
        %1213 = vst [vmem:[#allocation2 + $0x55] sm:$0x8] %v1205
        %1214 = vst [vmem:[#allocation2 + $0x65] sm:$0x8] %v1206
        %1215 = vst [vmem:[#allocation2 + $0x75] sm:$0x8] %v1207
        %v1216 = vld [vmem:[%s372] sm:$0x4]
        %v1217 = vld [vmem:[%s372 + $0x4] sm:$0x4]
        %v1218 = vld [vmem:[%s372 + $0x8] sm:$0x4]
        %v1219 = vld [vmem:[%s372 + $0xc] sm:$0x4]
        %v1220 = vld [vmem:[%s372 + $0x10] sm:$0x4]
        %v1221 = vld [vmem:[%s372 + $0x14] sm:$0x4]
        %v1222 = vld [vmem:[%s372 + $0x18] sm:$0x4]
        %v1223 = vld [vmem:[%s372 + $0x1c] sm:$0x4]
        %v1224 = vunpack.c.l.bf16 %v1216
        %v1225 = vunpack.c.l.bf16 %v1217
        %v1226 = vunpack.c.l.bf16 %v1218
        %v1227 = vunpack.c.l.bf16 %v1219
        %v1228 = vunpack.c.l.bf16 %v1220
        %v1229 = vunpack.c.l.bf16 %v1221
        %v1230 = vunpack.c.l.bf16 %v1222
        %v1231 = vunpack.c.l.bf16 %v1223
        %v1232 = vmul.f32 %v1224, 0.8
        %v1233 = vmul.f32 %v1225, 0.8
        %v1234 = vmul.f32 %v1226, 0.8
        %v1235 = vmul.f32 %v1227, 0.8
        %v1236 = vmul.f32 %v1228, 0.8
        %v1237 = vmul.f32 %v1229, 0.8
        %v1238 = vmul.f32 %v1230, 0.8
        %v1239 = vmul.f32 %v1231, 0.8
        %v1240 = vmul.f32 %v1224, 0.2
        %v1241 = vmul.f32 %v1225, 0.2
        %v1242 = vmul.f32 %v1226, 0.2
        %v1243 = vmul.f32 %v1227, 0.2
        %v1244 = vmul.f32 %v1228, 0.2
        %v1245 = vmul.f32 %v1229, 0.2
        %v1246 = vmul.f32 %v1230, 0.2
        %v1247 = vmul.f32 %v1231, 0.2
        %v1256 = vrot.slane %v1240, 1
        %v1257 = vrot.slane %v1241, 1
        %v1258 = vrot.slane %v1242, 1
        %v1259 = vrot.slane %v1243, 1
        %v1260 = vrot.slane %v1244, 1
        %v1261 = vrot.slane %v1245, 1
        %v1262 = vrot.slane %v1246, 1
        %v1263 = vrot.slane %v1247, 1
        %v1272 = vadd.f32 %v1232, %v1256
        %v1273 = vadd.f32 %v1233, %v1257
        %v1274 = vadd.f32 %v1234, %v1258
        %v1275 = vadd.f32 %v1235, %v1259
        %v1276 = vadd.f32 %v1236, %v1260
        %v1277 = vadd.f32 %v1237, %v1261
        %v1278 = vadd.f32 %v1238, %v1262
        %v1279 = vadd.f32 %v1239, %v1263
        %1280 = vst [vmem:[#allocation2 + $0x5] sm:$0x10] %v1272
        %1281 = vst [vmem:[#allocation2 + $0x15] sm:$0x10] %v1273
        %1282 = vst [vmem:[#allocation2 + $0x25] sm:$0x10] %v1274
        %1283 = vst [vmem:[#allocation2 + $0x35] sm:$0x10] %v1275
        %1284 = vst [vmem:[#allocation2 + $0x45] sm:$0x10] %v1276
        %1285 = vst [vmem:[#allocation2 + $0x55] sm:$0x10] %v1277
        %1286 = vst [vmem:[#allocation2 + $0x65] sm:$0x10] %v1278
        %1287 = vst [vmem:[#allocation2 + $0x75] sm:$0x10] %v1279
        %v1288 = vld [vmem:[%s372] sm:$0x4]
        %v1289 = vld [vmem:[%s372 + $0x4] sm:$0x4]
        %v1290 = vld [vmem:[%s372 + $0x8] sm:$0x4]
        %v1291 = vld [vmem:[%s372 + $0xc] sm:$0x4]
        %v1292 = vld [vmem:[%s372 + $0x10] sm:$0x4]
        %v1293 = vld [vmem:[%s372 + $0x14] sm:$0x4]
        %v1294 = vld [vmem:[%s372 + $0x18] sm:$0x4]
        %v1295 = vld [vmem:[%s372 + $0x1c] sm:$0x4]
        %v1296 = vunpack.c.l.bf16 %v1288
        %v1297 = vunpack.c.l.bf16 %v1289
        %v1298 = vunpack.c.l.bf16 %v1290
        %v1299 = vunpack.c.l.bf16 %v1291
        %v1300 = vunpack.c.l.bf16 %v1292
        %v1301 = vunpack.c.l.bf16 %v1293
        %v1302 = vunpack.c.l.bf16 %v1294
        %v1303 = vunpack.c.l.bf16 %v1295
        %v1304 = vmul.f32 %v1296, 0.33333334
        %v1305 = vmul.f32 %v1297, 0.33333334
        %v1306 = vmul.f32 %v1298, 0.33333334
        %v1307 = vmul.f32 %v1299, 0.33333334
        %v1308 = vmul.f32 %v1300, 0.33333334
        %v1309 = vmul.f32 %v1301, 0.33333334
        %v1310 = vmul.f32 %v1302, 0.33333334
        %v1311 = vmul.f32 %v1303, 0.33333334
        %v1312 = vmul.f32 %v1296, 0.6666667
        %v1313 = vmul.f32 %v1297, 0.6666667
        %v1314 = vmul.f32 %v1298, 0.6666667
        %v1315 = vmul.f32 %v1299, 0.6666667
        %v1316 = vmul.f32 %v1300, 0.6666667
        %v1317 = vmul.f32 %v1301, 0.6666667
        %v1318 = vmul.f32 %v1302, 0.6666667
        %v1319 = vmul.f32 %v1303, 0.6666667
        %v1328 = vrot.slane %v1312, 1
        %v1329 = vrot.slane %v1313, 1
        %v1330 = vrot.slane %v1314, 1
        %v1331 = vrot.slane %v1315, 1
        %v1332 = vrot.slane %v1316, 1
        %v1333 = vrot.slane %v1317, 1
        %v1334 = vrot.slane %v1318, 1
        %v1335 = vrot.slane %v1319, 1
        %v1344 = vadd.f32 %v1304, %v1328
        %v1345 = vadd.f32 %v1305, %v1329
        %v1346 = vadd.f32 %v1306, %v1330
        %v1347 = vadd.f32 %v1307, %v1331
        %v1348 = vadd.f32 %v1308, %v1332
        %v1349 = vadd.f32 %v1309, %v1333
        %v1350 = vadd.f32 %v1310, %v1334
        %v1351 = vadd.f32 %v1311, %v1335
        %1352 = vst [vmem:[#allocation2 + $0x6] sm:$0x10] %v1344
        %1353 = vst [vmem:[#allocation2 + $0x16] sm:$0x10] %v1345
        %1354 = vst [vmem:[#allocation2 + $0x26] sm:$0x10] %v1346
        %1355 = vst [vmem:[#allocation2 + $0x36] sm:$0x10] %v1347
        %1356 = vst [vmem:[#allocation2 + $0x46] sm:$0x10] %v1348
        %1357 = vst [vmem:[#allocation2 + $0x56] sm:$0x10] %v1349
        %1358 = vst [vmem:[#allocation2 + $0x66] sm:$0x10] %v1350
        %1359 = vst [vmem:[#allocation2 + $0x76] sm:$0x10] %v1351
        %v1360 = vld [vmem:[%s372] sm:$0x4]
        %v1361 = vld [vmem:[%s372 + $0x4] sm:$0x4]
        %v1362 = vld [vmem:[%s372 + $0x8] sm:$0x4]
        %v1363 = vld [vmem:[%s372 + $0xc] sm:$0x4]
        %v1364 = vld [vmem:[%s372 + $0x10] sm:$0x4]
        %v1365 = vld [vmem:[%s372 + $0x14] sm:$0x4]
        %v1366 = vld [vmem:[%s372 + $0x18] sm:$0x4]
        %v1367 = vld [vmem:[%s372 + $0x1c] sm:$0x4]
        %v1368 = vunpack.c.l.bf16 %v1360
        %v1369 = vunpack.c.l.bf16 %v1361
        %v1370 = vunpack.c.l.bf16 %v1362
        %v1371 = vunpack.c.l.bf16 %v1363
        %v1372 = vunpack.c.l.bf16 %v1364
        %v1373 = vunpack.c.l.bf16 %v1365
        %v1374 = vunpack.c.l.bf16 %v1366
        %v1375 = vunpack.c.l.bf16 %v1367
        %v1376 = vmul.f32 %v1368, 0.8666667
        %v1377 = vmul.f32 %v1369, 0.8666667
        %v1378 = vmul.f32 %v1370, 0.8666667
        %v1379 = vmul.f32 %v1371, 0.8666667
        %v1380 = vmul.f32 %v1372, 0.8666667
        %v1381 = vmul.f32 %v1373, 0.8666667
        %v1382 = vmul.f32 %v1374, 0.8666667
        %v1383 = vmul.f32 %v1375, 0.8666667
        %v1384 = vld [vmem:[%s372] sm:$0x8]
        %v1385 = vld [vmem:[%s372 + $0x4] sm:$0x8]
        %v1386 = vld [vmem:[%s372 + $0x8] sm:$0x8]
        %v1387 = vld [vmem:[%s372 + $0xc] sm:$0x8]
        %v1388 = vld [vmem:[%s372 + $0x10] sm:$0x8]
        %v1389 = vld [vmem:[%s372 + $0x14] sm:$0x8]
        %v1390 = vld [vmem:[%s372 + $0x18] sm:$0x8]
        %v1391 = vld [vmem:[%s372 + $0x1c] sm:$0x8]
        %v1392 = vunpack.c.l.bf16 %v1384
        %v1393 = vunpack.c.l.bf16 %v1385
        %v1394 = vunpack.c.l.bf16 %v1386
        %v1395 = vunpack.c.l.bf16 %v1387
        %v1396 = vunpack.c.l.bf16 %v1388
        %v1397 = vunpack.c.l.bf16 %v1389
        %v1398 = vunpack.c.l.bf16 %v1390
        %v1399 = vunpack.c.l.bf16 %v1391
        %v1400 = vmul.f32 %v1392, 0.13333334
        %v1401 = vmul.f32 %v1393, 0.13333334
        %v1402 = vmul.f32 %v1394, 0.13333334
        %v1403 = vmul.f32 %v1395, 0.13333334
        %v1404 = vmul.f32 %v1396, 0.13333334
        %v1405 = vmul.f32 %v1397, 0.13333334
        %v1406 = vmul.f32 %v1398, 0.13333334
        %v1407 = vmul.f32 %v1399, 0.13333334
        %v1416 = vrot.slane %v1400, 1
        %v1417 = vrot.slane %v1401, 1
        %v1418 = vrot.slane %v1402, 1
        %v1419 = vrot.slane %v1403, 1
        %v1420 = vrot.slane %v1404, 1
        %v1421 = vrot.slane %v1405, 1
        %v1422 = vrot.slane %v1406, 1
        %v1423 = vrot.slane %v1407, 1
        %v1432 = vadd.f32 %v1376, %v1416
        %v1433 = vadd.f32 %v1377, %v1417
        %v1434 = vadd.f32 %v1378, %v1418
        %v1435 = vadd.f32 %v1379, %v1419
        %v1436 = vadd.f32 %v1380, %v1420
        %v1437 = vadd.f32 %v1381, %v1421
        %v1438 = vadd.f32 %v1382, %v1422
        %v1439 = vadd.f32 %v1383, %v1423
        %1440 = vst [vmem:[#allocation2 + $0x6] sm:$0x20] %v1432
        %1441 = vst [vmem:[#allocation2 + $0x16] sm:$0x20] %v1433
        %1442 = vst [vmem:[#allocation2 + $0x26] sm:$0x20] %v1434
        %1443 = vst [vmem:[#allocation2 + $0x36] sm:$0x20] %v1435
        %1444 = vst [vmem:[#allocation2 + $0x46] sm:$0x20] %v1436
        %1445 = vst [vmem:[#allocation2 + $0x56] sm:$0x20] %v1437
        %1446 = vst [vmem:[#allocation2 + $0x66] sm:$0x20] %v1438
        %1447 = vst [vmem:[#allocation2 + $0x76] sm:$0x20] %v1439
        %v1448 = vld [vmem:[%s372] sm:$0x4]
        %v1449 = vld [vmem:[%s372 + $0x4] sm:$0x4]
        %v1450 = vld [vmem:[%s372 + $0x8] sm:$0x4]
        %v1451 = vld [vmem:[%s372 + $0xc] sm:$0x4]
        %v1452 = vld [vmem:[%s372 + $0x10] sm:$0x4]
        %v1453 = vld [vmem:[%s372 + $0x14] sm:$0x4]
        %v1454 = vld [vmem:[%s372 + $0x18] sm:$0x4]
        %v1455 = vld [vmem:[%s372 + $0x1c] sm:$0x4]
        %v1456 = vunpack.c.l.bf16 %v1448
        %v1457 = vunpack.c.l.bf16 %v1449
        %v1458 = vunpack.c.l.bf16 %v1450
        %v1459 = vunpack.c.l.bf16 %v1451
        %v1460 = vunpack.c.l.bf16 %v1452
        %v1461 = vunpack.c.l.bf16 %v1453
        %v1462 = vunpack.c.l.bf16 %v1454
        %v1463 = vunpack.c.l.bf16 %v1455
        %v1464 = vmul.f32 %v1456, 0.4
        %v1465 = vmul.f32 %v1457, 0.4
        %v1466 = vmul.f32 %v1458, 0.4
        %v1467 = vmul.f32 %v1459, 0.4
        %v1468 = vmul.f32 %v1460, 0.4
        %v1469 = vmul.f32 %v1461, 0.4
        %v1470 = vmul.f32 %v1462, 0.4
        %v1471 = vmul.f32 %v1463, 0.4
        %v1472 = vld [vmem:[%s372] sm:$0x8]
        %v1473 = vld [vmem:[%s372 + $0x4] sm:$0x8]
        %v1474 = vld [vmem:[%s372 + $0x8] sm:$0x8]
        %v1475 = vld [vmem:[%s372 + $0xc] sm:$0x8]
        %v1476 = vld [vmem:[%s372 + $0x10] sm:$0x8]
        %v1477 = vld [vmem:[%s372 + $0x14] sm:$0x8]
        %v1478 = vld [vmem:[%s372 + $0x18] sm:$0x8]
        %v1479 = vld [vmem:[%s372 + $0x1c] sm:$0x8]
        %v1480 = vunpack.c.l.bf16 %v1472
        %v1481 = vunpack.c.l.bf16 %v1473
        %v1482 = vunpack.c.l.bf16 %v1474
        %v1483 = vunpack.c.l.bf16 %v1475
        %v1484 = vunpack.c.l.bf16 %v1476
        %v1485 = vunpack.c.l.bf16 %v1477
        %v1486 = vunpack.c.l.bf16 %v1478
        %v1487 = vunpack.c.l.bf16 %v1479
        %v1488 = vmul.f32 %v1480, 0.6
        %v1489 = vmul.f32 %v1481, 0.6
        %v1490 = vmul.f32 %v1482, 0.6
        %v1491 = vmul.f32 %v1483, 0.6
        %v1492 = vmul.f32 %v1484, 0.6
        %v1493 = vmul.f32 %v1485, 0.6
        %v1494 = vmul.f32 %v1486, 0.6
        %v1495 = vmul.f32 %v1487, 0.6
        %v1504 = vrot.slane %v1488, 1
        %v1505 = vrot.slane %v1489, 1
        %v1506 = vrot.slane %v1490, 1
        %v1507 = vrot.slane %v1491, 1
        %v1508 = vrot.slane %v1492, 1
        %v1509 = vrot.slane %v1493, 1
        %v1510 = vrot.slane %v1494, 1
        %v1511 = vrot.slane %v1495, 1
        %v1520 = vadd.f32 %v1464, %v1504
        %v1521 = vadd.f32 %v1465, %v1505
        %v1522 = vadd.f32 %v1466, %v1506
        %v1523 = vadd.f32 %v1467, %v1507
        %v1524 = vadd.f32 %v1468, %v1508
        %v1525 = vadd.f32 %v1469, %v1509
        %v1526 = vadd.f32 %v1470, %v1510
        %v1527 = vadd.f32 %v1471, %v1511
        %1528 = vst [vmem:[#allocation2 + $0x7] sm:$0x20] %v1520
        %1529 = vst [vmem:[#allocation2 + $0x17] sm:$0x20] %v1521
        %1530 = vst [vmem:[#allocation2 + $0x27] sm:$0x20] %v1522
        %1531 = vst [vmem:[#allocation2 + $0x37] sm:$0x20] %v1523
        %1532 = vst [vmem:[#allocation2 + $0x47] sm:$0x20] %v1524
        %1533 = vst [vmem:[#allocation2 + $0x57] sm:$0x20] %v1525
        %1534 = vst [vmem:[#allocation2 + $0x67] sm:$0x20] %v1526
        %1535 = vst [vmem:[#allocation2 + $0x77] sm:$0x20] %v1527
        %v1536 = vld [vmem:[%s372] sm:$0x8]
        %v1537 = vld [vmem:[%s372 + $0x4] sm:$0x8]
        %v1538 = vld [vmem:[%s372 + $0x8] sm:$0x8]
        %v1539 = vld [vmem:[%s372 + $0xc] sm:$0x8]
        %v1540 = vld [vmem:[%s372 + $0x10] sm:$0x8]
        %v1541 = vld [vmem:[%s372 + $0x14] sm:$0x8]
        %v1542 = vld [vmem:[%s372 + $0x18] sm:$0x8]
        %v1543 = vld [vmem:[%s372 + $0x1c] sm:$0x8]
        %v1544 = vunpack.c.l.bf16 %v1536
        %v1545 = vunpack.c.l.bf16 %v1537
        %v1546 = vunpack.c.l.bf16 %v1538
        %v1547 = vunpack.c.l.bf16 %v1539
        %v1548 = vunpack.c.l.bf16 %v1540
        %v1549 = vunpack.c.l.bf16 %v1541
        %v1550 = vunpack.c.l.bf16 %v1542
        %v1551 = vunpack.c.l.bf16 %v1543
        %v1552 = vmul.f32 %v1544, 0.93333334
        %v1553 = vmul.f32 %v1545, 0.93333334
        %v1554 = vmul.f32 %v1546, 0.93333334
        %v1555 = vmul.f32 %v1547, 0.93333334
        %v1556 = vmul.f32 %v1548, 0.93333334
        %v1557 = vmul.f32 %v1549, 0.93333334
        %v1558 = vmul.f32 %v1550, 0.93333334
        %v1559 = vmul.f32 %v1551, 0.93333334
        %v1560 = vmul.f32 %v1544, 0.06666667
        %v1561 = vmul.f32 %v1545, 0.06666667
        %v1562 = vmul.f32 %v1546, 0.06666667
        %v1563 = vmul.f32 %v1547, 0.06666667
        %v1564 = vmul.f32 %v1548, 0.06666667
        %v1565 = vmul.f32 %v1549, 0.06666667
        %v1566 = vmul.f32 %v1550, 0.06666667
        %v1567 = vmul.f32 %v1551, 0.06666667
        %v1576 = vrot.slane %v1560, 1
        %v1577 = vrot.slane %v1561, 1
        %v1578 = vrot.slane %v1562, 1
        %v1579 = vrot.slane %v1563, 1
        %v1580 = vrot.slane %v1564, 1
        %v1581 = vrot.slane %v1565, 1
        %v1582 = vrot.slane %v1566, 1
        %v1583 = vrot.slane %v1567, 1
        %v1592 = vadd.f32 %v1552, %v1576
        %v1593 = vadd.f32 %v1553, %v1577
        %v1594 = vadd.f32 %v1554, %v1578
        %v1595 = vadd.f32 %v1555, %v1579
        %v1596 = vadd.f32 %v1556, %v1580
        %v1597 = vadd.f32 %v1557, %v1581
        %v1598 = vadd.f32 %v1558, %v1582
        %v1599 = vadd.f32 %v1559, %v1583
        %1600 = vst [vmem:[#allocation2 + $0x7] sm:$0x40] %v1592
        %1601 = vst [vmem:[#allocation2 + $0x17] sm:$0x40] %v1593
        %1602 = vst [vmem:[#allocation2 + $0x27] sm:$0x40] %v1594
        %1603 = vst [vmem:[#allocation2 + $0x37] sm:$0x40] %v1595
        %1604 = vst [vmem:[#allocation2 + $0x47] sm:$0x40] %v1596
        %1605 = vst [vmem:[#allocation2 + $0x57] sm:$0x40] %v1597
        %1606 = vst [vmem:[#allocation2 + $0x67] sm:$0x40] %v1598
        %1607 = vst [vmem:[#allocation2 + $0x77] sm:$0x40] %v1599
        %v1608 = vld [vmem:[%s372] sm:$0x8]
        %v1609 = vld [vmem:[%s372 + $0x4] sm:$0x8]
        %v1610 = vld [vmem:[%s372 + $0x8] sm:$0x8]
        %v1611 = vld [vmem:[%s372 + $0xc] sm:$0x8]
        %v1612 = vld [vmem:[%s372 + $0x10] sm:$0x8]
        %v1613 = vld [vmem:[%s372 + $0x14] sm:$0x8]
        %v1614 = vld [vmem:[%s372 + $0x18] sm:$0x8]
        %v1615 = vld [vmem:[%s372 + $0x1c] sm:$0x8]
        %v1616 = vunpack.c.l.bf16 %v1608
        %v1617 = vunpack.c.l.bf16 %v1609
        %v1618 = vunpack.c.l.bf16 %v1610
        %v1619 = vunpack.c.l.bf16 %v1611
        %v1620 = vunpack.c.l.bf16 %v1612
        %v1621 = vunpack.c.l.bf16 %v1613
        %v1622 = vunpack.c.l.bf16 %v1614
        %v1623 = vunpack.c.l.bf16 %v1615
        %v1624 = vmul.f32 %v1616, 0.46666667
        %v1625 = vmul.f32 %v1617, 0.46666667
        %v1626 = vmul.f32 %v1618, 0.46666667
        %v1627 = vmul.f32 %v1619, 0.46666667
        %v1628 = vmul.f32 %v1620, 0.46666667
        %v1629 = vmul.f32 %v1621, 0.46666667
        %v1630 = vmul.f32 %v1622, 0.46666667
        %v1631 = vmul.f32 %v1623, 0.46666667
        %v1632 = vmul.f32 %v1616, 0.53333336
        %v1633 = vmul.f32 %v1617, 0.53333336
        %v1634 = vmul.f32 %v1618, 0.53333336
        %v1635 = vmul.f32 %v1619, 0.53333336
        %v1636 = vmul.f32 %v1620, 0.53333336
        %v1637 = vmul.f32 %v1621, 0.53333336
        %v1638 = vmul.f32 %v1622, 0.53333336
        %v1639 = vmul.f32 %v1623, 0.53333336
        %v1648 = vrot.slane %v1632, 1
        %v1649 = vrot.slane %v1633, 1
        %v1650 = vrot.slane %v1634, 1
        %v1651 = vrot.slane %v1635, 1
        %v1652 = vrot.slane %v1636, 1
        %v1653 = vrot.slane %v1637, 1
        %v1654 = vrot.slane %v1638, 1
        %v1655 = vrot.slane %v1639, 1
        %v1664 = vadd.f32 %v1624, %v1648
        %v1665 = vadd.f32 %v1625, %v1649
        %v1666 = vadd.f32 %v1626, %v1650
        %v1667 = vadd.f32 %v1627, %v1651
        %v1668 = vadd.f32 %v1628, %v1652
        %v1669 = vadd.f32 %v1629, %v1653
        %v1670 = vadd.f32 %v1630, %v1654
        %v1671 = vadd.f32 %v1631, %v1655
        %1672 = vst [vmem:[#allocation2 + $0x8] sm:$0x40] %v1664
        %1673 = vst [vmem:[#allocation2 + $0x18] sm:$0x40] %v1665
        %1674 = vst [vmem:[#allocation2 + $0x28] sm:$0x40] %v1666
        %1675 = vst [vmem:[#allocation2 + $0x38] sm:$0x40] %v1667
        %1676 = vst [vmem:[#allocation2 + $0x48] sm:$0x40] %v1668
        %1677 = vst [vmem:[#allocation2 + $0x58] sm:$0x40] %v1669
        %1678 = vst [vmem:[#allocation2 + $0x68] sm:$0x40] %v1670
        %1679 = vst [vmem:[#allocation2 + $0x78] sm:$0x40] %v1671
        %v1680 = vld [vmem:[%s372] sm:$0x8]
        %v1681 = vld [vmem:[%s372 + $0x4] sm:$0x8]
        %v1682 = vld [vmem:[%s372 + $0x8] sm:$0x8]
        %v1683 = vld [vmem:[%s372 + $0xc] sm:$0x8]
        %v1684 = vld [vmem:[%s372 + $0x10] sm:$0x8]
        %v1685 = vld [vmem:[%s372 + $0x14] sm:$0x8]
        %v1686 = vld [vmem:[%s372 + $0x18] sm:$0x8]
        %v1687 = vld [vmem:[%s372 + $0x1c] sm:$0x8]
        %v1688 = vunpack.c.l.bf16 %v1680
        %v1689 = vunpack.c.l.bf16 %v1681
        %v1690 = vunpack.c.l.bf16 %v1682
        %v1691 = vunpack.c.l.bf16 %v1683
        %v1692 = vunpack.c.l.bf16 %v1684
        %v1693 = vunpack.c.l.bf16 %v1685
        %v1694 = vunpack.c.l.bf16 %v1686
        %v1695 = vunpack.c.l.bf16 %v1687
        %v1696 = vmul.f32 %v1688, 0.0
        %v1697 = vmul.f32 %v1689, 0.0
        %v1698 = vmul.f32 %v1690, 0.0
        %v1699 = vmul.f32 %v1691, 0.0
        %v1700 = vmul.f32 %v1692, 0.0
        %v1701 = vmul.f32 %v1693, 0.0
        %v1702 = vmul.f32 %v1694, 0.0
        %v1703 = vmul.f32 %v1695, 0.0
        %v1712 = vrot.slane %v1688, 1
        %v1713 = vrot.slane %v1689, 1
        %v1714 = vrot.slane %v1690, 1
        %v1715 = vrot.slane %v1691, 1
        %v1716 = vrot.slane %v1692, 1
        %v1717 = vrot.slane %v1693, 1
        %v1718 = vrot.slane %v1694, 1
        %v1719 = vrot.slane %v1695, 1
        %v1728 = vadd.f32 %v1696, %v1712
        %v1729 = vadd.f32 %v1697, %v1713
        %v1730 = vadd.f32 %v1698, %v1714
        %v1731 = vadd.f32 %v1699, %v1715
        %v1732 = vadd.f32 %v1700, %v1716
        %v1733 = vadd.f32 %v1701, %v1717
        %v1734 = vadd.f32 %v1702, %v1718
        %v1735 = vadd.f32 %v1703, %v1719
        %1736 = vst [vmem:[#allocation2 + $0x9] sm:$0x40] %v1728
        %1737 = vst [vmem:[#allocation2 + $0x19] sm:$0x40] %v1729
        %1738 = vst [vmem:[#allocation2 + $0x29] sm:$0x40] %v1730
        %1739 = vst [vmem:[#allocation2 + $0x39] sm:$0x40] %v1731
        %1740 = vst [vmem:[#allocation2 + $0x49] sm:$0x40] %v1732
        %1741 = vst [vmem:[#allocation2 + $0x59] sm:$0x40] %v1733
        %1742 = vst [vmem:[#allocation2 + $0x69] sm:$0x40] %v1734
        %1743 = vst [vmem:[#allocation2 + $0x79] sm:$0x40] %v1735
        %v1744 = vld [vmem:[#allocation2] sm:$0xff]
        %v1745 = vld [vmem:[#allocation2 + $0x8] sm:$0xff]
        %s1746 = scalar_lea.vmem [#allocation2], 16
        %v1747 = vld [vmem:[%s1746] sm:$0xff]
        %v1748 = vld [vmem:[%s1746 + $0x8] sm:$0xff]
        %v1749 = vmul.f32 %v1747, 0.0
        %v1750 = vmul.f32 %v1748, 0.0
        %v1751 = vadd.f32 %v1744, %v1749
        %v1752 = vadd.f32 %v1745, %v1750
        %1753 = vst [vmem:[#allocation3] sm:$0xff] %v1751
        %1754 = vst [vmem:[#allocation3 + $0x10] sm:$0xff] %v1752
        %v1755 = vld [vmem:[#allocation2] sm:$0xff]
        %v1756 = vld [vmem:[#allocation2 + $0x8] sm:$0xff]
        %v1757 = vmul.f32 %v1755, 0.53333336
        %v1758 = vmul.f32 %v1756, 0.53333336
        %v1759 = vld [vmem:[%s1746] sm:$0xff]
        %v1760 = vld [vmem:[%s1746 + $0x8] sm:$0xff]
        %v1761 = vmul.f32 %v1759, 0.46666667
        %v1762 = vmul.f32 %v1760, 0.46666667
        %v1763 = vadd.f32 %v1757, %v1761
        %v1764 = vadd.f32 %v1758, %v1762
        %s1765 = scalar_lea.vmem [#allocation3], 48
        %1766 = vst [vmem:[%s1765] sm:$0xff] %v1763
        %1767 = vst [vmem:[%s1765 + $0x10] sm:$0xff] %v1764
        %v1768 = vld [vmem:[#allocation2] sm:$0xff]
        %v1769 = vld [vmem:[#allocation2 + $0x8] sm:$0xff]
        %v1770 = vmul.f32 %v1768, 0.06666667
        %v1771 = vmul.f32 %v1769, 0.06666667
        %v1772 = vld [vmem:[%s1746] sm:$0xff]
        %v1773 = vld [vmem:[%s1746 + $0x8] sm:$0xff]
        %v1774 = vmul.f32 %v1772, 0.93333334
        %v1775 = vmul.f32 %v1773, 0.93333334
        %v1776 = vadd.f32 %v1770, %v1774
        %v1777 = vadd.f32 %v1771, %v1775
        %s1778 = scalar_lea.vmem [#allocation3], 96
        %1779 = vst [vmem:[%s1778] sm:$0xff] %v1776
        %1780 = vst [vmem:[%s1778 + $0x10] sm:$0xff] %v1777
        %v1781 = vld [vmem:[%s1746] sm:$0xff]
        %v1782 = vld [vmem:[%s1746 + $0x8] sm:$0xff]
        %v1783 = vmul.f32 %v1781, 0.6
        %v1784 = vmul.f32 %v1782, 0.6
        %s1785 = scalar_lea.vmem [#allocation2], 32
        %v1786 = vld [vmem:[%s1785] sm:$0xff]
        %v1787 = vld [vmem:[%s1785 + $0x8] sm:$0xff]
        %v1788 = vmul.f32 %v1786, 0.4
        %v1789 = vmul.f32 %v1787, 0.4
        %v1790 = vadd.f32 %v1783, %v1788
        %v1791 = vadd.f32 %v1784, %v1789
        %s1792 = scalar_lea.vmem [#allocation3], 144
        %1793 = vst [vmem:[%s1792] sm:$0xff] %v1790
        %1794 = vst [vmem:[%s1792 + $0x10] sm:$0xff] %v1791
        %v1795 = vld [vmem:[%s1746] sm:$0xff]
        %v1796 = vld [vmem:[%s1746 + $0x8] sm:$0xff]
        %v1797 = vmul.f32 %v1795, 0.13333334
        %v1798 = vmul.f32 %v1796, 0.13333334
        %v1799 = vld [vmem:[%s1785] sm:$0xff]
        %v1800 = vld [vmem:[%s1785 + $0x8] sm:$0xff]
        %v1801 = vmul.f32 %v1799, 0.8666667
        %v1802 = vmul.f32 %v1800, 0.8666667
        %v1803 = vadd.f32 %v1797, %v1801
        %v1804 = vadd.f32 %v1798, %v1802
        %s1805 = scalar_lea.vmem [#allocation3], 192
        %1806 = vst [vmem:[%s1805] sm:$0xff] %v1803
        %1807 = vst [vmem:[%s1805 + $0x10] sm:$0xff] %v1804
        %v1808 = vld [vmem:[%s1785] sm:$0xff]
        %v1809 = vld [vmem:[%s1785 + $0x8] sm:$0xff]
        %v1810 = vmul.f32 %v1808, 0.6666667
        %v1811 = vmul.f32 %v1809, 0.6666667
        %s1812 = scalar_lea.vmem [#allocation2], 48
        %v1813 = vld [vmem:[%s1812] sm:$0xff]
        %v1814 = vld [vmem:[%s1812 + $0x8] sm:$0xff]
        %v1815 = vmul.f32 %v1813, 0.33333334
        %v1816 = vmul.f32 %v1814, 0.33333334
        %v1817 = vadd.f32 %v1810, %v1815
        %v1818 = vadd.f32 %v1811, %v1816
        %s1819 = scalar_lea.vmem [#allocation3], 240
        %1820 = vst [vmem:[%s1819] sm:$0xff] %v1817
        %1821 = vst [vmem:[%s1819 + $0x10] sm:$0xff] %v1818
        %v1822 = vld [vmem:[%s1785] sm:$0xff]
        %v1823 = vld [vmem:[%s1785 + $0x8] sm:$0xff]
        %v1824 = vmul.f32 %v1822, 0.2
        %v1825 = vmul.f32 %v1823, 0.2
        %v1826 = vld [vmem:[%s1812] sm:$0xff]
        %v1827 = vld [vmem:[%s1812 + $0x8] sm:$0xff]
        %v1828 = vmul.f32 %v1826, 0.8
        %v1829 = vmul.f32 %v1827, 0.8
        %v1830 = vadd.f32 %v1824, %v1828
        %v1831 = vadd.f32 %v1825, %v1829
        %s1832 = scalar_lea.vmem [#allocation3], 288
        %1833 = vst [vmem:[%s1832] sm:$0xff] %v1830
        %1834 = vst [vmem:[%s1832 + $0x10] sm:$0xff] %v1831
        %v1835 = vld [vmem:[%s1812] sm:$0xff]
        %v1836 = vld [vmem:[%s1812 + $0x8] sm:$0xff]
        %v1837 = vmul.f32 %v1835, 0.73333335
        %v1838 = vmul.f32 %v1836, 0.73333335
        %s1839 = scalar_lea.vmem [#allocation2], 64
        %v1840 = vld [vmem:[%s1839] sm:$0xff]
        %v1841 = vld [vmem:[%s1839 + $0x8] sm:$0xff]
        %v1842 = vmul.f32 %v1840, 0.26666668
        %v1843 = vmul.f32 %v1841, 0.26666668
        %v1844 = vadd.f32 %v1837, %v1842
        %v1845 = vadd.f32 %v1838, %v1843
        %s1846 = scalar_lea.vmem [#allocation3], 336
        %1847 = vst [vmem:[%s1846] sm:$0xff] %v1844
        %1848 = vst [vmem:[%s1846 + $0x10] sm:$0xff] %v1845
        %v1849 = vld [vmem:[%s1812] sm:$0xff]
        %v1850 = vld [vmem:[%s1812 + $0x8] sm:$0xff]
        %v1851 = vmul.f32 %v1849, 0.26666668
        %v1852 = vmul.f32 %v1850, 0.26666668
        %v1853 = vld [vmem:[%s1839] sm:$0xff]
        %v1854 = vld [vmem:[%s1839 + $0x8] sm:$0xff]
        %v1855 = vmul.f32 %v1853, 0.73333335
        %v1856 = vmul.f32 %v1854, 0.73333335
        %v1857 = vadd.f32 %v1851, %v1855
        %v1858 = vadd.f32 %v1852, %v1856
        %s1859 = scalar_lea.vmem [#allocation3], 384
        %1860 = vst [vmem:[%s1859] sm:$0xff] %v1857
        %1861 = vst [vmem:[%s1859 + $0x10] sm:$0xff] %v1858
        %v1862 = vld [vmem:[%s1839] sm:$0xff]
        %v1863 = vld [vmem:[%s1839 + $0x8] sm:$0xff]
        %v1864 = vmul.f32 %v1862, 0.8
        %v1865 = vmul.f32 %v1863, 0.8
        %s1866 = scalar_lea.vmem [#allocation2], 80
        %v1867 = vld [vmem:[%s1866] sm:$0xff]
        %v1868 = vld [vmem:[%s1866 + $0x8] sm:$0xff]
        %v1869 = vmul.f32 %v1867, 0.2
        %v1870 = vmul.f32 %v1868, 0.2
        %v1871 = vadd.f32 %v1864, %v1869
        %v1872 = vadd.f32 %v1865, %v1870
        %s1873 = scalar_lea.vmem [#allocation3], 432
        %1874 = vst [vmem:[%s1873] sm:$0xff] %v1871
        %1875 = vst [vmem:[%s1873 + $0x10] sm:$0xff] %v1872
        %v1876 = vld [vmem:[%s1839] sm:$0xff]
        %v1877 = vld [vmem:[%s1839 + $0x8] sm:$0xff]
        %v1878 = vmul.f32 %v1876, 0.33333334
        %v1879 = vmul.f32 %v1877, 0.33333334
        %v1880 = vld [vmem:[%s1866] sm:$0xff]
        %v1881 = vld [vmem:[%s1866 + $0x8] sm:$0xff]
        %v1882 = vmul.f32 %v1880, 0.6666667
        %v1883 = vmul.f32 %v1881, 0.6666667
        %v1884 = vadd.f32 %v1878, %v1882
        %v1885 = vadd.f32 %v1879, %v1883
        %s1886 = scalar_lea.vmem [#allocation3], 480
        %1887 = vst [vmem:[%s1886] sm:$0xff] %v1884
        %1888 = vst [vmem:[%s1886 + $0x10] sm:$0xff] %v1885
        %v1889 = vld [vmem:[%s1866] sm:$0xff]
        %v1890 = vld [vmem:[%s1866 + $0x8] sm:$0xff]
        %v1891 = vmul.f32 %v1889, 0.8666667
        %v1892 = vmul.f32 %v1890, 0.8666667
        %s1893 = scalar_lea.vmem [#allocation2], 96
        %v1894 = vld [vmem:[%s1893] sm:$0xff]
        %v1895 = vld [vmem:[%s1893 + $0x8] sm:$0xff]
        %v1896 = vmul.f32 %v1894, 0.13333334
        %v1897 = vmul.f32 %v1895, 0.13333334
        %v1898 = vadd.f32 %v1891, %v1896
        %v1899 = vadd.f32 %v1892, %v1897
        %s1900 = scalar_lea.vmem [#allocation3], 528
        %1901 = vst [vmem:[%s1900] sm:$0xff] %v1898
        %1902 = vst [vmem:[%s1900 + $0x10] sm:$0xff] %v1899
        %v1903 = vld [vmem:[%s1866] sm:$0xff]
        %v1904 = vld [vmem:[%s1866 + $0x8] sm:$0xff]
        %v1905 = vmul.f32 %v1903, 0.4
        %v1906 = vmul.f32 %v1904, 0.4
        %v1907 = vld [vmem:[%s1893] sm:$0xff]
        %v1908 = vld [vmem:[%s1893 + $0x8] sm:$0xff]
        %v1909 = vmul.f32 %v1907, 0.6
        %v1910 = vmul.f32 %v1908, 0.6
        %v1911 = vadd.f32 %v1905, %v1909
        %v1912 = vadd.f32 %v1906, %v1910
        %s1913 = scalar_lea.vmem [#allocation3], 576
        %1914 = vst [vmem:[%s1913] sm:$0xff] %v1911
        %1915 = vst [vmem:[%s1913 + $0x10] sm:$0xff] %v1912
        %v1916 = vld [vmem:[%s1893] sm:$0xff]
        %v1917 = vld [vmem:[%s1893 + $0x8] sm:$0xff]
        %v1918 = vmul.f32 %v1916, 0.93333334
        %v1919 = vmul.f32 %v1917, 0.93333334
        %s1920 = scalar_lea.vmem [#allocation2], 112
        %v1921 = vld [vmem:[%s1920] sm:$0xff]
        %v1922 = vld [vmem:[%s1920 + $0x8] sm:$0xff]
        %v1923 = vmul.f32 %v1921, 0.06666667
        %v1924 = vmul.f32 %v1922, 0.06666667
        %v1925 = vadd.f32 %v1918, %v1923
        %v1926 = vadd.f32 %v1919, %v1924
        %s1927 = scalar_lea.vmem [#allocation3], 624
        %1928 = vst [vmem:[%s1927] sm:$0xff] %v1925
        %1929 = vst [vmem:[%s1927 + $0x10] sm:$0xff] %v1926
        %v1930 = vld [vmem:[%s1893] sm:$0xff]
        %v1931 = vld [vmem:[%s1893 + $0x8] sm:$0xff]
        %v1932 = vmul.f32 %v1930, 0.46666667
        %v1933 = vmul.f32 %v1931, 0.46666667
        %v1934 = vld [vmem:[%s1920] sm:$0xff]
        %v1935 = vld [vmem:[%s1920 + $0x8] sm:$0xff]
        %v1936 = vmul.f32 %v1934, 0.53333336
        %v1937 = vmul.f32 %v1935, 0.53333336
        %v1938 = vadd.f32 %v1932, %v1936
        %v1939 = vadd.f32 %v1933, %v1937
        %s1940 = scalar_lea.vmem [#allocation3], 672
        %1941 = vst [vmem:[%s1940] sm:$0xff] %v1938
        %1942 = vst [vmem:[%s1940 + $0x10] sm:$0xff] %v1939
        %v1943 = vld [vmem:[%s1893] sm:$0xff]
        %v1944 = vld [vmem:[%s1893 + $0x8] sm:$0xff]
        %v1945 = vmul.f32 %v1943, 0.0
        %v1946 = vmul.f32 %v1944, 0.0
        %v1947 = vld [vmem:[%s1920] sm:$0xff]
        %v1948 = vld [vmem:[%s1920 + $0x8] sm:$0xff]
        %v1949 = vadd.f32 %v1945, %v1947
        %v1950 = vadd.f32 %v1946, %v1948
        %s1951 = scalar_lea.vmem [#allocation3], 720
        %1952 = vst [vmem:[%s1951] sm:$0xff] %v1949
        %1953 = vst [vmem:[%s1951 + $0x10] sm:$0xff] %v1950
        %v1954 = vld [vmem:[%s381] sm:$0xf]
        %v1955 = vld [vmem:[%s381 + $0x4] sm:$0xf]
        %v1956 = vld [vmem:[%s381 + $0x8] sm:$0xf]
        %v1957 = vld [vmem:[%s381 + $0xc] sm:$0xf]
        %v1958 = vld [vmem:[%s381 + $0x10] sm:$0xf]
        %v1959 = vld [vmem:[%s381 + $0x14] sm:$0xf]
        %v1960 = vld [vmem:[%s381 + $0x18] sm:$0xf]
        %v1961 = vld [vmem:[%s381 + $0x1c] sm:$0xf]
        %v1962 = vld [vmem:[%s381 + $0x20] sm:$0xf]
        %v1963 = vld [vmem:[%s381 + $0x24] sm:$0xf]
        %v1964 = vld [vmem:[%s381 + $0x28] sm:$0xf]
        %v1965 = vld [vmem:[%s381 + $0x2c] sm:$0xf]
        %v1966 = vld [vmem:[%s381 + $0x30] sm:$0xf]
        %v1967 = vld [vmem:[%s381 + $0x34] sm:$0xf]
        %v1968 = vld [vmem:[%s381 + $0x38] sm:$0xf]
        %v1969 = vld [vmem:[%s381 + $0x3c] sm:$0xf]
        %v1970 = vld [vmem:[%s381 + $0x40] sm:$0xf]
        %v1971 = vld [vmem:[%s381 + $0x44] sm:$0xf]
        %v1972 = vld [vmem:[%s381 + $0x48] sm:$0xf]
        %v1973 = vld [vmem:[%s381 + $0x4c] sm:$0xf]
        %v1974 = vld [vmem:[%s381 + $0x50] sm:$0xf]
        %v1975 = vld [vmem:[%s381 + $0x54] sm:$0xf]
        %v1976 = vld [vmem:[%s381 + $0x58] sm:$0xf]
        %v1977 = vld [vmem:[%s381 + $0x5c] sm:$0xf]
        %v1978 = vld [vmem:[%s381 + $0x60] sm:$0xf]
        %v1979 = vld [vmem:[%s381 + $0x64] sm:$0xf]
        %v1980 = vld [vmem:[%s381 + $0x68] sm:$0xf]
        %v1981 = vld [vmem:[%s381 + $0x6c] sm:$0xf]
        %v1982 = vld [vmem:[%s381 + $0x70] sm:$0xf]
        %v1983 = vld [vmem:[%s381 + $0x74] sm:$0xf]
        %v1984 = vld [vmem:[%s381 + $0x78] sm:$0xf]
        %v1985 = vld [vmem:[%s381 + $0x7c] sm:$0xf]
        %v1986 = vunpack.c.l.bf16 %v1954
        %v1987 = vunpack.c.l.bf16 %v1955
        %v1988 = vunpack.c.l.bf16 %v1956
        %v1989 = vunpack.c.l.bf16 %v1957
        %v1990 = vunpack.c.l.bf16 %v1958
        %v1991 = vunpack.c.l.bf16 %v1959
        %v1992 = vunpack.c.l.bf16 %v1960
        %v1993 = vunpack.c.l.bf16 %v1961
        %v1994 = vunpack.c.l.bf16 %v1962
        %v1995 = vunpack.c.l.bf16 %v1963
        %v1996 = vunpack.c.l.bf16 %v1964
        %v1997 = vunpack.c.l.bf16 %v1965
        %v1998 = vunpack.c.l.bf16 %v1966
        %v1999 = vunpack.c.l.bf16 %v1967
        %v2000 = vunpack.c.l.bf16 %v1968
        %v2001 = vunpack.c.l.bf16 %v1969
        %v2002 = vunpack.c.l.bf16 %v1970
        %v2003 = vunpack.c.l.bf16 %v1971
        %v2004 = vunpack.c.l.bf16 %v1972
        %v2005 = vunpack.c.l.bf16 %v1973
        %v2006 = vunpack.c.l.bf16 %v1974
        %v2007 = vunpack.c.l.bf16 %v1975
        %v2008 = vunpack.c.l.bf16 %v1976
        %v2009 = vunpack.c.l.bf16 %v1977
        %v2010 = vunpack.c.l.bf16 %v1978
        %v2011 = vunpack.c.l.bf16 %v1979
        %v2012 = vunpack.c.l.bf16 %v1980
        %v2013 = vunpack.c.l.bf16 %v1981
        %v2014 = vunpack.c.l.bf16 %v1982
        %v2015 = vunpack.c.l.bf16 %v1983
        %v2016 = vunpack.c.l.bf16 %v1984
        %v2017 = vunpack.c.l.bf16 %v1985
        %2018 = vst [vmem:[#allocation3 + $0x8] sm:$0xff] %v1986
        %2019 = vst [vmem:[#allocation3 + $0x18] sm:$0xff] %v1987
        %2020 = vst [vmem:[#allocation3 + $0x38] sm:$0xff] %v1988
        %2021 = vst [vmem:[#allocation3 + $0x48] sm:$0xff] %v1989
        %2022 = vst [vmem:[#allocation3 + $0x68] sm:$0xff] %v1990
        %2023 = vst [vmem:[#allocation3 + $0x78] sm:$0xff] %v1991
        %2024 = vst [vmem:[#allocation3 + $0x98] sm:$0xff] %v1992
        %2025 = vst [vmem:[#allocation3 + $0xa8] sm:$0xff] %v1993
        %2026 = vst [vmem:[#allocation3 + $0xc8] sm:$0xff] %v1994
        %2027 = vst [vmem:[#allocation3 + $0xd8] sm:$0xff] %v1995
        %2028 = vst [vmem:[#allocation3 + $0xf8] sm:$0xff] %v1996
        %2029 = vst [vmem:[#allocation3 + $0x108] sm:$0xff] %v1997
        %2030 = vst [vmem:[#allocation3 + $0x128] sm:$0xff] %v1998
        %2031 = vst [vmem:[#allocation3 + $0x138] sm:$0xff] %v1999
        %2032 = vst [vmem:[#allocation3 + $0x158] sm:$0xff] %v2000
        %2033 = vst [vmem:[#allocation3 + $0x168] sm:$0xff] %v2001
        %2034 = vst [vmem:[#allocation3 + $0x188] sm:$0xff] %v2002
        %2035 = vst [vmem:[#allocation3 + $0x198] sm:$0xff] %v2003
        %2036 = vst [vmem:[#allocation3 + $0x1b8] sm:$0xff] %v2004
        %2037 = vst [vmem:[#allocation3 + $0x1c8] sm:$0xff] %v2005
        %2038 = vst [vmem:[#allocation3 + $0x1e8] sm:$0xff] %v2006
        %2039 = vst [vmem:[#allocation3 + $0x1f8] sm:$0xff] %v2007
        %2040 = vst [vmem:[#allocation3 + $0x218] sm:$0xff] %v2008
        %2041 = vst [vmem:[#allocation3 + $0x228] sm:$0xff] %v2009
        %2042 = vst [vmem:[#allocation3 + $0x248] sm:$0xff] %v2010
        %2043 = vst [vmem:[#allocation3 + $0x258] sm:$0xff] %v2011
        %2044 = vst [vmem:[#allocation3 + $0x278] sm:$0xff] %v2012
        %2045 = vst [vmem:[#allocation3 + $0x288] sm:$0xff] %v2013
        %2046 = vst [vmem:[#allocation3 + $0x2a8] sm:$0xff] %v2014
        %2047 = vst [vmem:[#allocation3 + $0x2b8] sm:$0xff] %v2015
        %2048 = vst [vmem:[#allocation3 + $0x2d8] sm:$0xff] %v2016
        %2049 = vst [vmem:[#allocation3 + $0x2e8] sm:$0xff] %v2017
        %v2050 = vld [vmem:[#allocation11] sm:$0x1]
        %v2051 = vld [vmem:[#allocation13] sm:$0x1]
        %v2052 = vld [vmem:[#allocation3] sm:$0xff]
        %v2053 = vld [vmem:[#allocation3 + $0x8] sm:$0xff]
        %v2054 = vld [vmem:[#allocation3 + $0x10] sm:$0xff]
        %v2055 = vld [vmem:[#allocation3 + $0x18] sm:$0xff]
        %v2056 = vld [vmem:[#allocation3 + $0x20] sm:$0xff]
        %v2057 = vld [vmem:[#allocation3 + $0x28] sm:$0xff]
        %v2058 = vld [vmem:[#allocation3 + $0x30] sm:$0xff]
        %v2059 = vld [vmem:[#allocation3 + $0x38] sm:$0xff]
        %v2060 = vld [vmem:[#allocation3 + $0x40] sm:$0xff]
        %v2061 = vld [vmem:[#allocation3 + $0x48] sm:$0xff]
        %v2062 = vld [vmem:[#allocation3 + $0x50] sm:$0xff]
        %v2063 = vld [vmem:[#allocation3 + $0x58] sm:$0xff]
        %v2064 = vld [vmem:[#allocation3 + $0x60] sm:$0xff]
        %v2065 = vld [vmem:[#allocation3 + $0x68] sm:$0xff]
        %v2066 = vld [vmem:[#allocation3 + $0x70] sm:$0xff]
        %v2067 = vld [vmem:[#allocation3 + $0x78] sm:$0xff]
        %v2068 = vld [vmem:[#allocation3 + $0x80] sm:$0xff]
        %v2069 = vld [vmem:[#allocation3 + $0x88] sm:$0xff]
        %v2070 = vld [vmem:[#allocation3 + $0x90] sm:$0xff]
        %v2071 = vld [vmem:[#allocation3 + $0x98] sm:$0xff]
        %v2072 = vld [vmem:[#allocation3 + $0xa0] sm:$0xff]
        %v2073 = vld [vmem:[#allocation3 + $0xa8] sm:$0xff]
        %v2074 = vld [vmem:[#allocation3 + $0xb0] sm:$0xff]
        %v2075 = vld [vmem:[#allocation3 + $0xb8] sm:$0xff]
        %v2076 = vld [vmem:[#allocation3 + $0xc0] sm:$0xff]
        %v2077 = vld [vmem:[#allocation3 + $0xc8] sm:$0xff]
        %v2078 = vld [vmem:[#allocation3 + $0xd0] sm:$0xff]
        %v2079 = vld [vmem:[#allocation3 + $0xd8] sm:$0xff]
        %v2080 = vld [vmem:[#allocation3 + $0xe0] sm:$0xff]
        %v2081 = vld [vmem:[#allocation3 + $0xe8] sm:$0xff]
        %v2082 = vld [vmem:[#allocation3 + $0xf0] sm:$0xff]
        %v2083 = vld [vmem:[#allocation3 + $0xf8] sm:$0xff]
        %v2084 = vld [vmem:[#allocation3 + $0x100] sm:$0xff]
        %v2085 = vld [vmem:[#allocation3 + $0x108] sm:$0xff]
        %v2086 = vld [vmem:[#allocation3 + $0x110] sm:$0xff]
        %v2087 = vld [vmem:[#allocation3 + $0x118] sm:$0xff]
        %v2088 = vld [vmem:[#allocation3 + $0x120] sm:$0xff]
        %v2089 = vld [vmem:[#allocation3 + $0x128] sm:$0xff]
        %v2090 = vld [vmem:[#allocation3 + $0x130] sm:$0xff]
        %v2091 = vld [vmem:[#allocation3 + $0x138] sm:$0xff]
        %v2092 = vld [vmem:[#allocation3 + $0x140] sm:$0xff]
        %v2093 = vld [vmem:[#allocation3 + $0x148] sm:$0xff]
        %v2094 = vld [vmem:[#allocation3 + $0x150] sm:$0xff]
        %v2095 = vld [vmem:[#allocation3 + $0x158] sm:$0xff]
        %v2096 = vld [vmem:[#allocation3 + $0x160] sm:$0xff]
        %v2097 = vld [vmem:[#allocation3 + $0x168] sm:$0xff]
        %v2098 = vld [vmem:[#allocation3 + $0x170] sm:$0xff]
        %v2099 = vld [vmem:[#allocation3 + $0x178] sm:$0xff]
        %v2100 = vld [vmem:[#allocation3 + $0x180] sm:$0xff]
        %v2101 = vld [vmem:[#allocation3 + $0x188] sm:$0xff]
        %v2102 = vld [vmem:[#allocation3 + $0x190] sm:$0xff]
        %v2103 = vld [vmem:[#allocation3 + $0x198] sm:$0xff]
        %v2104 = vld [vmem:[#allocation3 + $0x1a0] sm:$0xff]
        %v2105 = vld [vmem:[#allocation3 + $0x1a8] sm:$0xff]
        %v2106 = vld [vmem:[#allocation3 + $0x1b0] sm:$0xff]
        %v2107 = vld [vmem:[#allocation3 + $0x1b8] sm:$0xff]
        %v2108 = vld [vmem:[#allocation3 + $0x1c0] sm:$0xff]
        %v2109 = vld [vmem:[#allocation3 + $0x1c8] sm:$0xff]
        %v2110 = vld [vmem:[#allocation3 + $0x1d0] sm:$0xff]
        %v2111 = vld [vmem:[#allocation3 + $0x1d8] sm:$0xff]
        %v2112 = vld [vmem:[#allocation3 + $0x1e0] sm:$0xff]
        %v2113 = vld [vmem:[#allocation3 + $0x1e8] sm:$0xff]
        %v2114 = vld [vmem:[#allocation3 + $0x1f0] sm:$0xff]
        %v2115 = vld [vmem:[#allocation3 + $0x1f8] sm:$0xff]
        %v2116 = vld [vmem:[#allocation3 + $0x200] sm:$0xff]
        %v2117 = vld [vmem:[#allocation3 + $0x208] sm:$0xff]
        %v2118 = vld [vmem:[#allocation3 + $0x210] sm:$0xff]
        %v2119 = vld [vmem:[#allocation3 + $0x218] sm:$0xff]
        %v2120 = vld [vmem:[#allocation3 + $0x220] sm:$0xff]
        %v2121 = vld [vmem:[#allocation3 + $0x228] sm:$0xff]
        %v2122 = vld [vmem:[#allocation3 + $0x230] sm:$0xff]
        %v2123 = vld [vmem:[#allocation3 + $0x238] sm:$0xff]
        %v2124 = vld [vmem:[#allocation3 + $0x240] sm:$0xff]
        %v2125 = vld [vmem:[#allocation3 + $0x248] sm:$0xff]
        %v2126 = vld [vmem:[#allocation3 + $0x250] sm:$0xff]
        %v2127 = vld [vmem:[#allocation3 + $0x258] sm:$0xff]
        %v2128 = vld [vmem:[#allocation3 + $0x260] sm:$0xff]
        %v2129 = vld [vmem:[#allocation3 + $0x268] sm:$0xff]
        %v2130 = vld [vmem:[#allocation3 + $0x270] sm:$0xff]
        %v2131 = vld [vmem:[#allocation3 + $0x278] sm:$0xff]
        %v2132 = vld [vmem:[#allocation3 + $0x280] sm:$0xff]
        %v2133 = vld [vmem:[#allocation3 + $0x288] sm:$0xff]
        %v2134 = vld [vmem:[#allocation3 + $0x290] sm:$0xff]
        %v2135 = vld [vmem:[#allocation3 + $0x298] sm:$0xff]
        %v2136 = vld [vmem:[#allocation3 + $0x2a0] sm:$0xff]
        %v2137 = vld [vmem:[#allocation3 + $0x2a8] sm:$0xff]
        %v2138 = vld [vmem:[#allocation3 + $0x2b0] sm:$0xff]
        %v2139 = vld [vmem:[#allocation3 + $0x2b8] sm:$0xff]
        %v2140 = vld [vmem:[#allocation3 + $0x2c0] sm:$0xff]
        %v2141 = vld [vmem:[#allocation3 + $0x2c8] sm:$0xff]
        %v2142 = vld [vmem:[#allocation3 + $0x2d0] sm:$0xff]
        %v2143 = vld [vmem:[#allocation3 + $0x2d8] sm:$0xff]
        %v2144 = vld [vmem:[#allocation3 + $0x2e0] sm:$0xff]
        %v2145 = vld [vmem:[#allocation3 + $0x2e8] sm:$0xff]
        %v2146 = vld [vmem:[#allocation3 + $0x2f0] sm:$0xff]
        %v2147 = vld [vmem:[#allocation3 + $0x2f8] sm:$0xff]
        %v2148 = vld [vmem:[#allocation3 + $0x300] sm:$0xff]
        %v2149 = vld [vmem:[#allocation3 + $0x308] sm:$0xff]
        %v2150 = vld [vmem:[#allocation3 + $0x310] sm:$0xff]
        %v2151 = vld [vmem:[#allocation3 + $0x318] sm:$0xff]
        %v2152 = vld [vmem:[#allocation3 + $0x320] sm:$0xff]
        %v2153 = vld [vmem:[#allocation3 + $0x328] sm:$0xff]
        %v2154 = vld [vmem:[#allocation3 + $0x330] sm:$0xff]
        %v2155 = vld [vmem:[#allocation3 + $0x338] sm:$0xff]
        %v2156 = vld [vmem:[#allocation3 + $0x340] sm:$0xff]
        %v2157 = vld [vmem:[#allocation3 + $0x348] sm:$0xff]
        %v2158 = vld [vmem:[#allocation3 + $0x350] sm:$0xff]
        %v2159 = vld [vmem:[#allocation3 + $0x358] sm:$0xff]
        %v2160 = vrot.slane %v2052, 7
        %v2161 = vrot.slane %v2053, 7
        %v2162 = vrot.slane %v2054, 7
        %v2163 = vrot.slane %v2055, 7
        %v2164 = vrot.slane %v2056, 7
        %v2165 = vrot.slane %v2057, 7
        %v2166 = vrot.slane %v2058, 7
        %v2167 = vrot.slane %v2059, 7
        %v2168 = vrot.slane %v2060, 7
        %v2169 = vrot.slane %v2061, 7
        %v2170 = vrot.slane %v2062, 7
        %v2171 = vrot.slane %v2063, 7
        %v2172 = vrot.slane %v2064, 7
        %v2173 = vrot.slane %v2065, 7
        %v2174 = vrot.slane %v2066, 7
        %v2175 = vrot.slane %v2067, 7
        %v2176 = vrot.slane %v2068, 7
        %v2177 = vrot.slane %v2069, 7
        %v2178 = vrot.slane %v2070, 7
        %v2179 = vrot.slane %v2071, 7
        %v2180 = vrot.slane %v2072, 7
        %v2181 = vrot.slane %v2073, 7
        %v2182 = vrot.slane %v2074, 7
        %v2183 = vrot.slane %v2075, 7
        %v2184 = vrot.slane %v2076, 7
        %v2185 = vrot.slane %v2077, 7
        %v2186 = vrot.slane %v2078, 7
        %v2187 = vrot.slane %v2079, 7
        %v2188 = vrot.slane %v2080, 7
        %v2189 = vrot.slane %v2081, 7
        %v2190 = vrot.slane %v2082, 7
        %v2191 = vrot.slane %v2083, 7
        %v2192 = vrot.slane %v2084, 7
        %v2193 = vrot.slane %v2085, 7
        %v2194 = vrot.slane %v2086, 7
        %v2195 = vrot.slane %v2087, 7
        %v2196 = vrot.slane %v2088, 7
        %v2197 = vrot.slane %v2089, 7
        %v2198 = vrot.slane %v2090, 7
        %v2199 = vrot.slane %v2091, 7
        %v2200 = vrot.slane %v2092, 7
        %v2201 = vrot.slane %v2093, 7
        %v2202 = vrot.slane %v2094, 7
        %v2203 = vrot.slane %v2095, 7
        %v2204 = vrot.slane %v2096, 7
        %v2205 = vrot.slane %v2097, 7
        %v2206 = vrot.slane %v2098, 7
        %v2207 = vrot.slane %v2099, 7
        %v2208 = vrot.slane %v2100, 7
        %v2209 = vrot.slane %v2101, 7
        %v2210 = vrot.slane %v2102, 7
        %v2211 = vrot.slane %v2103, 7
        %v2212 = vrot.slane %v2104, 7
        %v2213 = vrot.slane %v2105, 7
        %v2214 = vrot.slane %v2106, 7
        %v2215 = vrot.slane %v2107, 7
        %v2216 = vrot.slane %v2108, 7
        %v2217 = vrot.slane %v2109, 7
        %v2218 = vrot.slane %v2110, 7
        %v2219 = vrot.slane %v2111, 7
        %v2220 = vrot.slane %v2112, 7
        %v2221 = vrot.slane %v2113, 7
        %v2222 = vrot.slane %v2114, 7
        %v2223 = vrot.slane %v2115, 7
        %v2224 = vrot.slane %v2116, 7
        %v2225 = vrot.slane %v2117, 7
        %v2226 = vrot.slane %v2118, 7
        %v2227 = vrot.slane %v2119, 7
        %v2228 = vrot.slane %v2120, 7
        %v2229 = vrot.slane %v2121, 7
        %v2230 = vrot.slane %v2122, 7
        %v2231 = vrot.slane %v2123, 7
        %v2232 = vrot.slane %v2124, 7
        %v2233 = vrot.slane %v2125, 7
        %v2234 = vrot.slane %v2126, 7
        %v2235 = vrot.slane %v2127, 7
        %v2236 = vrot.slane %v2128, 7
        %v2237 = vrot.slane %v2129, 7
        %v2238 = vrot.slane %v2130, 7
        %v2239 = vrot.slane %v2131, 7
        %v2240 = vrot.slane %v2132, 7
        %v2241 = vrot.slane %v2133, 7
        %v2242 = vrot.slane %v2134, 7
        %v2243 = vrot.slane %v2135, 7
        %v2244 = vrot.slane %v2136, 7
        %v2245 = vrot.slane %v2137, 7
        %v2246 = vrot.slane %v2138, 7
        %v2247 = vrot.slane %v2139, 7
        %v2248 = vrot.slane %v2140, 7
        %v2249 = vrot.slane %v2141, 7
        %v2250 = vrot.slane %v2142, 7
        %v2251 = vrot.slane %v2143, 7
        %v2252 = vrot.slane %v2144, 7
        %v2253 = vrot.slane %v2145, 7
        %v2254 = vrot.slane %v2146, 7
        %v2255 = vrot.slane %v2147, 7
        %v2256 = vrot.slane %v2148, 7
        %v2257 = vrot.slane %v2149, 7
        %v2258 = vrot.slane %v2150, 7
        %v2259 = vrot.slane %v2151, 7
        %v2260 = vrot.slane %v2152, 7
        %v2261 = vrot.slane %v2153, 7
        %v2262 = vrot.slane %v2154, 7
        %v2263 = vrot.slane %v2155, 7
        %v2264 = vrot.slane %v2156, 7
        %v2265 = vrot.slane %v2157, 7
        %v2266 = vrot.slane %v2158, 7
        %v2267 = vrot.slane %v2159, 7
        %v2268 = vlaneseq
        %v2269 = vshrl.u32 %v2268, 7
        %vm2270 = vcmp.lt.s32.totalorder %v2269, 1
        %v2271 = vsel %vm2270, %v2264, %v2266
        %v2272 = vsel %vm2270, %v2265, %v2267
        %v2273 = vsel %vm2270, %v2262, %v2264
        %v2274 = vsel %vm2270, %v2263, %v2265
        %v2275 = vsel %vm2270, %v2260, %v2262
        %v2276 = vsel %vm2270, %v2261, %v2263
        %v2277 = vsel %vm2270, %v2258, %v2260
        %v2278 = vsel %vm2270, %v2259, %v2261
        %v2279 = vsel %vm2270, %v2256, %v2258
        %v2280 = vsel %vm2270, %v2257, %v2259
        %v2281 = vsel %vm2270, %v2254, %v2256
        %v2282 = vsel %vm2270, %v2255, %v2257
        %v2283 = vsel %vm2270, %v2252, %v2254
        %v2284 = vsel %vm2270, %v2253, %v2255
        %v2285 = vsel %vm2270, %v2250, %v2252
        %v2286 = vsel %vm2270, %v2251, %v2253
        %v2287 = vsel %vm2270, %v2248, %v2250
        %v2288 = vsel %vm2270, %v2249, %v2251
        %v2289 = vsel %vm2270, %v2246, %v2248
        %v2290 = vsel %vm2270, %v2247, %v2249
        %v2291 = vsel %vm2270, %v2244, %v2246
        %v2292 = vsel %vm2270, %v2245, %v2247
        %v2293 = vsel %vm2270, %v2242, %v2244
        %v2294 = vsel %vm2270, %v2243, %v2245
        %v2295 = vsel %vm2270, %v2240, %v2242
        %v2296 = vsel %vm2270, %v2241, %v2243
        %v2297 = vsel %vm2270, %v2238, %v2240
        %v2298 = vsel %vm2270, %v2239, %v2241
        %v2299 = vsel %vm2270, %v2236, %v2238
        %v2300 = vsel %vm2270, %v2237, %v2239
        %v2301 = vsel %vm2270, %v2234, %v2236
        %v2302 = vsel %vm2270, %v2235, %v2237
        %v2303 = vsel %vm2270, %v2232, %v2234
        %v2304 = vsel %vm2270, %v2233, %v2235
        %v2305 = vsel %vm2270, %v2230, %v2232
        %v2306 = vsel %vm2270, %v2231, %v2233
        %v2307 = vsel %vm2270, %v2228, %v2230
        %v2308 = vsel %vm2270, %v2229, %v2231
        %v2309 = vsel %vm2270, %v2226, %v2228
        %v2310 = vsel %vm2270, %v2227, %v2229
        %v2311 = vsel %vm2270, %v2224, %v2226
        %v2312 = vsel %vm2270, %v2225, %v2227
        %v2313 = vsel %vm2270, %v2222, %v2224
        %v2314 = vsel %vm2270, %v2223, %v2225
        %v2315 = vsel %vm2270, %v2220, %v2222
        %v2316 = vsel %vm2270, %v2221, %v2223
        %v2317 = vsel %vm2270, %v2218, %v2220
        %v2318 = vsel %vm2270, %v2219, %v2221
        %v2319 = vsel %vm2270, %v2216, %v2218
        %v2320 = vsel %vm2270, %v2217, %v2219
        %v2321 = vsel %vm2270, %v2214, %v2216
        %v2322 = vsel %vm2270, %v2215, %v2217
        %v2323 = vsel %vm2270, %v2212, %v2214
        %v2324 = vsel %vm2270, %v2213, %v2215
        %v2325 = vsel %vm2270, %v2210, %v2212
        %v2326 = vsel %vm2270, %v2211, %v2213
        %v2327 = vsel %vm2270, %v2208, %v2210
        %v2328 = vsel %vm2270, %v2209, %v2211
        %v2329 = vsel %vm2270, %v2206, %v2208
        %v2330 = vsel %vm2270, %v2207, %v2209
        %v2331 = vsel %vm2270, %v2204, %v2206
        %v2332 = vsel %vm2270, %v2205, %v2207
        %v2333 = vsel %vm2270, %v2202, %v2204
        %v2334 = vsel %vm2270, %v2203, %v2205
        %v2335 = vsel %vm2270, %v2200, %v2202
        %v2336 = vsel %vm2270, %v2201, %v2203
        %v2337 = vsel %vm2270, %v2198, %v2200
        %v2338 = vsel %vm2270, %v2199, %v2201
        %v2339 = vsel %vm2270, %v2196, %v2198
        %v2340 = vsel %vm2270, %v2197, %v2199
        %v2341 = vsel %vm2270, %v2194, %v2196
        %v2342 = vsel %vm2270, %v2195, %v2197
        %v2343 = vsel %vm2270, %v2192, %v2194
        %v2344 = vsel %vm2270, %v2193, %v2195
        %v2345 = vsel %vm2270, %v2190, %v2192
        %v2346 = vsel %vm2270, %v2191, %v2193
        %v2347 = vsel %vm2270, %v2188, %v2190
        %v2348 = vsel %vm2270, %v2189, %v2191
        %v2349 = vsel %vm2270, %v2186, %v2188
        %v2350 = vsel %vm2270, %v2187, %v2189
        %v2351 = vsel %vm2270, %v2184, %v2186
        %v2352 = vsel %vm2270, %v2185, %v2187
        %v2353 = vsel %vm2270, %v2182, %v2184
        %v2354 = vsel %vm2270, %v2183, %v2185
        %v2355 = vsel %vm2270, %v2180, %v2182
        %v2356 = vsel %vm2270, %v2181, %v2183
        %v2357 = vsel %vm2270, %v2178, %v2180
        %v2358 = vsel %vm2270, %v2179, %v2181
        %v2359 = vsel %vm2270, %v2176, %v2178
        %v2360 = vsel %vm2270, %v2177, %v2179
        %v2361 = vsel %vm2270, %v2174, %v2176
        %v2362 = vsel %vm2270, %v2175, %v2177
        %v2363 = vsel %vm2270, %v2172, %v2174
        %v2364 = vsel %vm2270, %v2173, %v2175
        %v2365 = vsel %vm2270, %v2170, %v2172
        %v2366 = vsel %vm2270, %v2171, %v2173
        %v2367 = vsel %vm2270, %v2168, %v2170
        %v2368 = vsel %vm2270, %v2169, %v2171
        %v2369 = vsel %vm2270, %v2166, %v2168
        %v2370 = vsel %vm2270, %v2167, %v2169
        %v2371 = vsel %vm2270, %v2164, %v2166
        %v2372 = vsel %vm2270, %v2165, %v2167
        %v2373 = vsel %vm2270, %v2162, %v2164
        %v2374 = vsel %vm2270, %v2163, %v2165
        %v2375 = vsel %vm2270, %v2160, %v2162
        %v2376 = vsel %vm2270, %v2161, %v2163
        %v2377 = vsel %vm2270, %v2266, %v2160
        %v2378 = vsel %vm2270, %v2267, %v2161
        %v2379 = vrot.slane %v2052, 1
        %v2380 = vrot.slane %v2053, 1
        %v2381 = vrot.slane %v2054, 1
        %v2382 = vrot.slane %v2055, 1
        %v2383 = vrot.slane %v2056, 1
        %v2384 = vrot.slane %v2057, 1
        %v2385 = vrot.slane %v2058, 1
        %v2386 = vrot.slane %v2059, 1
        %v2387 = vrot.slane %v2060, 1
        %v2388 = vrot.slane %v2061, 1
        %v2389 = vrot.slane %v2062, 1
        %v2390 = vrot.slane %v2063, 1
        %v2391 = vrot.slane %v2064, 1
        %v2392 = vrot.slane %v2065, 1
        %v2393 = vrot.slane %v2066, 1
        %v2394 = vrot.slane %v2067, 1
        %v2395 = vrot.slane %v2068, 1
        %v2396 = vrot.slane %v2069, 1
        %v2397 = vrot.slane %v2070, 1
        %v2398 = vrot.slane %v2071, 1
        %v2399 = vrot.slane %v2072, 1
        %v2400 = vrot.slane %v2073, 1
        %v2401 = vrot.slane %v2074, 1
        %v2402 = vrot.slane %v2075, 1
        %v2403 = vrot.slane %v2076, 1
        %v2404 = vrot.slane %v2077, 1
        %v2405 = vrot.slane %v2078, 1
        %v2406 = vrot.slane %v2079, 1
        %v2407 = vrot.slane %v2080, 1
        %v2408 = vrot.slane %v2081, 1
        %v2409 = vrot.slane %v2082, 1
        %v2410 = vrot.slane %v2083, 1
        %v2411 = vrot.slane %v2084, 1
        %v2412 = vrot.slane %v2085, 1
        %v2413 = vrot.slane %v2086, 1
        %v2414 = vrot.slane %v2087, 1
        %v2415 = vrot.slane %v2088, 1
        %v2416 = vrot.slane %v2089, 1
        %v2417 = vrot.slane %v2090, 1
        %v2418 = vrot.slane %v2091, 1
        %v2419 = vrot.slane %v2092, 1
        %v2420 = vrot.slane %v2093, 1
        %v2421 = vrot.slane %v2094, 1
        %v2422 = vrot.slane %v2095, 1
        %v2423 = vrot.slane %v2096, 1
        %v2424 = vrot.slane %v2097, 1
        %v2425 = vrot.slane %v2098, 1
        %v2426 = vrot.slane %v2099, 1
        %v2427 = vrot.slane %v2100, 1
        %v2428 = vrot.slane %v2101, 1
        %v2429 = vrot.slane %v2102, 1
        %v2430 = vrot.slane %v2103, 1
        %v2431 = vrot.slane %v2104, 1
        %v2432 = vrot.slane %v2105, 1
        %v2433 = vrot.slane %v2106, 1
        %v2434 = vrot.slane %v2107, 1
        %v2435 = vrot.slane %v2108, 1
        %v2436 = vrot.slane %v2109, 1
        %v2437 = vrot.slane %v2110, 1
        %v2438 = vrot.slane %v2111, 1
        %v2439 = vrot.slane %v2112, 1
        %v2440 = vrot.slane %v2113, 1
        %v2441 = vrot.slane %v2114, 1
        %v2442 = vrot.slane %v2115, 1
        %v2443 = vrot.slane %v2116, 1
        %v2444 = vrot.slane %v2117, 1
        %v2445 = vrot.slane %v2118, 1
        %v2446 = vrot.slane %v2119, 1
        %v2447 = vrot.slane %v2120, 1
        %v2448 = vrot.slane %v2121, 1
        %v2449 = vrot.slane %v2122, 1
        %v2450 = vrot.slane %v2123, 1
        %v2451 = vrot.slane %v2124, 1
        %v2452 = vrot.slane %v2125, 1
        %v2453 = vrot.slane %v2126, 1
        %v2454 = vrot.slane %v2127, 1
        %v2455 = vrot.slane %v2128, 1
        %v2456 = vrot.slane %v2129, 1
        %v2457 = vrot.slane %v2130, 1
        %v2458 = vrot.slane %v2131, 1
        %v2459 = vrot.slane %v2132, 1
        %v2460 = vrot.slane %v2133, 1
        %v2461 = vrot.slane %v2134, 1
        %v2462 = vrot.slane %v2135, 1
        %v2463 = vrot.slane %v2136, 1
        %v2464 = vrot.slane %v2137, 1
        %v2465 = vrot.slane %v2138, 1
        %v2466 = vrot.slane %v2139, 1
        %v2467 = vrot.slane %v2140, 1
        %v2468 = vrot.slane %v2141, 1
        %v2469 = vrot.slane %v2142, 1
        %v2470 = vrot.slane %v2143, 1
        %v2471 = vrot.slane %v2144, 1
        %v2472 = vrot.slane %v2145, 1
        %v2473 = vrot.slane %v2146, 1
        %v2474 = vrot.slane %v2147, 1
        %v2475 = vrot.slane %v2148, 1
        %v2476 = vrot.slane %v2149, 1
        %v2477 = vrot.slane %v2150, 1
        %v2478 = vrot.slane %v2151, 1
        %v2479 = vrot.slane %v2152, 1
        %v2480 = vrot.slane %v2153, 1
        %v2481 = vrot.slane %v2154, 1
        %v2482 = vrot.slane %v2155, 1
        %v2483 = vrot.slane %v2156, 1
        %v2484 = vrot.slane %v2157, 1
        %v2485 = vrot.slane %v2158, 1
        %v2486 = vrot.slane %v2159, 1
        %vm2487 = vcmp.lt.s32.totalorder %v2269, 7
        %v2488 = vsel %vm2487, %v2483, %v2485
        %v2489 = vsel %vm2487, %v2484, %v2486
        %v2490 = vsel %vm2487, %v2481, %v2483
        %v2491 = vsel %vm2487, %v2482, %v2484
        %v2492 = vsel %vm2487, %v2479, %v2481
        %v2493 = vsel %vm2487, %v2480, %v2482
        %v2494 = vsel %vm2487, %v2477, %v2479
        %v2495 = vsel %vm2487, %v2478, %v2480
        %v2496 = vsel %vm2487, %v2475, %v2477
        %v2497 = vsel %vm2487, %v2476, %v2478
        %v2498 = vsel %vm2487, %v2473, %v2475
        %v2499 = vsel %vm2487, %v2474, %v2476
        %v2500 = vsel %vm2487, %v2471, %v2473
        %v2501 = vsel %vm2487, %v2472, %v2474
        %v2502 = vsel %vm2487, %v2469, %v2471
        %v2503 = vsel %vm2487, %v2470, %v2472
        %v2504 = vsel %vm2487, %v2467, %v2469
        %v2505 = vsel %vm2487, %v2468, %v2470
        %v2506 = vsel %vm2487, %v2465, %v2467
        %v2507 = vsel %vm2487, %v2466, %v2468
        %v2508 = vsel %vm2487, %v2463, %v2465
        %v2509 = vsel %vm2487, %v2464, %v2466
        %v2510 = vsel %vm2487, %v2461, %v2463
        %v2511 = vsel %vm2487, %v2462, %v2464
        %v2512 = vsel %vm2487, %v2459, %v2461
        %v2513 = vsel %vm2487, %v2460, %v2462
        %v2514 = vsel %vm2487, %v2457, %v2459
        %v2515 = vsel %vm2487, %v2458, %v2460
        %v2516 = vsel %vm2487, %v2455, %v2457
        %v2517 = vsel %vm2487, %v2456, %v2458
        %v2518 = vsel %vm2487, %v2453, %v2455
        %v2519 = vsel %vm2487, %v2454, %v2456
        %v2520 = vsel %vm2487, %v2451, %v2453
        %v2521 = vsel %vm2487, %v2452, %v2454
        %v2522 = vsel %vm2487, %v2449, %v2451
        %v2523 = vsel %vm2487, %v2450, %v2452
        %v2524 = vsel %vm2487, %v2447, %v2449
        %v2525 = vsel %vm2487, %v2448, %v2450
        %v2526 = vsel %vm2487, %v2445, %v2447
        %v2527 = vsel %vm2487, %v2446, %v2448
        %v2528 = vsel %vm2487, %v2443, %v2445
        %v2529 = vsel %vm2487, %v2444, %v2446
        %v2530 = vsel %vm2487, %v2441, %v2443
        %v2531 = vsel %vm2487, %v2442, %v2444
        %v2532 = vsel %vm2487, %v2439, %v2441
        %v2533 = vsel %vm2487, %v2440, %v2442
        %v2534 = vsel %vm2487, %v2437, %v2439
        %v2535 = vsel %vm2487, %v2438, %v2440
        %v2536 = vsel %vm2487, %v2435, %v2437
        %v2537 = vsel %vm2487, %v2436, %v2438
        %v2538 = vsel %vm2487, %v2433, %v2435
        %v2539 = vsel %vm2487, %v2434, %v2436
        %v2540 = vsel %vm2487, %v2431, %v2433
        %v2541 = vsel %vm2487, %v2432, %v2434
        %v2542 = vsel %vm2487, %v2429, %v2431
        %v2543 = vsel %vm2487, %v2430, %v2432
        %v2544 = vsel %vm2487, %v2427, %v2429
        %v2545 = vsel %vm2487, %v2428, %v2430
        %v2546 = vsel %vm2487, %v2425, %v2427
        %v2547 = vsel %vm2487, %v2426, %v2428
        %v2548 = vsel %vm2487, %v2423, %v2425
        %v2549 = vsel %vm2487, %v2424, %v2426
        %v2550 = vsel %vm2487, %v2421, %v2423
        %v2551 = vsel %vm2487, %v2422, %v2424
        %v2552 = vsel %vm2487, %v2419, %v2421
        %v2553 = vsel %vm2487, %v2420, %v2422
        %v2554 = vsel %vm2487, %v2417, %v2419
        %v2555 = vsel %vm2487, %v2418, %v2420
        %v2556 = vsel %vm2487, %v2415, %v2417
        %v2557 = vsel %vm2487, %v2416, %v2418
        %v2558 = vsel %vm2487, %v2413, %v2415
        %v2559 = vsel %vm2487, %v2414, %v2416
        %v2560 = vsel %vm2487, %v2411, %v2413
        %v2561 = vsel %vm2487, %v2412, %v2414
        %v2562 = vsel %vm2487, %v2409, %v2411
        %v2563 = vsel %vm2487, %v2410, %v2412
        %v2564 = vsel %vm2487, %v2407, %v2409
        %v2565 = vsel %vm2487, %v2408, %v2410
        %v2566 = vsel %vm2487, %v2405, %v2407
        %v2567 = vsel %vm2487, %v2406, %v2408
        %v2568 = vsel %vm2487, %v2403, %v2405
        %v2569 = vsel %vm2487, %v2404, %v2406
        %v2570 = vsel %vm2487, %v2401, %v2403
        %v2571 = vsel %vm2487, %v2402, %v2404
        %v2572 = vsel %vm2487, %v2399, %v2401
        %v2573 = vsel %vm2487, %v2400, %v2402
        %v2574 = vsel %vm2487, %v2397, %v2399
        %v2575 = vsel %vm2487, %v2398, %v2400
        %v2576 = vsel %vm2487, %v2395, %v2397
        %v2577 = vsel %vm2487, %v2396, %v2398
        %v2578 = vsel %vm2487, %v2393, %v2395
        %v2579 = vsel %vm2487, %v2394, %v2396
        %v2580 = vsel %vm2487, %v2391, %v2393
        %v2581 = vsel %vm2487, %v2392, %v2394
        %v2582 = vsel %vm2487, %v2389, %v2391
        %v2583 = vsel %vm2487, %v2390, %v2392
        %v2584 = vsel %vm2487, %v2387, %v2389
        %v2585 = vsel %vm2487, %v2388, %v2390
        %v2586 = vsel %vm2487, %v2385, %v2387
        %v2587 = vsel %vm2487, %v2386, %v2388
        %v2588 = vsel %vm2487, %v2383, %v2385
        %v2589 = vsel %vm2487, %v2384, %v2386
        %v2590 = vsel %vm2487, %v2381, %v2383
        %v2591 = vsel %vm2487, %v2382, %v2384
        %v2592 = vsel %vm2487, %v2379, %v2381
        %v2593 = vsel %vm2487, %v2380, %v2382
        %v2594 = vsel %vm2487, %v2485, %v2379
        %v2595 = vsel %vm2487, %v2486, %v2380
        %v2596 = vpack.c.bf16 %v2375, %v2377
        %v2597 = vpack.c.bf16 %v2376, %v2378
        %v2598 = vpack.c.bf16 %v2371, %v2373
        %v2599 = vpack.c.bf16 %v2372, %v2374
        %v2600 = vpack.c.bf16 %v2367, %v2369
        %v2601 = vpack.c.bf16 %v2368, %v2370
        %v2602 = vpack.c.bf16 %v2363, %v2365
        %v2603 = vpack.c.bf16 %v2364, %v2366
        %v2604 = vpack.c.bf16 %v2359, %v2361
        %v2605 = vpack.c.bf16 %v2360, %v2362
        %v2606 = vpack.c.bf16 %v2355, %v2357
        %v2607 = vpack.c.bf16 %v2356, %v2358
        %v2608 = vpack.c.bf16 %v2351, %v2353
        %v2609 = vpack.c.bf16 %v2352, %v2354
        %v2610 = vpack.c.bf16 %v2347, %v2349
        %v2611 = vpack.c.bf16 %v2348, %v2350
        %v2612 = vpack.c.bf16 %v2343, %v2345
        %v2613 = vpack.c.bf16 %v2344, %v2346
        %v2614 = vpack.c.bf16 %v2339, %v2341
        %v2615 = vpack.c.bf16 %v2340, %v2342
        %v2616 = vpack.c.bf16 %v2335, %v2337
        %v2617 = vpack.c.bf16 %v2336, %v2338
        %v2618 = vpack.c.bf16 %v2331, %v2333
        %v2619 = vpack.c.bf16 %v2332, %v2334
        %v2620 = vpack.c.bf16 %v2327, %v2329
        %v2621 = vpack.c.bf16 %v2328, %v2330
        %v2622 = vpack.c.bf16 %v2323, %v2325
        %v2623 = vpack.c.bf16 %v2324, %v2326
        %v2624 = vpack.c.bf16 %v2319, %v2321
        %v2625 = vpack.c.bf16 %v2320, %v2322
        %v2626 = vpack.c.bf16 %v2315, %v2317
        %v2627 = vpack.c.bf16 %v2316, %v2318
        %v2628 = vpack.c.bf16 %v2311, %v2313
        %v2629 = vpack.c.bf16 %v2312, %v2314
        %v2630 = vpack.c.bf16 %v2307, %v2309
        %v2631 = vpack.c.bf16 %v2308, %v2310
        %v2632 = vpack.c.bf16 %v2303, %v2305
        %v2633 = vpack.c.bf16 %v2304, %v2306
        %v2634 = vpack.c.bf16 %v2299, %v2301
        %v2635 = vpack.c.bf16 %v2300, %v2302
        %v2636 = vpack.c.bf16 %v2295, %v2297
        %v2637 = vpack.c.bf16 %v2296, %v2298
        %v2638 = vpack.c.bf16 %v2291, %v2293
        %v2639 = vpack.c.bf16 %v2292, %v2294
        %v2640 = vpack.c.bf16 %v2287, %v2289
        %v2641 = vpack.c.bf16 %v2288, %v2290
        %v2642 = vpack.c.bf16 %v2283, %v2285
        %v2643 = vpack.c.bf16 %v2284, %v2286
        %v2644 = vpack.c.bf16 %v2279, %v2281
        %v2645 = vpack.c.bf16 %v2280, %v2282
        %v2646 = vpack.c.bf16 %v2275, %v2277
        %v2647 = vpack.c.bf16 %v2276, %v2278
        %v2648 = vpack.c.bf16 %v2271, %v2273
        %v2649 = vpack.c.bf16 %v2272, %v2274
        %v2650 = vld [vmem:[#allocation10] sm:$0xff]
        %v2651 = vld [vmem:[#allocation10 + $0x8] sm:$0xf]
        %v2652 = vld [vmem:[#allocation10 + $0xc] sm:$0xff]
        %v2653 = vld [vmem:[#allocation10 + $0x14] sm:$0xf]
        %v2654 = vld [vmem:[#allocation10 + $0x18] sm:$0xff]
        %v2655 = vld [vmem:[#allocation10 + $0x20] sm:$0xf]
        %v2656 = vld [vmem:[#allocation10 + $0x24] sm:$0xff]
        %v2657 = vld [vmem:[#allocation10 + $0x2c] sm:$0xf]
        %v2658 = vld [vmem:[#allocation10 + $0x30] sm:$0xff]
        %v2659 = vld [vmem:[#allocation10 + $0x38] sm:$0xf]
        %v2660 = vld [vmem:[#allocation10 + $0x3c] sm:$0xff]
        %v2661 = vld [vmem:[#allocation10 + $0x44] sm:$0xf]
        %v2662 = vld [vmem:[#allocation10 + $0x48] sm:$0xff]
        %v2663 = vld [vmem:[#allocation10 + $0x50] sm:$0xf]
        %v2664 = vld [vmem:[#allocation10 + $0x54] sm:$0xff]
        %v2665 = vld [vmem:[#allocation10 + $0x5c] sm:$0xf]
        %v2666 = vld [vmem:[#allocation10 + $0x60] sm:$0xff]
        %v2667 = vld [vmem:[#allocation10 + $0x68] sm:$0xf]
        %v2668 = vld [vmem:[#allocation10 + $0x6c] sm:$0xff]
        %v2669 = vld [vmem:[#allocation10 + $0x74] sm:$0xf]
        %v2670 = vld [vmem:[#allocation10 + $0x78] sm:$0xff]
        %v2671 = vld [vmem:[#allocation10 + $0x80] sm:$0xf]
        %v2672 = vld [vmem:[#allocation10 + $0x84] sm:$0xff]
        %v2673 = vld [vmem:[#allocation10 + $0x8c] sm:$0xf]
        %v2674 = vld [vmem:[#allocation10 + $0x90] sm:$0xff]
        %v2675 = vld [vmem:[#allocation10 + $0x98] sm:$0xf]
        %v2676 = vld [vmem:[#allocation10 + $0x9c] sm:$0xff]
        %v2677 = vld [vmem:[#allocation10 + $0xa4] sm:$0xf]
        %v2678 = vld [vmem:[#allocation10 + $0xa8] sm:$0xff]
        %v2679 = vld [vmem:[#allocation10 + $0xb0] sm:$0xf]
        %v2680 = vld [vmem:[#allocation10 + $0xb4] sm:$0xff]
        %v2681 = vld [vmem:[#allocation10 + $0xbc] sm:$0xf]
        %v2682 = vld [vmem:[#allocation10 + $0xc0] sm:$0xff]
        %v2683 = vld [vmem:[#allocation10 + $0xc8] sm:$0xf]
        %v2684 = vld [vmem:[#allocation10 + $0xcc] sm:$0xff]
        %v2685 = vld [vmem:[#allocation10 + $0xd4] sm:$0xf]
        %v2686 = vld [vmem:[#allocation10 + $0xd8] sm:$0xff]
        %v2687 = vld [vmem:[#allocation10 + $0xe0] sm:$0xf]
        %v2688 = vld [vmem:[#allocation10 + $0xe4] sm:$0xff]
        %v2689 = vld [vmem:[#allocation10 + $0xec] sm:$0xf]
        %v2690 = vld [vmem:[#allocation10 + $0xf0] sm:$0xff]
        %v2691 = vld [vmem:[#allocation10 + $0xf8] sm:$0xf]
        %v2692 = vld [vmem:[#allocation10 + $0xfc] sm:$0xff]
        %v2693 = vld [vmem:[#allocation10 + $0x104] sm:$0xf]
        %v2694 = vld [vmem:[#allocation10 + $0x108] sm:$0xff]
        %v2695 = vld [vmem:[#allocation10 + $0x110] sm:$0xf]
        %v2696 = vld [vmem:[#allocation10 + $0x114] sm:$0xff]
        %v2697 = vld [vmem:[#allocation10 + $0x11c] sm:$0xf]
        %v2698 = vld [vmem:[#allocation10 + $0x120] sm:$0xff]
        %v2699 = vld [vmem:[#allocation10 + $0x128] sm:$0xf]
        %v2700 = vld [vmem:[#allocation10 + $0x12c] sm:$0xff]
        %v2701 = vld [vmem:[#allocation10 + $0x134] sm:$0xf]
        %v2702 = vld [vmem:[#allocation10 + $0x138] sm:$0xff]
        %v2703 = vld [vmem:[#allocation10 + $0x140] sm:$0xf]
        %v2704 = vld [vmem:[#allocation10 + $0x144] sm:$0xff]
        %v2705 = vld [vmem:[#allocation10 + $0x14c] sm:$0xf]
        %v2706 = vld [vmem:[#allocation10 + $0x150] sm:$0xff]
        %v2707 = vld [vmem:[#allocation10 + $0x158] sm:$0xf]
        %v2708 = vld [vmem:[#allocation10 + $0x15c] sm:$0xff]
        %v2709 = vld [vmem:[#allocation10 + $0x164] sm:$0xf]
        %v2710 = vld [vmem:[#allocation10 + $0x168] sm:$0xff]
        %v2711 = vld [vmem:[#allocation10 + $0x170] sm:$0xf]
        %v2712 = vld [vmem:[#allocation10 + $0x174] sm:$0xff]
        %v2713 = vld [vmem:[#allocation10 + $0x17c] sm:$0xf]
        %v2714 = vpack.c.bf16 %v2054, %v2052
        %v2715 = vpack.c.bf16 %v2055, %v2053
        %v2716 = vpack.c.bf16 %v2058, %v2056
        %v2717 = vpack.c.bf16 %v2059, %v2057
        %v2718 = vpack.c.bf16 %v2062, %v2060
        %v2719 = vpack.c.bf16 %v2063, %v2061
        %v2720 = vpack.c.bf16 %v2066, %v2064
        %v2721 = vpack.c.bf16 %v2067, %v2065
        %v2722 = vpack.c.bf16 %v2070, %v2068
        %v2723 = vpack.c.bf16 %v2071, %v2069
        %v2724 = vpack.c.bf16 %v2074, %v2072
        %v2725 = vpack.c.bf16 %v2075, %v2073
        %v2726 = vpack.c.bf16 %v2078, %v2076
        %v2727 = vpack.c.bf16 %v2079, %v2077
        %v2728 = vpack.c.bf16 %v2082, %v2080
        %v2729 = vpack.c.bf16 %v2083, %v2081
        %v2730 = vpack.c.bf16 %v2086, %v2084
        %v2731 = vpack.c.bf16 %v2087, %v2085
        %v2732 = vpack.c.bf16 %v2090, %v2088
        %v2733 = vpack.c.bf16 %v2091, %v2089
        %v2734 = vpack.c.bf16 %v2094, %v2092
        %v2735 = vpack.c.bf16 %v2095, %v2093
        %v2736 = vpack.c.bf16 %v2098, %v2096
        %v2737 = vpack.c.bf16 %v2099, %v2097
        %v2738 = vpack.c.bf16 %v2102, %v2100
        %v2739 = vpack.c.bf16 %v2103, %v2101
        %v2740 = vpack.c.bf16 %v2106, %v2104
        %v2741 = vpack.c.bf16 %v2107, %v2105
        %v2742 = vpack.c.bf16 %v2110, %v2108
        %v2743 = vpack.c.bf16 %v2111, %v2109
        %v2744 = vpack.c.bf16 %v2114, %v2112
        %v2745 = vpack.c.bf16 %v2115, %v2113
        %v2746 = vpack.c.bf16 %v2118, %v2116
        %v2747 = vpack.c.bf16 %v2119, %v2117
        %v2748 = vpack.c.bf16 %v2122, %v2120
        %v2749 = vpack.c.bf16 %v2123, %v2121
        %v2750 = vpack.c.bf16 %v2126, %v2124
        %v2751 = vpack.c.bf16 %v2127, %v2125
        %v2752 = vpack.c.bf16 %v2130, %v2128
        %v2753 = vpack.c.bf16 %v2131, %v2129
        %v2754 = vpack.c.bf16 %v2134, %v2132
        %v2755 = vpack.c.bf16 %v2135, %v2133
        %v2756 = vpack.c.bf16 %v2138, %v2136
        %v2757 = vpack.c.bf16 %v2139, %v2137
        %v2758 = vpack.c.bf16 %v2142, %v2140
        %v2759 = vpack.c.bf16 %v2143, %v2141
        %v2760 = vpack.c.bf16 %v2146, %v2144
        %v2761 = vpack.c.bf16 %v2147, %v2145
        %v2762 = vpack.c.bf16 %v2150, %v2148
        %v2763 = vpack.c.bf16 %v2151, %v2149
        %v2764 = vpack.c.bf16 %v2154, %v2152
        %v2765 = vpack.c.bf16 %v2155, %v2153
        %v2766 = vpack.c.bf16 %v2158, %v2156
        %v2767 = vpack.c.bf16 %v2159, %v2157
        %s2768 = scalar_lea.vmem [#allocation10], 384
        %v2769 = vld [vmem:[%s2768] sm:$0xff]
        %v2770 = vld [vmem:[%s2768 + $0x8] sm:$0xf]
        %v2771 = vld [vmem:[%s2768 + $0xc] sm:$0xff]
        %v2772 = vld [vmem:[%s2768 + $0x14] sm:$0xf]
        %v2773 = vld [vmem:[%s2768 + $0x18] sm:$0xff]
        %v2774 = vld [vmem:[%s2768 + $0x20] sm:$0xf]
        %v2775 = vld [vmem:[%s2768 + $0x24] sm:$0xff]
        %v2776 = vld [vmem:[%s2768 + $0x2c] sm:$0xf]
        %v2777 = vld [vmem:[%s2768 + $0x30] sm:$0xff]
        %v2778 = vld [vmem:[%s2768 + $0x38] sm:$0xf]
        %v2779 = vld [vmem:[%s2768 + $0x3c] sm:$0xff]
        %v2780 = vld [vmem:[%s2768 + $0x44] sm:$0xf]
        %v2781 = vld [vmem:[%s2768 + $0x48] sm:$0xff]
        %v2782 = vld [vmem:[%s2768 + $0x50] sm:$0xf]
        %v2783 = vld [vmem:[%s2768 + $0x54] sm:$0xff]
        %v2784 = vld [vmem:[%s2768 + $0x5c] sm:$0xf]
        %v2785 = vld [vmem:[%s2768 + $0x60] sm:$0xff]
        %v2786 = vld [vmem:[%s2768 + $0x68] sm:$0xf]
        %v2787 = vld [vmem:[%s2768 + $0x6c] sm:$0xff]
        %v2788 = vld [vmem:[%s2768 + $0x74] sm:$0xf]
        %v2789 = vld [vmem:[%s2768 + $0x78] sm:$0xff]
        %v2790 = vld [vmem:[%s2768 + $0x80] sm:$0xf]
        %v2791 = vld [vmem:[%s2768 + $0x84] sm:$0xff]
        %v2792 = vld [vmem:[%s2768 + $0x8c] sm:$0xf]
        %v2793 = vld [vmem:[%s2768 + $0x90] sm:$0xff]
        %v2794 = vld [vmem:[%s2768 + $0x98] sm:$0xf]
        %v2795 = vld [vmem:[%s2768 + $0x9c] sm:$0xff]
        %v2796 = vld [vmem:[%s2768 + $0xa4] sm:$0xf]
        %v2797 = vld [vmem:[%s2768 + $0xa8] sm:$0xff]
        %v2798 = vld [vmem:[%s2768 + $0xb0] sm:$0xf]
        %v2799 = vld [vmem:[%s2768 + $0xb4] sm:$0xff]
        %v2800 = vld [vmem:[%s2768 + $0xbc] sm:$0xf]
        %v2801 = vld [vmem:[%s2768 + $0xc0] sm:$0xff]
        %v2802 = vld [vmem:[%s2768 + $0xc8] sm:$0xf]
        %v2803 = vld [vmem:[%s2768 + $0xcc] sm:$0xff]
        %v2804 = vld [vmem:[%s2768 + $0xd4] sm:$0xf]
        %v2805 = vld [vmem:[%s2768 + $0xd8] sm:$0xff]
        %v2806 = vld [vmem:[%s2768 + $0xe0] sm:$0xf]
        %v2807 = vld [vmem:[%s2768 + $0xe4] sm:$0xff]
        %v2808 = vld [vmem:[%s2768 + $0xec] sm:$0xf]
        %v2809 = vld [vmem:[%s2768 + $0xf0] sm:$0xff]
        %v2810 = vld [vmem:[%s2768 + $0xf8] sm:$0xf]
        %v2811 = vld [vmem:[%s2768 + $0xfc] sm:$0xff]
        %v2812 = vld [vmem:[%s2768 + $0x104] sm:$0xf]
        %v2813 = vld [vmem:[%s2768 + $0x108] sm:$0xff]
        %v2814 = vld [vmem:[%s2768 + $0x110] sm:$0xf]
        %v2815 = vld [vmem:[%s2768 + $0x114] sm:$0xff]
        %v2816 = vld [vmem:[%s2768 + $0x11c] sm:$0xf]
        %v2817 = vld [vmem:[%s2768 + $0x120] sm:$0xff]
        %v2818 = vld [vmem:[%s2768 + $0x128] sm:$0xf]
        %v2819 = vld [vmem:[%s2768 + $0x12c] sm:$0xff]
        %v2820 = vld [vmem:[%s2768 + $0x134] sm:$0xf]
        %v2821 = vld [vmem:[%s2768 + $0x138] sm:$0xff]
        %v2822 = vld [vmem:[%s2768 + $0x140] sm:$0xf]
        %v2823 = vld [vmem:[%s2768 + $0x144] sm:$0xff]
        %v2824 = vld [vmem:[%s2768 + $0x14c] sm:$0xf]
        %v2825 = vld [vmem:[%s2768 + $0x150] sm:$0xff]
        %v2826 = vld [vmem:[%s2768 + $0x158] sm:$0xf]
        %v2827 = vld [vmem:[%s2768 + $0x15c] sm:$0xff]
        %v2828 = vld [vmem:[%s2768 + $0x164] sm:$0xf]
        %v2829 = vld [vmem:[%s2768 + $0x168] sm:$0xff]
        %v2830 = vld [vmem:[%s2768 + $0x170] sm:$0xf]
        %v2831 = vld [vmem:[%s2768 + $0x174] sm:$0xff]
        %v2832 = vld [vmem:[%s2768 + $0x17c] sm:$0xf]
        %v2897 = vunpack.c.l.b16 %v2769
        %v2898 = vunpack.c.h.b16 %v2769
        %v2899 = vunpack.c.l.b16 %v2770
        %v2900 = vunpack.c.l.b16 %v2771
        %v2901 = vunpack.c.h.b16 %v2771
        %v2902 = vunpack.c.l.b16 %v2772
        %v2903 = vunpack.c.l.b16 %v2773
        %v2904 = vunpack.c.h.b16 %v2773
        %v2905 = vunpack.c.l.b16 %v2774
        %v2906 = vunpack.c.l.b16 %v2775
        %v2907 = vunpack.c.h.b16 %v2775
        %v2908 = vunpack.c.l.b16 %v2776
        %v2909 = vunpack.c.l.b16 %v2777
        %v2910 = vunpack.c.h.b16 %v2777
        %v2911 = vunpack.c.l.b16 %v2778
        %v2912 = vunpack.c.l.b16 %v2779
        %v2913 = vunpack.c.h.b16 %v2779
        %v2914 = vunpack.c.l.b16 %v2780
        %v2915 = vunpack.c.l.b16 %v2781
        %v2916 = vunpack.c.h.b16 %v2781
        %v2917 = vunpack.c.l.b16 %v2782
        %v2918 = vunpack.c.l.b16 %v2783
        %v2919 = vunpack.c.h.b16 %v2783
        %v2920 = vunpack.c.l.b16 %v2784
        %v2921 = vunpack.c.l.b16 %v2785
        %v2922 = vunpack.c.h.b16 %v2785
        %v2923 = vunpack.c.l.b16 %v2786
        %v2924 = vunpack.c.l.b16 %v2787
        %v2925 = vunpack.c.h.b16 %v2787
        %v2926 = vunpack.c.l.b16 %v2788
        %v2927 = vunpack.c.l.b16 %v2789
        %v2928 = vunpack.c.h.b16 %v2789
        %v2929 = vunpack.c.l.b16 %v2790
        %v2930 = vunpack.c.l.b16 %v2791
        %v2931 = vunpack.c.h.b16 %v2791
        %v2932 = vunpack.c.l.b16 %v2792
        %v2933 = vunpack.c.l.b16 %v2793
        %v2934 = vunpack.c.h.b16 %v2793
        %v2935 = vunpack.c.l.b16 %v2794
        %v2936 = vunpack.c.l.b16 %v2795
        %v2937 = vunpack.c.h.b16 %v2795
        %v2938 = vunpack.c.l.b16 %v2796
        %v2939 = vunpack.c.l.b16 %v2797
        %v2940 = vunpack.c.h.b16 %v2797
        %v2941 = vunpack.c.l.b16 %v2798
        %v2942 = vunpack.c.l.b16 %v2799
        %v2943 = vunpack.c.h.b16 %v2799
        %v2944 = vunpack.c.l.b16 %v2800
        %v2945 = vunpack.c.l.b16 %v2801
        %v2946 = vunpack.c.h.b16 %v2801
        %v2947 = vunpack.c.l.b16 %v2802
        %v2948 = vunpack.c.l.b16 %v2803
        %v2949 = vunpack.c.h.b16 %v2803
        %v2950 = vunpack.c.l.b16 %v2804
        %v2951 = vunpack.c.l.b16 %v2805
        %v2952 = vunpack.c.h.b16 %v2805
        %v2953 = vunpack.c.l.b16 %v2806
        %v2954 = vunpack.c.l.b16 %v2807
        %v2955 = vunpack.c.h.b16 %v2807
        %v2956 = vunpack.c.l.b16 %v2808
        %v2957 = vunpack.c.l.b16 %v2809
        %v2958 = vunpack.c.h.b16 %v2809
        %v2959 = vunpack.c.l.b16 %v2810
        %v2960 = vunpack.c.l.b16 %v2811
        %v2961 = vunpack.c.h.b16 %v2811
        %v2962 = vunpack.c.l.b16 %v2812
        %v2963 = vunpack.c.l.b16 %v2813
        %v2964 = vunpack.c.h.b16 %v2813
        %v2965 = vunpack.c.l.b16 %v2814
        %v2966 = vunpack.c.l.b16 %v2815
        %v2967 = vunpack.c.h.b16 %v2815
        %v2968 = vunpack.c.l.b16 %v2816
        %v2969 = vunpack.c.l.b16 %v2817
        %v2970 = vunpack.c.h.b16 %v2817
        %v2971 = vunpack.c.l.b16 %v2818
        %v2972 = vunpack.c.l.b16 %v2819
        %v2973 = vunpack.c.h.b16 %v2819
        %v2974 = vunpack.c.l.b16 %v2820
        %v2975 = vunpack.c.l.b16 %v2821
        %v2976 = vunpack.c.h.b16 %v2821
        %v2977 = vunpack.c.l.b16 %v2822
        %v2978 = vunpack.c.l.b16 %v2823
        %v2979 = vunpack.c.h.b16 %v2823
        %v2980 = vunpack.c.l.b16 %v2824
        %v2981 = vunpack.c.l.b16 %v2825
        %v2982 = vunpack.c.h.b16 %v2825
        %v2983 = vunpack.c.l.b16 %v2826
        %v2984 = vunpack.c.l.b16 %v2827
        %v2985 = vunpack.c.h.b16 %v2827
        %v2986 = vunpack.c.l.b16 %v2828
        %v2987 = vunpack.c.l.b16 %v2829
        %v2988 = vunpack.c.h.b16 %v2829
        %v2989 = vunpack.c.l.b16 %v2830
        %v2990 = vunpack.c.l.b16 %v2831
        %v2991 = vunpack.c.h.b16 %v2831
        %v2992 = vunpack.c.l.b16 %v2832
        %v2993 = vpack.c.b16 %v2900, %v2897
        %v2994 = vpack.c.b16 %v2901, %v2898
        %v2995 = vpack.c.b16 %v2902, %v2899
        %v2996 = vpack.c.b16 %v2906, %v2903
        %v2997 = vpack.c.b16 %v2907, %v2904
        %v2998 = vpack.c.b16 %v2908, %v2905
        %v2999 = vpack.c.b16 %v2912, %v2909
        %v3000 = vpack.c.b16 %v2913, %v2910
        %v3001 = vpack.c.b16 %v2914, %v2911
        %v3002 = vpack.c.b16 %v2918, %v2915
        %v3003 = vpack.c.b16 %v2919, %v2916
        %v3004 = vpack.c.b16 %v2920, %v2917
        %v3005 = vpack.c.b16 %v2924, %v2921
        %v3006 = vpack.c.b16 %v2925, %v2922
        %v3007 = vpack.c.b16 %v2926, %v2923
        %v3008 = vpack.c.b16 %v2930, %v2927
        %v3009 = vpack.c.b16 %v2931, %v2928
        %v3010 = vpack.c.b16 %v2932, %v2929
        %v3011 = vpack.c.b16 %v2936, %v2933
        %v3012 = vpack.c.b16 %v2937, %v2934
        %v3013 = vpack.c.b16 %v2938, %v2935
        %v3014 = vpack.c.b16 %v2942, %v2939
        %v3015 = vpack.c.b16 %v2943, %v2940
        %v3016 = vpack.c.b16 %v2944, %v2941
        %v3017 = vpack.c.b16 %v2948, %v2945
        %v3018 = vpack.c.b16 %v2949, %v2946
        %v3019 = vpack.c.b16 %v2950, %v2947
        %v3020 = vpack.c.b16 %v2954, %v2951
        %v3021 = vpack.c.b16 %v2955, %v2952
        %v3022 = vpack.c.b16 %v2956, %v2953
        %v3023 = vpack.c.b16 %v2960, %v2957
        %v3024 = vpack.c.b16 %v2961, %v2958
        %v3025 = vpack.c.b16 %v2962, %v2959
        %v3026 = vpack.c.b16 %v2966, %v2963
        %v3027 = vpack.c.b16 %v2967, %v2964
        %v3028 = vpack.c.b16 %v2968, %v2965
        %v3029 = vpack.c.b16 %v2972, %v2969
        %v3030 = vpack.c.b16 %v2973, %v2970
        %v3031 = vpack.c.b16 %v2974, %v2971
        %v3032 = vpack.c.b16 %v2978, %v2975
        %v3033 = vpack.c.b16 %v2979, %v2976
        %v3034 = vpack.c.b16 %v2980, %v2977
        %v3035 = vpack.c.b16 %v2984, %v2981
        %v3036 = vpack.c.b16 %v2985, %v2982
        %v3037 = vpack.c.b16 %v2986, %v2983
        %v3038 = vpack.c.b16 %v2990, %v2987
        %v3039 = vpack.c.b16 %v2991, %v2988
        %v3040 = vpack.c.b16 %v2992, %v2989
        %3089 = vmatprep.subr.bf16.mxu0 %v2994
        %3090 = vmatpush1.bf16.msra.mxu0 %v2993
        %3091 = vmatprep.subr.bf16.mxu0 %v2997
        %3092 = vmatpush1.bf16.msra.mxu0 %v2996
        %3093 = vmatprep.subr.bf16.mxu0 %v3000
        %3094 = vmatpush1.bf16.msra.mxu0 %v2999
        %3095 = vmatprep.subr.bf16.mxu0 %v3003
        %3096 = vmatpush1.bf16.msra.mxu0 %v3002
        %3097 = vmatprep.subr.bf16.mxu0 %v3006
        %3098 = vmatpush1.bf16.msra.mxu0 %v3005
        %3099 = vmatprep.subr.bf16.mxu0 %v3009
        %3100 = vmatpush1.bf16.msra.mxu0 %v3008
        %3101 = vmatprep.subr.bf16.mxu0 %v3012
        %3102 = vmatpush1.bf16.msra.mxu0 %v3011
        %3103 = vmatprep.subr.bf16.mxu0 %v3015
        %3104 = vmatpush1.bf16.msra.mxu0 %v3014
        %3105 = vmatprep.subr.bf16.mxu0 %v3018
        %3106 = vmatpush1.bf16.msra.mxu0 %v3017
        %3107 = vmatprep.subr.bf16.mxu0 %v3021
        %3108 = vmatpush1.bf16.msra.mxu0 %v3020
        %3109 = vmatprep.subr.bf16.mxu0 %v3024
        %3110 = vmatpush1.bf16.msra.mxu0 %v3023
        %3111 = vmatprep.subr.bf16.mxu0 %v3027
        %3112 = vmatpush1.bf16.msra.mxu0 %v3026
        %3113 = vmatprep.subr.bf16.mxu0 %v3030
        %3114 = vmatpush1.bf16.msra.mxu0 %v3029
        %3115 = vmatprep.subr.bf16.mxu0 %v3033
        %3116 = vmatpush1.bf16.msra.mxu0 %v3032
        %3117 = vmatprep.subr.bf16.mxu0 %v3036
        %3118 = vmatpush1.bf16.msra.mxu0 %v3035
        %3119 = vmatprep.subr.bf16.mxu0 %v3039
        %3120 = vmatpush1.bf16.msra.mxu0 %v3038
        %3121 = vmatprep.mubr.bf16.mxu0 %v2715
        %3122 = vmatmul.mubr.bf16.gmra.mrb[0].mxu0 %v2714
        %v3123 = vpop.f32.mrb[0].mxu0
        %v3124 = vadd.f32 0.0, %v3123
        %v3125 = vpop.f32.mrb[0].mxu0
        %v3126 = vadd.f32 0.0, %v3125
        %v3127 = vpop.f32.mrb[0].mxu0
        %v3128 = vadd.f32 0.0, %v3127
        %v3129 = vpop.f32.mrb[0].mxu0
        %v3130 = vadd.f32 0.0, %v3129
        %3131 = vmatprep.mubr.bf16.mxu0 %v2717
        %3132 = vmatmul.mubr.bf16.gmra.mrb[0].mxu0 %v2716
        %v3133 = vpop.f32.mrb[0].mxu0
        %v3134 = vpop.f32.mrb[0].mxu0
        %v3135 = vpop.f32.mrb[0].mxu0
        %v3136 = vadd.f32 0.0, %v3135
        %v3137 = vpop.f32.mrb[0].mxu0
        %v3138 = vadd.f32 0.0, %v3137
        %3139 = vmatprep.mubr.bf16.mxu0 %v2719
        %3140 = vmatmul.mubr.bf16.gmra.mrb[0].mxu0 %v2718
        %v3141 = vpop.f32.mrb[0].mxu0
        %v3142 = vadd.f32 0.0, %v3141
        %v3143 = vpop.f32.mrb[0].mxu0
        %v3144 = vadd.f32 0.0, %v3143
        %v3145 = vpop.f32.mrb[0].mxu0
        %v3146 = vpop.f32.mrb[0].mxu0
        %3147 = vmatprep.mubr.bf16.mxu0 %v2721
        %3148 = vmatmul.mubr.bf16.gmra.mrb[0].mxu0 %v2720
        %v3149 = vpop.f32.mrb[0].mxu0
        %v3150 = vadd.f32 0.0, %v3149
        %v3151 = vpop.f32.mrb[0].mxu0
        %v3152 = vadd.f32 0.0, %v3151
        %v3153 = vpop.f32.mrb[0].mxu0
        %v3154 = vadd.f32 0.0, %v3153
        %v3155 = vpop.f32.mrb[0].mxu0
        %v3156 = vadd.f32 0.0, %v3155
        %3157 = vmatprep.mubr.bf16.mxu0 %v2723
        %3158 = vmatmul.mubr.bf16.gmra.mrb[0].mxu0 %v2722
        %v3159 = vpop.f32.mrb[0].mxu0
        %v3160 = vpop.f32.mrb[0].mxu0
        %v3161 = vpop.f32.mrb[0].mxu0
        %v3162 = vadd.f32 0.0, %v3161
        %v3163 = vpop.f32.mrb[0].mxu0
        %v3164 = vadd.f32 0.0, %v3163
        %3165 = vmatprep.mubr.bf16.mxu0 %v2725
        %3166 = vmatmul.mubr.bf16.gmra.mrb[0].mxu0 %v2724
        %v3167 = vpop.f32.mrb[0].mxu0
        %v3168 = vadd.f32 0.0, %v3167
        %v3169 = vpop.f32.mrb[0].mxu0
        %v3170 = vadd.f32 0.0, %v3169
        %v3171 = vpop.f32.mrb[0].mxu0
        %v3172 = vpop.f32.mrb[0].mxu0
        %3173 = vmatprep.mubr.bf16.mxu0 %v2727
        %3174 = vmatmul.mubr.bf16.gmra.mrb[0].mxu0 %v2726
        %v3175 = vpop.f32.mrb[0].mxu0
        %v3176 = vadd.f32 0.0, %v3175
        %v3177 = vpop.f32.mrb[0].mxu0
        %v3178 = vadd.f32 0.0, %v3177
        %v3179 = vpop.f32.mrb[0].mxu0
        %v3180 = vadd.f32 0.0, %v3179
        %v3181 = vpop.f32.mrb[0].mxu0
        %v3182 = vadd.f32 0.0, %v3181
        %3183 = vmatprep.mubr.bf16.mxu0 %v2729
        %3184 = vmatmul.mubr.bf16.gmra.mrb[0].mxu0 %v2728
        %v3185 = vpop.f32.mrb[0].mxu0
        %v3186 = vpop.f32.mrb[0].mxu0
        %v3187 = vpop.f32.mrb[0].mxu0
        %v3188 = vadd.f32 0.0, %v3187
        %v3189 = vpop.f32.mrb[0].mxu0
        %v3190 = vadd.f32 0.0, %v3189
        %3191 = vmatprep.mubr.bf16.mxu0 %v2731
        %3192 = vmatmul.mubr.bf16.gmra.mrb[0].mxu0 %v2730
        %v3193 = vpop.f32.mrb[0].mxu0
        %v3194 = vadd.f32 0.0, %v3193
        %v3195 = vpop.f32.mrb[0].mxu0
        %v3196 = vadd.f32 0.0, %v3195
        %v3197 = vpop.f32.mrb[0].mxu0
        %v3198 = vpop.f32.mrb[0].mxu0
        %3199 = vmatprep.mubr.bf16.mxu0 %v2733
        %3200 = vmatmul.mubr.bf16.gmra.mrb[0].mxu0 %v2732
        %v3201 = vpop.f32.mrb[0].mxu0
        %v3202 = vadd.f32 0.0, %v3201
        %v3203 = vpop.f32.mrb[0].mxu0
        %v3204 = vadd.f32 0.0, %v3203
        %v3205 = vpop.f32.mrb[0].mxu0
        %v3206 = vadd.f32 0.0, %v3205
        %v3207 = vpop.f32.mrb[0].mxu0
        %v3208 = vadd.f32 0.0, %v3207
        %3209 = vmatprep.mubr.bf16.mxu0 %v2735
        %3210 = vmatmul.mubr.bf16.gmra.mrb[0].mxu0 %v2734
        %v3211 = vpop.f32.mrb[0].mxu0
        %v3212 = vpop.f32.mrb[0].mxu0
        %v3213 = vpop.f32.mrb[0].mxu0
        %v3214 = vadd.f32 0.0, %v3213
        %v3215 = vpop.f32.mrb[0].mxu0
        %v3216 = vadd.f32 0.0, %v3215
        %3217 = vmatprep.mubr.bf16.mxu0 %v2737
        %3218 = vmatmul.mubr.bf16.gmra.mrb[0].mxu0 %v2736
        %v3219 = vpop.f32.mrb[0].mxu0
        %v3220 = vadd.f32 0.0, %v3219
        %v3221 = vpop.f32.mrb[0].mxu0
        %v3222 = vadd.f32 0.0, %v3221
        %v3223 = vpop.f32.mrb[0].mxu0
        %v3224 = vpop.f32.mrb[0].mxu0
        %3225 = vmatprep.mubr.bf16.mxu0 %v2739
        %3226 = vmatmul.mubr.bf16.gmra.mrb[0].mxu0 %v2738
        %v3227 = vpop.f32.mrb[0].mxu0
        %v3228 = vadd.f32 0.0, %v3227
        %v3229 = vpop.f32.mrb[0].mxu0
        %v3230 = vadd.f32 0.0, %v3229
        %v3231 = vpop.f32.mrb[0].mxu0
        %v3232 = vadd.f32 0.0, %v3231
        %v3233 = vpop.f32.mrb[0].mxu0
        %v3234 = vadd.f32 0.0, %v3233
        %3235 = vmatprep.mubr.bf16.mxu0 %v2741
        %3236 = vmatmul.mubr.bf16.gmra.mrb[0].mxu0 %v2740
        %v3237 = vpop.f32.mrb[0].mxu0
        %v3238 = vpop.f32.mrb[0].mxu0
        %v3239 = vpop.f32.mrb[0].mxu0
        %v3240 = vadd.f32 0.0, %v3239
        %v3241 = vpop.f32.mrb[0].mxu0
        %v3242 = vadd.f32 0.0, %v3241
        %3243 = vmatprep.mubr.bf16.mxu0 %v2743
        %3244 = vmatmul.mubr.bf16.gmra.mrb[0].mxu0 %v2742
        %v3245 = vpop.f32.mrb[0].mxu0
        %v3246 = vadd.f32 0.0, %v3245
        %v3247 = vpop.f32.mrb[0].mxu0
        %v3248 = vadd.f32 0.0, %v3247
        %v3249 = vpop.f32.mrb[0].mxu0
        %v3250 = vpop.f32.mrb[0].mxu0
        %3251 = vmatprep.mubr.bf16.mxu0 %v2745
        %3252 = vmatmul.mubr.bf16.gmra.mrb[0].mxu0 %v2744
        %v3253 = vpop.f32.mrb[0].mxu0
        %v3254 = vadd.f32 0.0, %v3253
        %v3255 = vpop.f32.mrb[0].mxu0
        %v3256 = vadd.f32 0.0, %v3255
        %v3257 = vpop.f32.mrb[0].mxu0
        %v3258 = vadd.f32 0.0, %v3257
        %v3259 = vpop.f32.mrb[0].mxu0
        %v3260 = vadd.f32 0.0, %v3259
        %3261 = vmatprep.mubr.bf16.mxu0 %v2747
        %3262 = vmatmul.mubr.bf16.gmra.mrb[0].mxu0 %v2746
        %v3263 = vpop.f32.mrb[0].mxu0
        %v3264 = vpop.f32.mrb[0].mxu0
        %v3265 = vpop.f32.mrb[0].mxu0
        %v3266 = vadd.f32 0.0, %v3265
        %v3267 = vpop.f32.mrb[0].mxu0
        %v3268 = vadd.f32 0.0, %v3267
        %3269 = vmatprep.mubr.bf16.mxu0 %v2749
        %3270 = vmatmul.mubr.bf16.gmra.mrb[0].mxu0 %v2748
        %v3271 = vpop.f32.mrb[0].mxu0
        %v3272 = vadd.f32 0.0, %v3271
        %v3273 = vpop.f32.mrb[0].mxu0
        %v3274 = vadd.f32 0.0, %v3273
        %v3275 = vpop.f32.mrb[0].mxu0
        %v3276 = vpop.f32.mrb[0].mxu0
        %3277 = vmatprep.mubr.bf16.mxu0 %v2751
        %3278 = vmatmul.mubr.bf16.gmra.mrb[0].mxu0 %v2750
        %v3279 = vpop.f32.mrb[0].mxu0
        %v3280 = vadd.f32 0.0, %v3279
        %v3281 = vpop.f32.mrb[0].mxu0
        %v3282 = vadd.f32 0.0, %v3281
        %v3283 = vpop.f32.mrb[0].mxu0
        %v3284 = vadd.f32 0.0, %v3283
        %v3285 = vpop.f32.mrb[0].mxu0
        %v3286 = vadd.f32 0.0, %v3285
        %3287 = vmatprep.mubr.bf16.mxu0 %v2753
        %3288 = vmatmul.mubr.bf16.gmra.mrb[0].mxu0 %v2752
        %v3289 = vpop.f32.mrb[0].mxu0
        %v3290 = vpop.f32.mrb[0].mxu0
        %v3291 = vpop.f32.mrb[0].mxu0
        %v3292 = vadd.f32 0.0, %v3291
        %v3293 = vpop.f32.mrb[0].mxu0
        %v3294 = vadd.f32 0.0, %v3293
        %3295 = vmatprep.mubr.bf16.mxu0 %v2755
        %3296 = vmatmul.mubr.bf16.gmra.mrb[0].mxu0 %v2754
        %v3297 = vpop.f32.mrb[0].mxu0
        %v3298 = vadd.f32 0.0, %v3297
        %v3299 = vpop.f32.mrb[0].mxu0
        %v3300 = vadd.f32 0.0, %v3299
        %v3301 = vpop.f32.mrb[0].mxu0
        %v3302 = vpop.f32.mrb[0].mxu0
        %3303 = vmatprep.mubr.bf16.mxu0 %v2757
        %3304 = vmatmul.mubr.bf16.gmra.mrb[0].mxu0 %v2756
        %v3305 = vpop.f32.mrb[0].mxu0
        %v3306 = vadd.f32 0.0, %v3305
        %v3307 = vpop.f32.mrb[0].mxu0
        %v3308 = vadd.f32 0.0, %v3307
        %v3309 = vpop.f32.mrb[0].mxu0
        %v3310 = vadd.f32 0.0, %v3309
        %v3311 = vpop.f32.mrb[0].mxu0
        %v3312 = vadd.f32 0.0, %v3311
        %3313 = vmatprep.mubr.bf16.mxu0 %v2759
        %3314 = vmatmul.mubr.bf16.gmra.mrb[0].mxu0 %v2758
        %v3315 = vpop.f32.mrb[0].mxu0
        %v3316 = vpop.f32.mrb[0].mxu0
        %v3317 = vpop.f32.mrb[0].mxu0
        %v3318 = vpop.f32.mrb[0].mxu0
        %v3319 = vadd.f32 0.0, %v3318
        %3320 = vmatprep.mubr.bf16.mxu0 %v2761
        %3321 = vmatmul.mubr.bf16.gmra.mrb[0].mxu0 %v2760
        %v3322 = vpop.f32.mrb[0].mxu0
        %v3323 = vpop.f32.mrb[0].mxu0
        %v3324 = vadd.f32 0.0, %v3323
        %v3325 = vpop.f32.mrb[0].mxu0
        %v3326 = vpop.f32.mrb[0].mxu0
        %3327 = vmatprep.mubr.bf16.mxu0 %v2763
        %3328 = vmatmul.mubr.bf16.gmra.mrb[0].mxu0 %v2762
        %v3329 = vpop.f32.mrb[0].mxu0
        %v3330 = vpop.f32.mrb[0].mxu0
        %v3331 = vpop.f32.mrb[0].mxu0
        %v3332 = vpop.f32.mrb[0].mxu0
        %3333 = vmatprep.mubr.bf16.mxu0 %v2765
        %3334 = vmatmul.mubr.bf16.gmra.mrb[0].mxu0 %v2764
        %v3335 = vpop.f32.mrb[0].mxu0
        %v3336 = vpop.f32.mrb[0].mxu0
        %v3337 = vpop.f32.mrb[0].mxu0
        %v3338 = vadd.f32 0.0, %v3337
        %v3339 = vpop.f32.mrb[0].mxu0
        %3340 = vmatprep.mubr.bf16.mxu0 %v2767
        %3341 = vmatmul.mubr.bf16.gmra.mrb[0].mxu0 %v2766
        %v3342 = vpop.f32.mrb[0].mxu0
        %v3343 = vadd.f32 0.0, %v3342
        %v3344 = vpop.f32.mrb[0].mxu0
        %v3345 = vpop.f32.mrb[0].mxu0
        %v3346 = vpop.f32.mrb[0].mxu0
        %3347 = vdwg.mxu0
        %3348 = vmatprep.subr.bf16.mxu0 0
        %3349 = vmatpush1.bf16.msra.mxu0 %v2995
        %3350 = vmatprep.subr.bf16.mxu0 0
        %3351 = vmatpush1.bf16.msra.mxu0 %v2998
        %3352 = vmatprep.subr.bf16.mxu0 0
        %3353 = vmatpush1.bf16.msra.mxu0 %v3001
        %3354 = vmatprep.subr.bf16.mxu0 0
        %3355 = vmatpush1.bf16.msra.mxu0 %v3004
        %3356 = vmatprep.subr.bf16.mxu0 0
        %3357 = vmatpush1.bf16.msra.mxu0 %v3007
        %3358 = vmatprep.subr.bf16.mxu0 0
        %3359 = vmatpush1.bf16.msra.mxu0 %v3010
        %3360 = vmatprep.subr.bf16.mxu0 0
        %3361 = vmatpush1.bf16.msra.mxu0 %v3013
        %3362 = vmatprep.subr.bf16.mxu0 0
        %3363 = vmatpush1.bf16.msra.mxu0 %v3016
        %3364 = vmatprep.subr.bf16.mxu0 0
        %3365 = vmatpush1.bf16.msra.mxu0 %v3019
        %3366 = vmatprep.subr.bf16.mxu0 0
        %3367 = vmatpush1.bf16.msra.mxu0 %v3022
        %3368 = vmatprep.subr.bf16.mxu0 0
        %3369 = vmatpush1.bf16.msra.mxu0 %v3025
        %3370 = vmatprep.subr.bf16.mxu0 0
        %3371 = vmatpush1.bf16.msra.mxu0 %v3028
        %3372 = vmatprep.subr.bf16.mxu0 0
        %3373 = vmatpush1.bf16.msra.mxu0 %v3031
        %3374 = vmatprep.subr.bf16.mxu0 0
        %3375 = vmatpush1.bf16.msra.mxu0 %v3034
        %3376 = vmatprep.subr.bf16.mxu0 0
        %3377 = vmatpush1.bf16.msra.mxu0 %v3037
        %3378 = vmatprep.subr.bf16.mxu0 0
        %3379 = vmatpush1.bf16.msra.mxu0 %v3040
        %3380 = vmatprep.mubr.bf16.mxu0 %v2715
        %3381 = vmatmul.mubr.bf16.gmra.mrb[0].mxu0 %v2714
        %v3382 = vpop.f32.mrb[0].mxu0
        %v3383 = vpop.f32.mrb[0].mxu0
        %v3384 = vpop.f32.mrb[0].mxu0
        %v3385 = vpop.f32.mrb[0].mxu0
        %3386 = vmatprep.mubr.bf16.mxu0 %v2717
        %3387 = vmatmul.mubr.bf16.gmra.mrb[0].mxu0 %v2716
        %v3388 = vpop.f32.mrb[0].mxu0
        %v3389 = vpop.f32.mrb[0].mxu0
        %v3390 = vpop.f32.mrb[0].mxu0
        %v3391 = vadd.f32 0.0, %v3390
        %v3392 = vpop.f32.mrb[0].mxu0
        %3393 = vmatprep.mubr.bf16.mxu0 %v2719
        %3394 = vmatmul.mubr.bf16.gmra.mrb[0].mxu0 %v2718
        %v3395 = vpop.f32.mrb[0].mxu0
        %v3396 = vadd.f32 0.0, %v3395
        %v3397 = vpop.f32.mrb[0].mxu0
        %v3398 = vpop.f32.mrb[0].mxu0
        %v3399 = vpop.f32.mrb[0].mxu0
        %3400 = vmatprep.mubr.bf16.mxu0 %v2721
        %3401 = vmatmul.mubr.bf16.gmra.mrb[0].mxu0 %v2720
        %v3402 = vpop.f32.mrb[0].mxu0
        %v3403 = vadd.f32 0.0, %v3402
        %v3404 = vpop.f32.mrb[0].mxu0
        %v3405 = vpop.f32.mrb[0].mxu0
        %v3406 = vadd.f32 0.0, %v3405
        %v3407 = vpop.f32.mrb[0].mxu0
        %3408 = vmatprep.mubr.bf16.mxu0 %v2723
        %3409 = vmatmul.mubr.bf16.gmra.mrb[0].mxu0 %v2722
        %v3410 = vpop.f32.mrb[0].mxu0
        %v3411 = vpop.f32.mrb[0].mxu0
        %v3412 = vpop.f32.mrb[0].mxu0
        %v3413 = vadd.f32 0.0, %v3412
        %v3414 = vpop.f32.mrb[0].mxu0
        %3415 = vmatprep.mubr.bf16.mxu0 %v2725
        %3416 = vmatmul.mubr.bf16.gmra.mrb[0].mxu0 %v2724
        %v3417 = vpop.f32.mrb[0].mxu0
        %v3418 = vadd.f32 0.0, %v3417
        %v3419 = vpop.f32.mrb[0].mxu0
        %v3420 = vpop.f32.mrb[0].mxu0
        %v3421 = vpop.f32.mrb[0].mxu0
        %3422 = vmatprep.mubr.bf16.mxu0 %v2727
        %3423 = vmatmul.mubr.bf16.gmra.mrb[0].mxu0 %v2726
        %v3424 = vpop.f32.mrb[0].mxu0
        %v3425 = vadd.f32 0.0, %v3424
        %v3426 = vpop.f32.mrb[0].mxu0
        %v3427 = vpop.f32.mrb[0].mxu0
        %v3428 = vadd.f32 0.0, %v3427
        %v3429 = vpop.f32.mrb[0].mxu0
        %3430 = vmatprep.mubr.bf16.mxu0 %v2729
        %3431 = vmatmul.mubr.bf16.gmra.mrb[0].mxu0 %v2728
        %v3432 = vpop.f32.mrb[0].mxu0
        %v3433 = vpop.f32.mrb[0].mxu0
        %v3434 = vpop.f32.mrb[0].mxu0
        %v3435 = vadd.f32 0.0, %v3434
        %v3436 = vpop.f32.mrb[0].mxu0
        %3437 = vmatprep.mubr.bf16.mxu0 %v2731
        %3438 = vmatmul.mubr.bf16.gmra.mrb[0].mxu0 %v2730
        %v3439 = vpop.f32.mrb[0].mxu0
        %v3440 = vadd.f32 0.0, %v3439
        %v3441 = vpop.f32.mrb[0].mxu0
        %v3442 = vpop.f32.mrb[0].mxu0
        %v3443 = vpop.f32.mrb[0].mxu0
        %3444 = vmatprep.mubr.bf16.mxu0 %v2733
        %3445 = vmatmul.mubr.bf16.gmra.mrb[0].mxu0 %v2732
        %v3446 = vpop.f32.mrb[0].mxu0
        %v3447 = vadd.f32 0.0, %v3446
        %v3448 = vpop.f32.mrb[0].mxu0
        %v3449 = vpop.f32.mrb[0].mxu0
        %v3450 = vadd.f32 0.0, %v3449
        %v3451 = vpop.f32.mrb[0].mxu0
        %3452 = vmatprep.mubr.bf16.mxu0 %v2735
        %3453 = vmatmul.mubr.bf16.gmra.mrb[0].mxu0 %v2734
        %v3454 = vpop.f32.mrb[0].mxu0
        %v3455 = vpop.f32.mrb[0].mxu0
        %v3456 = vpop.f32.mrb[0].mxu0
        %v3457 = vadd.f32 0.0, %v3456
        %v3458 = vpop.f32.mrb[0].mxu0
        %3459 = vmatprep.mubr.bf16.mxu0 %v2737
        %3460 = vmatmul.mubr.bf16.gmra.mrb[0].mxu0 %v2736
        %v3461 = vpop.f32.mrb[0].mxu0
        %v3462 = vadd.f32 0.0, %v3461
        %v3463 = vpop.f32.mrb[0].mxu0
        %v3464 = vpop.f32.mrb[0].mxu0
        %v3465 = vpop.f32.mrb[0].mxu0
        %3466 = vmatprep.mubr.bf16.mxu0 %v2739
        %3467 = vmatmul.mubr.bf16.gmra.mrb[0].mxu0 %v2738
        %v3468 = vpop.f32.mrb[0].mxu0
        %v3469 = vadd.f32 0.0, %v3468
        %v3470 = vpop.f32.mrb[0].mxu0
        %v3471 = vpop.f32.mrb[0].mxu0
        %v3472 = vadd.f32 0.0, %v3471
        %v3473 = vpop.f32.mrb[0].mxu0
        %3474 = vmatprep.mubr.bf16.mxu0 %v2741
        %3475 = vmatmul.mubr.bf16.gmra.mrb[0].mxu0 %v2740
        %v3476 = vpop.f32.mrb[0].mxu0
        %v3477 = vpop.f32.mrb[0].mxu0
        %v3478 = vpop.f32.mrb[0].mxu0
        %v3479 = vadd.f32 0.0, %v3478
        %v3480 = vpop.f32.mrb[0].mxu0
        %3481 = vmatprep.mubr.bf16.mxu0 %v2743
        %3482 = vmatmul.mubr.bf16.gmra.mrb[0].mxu0 %v2742
        %v3483 = vpop.f32.mrb[0].mxu0
        %v3484 = vadd.f32 0.0, %v3483
        %v3485 = vpop.f32.mrb[0].mxu0
        %v3486 = vpop.f32.mrb[0].mxu0
        %v3487 = vpop.f32.mrb[0].mxu0
        %3488 = vmatprep.mubr.bf16.mxu0 %v2745
        %3489 = vmatmul.mubr.bf16.gmra.mrb[0].mxu0 %v2744
        %v3490 = vpop.f32.mrb[0].mxu0
        %v3491 = vadd.f32 0.0, %v3490
        %v3492 = vpop.f32.mrb[0].mxu0
        %v3493 = vpop.f32.mrb[0].mxu0
        %v3494 = vadd.f32 0.0, %v3493
        %v3495 = vpop.f32.mrb[0].mxu0
        %3496 = vmatprep.mubr.bf16.mxu0 %v2747
        %3497 = vmatmul.mubr.bf16.gmra.mrb[0].mxu0 %v2746
        %v3498 = vpop.f32.mrb[0].mxu0
        %v3499 = vpop.f32.mrb[0].mxu0
        %v3500 = vpop.f32.mrb[0].mxu0
        %v3501 = vadd.f32 0.0, %v3500
        %v3502 = vpop.f32.mrb[0].mxu0
        %3503 = vmatprep.mubr.bf16.mxu0 %v2749
        %3504 = vmatmul.mubr.bf16.gmra.mrb[0].mxu0 %v2748
        %v3505 = vpop.f32.mrb[0].mxu0
        %v3506 = vadd.f32 0.0, %v3505
        %v3507 = vpop.f32.mrb[0].mxu0
        %v3508 = vpop.f32.mrb[0].mxu0
        %v3509 = vpop.f32.mrb[0].mxu0
        %3510 = vmatprep.mubr.bf16.mxu0 %v2751
        %3511 = vmatmul.mubr.bf16.gmra.mrb[0].mxu0 %v2750
        %v3512 = vpop.f32.mrb[0].mxu0
        %v3513 = vadd.f32 0.0, %v3512
        %v3514 = vpop.f32.mrb[0].mxu0
        %v3515 = vpop.f32.mrb[0].mxu0
        %v3516 = vadd.f32 0.0, %v3515
        %v3517 = vpop.f32.mrb[0].mxu0
        %3518 = vmatprep.mubr.bf16.mxu0 %v2753
        %3519 = vmatmul.mubr.bf16.gmra.mrb[0].mxu0 %v2752
        %v3520 = vpop.f32.mrb[0].mxu0
        %v3521 = vpop.f32.mrb[0].mxu0
        %v3522 = vpop.f32.mrb[0].mxu0
        %v3523 = vadd.f32 0.0, %v3522
        %v3524 = vpop.f32.mrb[0].mxu0
        %3525 = vmatprep.mubr.bf16.mxu0 %v2755
        %3526 = vmatmul.mubr.bf16.gmra.mrb[0].mxu0 %v2754
        %v3527 = vpop.f32.mrb[0].mxu0
        %v3528 = vadd.f32 0.0, %v3527
        %v3529 = vpop.f32.mrb[0].mxu0
        %v3530 = vpop.f32.mrb[0].mxu0
        %v3531 = vpop.f32.mrb[0].mxu0
        %3532 = vmatprep.mubr.bf16.mxu0 %v2757
        %3533 = vmatmul.mubr.bf16.gmra.mrb[0].mxu0 %v2756
        %v3534 = vpop.f32.mrb[0].mxu0
        %v3535 = vadd.f32 0.0, %v3534
        %v3536 = vpop.f32.mrb[0].mxu0
        %v3537 = vpop.f32.mrb[0].mxu0
        %v3538 = vadd.f32 0.0, %v3537
        %v3539 = vpop.f32.mrb[0].mxu0
        %3540 = vmatprep.mubr.bf16.mxu0 %v2759
        %3541 = vmatmul.mubr.bf16.gmra.mrb[0].mxu0 %v2758
        %v3542 = vpop.f32.mrb[0].mxu0
        %v3543 = vpop.f32.mrb[0].mxu0
        %v3544 = vpop.f32.mrb[0].mxu0
        %v3545 = vadd.f32 0.0, %v3544
        %v3546 = vpop.f32.mrb[0].mxu0
        %3547 = vmatprep.mubr.bf16.mxu0 %v2761
        %3548 = vmatmul.mubr.bf16.gmra.mrb[0].mxu0 %v2760
        %v3549 = vpop.f32.mrb[0].mxu0
        %v3550 = vadd.f32 0.0, %v3549
        %v3551 = vpop.f32.mrb[0].mxu0
        %v3552 = vpop.f32.mrb[0].mxu0
        %v3553 = vpop.f32.mrb[0].mxu0
        %3554 = vmatprep.mubr.bf16.mxu0 %v2763
        %3555 = vmatmul.mubr.bf16.gmra.mrb[0].mxu0 %v2762
        %v3556 = vpop.f32.mrb[0].mxu0
        %v3557 = vadd.f32 0.0, %v3556
        %v3558 = vpop.f32.mrb[0].mxu0
        %v3559 = vpop.f32.mrb[0].mxu0
        %v3560 = vadd.f32 0.0, %v3559
        %v3561 = vpop.f32.mrb[0].mxu0
        %3562 = vmatprep.mubr.bf16.mxu0 %v2765
        %3563 = vmatmul.mubr.bf16.gmra.mrb[0].mxu0 %v2764
        %v3564 = vpop.f32.mrb[0].mxu0
        %v3565 = vpop.f32.mrb[0].mxu0
        %v3566 = vpop.f32.mrb[0].mxu0
        %v3567 = vpop.f32.mrb[0].mxu0
        %3568 = vmatprep.mubr.bf16.mxu0 %v2767
        %3569 = vmatmul.mubr.bf16.gmra.mrb[0].mxu0 %v2766
        %v3570 = vpop.f32.mrb[0].mxu0
        %v3571 = vpop.f32.mrb[0].mxu0
        %v3572 = vpop.f32.mrb[0].mxu0
        %v3573 = vpop.f32.mrb[0].mxu0
        %3574 = vdwg.mxu0
        %v3639 = vunpack.c.l.b16 %v2650
        %v3640 = vunpack.c.h.b16 %v2650
        %v3641 = vunpack.c.l.b16 %v2651
        %v3642 = vunpack.c.l.b16 %v2652
        %v3643 = vunpack.c.h.b16 %v2652
        %v3644 = vunpack.c.l.b16 %v2653
        %v3645 = vunpack.c.l.b16 %v2654
        %v3646 = vunpack.c.h.b16 %v2654
        %v3647 = vunpack.c.l.b16 %v2655
        %v3648 = vunpack.c.l.b16 %v2656
        %v3649 = vunpack.c.h.b16 %v2656
        %v3650 = vunpack.c.l.b16 %v2657
        %v3651 = vunpack.c.l.b16 %v2658
        %v3652 = vunpack.c.h.b16 %v2658
        %v3653 = vunpack.c.l.b16 %v2659
        %v3654 = vunpack.c.l.b16 %v2660
        %v3655 = vunpack.c.h.b16 %v2660
        %v3656 = vunpack.c.l.b16 %v2661
        %v3657 = vunpack.c.l.b16 %v2662
        %v3658 = vunpack.c.h.b16 %v2662
        %v3659 = vunpack.c.l.b16 %v2663
        %v3660 = vunpack.c.l.b16 %v2664
        %v3661 = vunpack.c.h.b16 %v2664
        %v3662 = vunpack.c.l.b16 %v2665
        %v3663 = vunpack.c.l.b16 %v2666
        %v3664 = vunpack.c.h.b16 %v2666
        %v3665 = vunpack.c.l.b16 %v2667
        %v3666 = vunpack.c.l.b16 %v2668
        %v3667 = vunpack.c.h.b16 %v2668
        %v3668 = vunpack.c.l.b16 %v2669
        %v3669 = vunpack.c.l.b16 %v2670
        %v3670 = vunpack.c.h.b16 %v2670
        %v3671 = vunpack.c.l.b16 %v2671
        %v3672 = vunpack.c.l.b16 %v2672
        %v3673 = vunpack.c.h.b16 %v2672
        %v3674 = vunpack.c.l.b16 %v2673
        %v3675 = vunpack.c.l.b16 %v2674
        %v3676 = vunpack.c.h.b16 %v2674
        %v3677 = vunpack.c.l.b16 %v2675
        %v3678 = vunpack.c.l.b16 %v2676
        %v3679 = vunpack.c.h.b16 %v2676
        %v3680 = vunpack.c.l.b16 %v2677
        %v3681 = vunpack.c.l.b16 %v2678
        %v3682 = vunpack.c.h.b16 %v2678
        %v3683 = vunpack.c.l.b16 %v2679
        %v3684 = vunpack.c.l.b16 %v2680
        %v3685 = vunpack.c.h.b16 %v2680
        %v3686 = vunpack.c.l.b16 %v2681
        %v3687 = vunpack.c.l.b16 %v2682
        %v3688 = vunpack.c.h.b16 %v2682
        %v3689 = vunpack.c.l.b16 %v2683
        %v3690 = vunpack.c.l.b16 %v2684
        %v3691 = vunpack.c.h.b16 %v2684
        %v3692 = vunpack.c.l.b16 %v2685
        %v3693 = vunpack.c.l.b16 %v2686
        %v3694 = vunpack.c.h.b16 %v2686
        %v3695 = vunpack.c.l.b16 %v2687
        %v3696 = vunpack.c.l.b16 %v2688
        %v3697 = vunpack.c.h.b16 %v2688
        %v3698 = vunpack.c.l.b16 %v2689
        %v3699 = vunpack.c.l.b16 %v2690
        %v3700 = vunpack.c.h.b16 %v2690
        %v3701 = vunpack.c.l.b16 %v2691
        %v3702 = vunpack.c.l.b16 %v2692
        %v3703 = vunpack.c.h.b16 %v2692
        %v3704 = vunpack.c.l.b16 %v2693
        %v3705 = vunpack.c.l.b16 %v2694
        %v3706 = vunpack.c.h.b16 %v2694
        %v3707 = vunpack.c.l.b16 %v2695
        %v3708 = vunpack.c.l.b16 %v2696
        %v3709 = vunpack.c.h.b16 %v2696
        %v3710 = vunpack.c.l.b16 %v2697
        %v3711 = vunpack.c.l.b16 %v2698
        %v3712 = vunpack.c.h.b16 %v2698
        %v3713 = vunpack.c.l.b16 %v2699
        %v3714 = vunpack.c.l.b16 %v2700
        %v3715 = vunpack.c.h.b16 %v2700
        %v3716 = vunpack.c.l.b16 %v2701
        %v3717 = vunpack.c.l.b16 %v2702
        %v3718 = vunpack.c.h.b16 %v2702
        %v3719 = vunpack.c.l.b16 %v2703
        %v3720 = vunpack.c.l.b16 %v2704
        %v3721 = vunpack.c.h.b16 %v2704
        %v3722 = vunpack.c.l.b16 %v2705
        %v3723 = vunpack.c.l.b16 %v2706
        %v3724 = vunpack.c.h.b16 %v2706
        %v3725 = vunpack.c.l.b16 %v2707
        %v3726 = vunpack.c.l.b16 %v2708
        %v3727 = vunpack.c.h.b16 %v2708
        %v3728 = vunpack.c.l.b16 %v2709
        %v3729 = vunpack.c.l.b16 %v2710
        %v3730 = vunpack.c.h.b16 %v2710
        %v3731 = vunpack.c.l.b16 %v2711
        %v3732 = vunpack.c.l.b16 %v2712
        %v3733 = vunpack.c.h.b16 %v2712
        %v3734 = vunpack.c.l.b16 %v2713
        %v3735 = vpack.c.b16 %v3642, %v3639
        %v3736 = vpack.c.b16 %v3643, %v3640
        %v3737 = vpack.c.b16 %v3644, %v3641
        %v3738 = vpack.c.b16 %v3648, %v3645
        %v3739 = vpack.c.b16 %v3649, %v3646
        %v3740 = vpack.c.b16 %v3650, %v3647
        %v3741 = vpack.c.b16 %v3654, %v3651
        %v3742 = vpack.c.b16 %v3655, %v3652
        %v3743 = vpack.c.b16 %v3656, %v3653
        %v3744 = vpack.c.b16 %v3660, %v3657
        %v3745 = vpack.c.b16 %v3661, %v3658
        %v3746 = vpack.c.b16 %v3662, %v3659
        %v3747 = vpack.c.b16 %v3666, %v3663
        %v3748 = vpack.c.b16 %v3667, %v3664
        %v3749 = vpack.c.b16 %v3668, %v3665
        %v3750 = vpack.c.b16 %v3672, %v3669
        %v3751 = vpack.c.b16 %v3673, %v3670
        %v3752 = vpack.c.b16 %v3674, %v3671
        %v3753 = vpack.c.b16 %v3678, %v3675
        %v3754 = vpack.c.b16 %v3679, %v3676
        %v3755 = vpack.c.b16 %v3680, %v3677
        %v3756 = vpack.c.b16 %v3684, %v3681
        %v3757 = vpack.c.b16 %v3685, %v3682
        %v3758 = vpack.c.b16 %v3686, %v3683
        %v3759 = vpack.c.b16 %v3690, %v3687
        %v3760 = vpack.c.b16 %v3691, %v3688
        %v3761 = vpack.c.b16 %v3692, %v3689
        %v3762 = vpack.c.b16 %v3696, %v3693
        %v3763 = vpack.c.b16 %v3697, %v3694
        %v3764 = vpack.c.b16 %v3698, %v3695
        %v3765 = vpack.c.b16 %v3702, %v3699
        %v3766 = vpack.c.b16 %v3703, %v3700
        %v3767 = vpack.c.b16 %v3704, %v3701
        %v3768 = vpack.c.b16 %v3708, %v3705
        %v3769 = vpack.c.b16 %v3709, %v3706
        %v3770 = vpack.c.b16 %v3710, %v3707
        %v3771 = vpack.c.b16 %v3714, %v3711
        %v3772 = vpack.c.b16 %v3715, %v3712
        %v3773 = vpack.c.b16 %v3716, %v3713
        %v3774 = vpack.c.b16 %v3720, %v3717
        %v3775 = vpack.c.b16 %v3721, %v3718
        %v3776 = vpack.c.b16 %v3722, %v3719
        %v3777 = vpack.c.b16 %v3726, %v3723
        %v3778 = vpack.c.b16 %v3727, %v3724
        %v3779 = vpack.c.b16 %v3728, %v3725
        %v3780 = vpack.c.b16 %v3732, %v3729
        %v3781 = vpack.c.b16 %v3733, %v3730
        %v3782 = vpack.c.b16 %v3734, %v3731
        %3831 = vmatprep.subr.bf16.mxu0 %v3736
        %3832 = vmatpush1.bf16.msra.mxu0 %v3735
        %3833 = vmatprep.subr.bf16.mxu0 %v3739
        %3834 = vmatpush1.bf16.msra.mxu0 %v3738
        %3835 = vmatprep.subr.bf16.mxu0 %v3742
        %3836 = vmatpush1.bf16.msra.mxu0 %v3741
        %3837 = vmatprep.subr.bf16.mxu0 %v3745
        %3838 = vmatpush1.bf16.msra.mxu0 %v3744
        %3839 = vmatprep.subr.bf16.mxu0 %v3748
        %3840 = vmatpush1.bf16.msra.mxu0 %v3747
        %3841 = vmatprep.subr.bf16.mxu0 %v3751
        %3842 = vmatpush1.bf16.msra.mxu0 %v3750
        %3843 = vmatprep.subr.bf16.mxu0 %v3754
        %3844 = vmatpush1.bf16.msra.mxu0 %v3753
        %3845 = vmatprep.subr.bf16.mxu0 %v3757
        %3846 = vmatpush1.bf16.msra.mxu0 %v3756
        %3847 = vmatprep.subr.bf16.mxu0 %v3760
        %3848 = vmatpush1.bf16.msra.mxu0 %v3759
        %3849 = vmatprep.subr.bf16.mxu0 %v3763
        %3850 = vmatpush1.bf16.msra.mxu0 %v3762
        %3851 = vmatprep.subr.bf16.mxu0 %v3766
        %3852 = vmatpush1.bf16.msra.mxu0 %v3765
        %3853 = vmatprep.subr.bf16.mxu0 %v3769
        %3854 = vmatpush1.bf16.msra.mxu0 %v3768
        %3855 = vmatprep.subr.bf16.mxu0 %v3772
        %3856 = vmatpush1.bf16.msra.mxu0 %v3771
        %3857 = vmatprep.subr.bf16.mxu0 %v3775
        %3858 = vmatpush1.bf16.msra.mxu0 %v3774
        %3859 = vmatprep.subr.bf16.mxu0 %v3778
        %3860 = vmatpush1.bf16.msra.mxu0 %v3777
        %3861 = vmatprep.subr.bf16.mxu0 %v3781
        %3862 = vmatpush1.bf16.msra.mxu0 %v3780
        %3863 = vmatprep.mubr.bf16.mxu0 %v2597
        %3864 = vmatmul.mubr.bf16.gmra.mrb[0].mxu0 %v2596
        %v3865 = vpop.f32.mrb[0].mxu0
        %v3866 = vadd.f32 %v3124, %v3865
        %v3867 = vpop.f32.mrb[0].mxu0
        %v3868 = vadd.f32 %v3126, %v3867
        %v3869 = vpop.f32.mrb[0].mxu0
        %v3870 = vadd.f32 %v3128, %v3869
        %v3871 = vpop.f32.mrb[0].mxu0
        %v3872 = vadd.f32 %v3130, %v3871
        %3873 = vmatprep.mubr.bf16.mxu0 %v2599
        %3874 = vmatmul.mubr.bf16.gmra.mrb[0].mxu0 %v2598
        %v3875 = vpop.f32.mrb[0].mxu0
        %v3876 = vpop.f32.mrb[0].mxu0
        %v3877 = vpop.f32.mrb[0].mxu0
        %v3878 = vadd.f32 %v3136, %v3877
        %v3879 = vpop.f32.mrb[0].mxu0
        %v3880 = vadd.f32 %v3138, %v3879
        %3881 = vmatprep.mubr.bf16.mxu0 %v2601
        %3882 = vmatmul.mubr.bf16.gmra.mrb[0].mxu0 %v2600
        %v3883 = vpop.f32.mrb[0].mxu0
        %v3884 = vadd.f32 %v3142, %v3883
        %v3885 = vpop.f32.mrb[0].mxu0
        %v3886 = vadd.f32 %v3144, %v3885
        %v3887 = vpop.f32.mrb[0].mxu0
        %v3888 = vpop.f32.mrb[0].mxu0
        %3889 = vmatprep.mubr.bf16.mxu0 %v2603
        %3890 = vmatmul.mubr.bf16.gmra.mrb[0].mxu0 %v2602
        %v3891 = vpop.f32.mrb[0].mxu0
        %v3892 = vadd.f32 %v3150, %v3891
        %v3893 = vpop.f32.mrb[0].mxu0
        %v3894 = vadd.f32 %v3152, %v3893
        %v3895 = vpop.f32.mrb[0].mxu0
        %v3896 = vadd.f32 %v3154, %v3895
        %v3897 = vpop.f32.mrb[0].mxu0
        %v3898 = vadd.f32 %v3156, %v3897
        %3899 = vmatprep.mubr.bf16.mxu0 %v2605
        %3900 = vmatmul.mubr.bf16.gmra.mrb[0].mxu0 %v2604
        %v3901 = vpop.f32.mrb[0].mxu0
        %v3902 = vpop.f32.mrb[0].mxu0
        %v3903 = vpop.f32.mrb[0].mxu0
        %v3904 = vadd.f32 %v3162, %v3903
        %v3905 = vpop.f32.mrb[0].mxu0
        %v3906 = vadd.f32 %v3164, %v3905
        %3907 = vmatprep.mubr.bf16.mxu0 %v2607
        %3908 = vmatmul.mubr.bf16.gmra.mrb[0].mxu0 %v2606
        %v3909 = vpop.f32.mrb[0].mxu0
        %v3910 = vadd.f32 %v3168, %v3909
        %v3911 = vpop.f32.mrb[0].mxu0
        %v3912 = vadd.f32 %v3170, %v3911
        %v3913 = vpop.f32.mrb[0].mxu0
        %v3914 = vpop.f32.mrb[0].mxu0
        %3915 = vmatprep.mubr.bf16.mxu0 %v2609
        %3916 = vmatmul.mubr.bf16.gmra.mrb[0].mxu0 %v2608
        %v3917 = vpop.f32.mrb[0].mxu0
        %v3918 = vadd.f32 %v3176, %v3917
        %v3919 = vpop.f32.mrb[0].mxu0
        %v3920 = vadd.f32 %v3178, %v3919
        %v3921 = vpop.f32.mrb[0].mxu0
        %v3922 = vadd.f32 %v3180, %v3921
        %v3923 = vpop.f32.mrb[0].mxu0
        %v3924 = vadd.f32 %v3182, %v3923
        %3925 = vmatprep.mubr.bf16.mxu0 %v2611
        %3926 = vmatmul.mubr.bf16.gmra.mrb[0].mxu0 %v2610
        %v3927 = vpop.f32.mrb[0].mxu0
        %v3928 = vpop.f32.mrb[0].mxu0
        %v3929 = vpop.f32.mrb[0].mxu0
        %v3930 = vadd.f32 %v3188, %v3929
        %v3931 = vpop.f32.mrb[0].mxu0
        %v3932 = vadd.f32 %v3190, %v3931
        %3933 = vmatprep.mubr.bf16.mxu0 %v2613
        %3934 = vmatmul.mubr.bf16.gmra.mrb[0].mxu0 %v2612
        %v3935 = vpop.f32.mrb[0].mxu0
        %v3936 = vadd.f32 %v3194, %v3935
        %v3937 = vpop.f32.mrb[0].mxu0
        %v3938 = vadd.f32 %v3196, %v3937
        %v3939 = vpop.f32.mrb[0].mxu0
        %v3940 = vpop.f32.mrb[0].mxu0
        %3941 = vmatprep.mubr.bf16.mxu0 %v2615
        %3942 = vmatmul.mubr.bf16.gmra.mrb[0].mxu0 %v2614
        %v3943 = vpop.f32.mrb[0].mxu0
        %v3944 = vadd.f32 %v3202, %v3943
        %v3945 = vpop.f32.mrb[0].mxu0
        %v3946 = vadd.f32 %v3204, %v3945
        %v3947 = vpop.f32.mrb[0].mxu0
        %v3948 = vadd.f32 %v3206, %v3947
        %v3949 = vpop.f32.mrb[0].mxu0
        %v3950 = vadd.f32 %v3208, %v3949
        %3951 = vmatprep.mubr.bf16.mxu0 %v2617
        %3952 = vmatmul.mubr.bf16.gmra.mrb[0].mxu0 %v2616
        %v3953 = vpop.f32.mrb[0].mxu0
        %v3954 = vpop.f32.mrb[0].mxu0
        %v3955 = vpop.f32.mrb[0].mxu0
        %v3956 = vadd.f32 %v3214, %v3955
        %v3957 = vpop.f32.mrb[0].mxu0
        %v3958 = vadd.f32 %v3216, %v3957
        %3959 = vmatprep.mubr.bf16.mxu0 %v2619
        %3960 = vmatmul.mubr.bf16.gmra.mrb[0].mxu0 %v2618
        %v3961 = vpop.f32.mrb[0].mxu0
        %v3962 = vadd.f32 %v3220, %v3961
        %v3963 = vpop.f32.mrb[0].mxu0
        %v3964 = vadd.f32 %v3222, %v3963
        %v3965 = vpop.f32.mrb[0].mxu0
        %v3966 = vpop.f32.mrb[0].mxu0
        %3967 = vmatprep.mubr.bf16.mxu0 %v2621
        %3968 = vmatmul.mubr.bf16.gmra.mrb[0].mxu0 %v2620
        %v3969 = vpop.f32.mrb[0].mxu0
        %v3970 = vadd.f32 %v3228, %v3969
        %v3971 = vpop.f32.mrb[0].mxu0
        %v3972 = vadd.f32 %v3230, %v3971
        %v3973 = vpop.f32.mrb[0].mxu0
        %v3974 = vadd.f32 %v3232, %v3973
        %v3975 = vpop.f32.mrb[0].mxu0
        %v3976 = vadd.f32 %v3234, %v3975
        %3977 = vmatprep.mubr.bf16.mxu0 %v2623
        %3978 = vmatmul.mubr.bf16.gmra.mrb[0].mxu0 %v2622
        %v3979 = vpop.f32.mrb[0].mxu0
        %v3980 = vpop.f32.mrb[0].mxu0
        %v3981 = vpop.f32.mrb[0].mxu0
        %v3982 = vadd.f32 %v3240, %v3981
        %v3983 = vpop.f32.mrb[0].mxu0
        %v3984 = vadd.f32 %v3242, %v3983
        %3985 = vmatprep.mubr.bf16.mxu0 %v2625
        %3986 = vmatmul.mubr.bf16.gmra.mrb[0].mxu0 %v2624
        %v3987 = vpop.f32.mrb[0].mxu0
        %v3988 = vadd.f32 %v3246, %v3987
        %v3989 = vpop.f32.mrb[0].mxu0
        %v3990 = vadd.f32 %v3248, %v3989
        %v3991 = vpop.f32.mrb[0].mxu0
        %v3992 = vpop.f32.mrb[0].mxu0
        %3993 = vmatprep.mubr.bf16.mxu0 %v2627
        %3994 = vmatmul.mubr.bf16.gmra.mrb[0].mxu0 %v2626
        %v3995 = vpop.f32.mrb[0].mxu0
        %v3996 = vadd.f32 %v3254, %v3995
        %v3997 = vpop.f32.mrb[0].mxu0
        %v3998 = vadd.f32 %v3256, %v3997
        %v3999 = vpop.f32.mrb[0].mxu0
        %v4000 = vadd.f32 %v3258, %v3999
        %v4001 = vpop.f32.mrb[0].mxu0
        %v4002 = vadd.f32 %v3260, %v4001
        %4003 = vmatprep.mubr.bf16.mxu0 %v2629
        %4004 = vmatmul.mubr.bf16.gmra.mrb[0].mxu0 %v2628
        %v4005 = vpop.f32.mrb[0].mxu0
        %v4006 = vpop.f32.mrb[0].mxu0
        %v4007 = vpop.f32.mrb[0].mxu0
        %v4008 = vadd.f32 %v3266, %v4007
        %v4009 = vpop.f32.mrb[0].mxu0
        %v4010 = vadd.f32 %v3268, %v4009
        %4011 = vmatprep.mubr.bf16.mxu0 %v2631
        %4012 = vmatmul.mubr.bf16.gmra.mrb[0].mxu0 %v2630
        %v4013 = vpop.f32.mrb[0].mxu0
        %v4014 = vadd.f32 %v3272, %v4013
        %v4015 = vpop.f32.mrb[0].mxu0
        %v4016 = vadd.f32 %v3274, %v4015
        %v4017 = vpop.f32.mrb[0].mxu0
        %v4018 = vpop.f32.mrb[0].mxu0
        %4019 = vmatprep.mubr.bf16.mxu0 %v2633
        %4020 = vmatmul.mubr.bf16.gmra.mrb[0].mxu0 %v2632
        %v4021 = vpop.f32.mrb[0].mxu0
        %v4022 = vadd.f32 %v3280, %v4021
        %v4023 = vpop.f32.mrb[0].mxu0
        %v4024 = vadd.f32 %v3282, %v4023
        %v4025 = vpop.f32.mrb[0].mxu0
        %v4026 = vadd.f32 %v3284, %v4025
        %v4027 = vpop.f32.mrb[0].mxu0
        %v4028 = vadd.f32 %v3286, %v4027
        %4029 = vmatprep.mubr.bf16.mxu0 %v2635
        %4030 = vmatmul.mubr.bf16.gmra.mrb[0].mxu0 %v2634
        %v4031 = vpop.f32.mrb[0].mxu0
        %v4032 = vpop.f32.mrb[0].mxu0
        %v4033 = vpop.f32.mrb[0].mxu0
        %v4034 = vadd.f32 %v3292, %v4033
        %v4035 = vpop.f32.mrb[0].mxu0
        %v4036 = vadd.f32 %v3294, %v4035
        %4037 = vmatprep.mubr.bf16.mxu0 %v2637
        %4038 = vmatmul.mubr.bf16.gmra.mrb[0].mxu0 %v2636
        %v4039 = vpop.f32.mrb[0].mxu0
        %v4040 = vadd.f32 %v3298, %v4039
        %v4041 = vpop.f32.mrb[0].mxu0
        %v4042 = vadd.f32 %v3300, %v4041
        %v4043 = vpop.f32.mrb[0].mxu0
        %v4044 = vpop.f32.mrb[0].mxu0
        %4045 = vmatprep.mubr.bf16.mxu0 %v2639
        %4046 = vmatmul.mubr.bf16.gmra.mrb[0].mxu0 %v2638
        %v4047 = vpop.f32.mrb[0].mxu0
        %v4048 = vadd.f32 %v3306, %v4047
        %v4049 = vpop.f32.mrb[0].mxu0
        %v4050 = vadd.f32 %v3308, %v4049
        %v4051 = vpop.f32.mrb[0].mxu0
        %v4052 = vadd.f32 %v3310, %v4051
        %v4053 = vpop.f32.mrb[0].mxu0
        %v4054 = vadd.f32 %v3312, %v4053
        %4055 = vmatprep.mubr.bf16.mxu0 %v2641
        %4056 = vmatmul.mubr.bf16.gmra.mrb[0].mxu0 %v2640
        %v4057 = vpop.f32.mrb[0].mxu0
        %v4058 = vpop.f32.mrb[0].mxu0
        %v4059 = vpop.f32.mrb[0].mxu0
        %v4060 = vpop.f32.mrb[0].mxu0
        %v4061 = vadd.f32 %v3319, %v4060
        %4062 = vmatprep.mubr.bf16.mxu0 %v2643
        %4063 = vmatmul.mubr.bf16.gmra.mrb[0].mxu0 %v2642
        %v4064 = vpop.f32.mrb[0].mxu0
        %v4065 = vpop.f32.mrb[0].mxu0
        %v4066 = vadd.f32 %v3324, %v4065
        %v4067 = vpop.f32.mrb[0].mxu0
        %v4068 = vpop.f32.mrb[0].mxu0
        %4069 = vmatprep.mubr.bf16.mxu0 %v2645
        %4070 = vmatmul.mubr.bf16.gmra.mrb[0].mxu0 %v2644
        %v4071 = vpop.f32.mrb[0].mxu0
        %v4072 = vpop.f32.mrb[0].mxu0
        %v4073 = vpop.f32.mrb[0].mxu0
        %v4074 = vpop.f32.mrb[0].mxu0
        %4075 = vmatprep.mubr.bf16.mxu0 %v2647
        %4076 = vmatmul.mubr.bf16.gmra.mrb[0].mxu0 %v2646
        %v4077 = vpop.f32.mrb[0].mxu0
        %v4078 = vpop.f32.mrb[0].mxu0
        %v4079 = vpop.f32.mrb[0].mxu0
        %v4080 = vadd.f32 %v3338, %v4079
        %v4081 = vpop.f32.mrb[0].mxu0
        %4082 = vmatprep.mubr.bf16.mxu0 %v2649
        %4083 = vmatmul.mubr.bf16.gmra.mrb[0].mxu0 %v2648
        %v4084 = vpop.f32.mrb[0].mxu0
        %v4085 = vadd.f32 %v3343, %v4084
        %v4086 = vpop.f32.mrb[0].mxu0
        %v4087 = vpop.f32.mrb[0].mxu0
        %v4088 = vpop.f32.mrb[0].mxu0
        %4089 = vdwg.mxu0
        %4090 = vmatprep.subr.bf16.mxu0 0
        %4091 = vmatpush1.bf16.msra.mxu0 %v3737
        %4092 = vmatprep.subr.bf16.mxu0 0
        %4093 = vmatpush1.bf16.msra.mxu0 %v3740
        %4094 = vmatprep.subr.bf16.mxu0 0
        %4095 = vmatpush1.bf16.msra.mxu0 %v3743
        %4096 = vmatprep.subr.bf16.mxu0 0
        %4097 = vmatpush1.bf16.msra.mxu0 %v3746
        %4098 = vmatprep.subr.bf16.mxu0 0
        %4099 = vmatpush1.bf16.msra.mxu0 %v3749
        %4100 = vmatprep.subr.bf16.mxu0 0
        %4101 = vmatpush1.bf16.msra.mxu0 %v3752
        %4102 = vmatprep.subr.bf16.mxu0 0
        %4103 = vmatpush1.bf16.msra.mxu0 %v3755
        %4104 = vmatprep.subr.bf16.mxu0 0
        %4105 = vmatpush1.bf16.msra.mxu0 %v3758
        %4106 = vmatprep.subr.bf16.mxu0 0
        %4107 = vmatpush1.bf16.msra.mxu0 %v3761
        %4108 = vmatprep.subr.bf16.mxu0 0
        %4109 = vmatpush1.bf16.msra.mxu0 %v3764
        %4110 = vmatprep.subr.bf16.mxu0 0
        %4111 = vmatpush1.bf16.msra.mxu0 %v3767
        %4112 = vmatprep.subr.bf16.mxu0 0
        %4113 = vmatpush1.bf16.msra.mxu0 %v3770
        %4114 = vmatprep.subr.bf16.mxu0 0
        %4115 = vmatpush1.bf16.msra.mxu0 %v3773
        %4116 = vmatprep.subr.bf16.mxu0 0
        %4117 = vmatpush1.bf16.msra.mxu0 %v3776
        %4118 = vmatprep.subr.bf16.mxu0 0
        %4119 = vmatpush1.bf16.msra.mxu0 %v3779
        %4120 = vmatprep.subr.bf16.mxu0 0
        %4121 = vmatpush1.bf16.msra.mxu0 %v3782
        %4122 = vmatprep.mubr.bf16.mxu0 %v2597
        %4123 = vmatmul.mubr.bf16.gmra.mrb[0].mxu0 %v2596
        %v4124 = vpop.f32.mrb[0].mxu0
        %v4125 = vpop.f32.mrb[0].mxu0
        %v4126 = vpop.f32.mrb[0].mxu0
        %v4127 = vpop.f32.mrb[0].mxu0
        %4128 = vmatprep.mubr.bf16.mxu0 %v2599
        %4129 = vmatmul.mubr.bf16.gmra.mrb[0].mxu0 %v2598
        %v4130 = vpop.f32.mrb[0].mxu0
        %v4131 = vpop.f32.mrb[0].mxu0
        %v4132 = vpop.f32.mrb[0].mxu0
        %v4133 = vadd.f32 %v3391, %v4132
        %v4134 = vpop.f32.mrb[0].mxu0
        %4135 = vmatprep.mubr.bf16.mxu0 %v2601
        %4136 = vmatmul.mubr.bf16.gmra.mrb[0].mxu0 %v2600
        %v4137 = vpop.f32.mrb[0].mxu0
        %v4138 = vadd.f32 %v3396, %v4137
        %v4139 = vpop.f32.mrb[0].mxu0
        %v4140 = vpop.f32.mrb[0].mxu0
        %v4141 = vpop.f32.mrb[0].mxu0
        %4142 = vmatprep.mubr.bf16.mxu0 %v2603
        %4143 = vmatmul.mubr.bf16.gmra.mrb[0].mxu0 %v2602
        %v4144 = vpop.f32.mrb[0].mxu0
        %v4145 = vadd.f32 %v3403, %v4144
        %v4146 = vpop.f32.mrb[0].mxu0
        %v4147 = vpop.f32.mrb[0].mxu0
        %v4148 = vadd.f32 %v3406, %v4147
        %v4149 = vpop.f32.mrb[0].mxu0
        %4150 = vmatprep.mubr.bf16.mxu0 %v2605
        %4151 = vmatmul.mubr.bf16.gmra.mrb[0].mxu0 %v2604
        %v4152 = vpop.f32.mrb[0].mxu0
        %v4153 = vpop.f32.mrb[0].mxu0
        %v4154 = vpop.f32.mrb[0].mxu0
        %v4155 = vadd.f32 %v3413, %v4154
        %v4156 = vpop.f32.mrb[0].mxu0
        %4157 = vmatprep.mubr.bf16.mxu0 %v2607
        %4158 = vmatmul.mubr.bf16.gmra.mrb[0].mxu0 %v2606
        %v4159 = vpop.f32.mrb[0].mxu0
        %v4160 = vadd.f32 %v3418, %v4159
        %v4161 = vpop.f32.mrb[0].mxu0
        %v4162 = vpop.f32.mrb[0].mxu0
        %v4163 = vpop.f32.mrb[0].mxu0
        %4164 = vmatprep.mubr.bf16.mxu0 %v2609
        %4165 = vmatmul.mubr.bf16.gmra.mrb[0].mxu0 %v2608
        %v4166 = vpop.f32.mrb[0].mxu0
        %v4167 = vadd.f32 %v3425, %v4166
        %v4168 = vpop.f32.mrb[0].mxu0
        %v4169 = vpop.f32.mrb[0].mxu0
        %v4170 = vadd.f32 %v3428, %v4169
        %v4171 = vpop.f32.mrb[0].mxu0
        %4172 = vmatprep.mubr.bf16.mxu0 %v2611
        %4173 = vmatmul.mubr.bf16.gmra.mrb[0].mxu0 %v2610
        %v4174 = vpop.f32.mrb[0].mxu0
        %v4175 = vpop.f32.mrb[0].mxu0
        %v4176 = vpop.f32.mrb[0].mxu0
        %v4177 = vadd.f32 %v3435, %v4176
        %v4178 = vpop.f32.mrb[0].mxu0
        %4179 = vmatprep.mubr.bf16.mxu0 %v2613
        %4180 = vmatmul.mubr.bf16.gmra.mrb[0].mxu0 %v2612
        %v4181 = vpop.f32.mrb[0].mxu0
        %v4182 = vadd.f32 %v3440, %v4181
        %v4183 = vpop.f32.mrb[0].mxu0
        %v4184 = vpop.f32.mrb[0].mxu0
        %v4185 = vpop.f32.mrb[0].mxu0
        %4186 = vmatprep.mubr.bf16.mxu0 %v2615
        %4187 = vmatmul.mubr.bf16.gmra.mrb[0].mxu0 %v2614
        %v4188 = vpop.f32.mrb[0].mxu0
        %v4189 = vadd.f32 %v3447, %v4188
        %v4190 = vpop.f32.mrb[0].mxu0
        %v4191 = vpop.f32.mrb[0].mxu0
        %v4192 = vadd.f32 %v3450, %v4191
        %v4193 = vpop.f32.mrb[0].mxu0
        %4194 = vmatprep.mubr.bf16.mxu0 %v2617
        %4195 = vmatmul.mubr.bf16.gmra.mrb[0].mxu0 %v2616
        %v4196 = vpop.f32.mrb[0].mxu0
        %v4197 = vpop.f32.mrb[0].mxu0
        %v4198 = vpop.f32.mrb[0].mxu0
        %v4199 = vadd.f32 %v3457, %v4198
        %v4200 = vpop.f32.mrb[0].mxu0
        %4201 = vmatprep.mubr.bf16.mxu0 %v2619
        %4202 = vmatmul.mubr.bf16.gmra.mrb[0].mxu0 %v2618
        %v4203 = vpop.f32.mrb[0].mxu0
        %v4204 = vadd.f32 %v3462, %v4203
        %v4205 = vpop.f32.mrb[0].mxu0
        %v4206 = vpop.f32.mrb[0].mxu0
        %v4207 = vpop.f32.mrb[0].mxu0
        %4208 = vmatprep.mubr.bf16.mxu0 %v2621
        %4209 = vmatmul.mubr.bf16.gmra.mrb[0].mxu0 %v2620
        %v4210 = vpop.f32.mrb[0].mxu0
        %v4211 = vadd.f32 %v3469, %v4210
        %v4212 = vpop.f32.mrb[0].mxu0
        %v4213 = vpop.f32.mrb[0].mxu0
        %v4214 = vadd.f32 %v3472, %v4213
        %v4215 = vpop.f32.mrb[0].mxu0
        %4216 = vmatprep.mubr.bf16.mxu0 %v2623
        %4217 = vmatmul.mubr.bf16.gmra.mrb[0].mxu0 %v2622
        %v4218 = vpop.f32.mrb[0].mxu0
        %v4219 = vpop.f32.mrb[0].mxu0
        %v4220 = vpop.f32.mrb[0].mxu0
        %v4221 = vadd.f32 %v3479, %v4220
        %v4222 = vpop.f32.mrb[0].mxu0
        %4223 = vmatprep.mubr.bf16.mxu0 %v2625
        %4224 = vmatmul.mubr.bf16.gmra.mrb[0].mxu0 %v2624
        %v4225 = vpop.f32.mrb[0].mxu0
        %v4226 = vadd.f32 %v3484, %v4225
        %v4227 = vpop.f32.mrb[0].mxu0
        %v4228 = vpop.f32.mrb[0].mxu0
        %v4229 = vpop.f32.mrb[0].mxu0
        %4230 = vmatprep.mubr.bf16.mxu0 %v2627
        %4231 = vmatmul.mubr.bf16.gmra.mrb[0].mxu0 %v2626
        %v4232 = vpop.f32.mrb[0].mxu0
        %v4233 = vadd.f32 %v3491, %v4232
        %v4234 = vpop.f32.mrb[0].mxu0
        %v4235 = vpop.f32.mrb[0].mxu0
        %v4236 = vadd.f32 %v3494, %v4235
        %v4237 = vpop.f32.mrb[0].mxu0
        %4238 = vmatprep.mubr.bf16.mxu0 %v2629
        %4239 = vmatmul.mubr.bf16.gmra.mrb[0].mxu0 %v2628
        %v4240 = vpop.f32.mrb[0].mxu0
        %v4241 = vpop.f32.mrb[0].mxu0
        %v4242 = vpop.f32.mrb[0].mxu0
        %v4243 = vadd.f32 %v3501, %v4242
        %v4244 = vpop.f32.mrb[0].mxu0
        %4245 = vmatprep.mubr.bf16.mxu0 %v2631
        %4246 = vmatmul.mubr.bf16.gmra.mrb[0].mxu0 %v2630
        %v4247 = vpop.f32.mrb[0].mxu0
        %v4248 = vadd.f32 %v3506, %v4247
        %v4249 = vpop.f32.mrb[0].mxu0
        %v4250 = vpop.f32.mrb[0].mxu0
        %v4251 = vpop.f32.mrb[0].mxu0
        %4252 = vmatprep.mubr.bf16.mxu0 %v2633
        %4253 = vmatmul.mubr.bf16.gmra.mrb[0].mxu0 %v2632
        %v4254 = vpop.f32.mrb[0].mxu0
        %v4255 = vadd.f32 %v3513, %v4254
        %v4256 = vpop.f32.mrb[0].mxu0
        %v4257 = vpop.f32.mrb[0].mxu0
        %v4258 = vadd.f32 %v3516, %v4257
        %v4259 = vpop.f32.mrb[0].mxu0
        %4260 = vmatprep.mubr.bf16.mxu0 %v2635
        %4261 = vmatmul.mubr.bf16.gmra.mrb[0].mxu0 %v2634
        %v4262 = vpop.f32.mrb[0].mxu0
        %v4263 = vpop.f32.mrb[0].mxu0
        %v4264 = vpop.f32.mrb[0].mxu0
        %v4265 = vadd.f32 %v3523, %v4264
        %v4266 = vpop.f32.mrb[0].mxu0
        %4267 = vmatprep.mubr.bf16.mxu0 %v2637
        %4268 = vmatmul.mubr.bf16.gmra.mrb[0].mxu0 %v2636
        %v4269 = vpop.f32.mrb[0].mxu0
        %v4270 = vadd.f32 %v3528, %v4269
        %v4271 = vpop.f32.mrb[0].mxu0
        %v4272 = vpop.f32.mrb[0].mxu0
        %v4273 = vpop.f32.mrb[0].mxu0
        %4274 = vmatprep.mubr.bf16.mxu0 %v2639
        %4275 = vmatmul.mubr.bf16.gmra.mrb[0].mxu0 %v2638
        %v4276 = vpop.f32.mrb[0].mxu0
        %v4277 = vadd.f32 %v3535, %v4276
        %v4278 = vpop.f32.mrb[0].mxu0
        %v4279 = vpop.f32.mrb[0].mxu0
        %v4280 = vadd.f32 %v3538, %v4279
        %v4281 = vpop.f32.mrb[0].mxu0
        %4282 = vmatprep.mubr.bf16.mxu0 %v2641
        %4283 = vmatmul.mubr.bf16.gmra.mrb[0].mxu0 %v2640
        %v4284 = vpop.f32.mrb[0].mxu0
        %v4285 = vpop.f32.mrb[0].mxu0
        %v4286 = vpop.f32.mrb[0].mxu0
        %v4287 = vadd.f32 %v3545, %v4286
        %v4288 = vpop.f32.mrb[0].mxu0
        %4289 = vmatprep.mubr.bf16.mxu0 %v2643
        %4290 = vmatmul.mubr.bf16.gmra.mrb[0].mxu0 %v2642
        %v4291 = vpop.f32.mrb[0].mxu0
        %v4292 = vadd.f32 %v3550, %v4291
        %v4293 = vpop.f32.mrb[0].mxu0
        %v4294 = vpop.f32.mrb[0].mxu0
        %v4295 = vpop.f32.mrb[0].mxu0
        %4296 = vmatprep.mubr.bf16.mxu0 %v2645
        %4297 = vmatmul.mubr.bf16.gmra.mrb[0].mxu0 %v2644
        %v4298 = vpop.f32.mrb[0].mxu0
        %v4299 = vadd.f32 %v3557, %v4298
        %v4300 = vpop.f32.mrb[0].mxu0
        %v4301 = vpop.f32.mrb[0].mxu0
        %v4302 = vadd.f32 %v3560, %v4301
        %v4303 = vpop.f32.mrb[0].mxu0
        %4304 = vmatprep.mubr.bf16.mxu0 %v2647
        %4305 = vmatmul.mubr.bf16.gmra.mrb[0].mxu0 %v2646
        %v4306 = vpop.f32.mrb[0].mxu0
        %v4307 = vpop.f32.mrb[0].mxu0
        %v4308 = vpop.f32.mrb[0].mxu0
        %v4309 = vpop.f32.mrb[0].mxu0
        %4310 = vmatprep.mubr.bf16.mxu0 %v2649
        %4311 = vmatmul.mubr.bf16.gmra.mrb[0].mxu0 %v2648
        %v4312 = vpop.f32.mrb[0].mxu0
        %v4313 = vpop.f32.mrb[0].mxu0
        %v4314 = vpop.f32.mrb[0].mxu0
        %v4315 = vpop.f32.mrb[0].mxu0
        %4316 = vdwg.mxu0
        %v4317 = vpack.c.bf16 %v2590, %v2592
        %v4318 = vpack.c.bf16 %v2591, %v2593
        %v4319 = vpack.c.bf16 %v2586, %v2588
        %v4320 = vpack.c.bf16 %v2587, %v2589
        %v4321 = vpack.c.bf16 %v2582, %v2584
        %v4322 = vpack.c.bf16 %v2583, %v2585
        %v4323 = vpack.c.bf16 %v2578, %v2580
        %v4324 = vpack.c.bf16 %v2579, %v2581
        %v4325 = vpack.c.bf16 %v2574, %v2576
        %v4326 = vpack.c.bf16 %v2575, %v2577
        %v4327 = vpack.c.bf16 %v2570, %v2572
        %v4328 = vpack.c.bf16 %v2571, %v2573
        %v4329 = vpack.c.bf16 %v2566, %v2568
        %v4330 = vpack.c.bf16 %v2567, %v2569
        %v4331 = vpack.c.bf16 %v2562, %v2564
        %v4332 = vpack.c.bf16 %v2563, %v2565
        %v4333 = vpack.c.bf16 %v2558, %v2560
        %v4334 = vpack.c.bf16 %v2559, %v2561
        %v4335 = vpack.c.bf16 %v2554, %v2556
        %v4336 = vpack.c.bf16 %v2555, %v2557
        %v4337 = vpack.c.bf16 %v2550, %v2552
        %v4338 = vpack.c.bf16 %v2551, %v2553
        %v4339 = vpack.c.bf16 %v2546, %v2548
        %v4340 = vpack.c.bf16 %v2547, %v2549
        %v4341 = vpack.c.bf16 %v2542, %v2544
        %v4342 = vpack.c.bf16 %v2543, %v2545
        %v4343 = vpack.c.bf16 %v2538, %v2540
        %v4344 = vpack.c.bf16 %v2539, %v2541
        %v4345 = vpack.c.bf16 %v2534, %v2536
        %v4346 = vpack.c.bf16 %v2535, %v2537
        %v4347 = vpack.c.bf16 %v2530, %v2532
        %v4348 = vpack.c.bf16 %v2531, %v2533
        %v4349 = vpack.c.bf16 %v2526, %v2528
        %v4350 = vpack.c.bf16 %v2527, %v2529
        %v4351 = vpack.c.bf16 %v2522, %v2524
        %v4352 = vpack.c.bf16 %v2523, %v2525
        %v4353 = vpack.c.bf16 %v2518, %v2520
        %v4354 = vpack.c.bf16 %v2519, %v2521
        %v4355 = vpack.c.bf16 %v2514, %v2516
        %v4356 = vpack.c.bf16 %v2515, %v2517
        %v4357 = vpack.c.bf16 %v2510, %v2512
        %v4358 = vpack.c.bf16 %v2511, %v2513
        %v4359 = vpack.c.bf16 %v2506, %v2508
        %v4360 = vpack.c.bf16 %v2507, %v2509
        %v4361 = vpack.c.bf16 %v2502, %v2504
        %v4362 = vpack.c.bf16 %v2503, %v2505
        %v4363 = vpack.c.bf16 %v2498, %v2500
        %v4364 = vpack.c.bf16 %v2499, %v2501
        %v4365 = vpack.c.bf16 %v2494, %v2496
        %v4366 = vpack.c.bf16 %v2495, %v2497
        %v4367 = vpack.c.bf16 %v2490, %v2492
        %v4368 = vpack.c.bf16 %v2491, %v2493
        %v4369 = vpack.c.bf16 %v2594, %v2488
        %v4370 = vpack.c.bf16 %v2595, %v2489
        %s4371 = scalar_lea.vmem [#allocation10], 768
        %v4372 = vld [vmem:[%s4371] sm:$0xff]
        %v4373 = vld [vmem:[%s4371 + $0x8] sm:$0xf]
        %v4374 = vld [vmem:[%s4371 + $0xc] sm:$0xff]
        %v4375 = vld [vmem:[%s4371 + $0x14] sm:$0xf]
        %v4376 = vld [vmem:[%s4371 + $0x18] sm:$0xff]
        %v4377 = vld [vmem:[%s4371 + $0x20] sm:$0xf]
        %v4378 = vld [vmem:[%s4371 + $0x24] sm:$0xff]
        %v4379 = vld [vmem:[%s4371 + $0x2c] sm:$0xf]
        %v4380 = vld [vmem:[%s4371 + $0x30] sm:$0xff]
        %v4381 = vld [vmem:[%s4371 + $0x38] sm:$0xf]
        %v4382 = vld [vmem:[%s4371 + $0x3c] sm:$0xff]
        %v4383 = vld [vmem:[%s4371 + $0x44] sm:$0xf]
        %v4384 = vld [vmem:[%s4371 + $0x48] sm:$0xff]
        %v4385 = vld [vmem:[%s4371 + $0x50] sm:$0xf]
        %v4386 = vld [vmem:[%s4371 + $0x54] sm:$0xff]
        %v4387 = vld [vmem:[%s4371 + $0x5c] sm:$0xf]
        %v4388 = vld [vmem:[%s4371 + $0x60] sm:$0xff]
        %v4389 = vld [vmem:[%s4371 + $0x68] sm:$0xf]
        %v4390 = vld [vmem:[%s4371 + $0x6c] sm:$0xff]
        %v4391 = vld [vmem:[%s4371 + $0x74] sm:$0xf]
        %v4392 = vld [vmem:[%s4371 + $0x78] sm:$0xff]
        %v4393 = vld [vmem:[%s4371 + $0x80] sm:$0xf]
        %v4394 = vld [vmem:[%s4371 + $0x84] sm:$0xff]
        %v4395 = vld [vmem:[%s4371 + $0x8c] sm:$0xf]
        %v4396 = vld [vmem:[%s4371 + $0x90] sm:$0xff]
        %v4397 = vld [vmem:[%s4371 + $0x98] sm:$0xf]
        %v4398 = vld [vmem:[%s4371 + $0x9c] sm:$0xff]
        %v4399 = vld [vmem:[%s4371 + $0xa4] sm:$0xf]
        %v4400 = vld [vmem:[%s4371 + $0xa8] sm:$0xff]
        %v4401 = vld [vmem:[%s4371 + $0xb0] sm:$0xf]
        %v4402 = vld [vmem:[%s4371 + $0xb4] sm:$0xff]
        %v4403 = vld [vmem:[%s4371 + $0xbc] sm:$0xf]
        %v4404 = vld [vmem:[%s4371 + $0xc0] sm:$0xff]
        %v4405 = vld [vmem:[%s4371 + $0xc8] sm:$0xf]
        %v4406 = vld [vmem:[%s4371 + $0xcc] sm:$0xff]
        %v4407 = vld [vmem:[%s4371 + $0xd4] sm:$0xf]
        %v4408 = vld [vmem:[%s4371 + $0xd8] sm:$0xff]
        %v4409 = vld [vmem:[%s4371 + $0xe0] sm:$0xf]
        %v4410 = vld [vmem:[%s4371 + $0xe4] sm:$0xff]
        %v4411 = vld [vmem:[%s4371 + $0xec] sm:$0xf]
        %v4412 = vld [vmem:[%s4371 + $0xf0] sm:$0xff]
        %v4413 = vld [vmem:[%s4371 + $0xf8] sm:$0xf]
        %v4414 = vld [vmem:[%s4371 + $0xfc] sm:$0xff]
        %v4415 = vld [vmem:[%s4371 + $0x104] sm:$0xf]
        %v4416 = vld [vmem:[%s4371 + $0x108] sm:$0xff]
        %v4417 = vld [vmem:[%s4371 + $0x110] sm:$0xf]
        %v4418 = vld [vmem:[%s4371 + $0x114] sm:$0xff]
        %v4419 = vld [vmem:[%s4371 + $0x11c] sm:$0xf]
        %v4420 = vld [vmem:[%s4371 + $0x120] sm:$0xff]
        %v4421 = vld [vmem:[%s4371 + $0x128] sm:$0xf]
        %v4422 = vld [vmem:[%s4371 + $0x12c] sm:$0xff]
        %v4423 = vld [vmem:[%s4371 + $0x134] sm:$0xf]
        %v4424 = vld [vmem:[%s4371 + $0x138] sm:$0xff]
        %v4425 = vld [vmem:[%s4371 + $0x140] sm:$0xf]
        %v4426 = vld [vmem:[%s4371 + $0x144] sm:$0xff]
        %v4427 = vld [vmem:[%s4371 + $0x14c] sm:$0xf]
        %v4428 = vld [vmem:[%s4371 + $0x150] sm:$0xff]
        %v4429 = vld [vmem:[%s4371 + $0x158] sm:$0xf]
        %v4430 = vld [vmem:[%s4371 + $0x15c] sm:$0xff]
        %v4431 = vld [vmem:[%s4371 + $0x164] sm:$0xf]
        %v4432 = vld [vmem:[%s4371 + $0x168] sm:$0xff]
        %v4433 = vld [vmem:[%s4371 + $0x170] sm:$0xf]
        %v4434 = vld [vmem:[%s4371 + $0x174] sm:$0xff]
        %v4435 = vld [vmem:[%s4371 + $0x17c] sm:$0xf]
        %v4500 = vunpack.c.l.b16 %v4372
        %v4501 = vunpack.c.h.b16 %v4372
        %v4502 = vunpack.c.l.b16 %v4373
        %v4503 = vunpack.c.l.b16 %v4374
        %v4504 = vunpack.c.h.b16 %v4374
        %v4505 = vunpack.c.l.b16 %v4375
        %v4506 = vunpack.c.l.b16 %v4376
        %v4507 = vunpack.c.h.b16 %v4376
        %v4508 = vunpack.c.l.b16 %v4377
        %v4509 = vunpack.c.l.b16 %v4378
        %v4510 = vunpack.c.h.b16 %v4378
        %v4511 = vunpack.c.l.b16 %v4379
        %v4512 = vunpack.c.l.b16 %v4380
        %v4513 = vunpack.c.h.b16 %v4380
        %v4514 = vunpack.c.l.b16 %v4381
        %v4515 = vunpack.c.l.b16 %v4382
        %v4516 = vunpack.c.h.b16 %v4382
        %v4517 = vunpack.c.l.b16 %v4383
        %v4518 = vunpack.c.l.b16 %v4384
        %v4519 = vunpack.c.h.b16 %v4384
        %v4520 = vunpack.c.l.b16 %v4385
        %v4521 = vunpack.c.l.b16 %v4386
        %v4522 = vunpack.c.h.b16 %v4386
        %v4523 = vunpack.c.l.b16 %v4387
        %v4524 = vunpack.c.l.b16 %v4388
        %v4525 = vunpack.c.h.b16 %v4388
        %v4526 = vunpack.c.l.b16 %v4389
        %v4527 = vunpack.c.l.b16 %v4390
        %v4528 = vunpack.c.h.b16 %v4390
        %v4529 = vunpack.c.l.b16 %v4391
        %v4530 = vunpack.c.l.b16 %v4392
        %v4531 = vunpack.c.h.b16 %v4392
        %v4532 = vunpack.c.l.b16 %v4393
        %v4533 = vunpack.c.l.b16 %v4394
        %v4534 = vunpack.c.h.b16 %v4394
        %v4535 = vunpack.c.l.b16 %v4395
        %v4536 = vunpack.c.l.b16 %v4396
        %v4537 = vunpack.c.h.b16 %v4396
        %v4538 = vunpack.c.l.b16 %v4397
        %v4539 = vunpack.c.l.b16 %v4398
        %v4540 = vunpack.c.h.b16 %v4398
        %v4541 = vunpack.c.l.b16 %v4399
        %v4542 = vunpack.c.l.b16 %v4400
        %v4543 = vunpack.c.h.b16 %v4400
        %v4544 = vunpack.c.l.b16 %v4401
        %v4545 = vunpack.c.l.b16 %v4402
        %v4546 = vunpack.c.h.b16 %v4402
        %v4547 = vunpack.c.l.b16 %v4403
        %v4548 = vunpack.c.l.b16 %v4404
        %v4549 = vunpack.c.h.b16 %v4404
        %v4550 = vunpack.c.l.b16 %v4405
        %v4551 = vunpack.c.l.b16 %v4406
        %v4552 = vunpack.c.h.b16 %v4406
        %v4553 = vunpack.c.l.b16 %v4407
        %v4554 = vunpack.c.l.b16 %v4408
        %v4555 = vunpack.c.h.b16 %v4408
        %v4556 = vunpack.c.l.b16 %v4409
        %v4557 = vunpack.c.l.b16 %v4410
        %v4558 = vunpack.c.h.b16 %v4410
        %v4559 = vunpack.c.l.b16 %v4411
        %v4560 = vunpack.c.l.b16 %v4412
        %v4561 = vunpack.c.h.b16 %v4412
        %v4562 = vunpack.c.l.b16 %v4413
        %v4563 = vunpack.c.l.b16 %v4414
        %v4564 = vunpack.c.h.b16 %v4414
        %v4565 = vunpack.c.l.b16 %v4415
        %v4566 = vunpack.c.l.b16 %v4416
        %v4567 = vunpack.c.h.b16 %v4416
        %v4568 = vunpack.c.l.b16 %v4417
        %v4569 = vunpack.c.l.b16 %v4418
        %v4570 = vunpack.c.h.b16 %v4418
        %v4571 = vunpack.c.l.b16 %v4419
        %v4572 = vunpack.c.l.b16 %v4420
        %v4573 = vunpack.c.h.b16 %v4420
        %v4574 = vunpack.c.l.b16 %v4421
        %v4575 = vunpack.c.l.b16 %v4422
        %v4576 = vunpack.c.h.b16 %v4422
        %v4577 = vunpack.c.l.b16 %v4423
        %v4578 = vunpack.c.l.b16 %v4424
        %v4579 = vunpack.c.h.b16 %v4424
        %v4580 = vunpack.c.l.b16 %v4425
        %v4581 = vunpack.c.l.b16 %v4426
        %v4582 = vunpack.c.h.b16 %v4426
        %v4583 = vunpack.c.l.b16 %v4427
        %v4584 = vunpack.c.l.b16 %v4428
        %v4585 = vunpack.c.h.b16 %v4428
        %v4586 = vunpack.c.l.b16 %v4429
        %v4587 = vunpack.c.l.b16 %v4430
        %v4588 = vunpack.c.h.b16 %v4430
        %v4589 = vunpack.c.l.b16 %v4431
        %v4590 = vunpack.c.l.b16 %v4432
        %v4591 = vunpack.c.h.b16 %v4432
        %v4592 = vunpack.c.l.b16 %v4433
        %v4593 = vunpack.c.l.b16 %v4434
        %v4594 = vunpack.c.h.b16 %v4434
        %v4595 = vunpack.c.l.b16 %v4435
        %v4596 = vpack.c.b16 %v4503, %v4500
        %v4597 = vpack.c.b16 %v4504, %v4501
        %v4598 = vpack.c.b16 %v4505, %v4502
        %v4599 = vpack.c.b16 %v4509, %v4506
        %v4600 = vpack.c.b16 %v4510, %v4507
        %v4601 = vpack.c.b16 %v4511, %v4508
        %v4602 = vpack.c.b16 %v4515, %v4512
        %v4603 = vpack.c.b16 %v4516, %v4513
        %v4604 = vpack.c.b16 %v4517, %v4514
        %v4605 = vpack.c.b16 %v4521, %v4518
        %v4606 = vpack.c.b16 %v4522, %v4519
        %v4607 = vpack.c.b16 %v4523, %v4520
        %v4608 = vpack.c.b16 %v4527, %v4524
        %v4609 = vpack.c.b16 %v4528, %v4525
        %v4610 = vpack.c.b16 %v4529, %v4526
        %v4611 = vpack.c.b16 %v4533, %v4530
        %v4612 = vpack.c.b16 %v4534, %v4531
        %v4613 = vpack.c.b16 %v4535, %v4532
        %v4614 = vpack.c.b16 %v4539, %v4536
        %v4615 = vpack.c.b16 %v4540, %v4537
        %v4616 = vpack.c.b16 %v4541, %v4538
        %v4617 = vpack.c.b16 %v4545, %v4542
        %v4618 = vpack.c.b16 %v4546, %v4543
        %v4619 = vpack.c.b16 %v4547, %v4544
        %v4620 = vpack.c.b16 %v4551, %v4548
        %v4621 = vpack.c.b16 %v4552, %v4549
        %v4622 = vpack.c.b16 %v4553, %v4550
        %v4623 = vpack.c.b16 %v4557, %v4554
        %v4624 = vpack.c.b16 %v4558, %v4555
        %v4625 = vpack.c.b16 %v4559, %v4556
        %v4626 = vpack.c.b16 %v4563, %v4560
        %v4627 = vpack.c.b16 %v4564, %v4561
        %v4628 = vpack.c.b16 %v4565, %v4562
        %v4629 = vpack.c.b16 %v4569, %v4566
        %v4630 = vpack.c.b16 %v4570, %v4567
        %v4631 = vpack.c.b16 %v4571, %v4568
        %v4632 = vpack.c.b16 %v4575, %v4572
        %v4633 = vpack.c.b16 %v4576, %v4573
        %v4634 = vpack.c.b16 %v4577, %v4574
        %v4635 = vpack.c.b16 %v4581, %v4578
        %v4636 = vpack.c.b16 %v4582, %v4579
        %v4637 = vpack.c.b16 %v4583, %v4580
        %v4638 = vpack.c.b16 %v4587, %v4584
        %v4639 = vpack.c.b16 %v4588, %v4585
        %v4640 = vpack.c.b16 %v4589, %v4586
        %v4641 = vpack.c.b16 %v4593, %v4590
        %v4642 = vpack.c.b16 %v4594, %v4591
        %v4643 = vpack.c.b16 %v4595, %v4592
        %4692 = vmatprep.subr.bf16.mxu0 %v4597
        %4693 = vmatpush1.bf16.msra.mxu0 %v4596
        %4694 = vmatprep.subr.bf16.mxu0 %v4600
        %4695 = vmatpush1.bf16.msra.mxu0 %v4599
        %4696 = vmatprep.subr.bf16.mxu0 %v4603
        %4697 = vmatpush1.bf16.msra.mxu0 %v4602
        %4698 = vmatprep.subr.bf16.mxu0 %v4606
        %4699 = vmatpush1.bf16.msra.mxu0 %v4605
        %4700 = vmatprep.subr.bf16.mxu0 %v4609
        %4701 = vmatpush1.bf16.msra.mxu0 %v4608
        %4702 = vmatprep.subr.bf16.mxu0 %v4612
        %4703 = vmatpush1.bf16.msra.mxu0 %v4611
        %4704 = vmatprep.subr.bf16.mxu0 %v4615
        %4705 = vmatpush1.bf16.msra.mxu0 %v4614
        %4706 = vmatprep.subr.bf16.mxu0 %v4618
        %4707 = vmatpush1.bf16.msra.mxu0 %v4617
        %4708 = vmatprep.subr.bf16.mxu0 %v4621
        %4709 = vmatpush1.bf16.msra.mxu0 %v4620
        %4710 = vmatprep.subr.bf16.mxu0 %v4624
        %4711 = vmatpush1.bf16.msra.mxu0 %v4623
        %4712 = vmatprep.subr.bf16.mxu0 %v4627
        %4713 = vmatpush1.bf16.msra.mxu0 %v4626
        %4714 = vmatprep.subr.bf16.mxu0 %v4630
        %4715 = vmatpush1.bf16.msra.mxu0 %v4629
        %4716 = vmatprep.subr.bf16.mxu0 %v4633
        %4717 = vmatpush1.bf16.msra.mxu0 %v4632
        %4718 = vmatprep.subr.bf16.mxu0 %v4636
        %4719 = vmatpush1.bf16.msra.mxu0 %v4635
        %4720 = vmatprep.subr.bf16.mxu0 %v4639
        %4721 = vmatpush1.bf16.msra.mxu0 %v4638
        %4722 = vmatprep.subr.bf16.mxu0 %v4642
        %4723 = vmatpush1.bf16.msra.mxu0 %v4641
        %4724 = vmatprep.mubr.bf16.mxu0 %v4318
        %4725 = vmatmul.mubr.bf16.gmra.mrb[0].mxu0 %v4317
        %v4726 = vpop.f32.mrb[0].mxu0
        %v4727 = vadd.f32 0.0, %v4726
        %v4728 = vpop.f32.mrb[0].mxu0
        %v4729 = vadd.f32 0.0, %v4728
        %v4730 = vpop.f32.mrb[0].mxu0
        %v4731 = vadd.f32 0.0, %v4730
        %v4732 = vpop.f32.mrb[0].mxu0
        %v4733 = vadd.f32 0.0, %v4732
        %4734 = vmatprep.mubr.bf16.mxu0 %v4320
        %4735 = vmatmul.mubr.bf16.gmra.mrb[0].mxu0 %v4319
        %v4736 = vpop.f32.mrb[0].mxu0
        %v4737 = vpop.f32.mrb[0].mxu0
        %v4738 = vpop.f32.mrb[0].mxu0
        %v4739 = vadd.f32 0.0, %v4738
        %v4740 = vpop.f32.mrb[0].mxu0
        %v4741 = vadd.f32 0.0, %v4740
        %4742 = vmatprep.mubr.bf16.mxu0 %v4322
        %4743 = vmatmul.mubr.bf16.gmra.mrb[0].mxu0 %v4321
        %v4744 = vpop.f32.mrb[0].mxu0
        %v4745 = vadd.f32 0.0, %v4744
        %v4746 = vpop.f32.mrb[0].mxu0
        %v4747 = vadd.f32 0.0, %v4746
        %v4748 = vpop.f32.mrb[0].mxu0
        %v4749 = vpop.f32.mrb[0].mxu0
        %4750 = vmatprep.mubr.bf16.mxu0 %v4324
        %4751 = vmatmul.mubr.bf16.gmra.mrb[0].mxu0 %v4323
        %v4752 = vpop.f32.mrb[0].mxu0
        %v4753 = vadd.f32 0.0, %v4752
        %v4754 = vpop.f32.mrb[0].mxu0
        %v4755 = vadd.f32 0.0, %v4754
        %v4756 = vpop.f32.mrb[0].mxu0
        %v4757 = vadd.f32 0.0, %v4756
        %v4758 = vpop.f32.mrb[0].mxu0
        %v4759 = vadd.f32 0.0, %v4758
        %4760 = vmatprep.mubr.bf16.mxu0 %v4326
        %4761 = vmatmul.mubr.bf16.gmra.mrb[0].mxu0 %v4325
        %v4762 = vpop.f32.mrb[0].mxu0
        %v4763 = vpop.f32.mrb[0].mxu0
        %v4764 = vpop.f32.mrb[0].mxu0
        %v4765 = vadd.f32 0.0, %v4764
        %v4766 = vpop.f32.mrb[0].mxu0
        %v4767 = vadd.f32 0.0, %v4766
        %4768 = vmatprep.mubr.bf16.mxu0 %v4328
        %4769 = vmatmul.mubr.bf16.gmra.mrb[0].mxu0 %v4327
        %v4770 = vpop.f32.mrb[0].mxu0
        %v4771 = vadd.f32 0.0, %v4770
        %v4772 = vpop.f32.mrb[0].mxu0
        %v4773 = vadd.f32 0.0, %v4772
        %v4774 = vpop.f32.mrb[0].mxu0
        %v4775 = vpop.f32.mrb[0].mxu0
        %4776 = vmatprep.mubr.bf16.mxu0 %v4330
        %4777 = vmatmul.mubr.bf16.gmra.mrb[0].mxu0 %v4329
        %v4778 = vpop.f32.mrb[0].mxu0
        %v4779 = vadd.f32 0.0, %v4778
        %v4780 = vpop.f32.mrb[0].mxu0
        %v4781 = vadd.f32 0.0, %v4780
        %v4782 = vpop.f32.mrb[0].mxu0
        %v4783 = vadd.f32 0.0, %v4782
        %v4784 = vpop.f32.mrb[0].mxu0
        %v4785 = vadd.f32 0.0, %v4784
        %4786 = vmatprep.mubr.bf16.mxu0 %v4332
        %4787 = vmatmul.mubr.bf16.gmra.mrb[0].mxu0 %v4331
        %v4788 = vpop.f32.mrb[0].mxu0
        %v4789 = vpop.f32.mrb[0].mxu0
        %v4790 = vpop.f32.mrb[0].mxu0
        %v4791 = vadd.f32 0.0, %v4790
        %v4792 = vpop.f32.mrb[0].mxu0
        %v4793 = vadd.f32 0.0, %v4792
        %4794 = vmatprep.mubr.bf16.mxu0 %v4334
        %4795 = vmatmul.mubr.bf16.gmra.mrb[0].mxu0 %v4333
        %v4796 = vpop.f32.mrb[0].mxu0
        %v4797 = vadd.f32 0.0, %v4796
        %v4798 = vpop.f32.mrb[0].mxu0
        %v4799 = vadd.f32 0.0, %v4798
        %v4800 = vpop.f32.mrb[0].mxu0
        %v4801 = vpop.f32.mrb[0].mxu0
        %4802 = vmatprep.mubr.bf16.mxu0 %v4336
        %4803 = vmatmul.mubr.bf16.gmra.mrb[0].mxu0 %v4335
        %v4804 = vpop.f32.mrb[0].mxu0
        %v4805 = vadd.f32 0.0, %v4804
        %v4806 = vpop.f32.mrb[0].mxu0
        %v4807 = vadd.f32 0.0, %v4806
        %v4808 = vpop.f32.mrb[0].mxu0
        %v4809 = vadd.f32 0.0, %v4808
        %v4810 = vpop.f32.mrb[0].mxu0
        %v4811 = vadd.f32 0.0, %v4810
        %4812 = vmatprep.mubr.bf16.mxu0 %v4338
        %4813 = vmatmul.mubr.bf16.gmra.mrb[0].mxu0 %v4337
        %v4814 = vpop.f32.mrb[0].mxu0
        %v4815 = vpop.f32.mrb[0].mxu0
        %v4816 = vpop.f32.mrb[0].mxu0
        %v4817 = vadd.f32 0.0, %v4816
        %v4818 = vpop.f32.mrb[0].mxu0
        %v4819 = vadd.f32 0.0, %v4818
        %4820 = vmatprep.mubr.bf16.mxu0 %v4340
        %4821 = vmatmul.mubr.bf16.gmra.mrb[0].mxu0 %v4339
        %v4822 = vpop.f32.mrb[0].mxu0
        %v4823 = vadd.f32 0.0, %v4822
        %v4824 = vpop.f32.mrb[0].mxu0
        %v4825 = vadd.f32 0.0, %v4824
        %v4826 = vpop.f32.mrb[0].mxu0
        %v4827 = vpop.f32.mrb[0].mxu0
        %4828 = vmatprep.mubr.bf16.mxu0 %v4342
        %4829 = vmatmul.mubr.bf16.gmra.mrb[0].mxu0 %v4341
        %v4830 = vpop.f32.mrb[0].mxu0
        %v4831 = vadd.f32 0.0, %v4830
        %v4832 = vpop.f32.mrb[0].mxu0
        %v4833 = vadd.f32 0.0, %v4832
        %v4834 = vpop.f32.mrb[0].mxu0
        %v4835 = vadd.f32 0.0, %v4834
        %v4836 = vpop.f32.mrb[0].mxu0
        %v4837 = vadd.f32 0.0, %v4836
        %4838 = vmatprep.mubr.bf16.mxu0 %v4344
        %4839 = vmatmul.mubr.bf16.gmra.mrb[0].mxu0 %v4343
        %v4840 = vpop.f32.mrb[0].mxu0
        %v4841 = vpop.f32.mrb[0].mxu0
        %v4842 = vpop.f32.mrb[0].mxu0
        %v4843 = vadd.f32 0.0, %v4842
        %v4844 = vpop.f32.mrb[0].mxu0
        %v4845 = vadd.f32 0.0, %v4844
        %4846 = vmatprep.mubr.bf16.mxu0 %v4346
        %4847 = vmatmul.mubr.bf16.gmra.mrb[0].mxu0 %v4345
        %v4848 = vpop.f32.mrb[0].mxu0
        %v4849 = vadd.f32 0.0, %v4848
        %v4850 = vpop.f32.mrb[0].mxu0
        %v4851 = vadd.f32 0.0, %v4850
        %v4852 = vpop.f32.mrb[0].mxu0
        %v4853 = vpop.f32.mrb[0].mxu0
        %4854 = vmatprep.mubr.bf16.mxu0 %v4348
        %4855 = vmatmul.mubr.bf16.gmra.mrb[0].mxu0 %v4347
        %v4856 = vpop.f32.mrb[0].mxu0
        %v4857 = vadd.f32 0.0, %v4856
        %v4858 = vpop.f32.mrb[0].mxu0
        %v4859 = vadd.f32 0.0, %v4858
        %v4860 = vpop.f32.mrb[0].mxu0
        %v4861 = vadd.f32 0.0, %v4860
        %v4862 = vpop.f32.mrb[0].mxu0
        %v4863 = vadd.f32 0.0, %v4862
        %4864 = vmatprep.mubr.bf16.mxu0 %v4350
        %4865 = vmatmul.mubr.bf16.gmra.mrb[0].mxu0 %v4349
        %v4866 = vpop.f32.mrb[0].mxu0
        %v4867 = vpop.f32.mrb[0].mxu0
        %v4868 = vpop.f32.mrb[0].mxu0
        %v4869 = vadd.f32 0.0, %v4868
        %v4870 = vpop.f32.mrb[0].mxu0
        %v4871 = vadd.f32 0.0, %v4870
        %4872 = vmatprep.mubr.bf16.mxu0 %v4352
        %4873 = vmatmul.mubr.bf16.gmra.mrb[0].mxu0 %v4351
        %v4874 = vpop.f32.mrb[0].mxu0
        %v4875 = vadd.f32 0.0, %v4874
        %v4876 = vpop.f32.mrb[0].mxu0
        %v4877 = vadd.f32 0.0, %v4876
        %v4878 = vpop.f32.mrb[0].mxu0
        %v4879 = vpop.f32.mrb[0].mxu0
        %4880 = vmatprep.mubr.bf16.mxu0 %v4354
        %4881 = vmatmul.mubr.bf16.gmra.mrb[0].mxu0 %v4353
        %v4882 = vpop.f32.mrb[0].mxu0
        %v4883 = vadd.f32 0.0, %v4882
        %v4884 = vpop.f32.mrb[0].mxu0
        %v4885 = vadd.f32 0.0, %v4884
        %v4886 = vpop.f32.mrb[0].mxu0
        %v4887 = vadd.f32 0.0, %v4886
        %v4888 = vpop.f32.mrb[0].mxu0
        %v4889 = vadd.f32 0.0, %v4888
        %4890 = vmatprep.mubr.bf16.mxu0 %v4356
        %4891 = vmatmul.mubr.bf16.gmra.mrb[0].mxu0 %v4355
        %v4892 = vpop.f32.mrb[0].mxu0
        %v4893 = vpop.f32.mrb[0].mxu0
        %v4894 = vpop.f32.mrb[0].mxu0
        %v4895 = vadd.f32 0.0, %v4894
        %v4896 = vpop.f32.mrb[0].mxu0
        %v4897 = vadd.f32 0.0, %v4896
        %4898 = vmatprep.mubr.bf16.mxu0 %v4358
        %4899 = vmatmul.mubr.bf16.gmra.mrb[0].mxu0 %v4357
        %v4900 = vpop.f32.mrb[0].mxu0
        %v4901 = vadd.f32 0.0, %v4900
        %v4902 = vpop.f32.mrb[0].mxu0
        %v4903 = vadd.f32 0.0, %v4902
        %v4904 = vpop.f32.mrb[0].mxu0
        %v4905 = vpop.f32.mrb[0].mxu0
        %4906 = vmatprep.mubr.bf16.mxu0 %v4360
        %4907 = vmatmul.mubr.bf16.gmra.mrb[0].mxu0 %v4359
        %v4908 = vpop.f32.mrb[0].mxu0
        %v4909 = vadd.f32 0.0, %v4908
        %v4910 = vpop.f32.mrb[0].mxu0
        %v4911 = vadd.f32 0.0, %v4910
        %v4912 = vpop.f32.mrb[0].mxu0
        %v4913 = vadd.f32 0.0, %v4912
        %v4914 = vpop.f32.mrb[0].mxu0
        %v4915 = vadd.f32 0.0, %v4914
        %4916 = vmatprep.mubr.bf16.mxu0 %v4362
        %4917 = vmatmul.mubr.bf16.gmra.mrb[0].mxu0 %v4361
        %v4918 = vpop.f32.mrb[0].mxu0
        %v4919 = vpop.f32.mrb[0].mxu0
        %v4920 = vpop.f32.mrb[0].mxu0
        %v4921 = vpop.f32.mrb[0].mxu0
        %v4922 = vadd.f32 0.0, %v4921
        %4923 = vmatprep.mubr.bf16.mxu0 %v4364
        %4924 = vmatmul.mubr.bf16.gmra.mrb[0].mxu0 %v4363
        %v4925 = vpop.f32.mrb[0].mxu0
        %v4926 = vpop.f32.mrb[0].mxu0
        %v4927 = vadd.f32 0.0, %v4926
        %v4928 = vpop.f32.mrb[0].mxu0
        %v4929 = vpop.f32.mrb[0].mxu0
        %4930 = vmatprep.mubr.bf16.mxu0 %v4366
        %4931 = vmatmul.mubr.bf16.gmra.mrb[0].mxu0 %v4365
        %v4932 = vpop.f32.mrb[0].mxu0
        %v4933 = vpop.f32.mrb[0].mxu0
        %v4934 = vpop.f32.mrb[0].mxu0
        %v4935 = vpop.f32.mrb[0].mxu0
        %4936 = vmatprep.mubr.bf16.mxu0 %v4368
        %4937 = vmatmul.mubr.bf16.gmra.mrb[0].mxu0 %v4367
        %v4938 = vpop.f32.mrb[0].mxu0
        %v4939 = vpop.f32.mrb[0].mxu0
        %v4940 = vpop.f32.mrb[0].mxu0
        %v4941 = vadd.f32 0.0, %v4940
        %v4942 = vpop.f32.mrb[0].mxu0
        %4943 = vmatprep.mubr.bf16.mxu0 %v4370
        %4944 = vmatmul.mubr.bf16.gmra.mrb[0].mxu0 %v4369
        %v4945 = vpop.f32.mrb[0].mxu0
        %v4946 = vadd.f32 0.0, %v4945
        %v4947 = vpop.f32.mrb[0].mxu0
        %v4948 = vpop.f32.mrb[0].mxu0
        %v4949 = vpop.f32.mrb[0].mxu0
        %4950 = vdwg.mxu0
        %4951 = vmatprep.subr.bf16.mxu0 0
        %4952 = vmatpush1.bf16.msra.mxu0 %v4598
        %4953 = vmatprep.subr.bf16.mxu0 0
        %4954 = vmatpush1.bf16.msra.mxu0 %v4601
        %4955 = vmatprep.subr.bf16.mxu0 0
        %4956 = vmatpush1.bf16.msra.mxu0 %v4604
        %4957 = vmatprep.subr.bf16.mxu0 0
        %4958 = vmatpush1.bf16.msra.mxu0 %v4607
        %4959 = vmatprep.subr.bf16.mxu0 0
        %4960 = vmatpush1.bf16.msra.mxu0 %v4610
        %4961 = vmatprep.subr.bf16.mxu0 0
        %4962 = vmatpush1.bf16.msra.mxu0 %v4613
        %4963 = vmatprep.subr.bf16.mxu0 0
        %4964 = vmatpush1.bf16.msra.mxu0 %v4616
        %4965 = vmatprep.subr.bf16.mxu0 0
        %4966 = vmatpush1.bf16.msra.mxu0 %v4619
        %4967 = vmatprep.subr.bf16.mxu0 0
        %4968 = vmatpush1.bf16.msra.mxu0 %v4622
        %4969 = vmatprep.subr.bf16.mxu0 0
        %4970 = vmatpush1.bf16.msra.mxu0 %v4625
        %4971 = vmatprep.subr.bf16.mxu0 0
        %4972 = vmatpush1.bf16.msra.mxu0 %v4628
        %4973 = vmatprep.subr.bf16.mxu0 0
        %4974 = vmatpush1.bf16.msra.mxu0 %v4631
        %4975 = vmatprep.subr.bf16.mxu0 0
        %4976 = vmatpush1.bf16.msra.mxu0 %v4634
        %4977 = vmatprep.subr.bf16.mxu0 0
        %4978 = vmatpush1.bf16.msra.mxu0 %v4637
        %4979 = vmatprep.subr.bf16.mxu0 0
        %4980 = vmatpush1.bf16.msra.mxu0 %v4640
        %4981 = vmatprep.subr.bf16.mxu0 0
        %4982 = vmatpush1.bf16.msra.mxu0 %v4643
        %4983 = vmatprep.mubr.bf16.mxu0 %v4318
        %4984 = vmatmul.mubr.bf16.gmra.mrb[0].mxu0 %v4317
        %v4985 = vpop.f32.mrb[0].mxu0
        %v4986 = vpop.f32.mrb[0].mxu0
        %v4987 = vpop.f32.mrb[0].mxu0
        %v4988 = vpop.f32.mrb[0].mxu0
        %4989 = vmatprep.mubr.bf16.mxu0 %v4320
        %4990 = vmatmul.mubr.bf16.gmra.mrb[0].mxu0 %v4319
        %v4991 = vpop.f32.mrb[0].mxu0
        %v4992 = vpop.f32.mrb[0].mxu0
        %v4993 = vpop.f32.mrb[0].mxu0
        %v4994 = vadd.f32 0.0, %v4993
        %v4995 = vpop.f32.mrb[0].mxu0
        %4996 = vmatprep.mubr.bf16.mxu0 %v4322
        %4997 = vmatmul.mubr.bf16.gmra.mrb[0].mxu0 %v4321
        %v4998 = vpop.f32.mrb[0].mxu0
        %v4999 = vadd.f32 0.0, %v4998
        %v5000 = vpop.f32.mrb[0].mxu0
        %v5001 = vpop.f32.mrb[0].mxu0
        %v5002 = vpop.f32.mrb[0].mxu0
        %5003 = vmatprep.mubr.bf16.mxu0 %v4324
        %5004 = vmatmul.mubr.bf16.gmra.mrb[0].mxu0 %v4323
        %v5005 = vpop.f32.mrb[0].mxu0
        %v5006 = vadd.f32 0.0, %v5005
        %v5007 = vpop.f32.mrb[0].mxu0
        %v5008 = vpop.f32.mrb[0].mxu0
        %v5009 = vadd.f32 0.0, %v5008
        %v5010 = vpop.f32.mrb[0].mxu0
        %5011 = vmatprep.mubr.bf16.mxu0 %v4326
        %5012 = vmatmul.mubr.bf16.gmra.mrb[0].mxu0 %v4325
        %v5013 = vpop.f32.mrb[0].mxu0
        %v5014 = vpop.f32.mrb[0].mxu0
        %v5015 = vpop.f32.mrb[0].mxu0
        %v5016 = vadd.f32 0.0, %v5015
        %v5017 = vpop.f32.mrb[0].mxu0
        %5018 = vmatprep.mubr.bf16.mxu0 %v4328
        %5019 = vmatmul.mubr.bf16.gmra.mrb[0].mxu0 %v4327
        %v5020 = vpop.f32.mrb[0].mxu0
        %v5021 = vadd.f32 0.0, %v5020
        %v5022 = vpop.f32.mrb[0].mxu0
        %v5023 = vpop.f32.mrb[0].mxu0
        %v5024 = vpop.f32.mrb[0].mxu0
        %5025 = vmatprep.mubr.bf16.mxu0 %v4330
        %5026 = vmatmul.mubr.bf16.gmra.mrb[0].mxu0 %v4329
        %v5027 = vpop.f32.mrb[0].mxu0
        %v5028 = vadd.f32 0.0, %v5027
        %v5029 = vpop.f32.mrb[0].mxu0
        %v5030 = vpop.f32.mrb[0].mxu0
        %v5031 = vadd.f32 0.0, %v5030
        %v5032 = vpop.f32.mrb[0].mxu0
        %5033 = vmatprep.mubr.bf16.mxu0 %v4332
        %5034 = vmatmul.mubr.bf16.gmra.mrb[0].mxu0 %v4331
        %v5035 = vpop.f32.mrb[0].mxu0
        %v5036 = vpop.f32.mrb[0].mxu0
        %v5037 = vpop.f32.mrb[0].mxu0
        %v5038 = vadd.f32 0.0, %v5037
        %v5039 = vpop.f32.mrb[0].mxu0
        %5040 = vmatprep.mubr.bf16.mxu0 %v4334
        %5041 = vmatmul.mubr.bf16.gmra.mrb[0].mxu0 %v4333
        %v5042 = vpop.f32.mrb[0].mxu0
        %v5043 = vadd.f32 0.0, %v5042
        %v5044 = vpop.f32.mrb[0].mxu0
        %v5045 = vpop.f32.mrb[0].mxu0
        %v5046 = vpop.f32.mrb[0].mxu0
        %5047 = vmatprep.mubr.bf16.mxu0 %v4336
        %5048 = vmatmul.mubr.bf16.gmra.mrb[0].mxu0 %v4335
        %v5049 = vpop.f32.mrb[0].mxu0
        %v5050 = vadd.f32 0.0, %v5049
        %v5051 = vpop.f32.mrb[0].mxu0
        %v5052 = vpop.f32.mrb[0].mxu0
        %v5053 = vadd.f32 0.0, %v5052
        %v5054 = vpop.f32.mrb[0].mxu0
        %5055 = vmatprep.mubr.bf16.mxu0 %v4338
        %5056 = vmatmul.mubr.bf16.gmra.mrb[0].mxu0 %v4337
        %v5057 = vpop.f32.mrb[0].mxu0
        %v5058 = vpop.f32.mrb[0].mxu0
        %v5059 = vpop.f32.mrb[0].mxu0
        %v5060 = vadd.f32 0.0, %v5059
        %v5061 = vpop.f32.mrb[0].mxu0
        %5062 = vmatprep.mubr.bf16.mxu0 %v4340
        %5063 = vmatmul.mubr.bf16.gmra.mrb[0].mxu0 %v4339
        %v5064 = vpop.f32.mrb[0].mxu0
        %v5065 = vadd.f32 0.0, %v5064
        %v5066 = vpop.f32.mrb[0].mxu0
        %v5067 = vpop.f32.mrb[0].mxu0
        %v5068 = vpop.f32.mrb[0].mxu0
        %5069 = vmatprep.mubr.bf16.mxu0 %v4342
        %5070 = vmatmul.mubr.bf16.gmra.mrb[0].mxu0 %v4341
        %v5071 = vpop.f32.mrb[0].mxu0
        %v5072 = vadd.f32 0.0, %v5071
        %v5073 = vpop.f32.mrb[0].mxu0
        %v5074 = vpop.f32.mrb[0].mxu0
        %v5075 = vadd.f32 0.0, %v5074
        %v5076 = vpop.f32.mrb[0].mxu0
        %5077 = vmatprep.mubr.bf16.mxu0 %v4344
        %5078 = vmatmul.mubr.bf16.gmra.mrb[0].mxu0 %v4343
        %v5079 = vpop.f32.mrb[0].mxu0
        %v5080 = vpop.f32.mrb[0].mxu0
        %v5081 = vpop.f32.mrb[0].mxu0
        %v5082 = vadd.f32 0.0, %v5081
        %v5083 = vpop.f32.mrb[0].mxu0
        %5084 = vmatprep.mubr.bf16.mxu0 %v4346
        %5085 = vmatmul.mubr.bf16.gmra.mrb[0].mxu0 %v4345
        %v5086 = vpop.f32.mrb[0].mxu0
        %v5087 = vadd.f32 0.0, %v5086
        %v5088 = vpop.f32.mrb[0].mxu0
        %v5089 = vpop.f32.mrb[0].mxu0
        %v5090 = vpop.f32.mrb[0].mxu0
        %5091 = vmatprep.mubr.bf16.mxu0 %v4348
        %5092 = vmatmul.mubr.bf16.gmra.mrb[0].mxu0 %v4347
        %v5093 = vpop.f32.mrb[0].mxu0
        %v5094 = vadd.f32 0.0, %v5093
        %v5095 = vpop.f32.mrb[0].mxu0
        %v5096 = vpop.f32.mrb[0].mxu0
        %v5097 = vadd.f32 0.0, %v5096
        %v5098 = vpop.f32.mrb[0].mxu0
        %5099 = vmatprep.mubr.bf16.mxu0 %v4350
        %5100 = vmatmul.mubr.bf16.gmra.mrb[0].mxu0 %v4349
        %v5101 = vpop.f32.mrb[0].mxu0
        %v5102 = vpop.f32.mrb[0].mxu0
        %v5103 = vpop.f32.mrb[0].mxu0
        %v5104 = vadd.f32 0.0, %v5103
        %v5105 = vpop.f32.mrb[0].mxu0
        %5106 = vmatprep.mubr.bf16.mxu0 %v4352
        %5107 = vmatmul.mubr.bf16.gmra.mrb[0].mxu0 %v4351
        %v5108 = vpop.f32.mrb[0].mxu0
        %v5109 = vadd.f32 0.0, %v5108
        %v5110 = vpop.f32.mrb[0].mxu0
        %v5111 = vpop.f32.mrb[0].mxu0
        %v5112 = vpop.f32.mrb[0].mxu0
        %5113 = vmatprep.mubr.bf16.mxu0 %v4354
        %5114 = vmatmul.mubr.bf16.gmra.mrb[0].mxu0 %v4353
        %v5115 = vpop.f32.mrb[0].mxu0
        %v5116 = vadd.f32 0.0, %v5115
        %v5117 = vpop.f32.mrb[0].mxu0
        %v5118 = vpop.f32.mrb[0].mxu0
        %v5119 = vadd.f32 0.0, %v5118
        %v5120 = vpop.f32.mrb[0].mxu0
        %5121 = vmatprep.mubr.bf16.mxu0 %v4356
        %5122 = vmatmul.mubr.bf16.gmra.mrb[0].mxu0 %v4355
        %v5123 = vpop.f32.mrb[0].mxu0
        %v5124 = vpop.f32.mrb[0].mxu0
        %v5125 = vpop.f32.mrb[0].mxu0
        %v5126 = vadd.f32 0.0, %v5125
        %v5127 = vpop.f32.mrb[0].mxu0
        %5128 = vmatprep.mubr.bf16.mxu0 %v4358
        %5129 = vmatmul.mubr.bf16.gmra.mrb[0].mxu0 %v4357
        %v5130 = vpop.f32.mrb[0].mxu0
        %v5131 = vadd.f32 0.0, %v5130
        %v5132 = vpop.f32.mrb[0].mxu0
        %v5133 = vpop.f32.mrb[0].mxu0
        %v5134 = vpop.f32.mrb[0].mxu0
        %5135 = vmatprep.mubr.bf16.mxu0 %v4360
        %5136 = vmatmul.mubr.bf16.gmra.mrb[0].mxu0 %v4359
        %v5137 = vpop.f32.mrb[0].mxu0
        %v5138 = vadd.f32 0.0, %v5137
        %v5139 = vpop.f32.mrb[0].mxu0
        %v5140 = vpop.f32.mrb[0].mxu0
        %v5141 = vadd.f32 0.0, %v5140
        %v5142 = vpop.f32.mrb[0].mxu0
        %5143 = vmatprep.mubr.bf16.mxu0 %v4362
        %5144 = vmatmul.mubr.bf16.gmra.mrb[0].mxu0 %v4361
        %v5145 = vpop.f32.mrb[0].mxu0
        %v5146 = vpop.f32.mrb[0].mxu0
        %v5147 = vpop.f32.mrb[0].mxu0
        %v5148 = vadd.f32 0.0, %v5147
        %v5149 = vpop.f32.mrb[0].mxu0
        %5150 = vmatprep.mubr.bf16.mxu0 %v4364
        %5151 = vmatmul.mubr.bf16.gmra.mrb[0].mxu0 %v4363
        %v5152 = vpop.f32.mrb[0].mxu0
        %v5153 = vadd.f32 0.0, %v5152
        %v5154 = vpop.f32.mrb[0].mxu0
        %v5155 = vpop.f32.mrb[0].mxu0
        %v5156 = vpop.f32.mrb[0].mxu0
        %5157 = vmatprep.mubr.bf16.mxu0 %v4366
        %5158 = vmatmul.mubr.bf16.gmra.mrb[0].mxu0 %v4365
        %v5159 = vpop.f32.mrb[0].mxu0
        %v5160 = vadd.f32 0.0, %v5159
        %v5161 = vpop.f32.mrb[0].mxu0
        %v5162 = vpop.f32.mrb[0].mxu0
        %v5163 = vadd.f32 0.0, %v5162
        %v5164 = vpop.f32.mrb[0].mxu0
        %5165 = vmatprep.mubr.bf16.mxu0 %v4368
        %5166 = vmatmul.mubr.bf16.gmra.mrb[0].mxu0 %v4367
        %v5167 = vpop.f32.mrb[0].mxu0
        %v5168 = vpop.f32.mrb[0].mxu0
        %v5169 = vpop.f32.mrb[0].mxu0
        %v5170 = vpop.f32.mrb[0].mxu0
        %5171 = vmatprep.mubr.bf16.mxu0 %v4370
        %5172 = vmatmul.mubr.bf16.gmra.mrb[0].mxu0 %v4369
        %v5173 = vpop.f32.mrb[0].mxu0
        %v5174 = vpop.f32.mrb[0].mxu0
        %v5175 = vpop.f32.mrb[0].mxu0
        %v5176 = vpop.f32.mrb[0].mxu0
        %5177 = vdwg.mxu0
        %v5178 = vadd.f32 %v3866, %v4727
        %v5179 = vadd.f32 %v3868, %v4729
        %v5180 = vadd.f32 %v3870, %v4731
        %v5181 = vadd.f32 %v3872, %v4733
        %v5182 = vadd.f32 %v3878, %v4739
        %v5183 = vadd.f32 %v3880, %v4741
        %v5184 = vadd.f32 %v4133, %v4994
        %v5185 = vadd.f32 %v3884, %v4745
        %v5186 = vadd.f32 %v3886, %v4747
        %v5187 = vadd.f32 %v4138, %v4999
        %v5188 = vadd.f32 %v3892, %v4753
        %v5189 = vadd.f32 %v3894, %v4755
        %v5190 = vadd.f32 %v4145, %v5006
        %v5191 = vadd.f32 %v3896, %v4757
        %v5192 = vadd.f32 %v3898, %v4759
        %v5193 = vadd.f32 %v4148, %v5009
        %v5194 = vadd.f32 %v3904, %v4765
        %v5195 = vadd.f32 %v3906, %v4767
        %v5196 = vadd.f32 %v4155, %v5016
        %v5197 = vadd.f32 %v3910, %v4771
        %v5198 = vadd.f32 %v3912, %v4773
        %v5199 = vadd.f32 %v4160, %v5021
        %v5200 = vadd.f32 %v3918, %v4779
        %v5201 = vadd.f32 %v3920, %v4781
        %v5202 = vadd.f32 %v4167, %v5028
        %v5203 = vadd.f32 %v3922, %v4783
        %v5204 = vadd.f32 %v3924, %v4785
        %v5205 = vadd.f32 %v4170, %v5031
        %v5206 = vadd.f32 %v3930, %v4791
        %v5207 = vadd.f32 %v3932, %v4793
        %v5208 = vadd.f32 %v4177, %v5038
        %v5209 = vadd.f32 %v3936, %v4797
        %v5210 = vadd.f32 %v3938, %v4799
        %v5211 = vadd.f32 %v4182, %v5043
        %v5212 = vadd.f32 %v3944, %v4805
        %v5213 = vadd.f32 %v3946, %v4807
        %v5214 = vadd.f32 %v4189, %v5050
        %v5215 = vadd.f32 %v3948, %v4809
        %v5216 = vadd.f32 %v3950, %v4811
        %v5217 = vadd.f32 %v4192, %v5053
        %v5218 = vadd.f32 %v3956, %v4817
        %v5219 = vadd.f32 %v3958, %v4819
        %v5220 = vadd.f32 %v4199, %v5060
        %v5221 = vadd.f32 %v3962, %v4823
        %v5222 = vadd.f32 %v3964, %v4825
        %v5223 = vadd.f32 %v4204, %v5065
        %v5224 = vadd.f32 %v3970, %v4831
        %v5225 = vadd.f32 %v3972, %v4833
        %v5226 = vadd.f32 %v4211, %v5072
        %v5227 = vadd.f32 %v3974, %v4835
        %v5228 = vadd.f32 %v3976, %v4837
        %v5229 = vadd.f32 %v4214, %v5075
        %v5230 = vadd.f32 %v3982, %v4843
        %v5231 = vadd.f32 %v3984, %v4845
        %v5232 = vadd.f32 %v4221, %v5082
        %v5233 = vadd.f32 %v3988, %v4849
        %v5234 = vadd.f32 %v3990, %v4851
        %v5235 = vadd.f32 %v4226, %v5087
        %v5236 = vadd.f32 %v3996, %v4857
        %v5237 = vadd.f32 %v3998, %v4859
        %v5238 = vadd.f32 %v4233, %v5094
        %v5239 = vadd.f32 %v4000, %v4861
        %v5240 = vadd.f32 %v4002, %v4863
        %v5241 = vadd.f32 %v4236, %v5097
        %v5242 = vadd.f32 %v4008, %v4869
        %v5243 = vadd.f32 %v4010, %v4871
        %v5244 = vadd.f32 %v4243, %v5104
        %v5245 = vadd.f32 %v4014, %v4875
        %v5246 = vadd.f32 %v4016, %v4877
        %v5247 = vadd.f32 %v4248, %v5109
        %v5248 = vadd.f32 %v4022, %v4883
        %v5249 = vadd.f32 %v4024, %v4885
        %v5250 = vadd.f32 %v4255, %v5116
        %v5251 = vadd.f32 %v4026, %v4887
        %v5252 = vadd.f32 %v4028, %v4889
        %v5253 = vadd.f32 %v4258, %v5119
        %v5254 = vadd.f32 %v4034, %v4895
        %v5255 = vadd.f32 %v4036, %v4897
        %v5256 = vadd.f32 %v4265, %v5126
        %v5257 = vadd.f32 %v4040, %v4901
        %v5258 = vadd.f32 %v4042, %v4903
        %v5259 = vadd.f32 %v4270, %v5131
        %v5260 = vadd.f32 %v4048, %v4909
        %v5261 = vadd.f32 %v4050, %v4911
        %v5262 = vadd.f32 %v4277, %v5138
        %v5263 = vadd.f32 %v4052, %v4913
        %v5264 = vadd.f32 %v4054, %v4915
        %v5265 = vadd.f32 %v4280, %v5141
        %v5266 = vadd.f32 %v4061, %v4922
        %v5267 = vadd.f32 %v4287, %v5148
        %v5268 = vadd.f32 %v4066, %v4927
        %v5269 = vadd.f32 %v4292, %v5153
        %v5270 = vadd.f32 %v4299, %v5160
        %v5271 = vadd.f32 %v4302, %v5163
        %v5272 = vadd.f32 %v4080, %v4941
        %v5273 = vadd.f32 %v4085, %v4946
        %v5274 = vadd.f32 %v5179, %v5272
        %v5275 = vadd.f32 %v5181, %v5273
        %v5276 = vadd.f32 %v5183, %v5178
        %v5277 = vadd.f32 %v5186, %v5180
        %v5278 = vadd.f32 %v5189, %v5182
        %v5279 = vadd.f32 %v5192, %v5185
        %v5280 = vadd.f32 %v5195, %v5188
        %v5281 = vadd.f32 %v5198, %v5191
        %v5282 = vadd.f32 %v5201, %v5194
        %v5283 = vadd.f32 %v5204, %v5197
        %v5284 = vadd.f32 %v5207, %v5200
        %v5285 = vadd.f32 %v5210, %v5203
        %v5286 = vadd.f32 %v5213, %v5206
        %v5287 = vadd.f32 %v5216, %v5209
        %v5288 = vadd.f32 %v5219, %v5212
        %v5289 = vadd.f32 %v5222, %v5215
        %v5290 = vadd.f32 %v5225, %v5218
        %v5291 = vadd.f32 %v5228, %v5221
        %v5292 = vadd.f32 %v5231, %v5224
        %v5293 = vadd.f32 %v5234, %v5227
        %v5294 = vadd.f32 %v5237, %v5230
        %v5295 = vadd.f32 %v5240, %v5233
        %v5296 = vadd.f32 %v5243, %v5236
        %v5297 = vadd.f32 %v5246, %v5239
        %v5298 = vadd.f32 %v5249, %v5242
        %v5299 = vadd.f32 %v5252, %v5245
        %v5300 = vadd.f32 %v5255, %v5248
        %v5301 = vadd.f32 %v5258, %v5251
        %v5302 = vadd.f32 %v5261, %v5254
        %v5303 = vadd.f32 %v5264, %v5257
        %v5304 = vadd.f32 %v5266, %v5260
        %v5305 = vadd.f32 %v5268, %v5263
        %v5306 = vadd.f32 %v5274, %v5184
        %v5307 = vadd.f32 %v5275, %v5187
        %v5308 = vadd.f32 %v5276, %v5190
        %v5309 = vadd.f32 %v5277, %v5193
        %v5310 = vadd.f32 %v5278, %v5196
        %v5311 = vadd.f32 %v5279, %v5199
        %v5312 = vadd.f32 %v5280, %v5202
        %v5313 = vadd.f32 %v5281, %v5205
        %v5314 = vadd.f32 %v5282, %v5208
        %v5315 = vadd.f32 %v5283, %v5211
        %v5316 = vadd.f32 %v5284, %v5214
        %v5317 = vadd.f32 %v5285, %v5217
        %v5318 = vadd.f32 %v5286, %v5220
        %v5319 = vadd.f32 %v5287, %v5223
        %v5320 = vadd.f32 %v5288, %v5226
        %v5321 = vadd.f32 %v5289, %v5229
        %v5322 = vadd.f32 %v5290, %v5232
        %v5323 = vadd.f32 %v5291, %v5235
        %v5324 = vadd.f32 %v5292, %v5238
        %v5325 = vadd.f32 %v5293, %v5241
        %v5326 = vadd.f32 %v5294, %v5244
        %v5327 = vadd.f32 %v5295, %v5247
        %v5328 = vadd.f32 %v5296, %v5250
        %v5329 = vadd.f32 %v5297, %v5253
        %v5330 = vadd.f32 %v5298, %v5256
        %v5331 = vadd.f32 %v5299, %v5259
        %v5332 = vadd.f32 %v5300, %v5262
        %v5333 = vadd.f32 %v5301, %v5265
        %v5334 = vadd.f32 %v5302, %v5267
        %v5335 = vadd.f32 %v5303, %v5269
        %v5336 = vadd.f32 %v5304, %v5270
        %v5337 = vadd.f32 %v5305, %v5271
        %v5339 = vlaneseq
        %v5340 = vshrl.u32 %v5339, 7
        %v5341 = vsub.s32 0, %v5340
        %v5342 = vrot.slane %v2050, %v5341
        %v5344 = vmul.f32 %v5306, %v5342
        %v5345 = vmul.f32 %v5307, %v5342
        %v5346 = vmul.f32 %v5308, %v5342
        %v5347 = vmul.f32 %v5309, %v5342
        %v5348 = vmul.f32 %v5310, %v5342
        %v5349 = vmul.f32 %v5311, %v5342
        %v5350 = vmul.f32 %v5312, %v5342
        %v5351 = vmul.f32 %v5313, %v5342
        %v5352 = vmul.f32 %v5314, %v5342
        %v5353 = vmul.f32 %v5315, %v5342
        %v5354 = vmul.f32 %v5316, %v5342
        %v5355 = vmul.f32 %v5317, %v5342
        %v5356 = vmul.f32 %v5318, %v5342
        %v5357 = vmul.f32 %v5319, %v5342
        %v5358 = vmul.f32 %v5320, %v5342
        %v5359 = vmul.f32 %v5321, %v5342
        %v5360 = vmul.f32 %v5322, %v5342
        %v5361 = vmul.f32 %v5323, %v5342
        %v5362 = vmul.f32 %v5324, %v5342
        %v5363 = vmul.f32 %v5325, %v5342
        %v5364 = vmul.f32 %v5326, %v5342
        %v5365 = vmul.f32 %v5327, %v5342
        %v5366 = vmul.f32 %v5328, %v5342
        %v5367 = vmul.f32 %v5329, %v5342
        %v5368 = vmul.f32 %v5330, %v5342
        %v5369 = vmul.f32 %v5331, %v5342
        %v5370 = vmul.f32 %v5332, %v5342
        %v5371 = vmul.f32 %v5333, %v5342
        %v5372 = vmul.f32 %v5334, %v5342
        %v5373 = vmul.f32 %v5335, %v5342
        %v5374 = vmul.f32 %v5336, %v5342
        %v5375 = vmul.f32 %v5337, %v5342
        %v5377 = vlaneseq
        %v5378 = vshrl.u32 %v5377, 7
        %v5379 = vsub.s32 0, %v5378
        %v5380 = vrot.slane %v2051, %v5379
        %v5382 = vadd.f32 %v5344, %v5380
        %v5383 = vadd.f32 %v5345, %v5380
        %v5384 = vadd.f32 %v5346, %v5380
        %v5385 = vadd.f32 %v5347, %v5380
        %v5386 = vadd.f32 %v5348, %v5380
        %v5387 = vadd.f32 %v5349, %v5380
        %v5388 = vadd.f32 %v5350, %v5380
        %v5389 = vadd.f32 %v5351, %v5380
        %v5390 = vadd.f32 %v5352, %v5380
        %v5391 = vadd.f32 %v5353, %v5380
        %v5392 = vadd.f32 %v5354, %v5380
        %v5393 = vadd.f32 %v5355, %v5380
        %v5394 = vadd.f32 %v5356, %v5380
        %v5395 = vadd.f32 %v5357, %v5380
        %v5396 = vadd.f32 %v5358, %v5380
        %v5397 = vadd.f32 %v5359, %v5380
        %v5398 = vadd.f32 %v5360, %v5380
        %v5399 = vadd.f32 %v5361, %v5380
        %v5400 = vadd.f32 %v5362, %v5380
        %v5401 = vadd.f32 %v5363, %v5380
        %v5402 = vadd.f32 %v5364, %v5380
        %v5403 = vadd.f32 %v5365, %v5380
        %v5404 = vadd.f32 %v5366, %v5380
        %v5405 = vadd.f32 %v5367, %v5380
        %v5406 = vadd.f32 %v5368, %v5380
        %v5407 = vadd.f32 %v5369, %v5380
        %v5408 = vadd.f32 %v5370, %v5380
        %v5409 = vadd.f32 %v5371, %v5380
        %v5410 = vadd.f32 %v5372, %v5380
        %v5411 = vadd.f32 %v5373, %v5380
        %v5412 = vadd.f32 %v5374, %v5380
        %v5413 = vadd.f32 %v5375, %v5380
        %v5414 = vmax.f32 %v5382, 0.0
        %v5415 = vmax.f32 %v5383, 0.0
        %v5416 = vmax.f32 %v5384, 0.0
        %v5417 = vmax.f32 %v5385, 0.0
        %v5418 = vmax.f32 %v5386, 0.0
        %v5419 = vmax.f32 %v5387, 0.0
        %v5420 = vmax.f32 %v5388, 0.0
        %v5421 = vmax.f32 %v5389, 0.0
        %v5422 = vmax.f32 %v5390, 0.0
        %v5423 = vmax.f32 %v5391, 0.0
        %v5424 = vmax.f32 %v5392, 0.0
        %v5425 = vmax.f32 %v5393, 0.0
        %v5426 = vmax.f32 %v5394, 0.0
        %v5427 = vmax.f32 %v5395, 0.0
        %v5428 = vmax.f32 %v5396, 0.0
        %v5429 = vmax.f32 %v5397, 0.0
        %v5430 = vmax.f32 %v5398, 0.0
        %v5431 = vmax.f32 %v5399, 0.0
        %v5432 = vmax.f32 %v5400, 0.0
        %v5433 = vmax.f32 %v5401, 0.0
        %v5434 = vmax.f32 %v5402, 0.0
        %v5435 = vmax.f32 %v5403, 0.0
        %v5436 = vmax.f32 %v5404, 0.0
        %v5437 = vmax.f32 %v5405, 0.0
        %v5438 = vmax.f32 %v5406, 0.0
        %v5439 = vmax.f32 %v5407, 0.0
        %v5440 = vmax.f32 %v5408, 0.0
        %v5441 = vmax.f32 %v5409, 0.0
        %v5442 = vmax.f32 %v5410, 0.0
        %v5443 = vmax.f32 %v5411, 0.0
        %v5444 = vmax.f32 %v5412, 0.0
        %v5445 = vmax.f32 %v5413, 0.0
        %5446 = vst [vmem:[#allocation4] sm:$0xff] %v5414
        %5447 = vst [vmem:[#allocation4 + $0x8] sm:$0xff] %v5415
        %5448 = vst [vmem:[#allocation4 + $0x18] sm:$0xff] %v5416
        %5449 = vst [vmem:[#allocation4 + $0x20] sm:$0xff] %v5417
        %5450 = vst [vmem:[#allocation4 + $0x30] sm:$0xff] %v5418
        %5451 = vst [vmem:[#allocation4 + $0x38] sm:$0xff] %v5419
        %5452 = vst [vmem:[#allocation4 + $0x48] sm:$0xff] %v5420
        %5453 = vst [vmem:[#allocation4 + $0x50] sm:$0xff] %v5421
        %5454 = vst [vmem:[#allocation4 + $0x60] sm:$0xff] %v5422
        %5455 = vst [vmem:[#allocation4 + $0x68] sm:$0xff] %v5423
        %5456 = vst [vmem:[#allocation4 + $0x78] sm:$0xff] %v5424
        %5457 = vst [vmem:[#allocation4 + $0x80] sm:$0xff] %v5425
        %5458 = vst [vmem:[#allocation4 + $0x90] sm:$0xff] %v5426
        %5459 = vst [vmem:[#allocation4 + $0x98] sm:$0xff] %v5427
        %5460 = vst [vmem:[#allocation4 + $0xa8] sm:$0xff] %v5428
        %5461 = vst [vmem:[#allocation4 + $0xb0] sm:$0xff] %v5429
        %5462 = vst [vmem:[#allocation4 + $0xc0] sm:$0xff] %v5430
        %5463 = vst [vmem:[#allocation4 + $0xc8] sm:$0xff] %v5431
        %5464 = vst [vmem:[#allocation4 + $0xd8] sm:$0xff] %v5432
        %5465 = vst [vmem:[#allocation4 + $0xe0] sm:$0xff] %v5433
        %5466 = vst [vmem:[#allocation4 + $0xf0] sm:$0xff] %v5434
        %5467 = vst [vmem:[#allocation4 + $0xf8] sm:$0xff] %v5435
        %5468 = vst [vmem:[#allocation4 + $0x108] sm:$0xff] %v5436
        %5469 = vst [vmem:[#allocation4 + $0x110] sm:$0xff] %v5437
        %5470 = vst [vmem:[#allocation4 + $0x120] sm:$0xff] %v5438
        %5471 = vst [vmem:[#allocation4 + $0x128] sm:$0xff] %v5439
        %5472 = vst [vmem:[#allocation4 + $0x138] sm:$0xff] %v5440
        %5473 = vst [vmem:[#allocation4 + $0x140] sm:$0xff] %v5441
        %5474 = vst [vmem:[#allocation4 + $0x150] sm:$0xff] %v5442
        %5475 = vst [vmem:[#allocation4 + $0x158] sm:$0xff] %v5443
        %5476 = vst [vmem:[#allocation4 + $0x168] sm:$0xff] %v5444
        %5477 = vst [vmem:[#allocation4 + $0x170] sm:$0xff] %v5445
        %v5478 = vld [vmem:[#allocation16] sm:$0x1]
        %v5479 = vld [vmem:[#allocation17] sm:$0x1]
        %v5480 = vld [vmem:[#allocation4] sm:$0xff]
        %v5481 = vld [vmem:[#allocation4 + $0x8] sm:$0xff]
        %v5482 = vld [vmem:[#allocation4 + $0x10] sm:$0xff]
        %v5483 = vld [vmem:[#allocation4 + $0x18] sm:$0xff]
        %v5484 = vld [vmem:[#allocation4 + $0x20] sm:$0xff]
        %v5485 = vld [vmem:[#allocation4 + $0x28] sm:$0xff]
        %v5486 = vld [vmem:[#allocation4 + $0x30] sm:$0xff]
        %v5487 = vld [vmem:[#allocation4 + $0x38] sm:$0xff]
        %v5488 = vld [vmem:[#allocation4 + $0x40] sm:$0xff]
        %v5489 = vld [vmem:[#allocation4 + $0x48] sm:$0xff]
        %v5490 = vld [vmem:[#allocation4 + $0x50] sm:$0xff]
        %v5491 = vld [vmem:[#allocation4 + $0x58] sm:$0xff]
        %v5492 = vld [vmem:[#allocation4 + $0x60] sm:$0xff]
        %v5493 = vld [vmem:[#allocation4 + $0x68] sm:$0xff]
        %v5494 = vld [vmem:[#allocation4 + $0x70] sm:$0xff]
        %v5495 = vld [vmem:[#allocation4 + $0x78] sm:$0xff]
        %v5496 = vld [vmem:[#allocation4 + $0x80] sm:$0xff]
        %v5497 = vld [vmem:[#allocation4 + $0x88] sm:$0xff]
        %v5498 = vld [vmem:[#allocation4 + $0x90] sm:$0xff]
        %v5499 = vld [vmem:[#allocation4 + $0x98] sm:$0xff]
        %v5500 = vld [vmem:[#allocation4 + $0xa0] sm:$0xff]
        %v5501 = vld [vmem:[#allocation4 + $0xa8] sm:$0xff]
        %v5502 = vld [vmem:[#allocation4 + $0xb0] sm:$0xff]
        %v5503 = vld [vmem:[#allocation4 + $0xb8] sm:$0xff]
        %v5504 = vld [vmem:[#allocation4 + $0xc0] sm:$0xff]
        %v5505 = vld [vmem:[#allocation4 + $0xc8] sm:$0xff]
        %v5506 = vld [vmem:[#allocation4 + $0xd0] sm:$0xff]
        %v5507 = vld [vmem:[#allocation4 + $0xd8] sm:$0xff]
        %v5508 = vld [vmem:[#allocation4 + $0xe0] sm:$0xff]
        %v5509 = vld [vmem:[#allocation4 + $0xe8] sm:$0xff]
        %v5510 = vld [vmem:[#allocation4 + $0xf0] sm:$0xff]
        %v5511 = vld [vmem:[#allocation4 + $0xf8] sm:$0xff]
        %v5512 = vld [vmem:[#allocation4 + $0x100] sm:$0xff]
        %v5513 = vld [vmem:[#allocation4 + $0x108] sm:$0xff]
        %v5514 = vld [vmem:[#allocation4 + $0x110] sm:$0xff]
        %v5515 = vld [vmem:[#allocation4 + $0x118] sm:$0xff]
        %v5516 = vld [vmem:[#allocation4 + $0x120] sm:$0xff]
        %v5517 = vld [vmem:[#allocation4 + $0x128] sm:$0xff]
        %v5518 = vld [vmem:[#allocation4 + $0x130] sm:$0xff]
        %v5519 = vld [vmem:[#allocation4 + $0x138] sm:$0xff]
        %v5520 = vld [vmem:[#allocation4 + $0x140] sm:$0xff]
        %v5521 = vld [vmem:[#allocation4 + $0x148] sm:$0xff]
        %v5522 = vld [vmem:[#allocation4 + $0x150] sm:$0xff]
        %v5523 = vld [vmem:[#allocation4 + $0x158] sm:$0xff]
        %v5524 = vld [vmem:[#allocation4 + $0x160] sm:$0xff]
        %v5525 = vld [vmem:[#allocation4 + $0x168] sm:$0xff]
        %v5526 = vld [vmem:[#allocation4 + $0x170] sm:$0xff]
        %v5527 = vld [vmem:[#allocation4 + $0x178] sm:$0xff]
        %v5528 = vld [vmem:[#allocation4 + $0x180] sm:$0xff]
        %v5529 = vld [vmem:[#allocation4 + $0x188] sm:$0xff]
        %v5530 = vld [vmem:[#allocation4 + $0x190] sm:$0xff]
        %v5531 = vld [vmem:[#allocation4 + $0x198] sm:$0xff]
        %v5532 = vld [vmem:[#allocation4 + $0x1a0] sm:$0xff]
        %v5533 = vld [vmem:[#allocation4 + $0x1a8] sm:$0xff]
        %v5534 = vrot.slane %v5480, 7
        %v5535 = vrot.slane %v5481, 7
        %v5536 = vrot.slane %v5482, 7
        %v5537 = vrot.slane %v5483, 7
        %v5538 = vrot.slane %v5484, 7
        %v5539 = vrot.slane %v5485, 7
        %v5540 = vrot.slane %v5486, 7
        %v5541 = vrot.slane %v5487, 7
        %v5542 = vrot.slane %v5488, 7
        %v5543 = vrot.slane %v5489, 7
        %v5544 = vrot.slane %v5490, 7
        %v5545 = vrot.slane %v5491, 7
        %v5546 = vrot.slane %v5492, 7
        %v5547 = vrot.slane %v5493, 7
        %v5548 = vrot.slane %v5494, 7
        %v5549 = vrot.slane %v5495, 7
        %v5550 = vrot.slane %v5496, 7
        %v5551 = vrot.slane %v5497, 7
        %v5552 = vrot.slane %v5498, 7
        %v5553 = vrot.slane %v5499, 7
        %v5554 = vrot.slane %v5500, 7
        %v5555 = vrot.slane %v5501, 7
        %v5556 = vrot.slane %v5502, 7
        %v5557 = vrot.slane %v5503, 7
        %v5558 = vrot.slane %v5504, 7
        %v5559 = vrot.slane %v5505, 7
        %v5560 = vrot.slane %v5506, 7
        %v5561 = vrot.slane %v5507, 7
        %v5562 = vrot.slane %v5508, 7
        %v5563 = vrot.slane %v5509, 7
        %v5564 = vrot.slane %v5510, 7
        %v5565 = vrot.slane %v5511, 7
        %v5566 = vrot.slane %v5512, 7
        %v5567 = vrot.slane %v5513, 7
        %v5568 = vrot.slane %v5514, 7
        %v5569 = vrot.slane %v5515, 7
        %v5570 = vrot.slane %v5516, 7
        %v5571 = vrot.slane %v5517, 7
        %v5572 = vrot.slane %v5518, 7
        %v5573 = vrot.slane %v5519, 7
        %v5574 = vrot.slane %v5520, 7
        %v5575 = vrot.slane %v5521, 7
        %v5576 = vrot.slane %v5522, 7
        %v5577 = vrot.slane %v5523, 7
        %v5578 = vrot.slane %v5524, 7
        %v5579 = vrot.slane %v5525, 7
        %v5580 = vrot.slane %v5526, 7
        %v5581 = vrot.slane %v5527, 7
        %v5582 = vrot.slane %v5528, 7
        %v5583 = vrot.slane %v5529, 7
        %v5584 = vrot.slane %v5530, 7
        %v5585 = vrot.slane %v5531, 7
        %v5586 = vrot.slane %v5532, 7
        %v5587 = vrot.slane %v5533, 7
        %v5588 = vsel %vm2270, %v5586, %v5587
        %v5589 = vsel %vm2270, %v5585, %v5586
        %v5590 = vsel %vm2270, %v5584, %v5585
        %v5591 = vsel %vm2270, %v5583, %v5584
        %v5592 = vsel %vm2270, %v5582, %v5583
        %v5593 = vsel %vm2270, %v5581, %v5582
        %v5594 = vsel %vm2270, %v5580, %v5581
        %v5595 = vsel %vm2270, %v5579, %v5580
        %v5596 = vsel %vm2270, %v5578, %v5579
        %v5597 = vsel %vm2270, %v5577, %v5578
        %v5598 = vsel %vm2270, %v5576, %v5577
        %v5599 = vsel %vm2270, %v5575, %v5576
        %v5600 = vsel %vm2270, %v5574, %v5575
        %v5601 = vsel %vm2270, %v5573, %v5574
        %v5602 = vsel %vm2270, %v5572, %v5573
        %v5603 = vsel %vm2270, %v5571, %v5572
        %v5604 = vsel %vm2270, %v5570, %v5571
        %v5605 = vsel %vm2270, %v5569, %v5570
        %v5606 = vsel %vm2270, %v5568, %v5569
        %v5607 = vsel %vm2270, %v5567, %v5568
        %v5608 = vsel %vm2270, %v5566, %v5567
        %v5609 = vsel %vm2270, %v5565, %v5566
        %v5610 = vsel %vm2270, %v5564, %v5565
        %v5611 = vsel %vm2270, %v5563, %v5564
        %v5612 = vsel %vm2270, %v5562, %v5563
        %v5613 = vsel %vm2270, %v5561, %v5562
        %v5614 = vsel %vm2270, %v5560, %v5561
        %v5615 = vsel %vm2270, %v5559, %v5560
        %v5616 = vsel %vm2270, %v5558, %v5559
        %v5617 = vsel %vm2270, %v5557, %v5558
        %v5618 = vsel %vm2270, %v5556, %v5557
        %v5619 = vsel %vm2270, %v5555, %v5556
        %v5620 = vsel %vm2270, %v5554, %v5555
        %v5621 = vsel %vm2270, %v5553, %v5554
        %v5622 = vsel %vm2270, %v5552, %v5553
        %v5623 = vsel %vm2270, %v5551, %v5552
        %v5624 = vsel %vm2270, %v5550, %v5551
        %v5625 = vsel %vm2270, %v5549, %v5550
        %v5626 = vsel %vm2270, %v5548, %v5549
        %v5627 = vsel %vm2270, %v5547, %v5548
        %v5628 = vsel %vm2270, %v5546, %v5547
        %v5629 = vsel %vm2270, %v5545, %v5546
        %v5630 = vsel %vm2270, %v5544, %v5545
        %v5631 = vsel %vm2270, %v5543, %v5544
        %v5632 = vsel %vm2270, %v5542, %v5543
        %v5633 = vsel %vm2270, %v5541, %v5542
        %v5634 = vsel %vm2270, %v5540, %v5541
        %v5635 = vsel %vm2270, %v5539, %v5540
        %v5636 = vsel %vm2270, %v5538, %v5539
        %v5637 = vsel %vm2270, %v5537, %v5538
        %v5638 = vsel %vm2270, %v5536, %v5537
        %v5639 = vsel %vm2270, %v5535, %v5536
        %v5640 = vsel %vm2270, %v5534, %v5535
        %v5641 = vsel %vm2270, %v5587, %v5534
        %v5642 = vrot.slane %v5480, 1
        %v5643 = vrot.slane %v5481, 1
        %v5644 = vrot.slane %v5482, 1
        %v5645 = vrot.slane %v5483, 1
        %v5646 = vrot.slane %v5484, 1
        %v5647 = vrot.slane %v5485, 1
        %v5648 = vrot.slane %v5486, 1
        %v5649 = vrot.slane %v5487, 1
        %v5650 = vrot.slane %v5488, 1
        %v5651 = vrot.slane %v5489, 1
        %v5652 = vrot.slane %v5490, 1
        %v5653 = vrot.slane %v5491, 1
        %v5654 = vrot.slane %v5492, 1
        %v5655 = vrot.slane %v5493, 1
        %v5656 = vrot.slane %v5494, 1
        %v5657 = vrot.slane %v5495, 1
        %v5658 = vrot.slane %v5496, 1
        %v5659 = vrot.slane %v5497, 1
        %v5660 = vrot.slane %v5498, 1
        %v5661 = vrot.slane %v5499, 1
        %v5662 = vrot.slane %v5500, 1
        %v5663 = vrot.slane %v5501, 1
        %v5664 = vrot.slane %v5502, 1
        %v5665 = vrot.slane %v5503, 1
        %v5666 = vrot.slane %v5504, 1
        %v5667 = vrot.slane %v5505, 1
        %v5668 = vrot.slane %v5506, 1
        %v5669 = vrot.slane %v5507, 1
        %v5670 = vrot.slane %v5508, 1
        %v5671 = vrot.slane %v5509, 1
        %v5672 = vrot.slane %v5510, 1
        %v5673 = vrot.slane %v5511, 1
        %v5674 = vrot.slane %v5512, 1
        %v5675 = vrot.slane %v5513, 1
        %v5676 = vrot.slane %v5514, 1
        %v5677 = vrot.slane %v5515, 1
        %v5678 = vrot.slane %v5516, 1
        %v5679 = vrot.slane %v5517, 1
        %v5680 = vrot.slane %v5518, 1
        %v5681 = vrot.slane %v5519, 1
        %v5682 = vrot.slane %v5520, 1
        %v5683 = vrot.slane %v5521, 1
        %v5684 = vrot.slane %v5522, 1
        %v5685 = vrot.slane %v5523, 1
        %v5686 = vrot.slane %v5524, 1
        %v5687 = vrot.slane %v5525, 1
        %v5688 = vrot.slane %v5526, 1
        %v5689 = vrot.slane %v5527, 1
        %v5690 = vrot.slane %v5528, 1
        %v5691 = vrot.slane %v5529, 1
        %v5692 = vrot.slane %v5530, 1
        %v5693 = vrot.slane %v5531, 1
        %v5694 = vrot.slane %v5532, 1
        %v5695 = vrot.slane %v5533, 1
        %v5696 = vsel %vm2487, %v5694, %v5695
        %v5697 = vsel %vm2487, %v5693, %v5694
        %v5698 = vsel %vm2487, %v5692, %v5693
        %v5699 = vsel %vm2487, %v5691, %v5692
        %v5700 = vsel %vm2487, %v5690, %v5691
        %v5701 = vsel %vm2487, %v5689, %v5690
        %v5702 = vsel %vm2487, %v5688, %v5689
        %v5703 = vsel %vm2487, %v5687, %v5688
        %v5704 = vsel %vm2487, %v5686, %v5687
        %v5705 = vsel %vm2487, %v5685, %v5686
        %v5706 = vsel %vm2487, %v5684, %v5685
        %v5707 = vsel %vm2487, %v5683, %v5684
        %v5708 = vsel %vm2487, %v5682, %v5683
        %v5709 = vsel %vm2487, %v5681, %v5682
        %v5710 = vsel %vm2487, %v5680, %v5681
        %v5711 = vsel %vm2487, %v5679, %v5680
        %v5712 = vsel %vm2487, %v5678, %v5679
        %v5713 = vsel %vm2487, %v5677, %v5678
        %v5714 = vsel %vm2487, %v5676, %v5677
        %v5715 = vsel %vm2487, %v5675, %v5676
        %v5716 = vsel %vm2487, %v5674, %v5675
        %v5717 = vsel %vm2487, %v5673, %v5674
        %v5718 = vsel %vm2487, %v5672, %v5673
        %v5719 = vsel %vm2487, %v5671, %v5672
        %v5720 = vsel %vm2487, %v5670, %v5671
        %v5721 = vsel %vm2487, %v5669, %v5670
        %v5722 = vsel %vm2487, %v5668, %v5669
        %v5723 = vsel %vm2487, %v5667, %v5668
        %v5724 = vsel %vm2487, %v5666, %v5667
        %v5725 = vsel %vm2487, %v5665, %v5666
        %v5726 = vsel %vm2487, %v5664, %v5665
        %v5727 = vsel %vm2487, %v5663, %v5664
        %v5728 = vsel %vm2487, %v5662, %v5663
        %v5729 = vsel %vm2487, %v5661, %v5662
        %v5730 = vsel %vm2487, %v5660, %v5661
        %v5731 = vsel %vm2487, %v5659, %v5660
        %v5732 = vsel %vm2487, %v5658, %v5659
        %v5733 = vsel %vm2487, %v5657, %v5658
        %v5734 = vsel %vm2487, %v5656, %v5657
        %v5735 = vsel %vm2487, %v5655, %v5656
        %v5736 = vsel %vm2487, %v5654, %v5655
        %v5737 = vsel %vm2487, %v5653, %v5654
        %v5738 = vsel %vm2487, %v5652, %v5653
        %v5739 = vsel %vm2487, %v5651, %v5652
        %v5740 = vsel %vm2487, %v5650, %v5651
        %v5741 = vsel %vm2487, %v5649, %v5650
        %v5742 = vsel %vm2487, %v5648, %v5649
        %v5743 = vsel %vm2487, %v5647, %v5648
        %v5744 = vsel %vm2487, %v5646, %v5647
        %v5745 = vsel %vm2487, %v5645, %v5646
        %v5746 = vsel %vm2487, %v5644, %v5645
        %v5747 = vsel %vm2487, %v5643, %v5644
        %v5748 = vsel %vm2487, %v5642, %v5643
        %v5749 = vsel %vm2487, %v5695, %v5642
        %v5750 = vpack.c.bf16 %v5640, %v5641
        %v5751 = vpack.c.bf16 %v5638, %v5639
        %v5752 = vpack.c.bf16 %v5636, %v5637
        %v5753 = vpack.c.bf16 %v5634, %v5635
        %v5754 = vpack.c.bf16 %v5632, %v5633
        %v5755 = vpack.c.bf16 %v5630, %v5631
        %v5756 = vpack.c.bf16 %v5628, %v5629
        %v5757 = vpack.c.bf16 %v5626, %v5627
        %v5758 = vpack.c.bf16 %v5624, %v5625
        %v5759 = vpack.c.bf16 %v5622, %v5623
        %v5760 = vpack.c.bf16 %v5620, %v5621
        %v5761 = vpack.c.bf16 %v5618, %v5619
        %v5762 = vpack.c.bf16 %v5616, %v5617
        %v5763 = vpack.c.bf16 %v5614, %v5615
        %v5764 = vpack.c.bf16 %v5612, %v5613
        %v5765 = vpack.c.bf16 %v5610, %v5611
        %v5766 = vpack.c.bf16 %v5608, %v5609
        %v5767 = vpack.c.bf16 %v5606, %v5607
        %v5768 = vpack.c.bf16 %v5604, %v5605
        %v5769 = vpack.c.bf16 %v5602, %v5603
        %v5770 = vpack.c.bf16 %v5600, %v5601
        %v5771 = vpack.c.bf16 %v5598, %v5599
        %v5772 = vpack.c.bf16 %v5596, %v5597
        %v5773 = vpack.c.bf16 %v5594, %v5595
        %v5774 = vpack.c.bf16 %v5592, %v5593
        %v5775 = vpack.c.bf16 %v5590, %v5591
        %v5776 = vpack.c.bf16 %v5588, %v5589
        %v5777 = vld [vmem:[#allocation14] sm:$0xff]
        %v5778 = vld [vmem:[#allocation14 + $0x8] sm:$0xf]
        %v5779 = vld [vmem:[#allocation14 + $0xc] sm:$0xff]
        %v5780 = vld [vmem:[#allocation14 + $0x14] sm:$0xf]
        %v5781 = vld [vmem:[#allocation14 + $0x18] sm:$0xff]
        %v5782 = vld [vmem:[#allocation14 + $0x20] sm:$0xf]
        %v5783 = vld [vmem:[#allocation14 + $0x24] sm:$0xff]
        %v5784 = vld [vmem:[#allocation14 + $0x2c] sm:$0xf]
        %v5785 = vld [vmem:[#allocation14 + $0x30] sm:$0xff]
        %v5786 = vld [vmem:[#allocation14 + $0x38] sm:$0xf]
        %v5787 = vld [vmem:[#allocation14 + $0x3c] sm:$0xff]
        %v5788 = vld [vmem:[#allocation14 + $0x44] sm:$0xf]
        %v5789 = vld [vmem:[#allocation14 + $0x48] sm:$0xff]
        %v5790 = vld [vmem:[#allocation14 + $0x50] sm:$0xf]
        %v5791 = vld [vmem:[#allocation14 + $0x54] sm:$0xff]
        %v5792 = vld [vmem:[#allocation14 + $0x5c] sm:$0xf]
        %v5793 = vld [vmem:[#allocation14 + $0x60] sm:$0xff]
        %v5794 = vld [vmem:[#allocation14 + $0x68] sm:$0xf]
        %v5795 = vld [vmem:[#allocation14 + $0x6c] sm:$0xff]
        %v5796 = vld [vmem:[#allocation14 + $0x74] sm:$0xf]
        %v5797 = vld [vmem:[#allocation14 + $0x78] sm:$0xff]
        %v5798 = vld [vmem:[#allocation14 + $0x80] sm:$0xf]
        %v5799 = vld [vmem:[#allocation14 + $0x84] sm:$0xff]
        %v5800 = vld [vmem:[#allocation14 + $0x8c] sm:$0xf]
        %v5801 = vld [vmem:[#allocation14 + $0x90] sm:$0xff]
        %v5802 = vld [vmem:[#allocation14 + $0x98] sm:$0xf]
        %v5803 = vld [vmem:[#allocation14 + $0x9c] sm:$0xff]
        %v5804 = vld [vmem:[#allocation14 + $0xa4] sm:$0xf]
        %v5805 = vld [vmem:[#allocation14 + $0xa8] sm:$0xff]
        %v5806 = vld [vmem:[#allocation14 + $0xb0] sm:$0xf]
        %v5807 = vld [vmem:[#allocation14 + $0xb4] sm:$0xff]
        %v5808 = vld [vmem:[#allocation14 + $0xbc] sm:$0xf]
        %v5809 = vpack.c.bf16 %v5481, %v5480
        %v5810 = vpack.c.bf16 %v5483, %v5482
        %v5811 = vpack.c.bf16 %v5485, %v5484
        %v5812 = vpack.c.bf16 %v5487, %v5486
        %v5813 = vpack.c.bf16 %v5489, %v5488
        %v5814 = vpack.c.bf16 %v5491, %v5490
        %v5815 = vpack.c.bf16 %v5493, %v5492
        %v5816 = vpack.c.bf16 %v5495, %v5494
        %v5817 = vpack.c.bf16 %v5497, %v5496
        %v5818 = vpack.c.bf16 %v5499, %v5498
        %v5819 = vpack.c.bf16 %v5501, %v5500
        %v5820 = vpack.c.bf16 %v5503, %v5502
        %v5821 = vpack.c.bf16 %v5505, %v5504
        %v5822 = vpack.c.bf16 %v5507, %v5506
        %v5823 = vpack.c.bf16 %v5509, %v5508
        %v5824 = vpack.c.bf16 %v5511, %v5510
        %v5825 = vpack.c.bf16 %v5513, %v5512
        %v5826 = vpack.c.bf16 %v5515, %v5514
        %v5827 = vpack.c.bf16 %v5517, %v5516
        %v5828 = vpack.c.bf16 %v5519, %v5518
        %v5829 = vpack.c.bf16 %v5521, %v5520
        %v5830 = vpack.c.bf16 %v5523, %v5522
        %v5831 = vpack.c.bf16 %v5525, %v5524
        %v5832 = vpack.c.bf16 %v5527, %v5526
        %v5833 = vpack.c.bf16 %v5529, %v5528
        %v5834 = vpack.c.bf16 %v5531, %v5530
        %v5835 = vpack.c.bf16 %v5533, %v5532
        %s5836 = scalar_lea.vmem [#allocation14], 192
        %v5837 = vld [vmem:[%s5836] sm:$0xff]
        %v5838 = vld [vmem:[%s5836 + $0x8] sm:$0xf]
        %v5839 = vld [vmem:[%s5836 + $0xc] sm:$0xff]
        %v5840 = vld [vmem:[%s5836 + $0x14] sm:$0xf]
        %v5841 = vld [vmem:[%s5836 + $0x18] sm:$0xff]
        %v5842 = vld [vmem:[%s5836 + $0x20] sm:$0xf]
        %v5843 = vld [vmem:[%s5836 + $0x24] sm:$0xff]
        %v5844 = vld [vmem:[%s5836 + $0x2c] sm:$0xf]
        %v5845 = vld [vmem:[%s5836 + $0x30] sm:$0xff]
        %v5846 = vld [vmem:[%s5836 + $0x38] sm:$0xf]
        %v5847 = vld [vmem:[%s5836 + $0x3c] sm:$0xff]
        %v5848 = vld [vmem:[%s5836 + $0x44] sm:$0xf]
        %v5849 = vld [vmem:[%s5836 + $0x48] sm:$0xff]
        %v5850 = vld [vmem:[%s5836 + $0x50] sm:$0xf]
        %v5851 = vld [vmem:[%s5836 + $0x54] sm:$0xff]
        %v5852 = vld [vmem:[%s5836 + $0x5c] sm:$0xf]
        %v5853 = vld [vmem:[%s5836 + $0x60] sm:$0xff]
        %v5854 = vld [vmem:[%s5836 + $0x68] sm:$0xf]
        %v5855 = vld [vmem:[%s5836 + $0x6c] sm:$0xff]
        %v5856 = vld [vmem:[%s5836 + $0x74] sm:$0xf]
        %v5857 = vld [vmem:[%s5836 + $0x78] sm:$0xff]
        %v5858 = vld [vmem:[%s5836 + $0x80] sm:$0xf]
        %v5859 = vld [vmem:[%s5836 + $0x84] sm:$0xff]
        %v5860 = vld [vmem:[%s5836 + $0x8c] sm:$0xf]
        %v5861 = vld [vmem:[%s5836 + $0x90] sm:$0xff]
        %v5862 = vld [vmem:[%s5836 + $0x98] sm:$0xf]
        %v5863 = vld [vmem:[%s5836 + $0x9c] sm:$0xff]
        %v5864 = vld [vmem:[%s5836 + $0xa4] sm:$0xf]
        %v5865 = vld [vmem:[%s5836 + $0xa8] sm:$0xff]
        %v5866 = vld [vmem:[%s5836 + $0xb0] sm:$0xf]
        %v5867 = vld [vmem:[%s5836 + $0xb4] sm:$0xff]
        %v5868 = vld [vmem:[%s5836 + $0xbc] sm:$0xf]
        %v5901 = vunpack.c.l.b16 %v5837
        %v5902 = vunpack.c.h.b16 %v5837
        %v5903 = vunpack.c.l.b16 %v5838
        %v5904 = vunpack.c.l.b16 %v5839
        %v5905 = vunpack.c.h.b16 %v5839
        %v5906 = vunpack.c.l.b16 %v5840
        %v5907 = vunpack.c.l.b16 %v5841
        %v5908 = vunpack.c.h.b16 %v5841
        %v5909 = vunpack.c.l.b16 %v5842
        %v5910 = vunpack.c.l.b16 %v5843
        %v5911 = vunpack.c.h.b16 %v5843
        %v5912 = vunpack.c.l.b16 %v5844
        %v5913 = vunpack.c.l.b16 %v5845
        %v5914 = vunpack.c.h.b16 %v5845
        %v5915 = vunpack.c.l.b16 %v5846
        %v5916 = vunpack.c.l.b16 %v5847
        %v5917 = vunpack.c.h.b16 %v5847
        %v5918 = vunpack.c.l.b16 %v5848
        %v5919 = vunpack.c.l.b16 %v5849
        %v5920 = vunpack.c.h.b16 %v5849
        %v5921 = vunpack.c.l.b16 %v5850
        %v5922 = vunpack.c.l.b16 %v5851
        %v5923 = vunpack.c.h.b16 %v5851
        %v5924 = vunpack.c.l.b16 %v5852
        %v5925 = vunpack.c.l.b16 %v5853
        %v5926 = vunpack.c.h.b16 %v5853
        %v5927 = vunpack.c.l.b16 %v5854
        %v5928 = vunpack.c.l.b16 %v5855
        %v5929 = vunpack.c.h.b16 %v5855
        %v5930 = vunpack.c.l.b16 %v5856
        %v5931 = vunpack.c.l.b16 %v5857
        %v5932 = vunpack.c.h.b16 %v5857
        %v5933 = vunpack.c.l.b16 %v5858
        %v5934 = vunpack.c.l.b16 %v5859
        %v5935 = vunpack.c.h.b16 %v5859
        %v5936 = vunpack.c.l.b16 %v5860
        %v5937 = vunpack.c.l.b16 %v5861
        %v5938 = vunpack.c.h.b16 %v5861
        %v5939 = vunpack.c.l.b16 %v5862
        %v5940 = vunpack.c.l.b16 %v5863
        %v5941 = vunpack.c.h.b16 %v5863
        %v5942 = vunpack.c.l.b16 %v5864
        %v5943 = vunpack.c.l.b16 %v5865
        %v5944 = vunpack.c.h.b16 %v5865
        %v5945 = vunpack.c.l.b16 %v5866
        %v5946 = vunpack.c.l.b16 %v5867
        %v5947 = vunpack.c.h.b16 %v5867
        %v5948 = vunpack.c.l.b16 %v5868
        %v5949 = vpack.c.b16 %v5904, %v5901
        %v5950 = vpack.c.b16 %v5905, %v5902
        %v5951 = vpack.c.b16 %v5906, %v5903
        %v5952 = vpack.c.b16 %v5910, %v5907
        %v5953 = vpack.c.b16 %v5911, %v5908
        %v5954 = vpack.c.b16 %v5912, %v5909
        %v5955 = vpack.c.b16 %v5916, %v5913
        %v5956 = vpack.c.b16 %v5917, %v5914
        %v5957 = vpack.c.b16 %v5918, %v5915
        %v5958 = vpack.c.b16 %v5922, %v5919
        %v5959 = vpack.c.b16 %v5923, %v5920
        %v5960 = vpack.c.b16 %v5924, %v5921
        %v5961 = vpack.c.b16 %v5928, %v5925
        %v5962 = vpack.c.b16 %v5929, %v5926
        %v5963 = vpack.c.b16 %v5930, %v5927
        %v5964 = vpack.c.b16 %v5934, %v5931
        %v5965 = vpack.c.b16 %v5935, %v5932
        %v5966 = vpack.c.b16 %v5936, %v5933
        %v5967 = vpack.c.b16 %v5940, %v5937
        %v5968 = vpack.c.b16 %v5941, %v5938
        %v5969 = vpack.c.b16 %v5942, %v5939
        %v5970 = vpack.c.b16 %v5946, %v5943
        %v5971 = vpack.c.b16 %v5947, %v5944
        %v5972 = vpack.c.b16 %v5948, %v5945
        %5997 = vmatprep.subr.bf16.mxu0 %v5950
        %5998 = vmatpush1.bf16.msra.mxu0 %v5949
        %5999 = vmatprep.subr.bf16.mxu0 %v5953
        %6000 = vmatpush1.bf16.msra.mxu0 %v5952
        %6001 = vmatprep.subr.bf16.mxu0 %v5956
        %6002 = vmatpush1.bf16.msra.mxu0 %v5955
        %6003 = vmatprep.subr.bf16.mxu0 %v5959
        %6004 = vmatpush1.bf16.msra.mxu0 %v5958
        %6005 = vmatprep.subr.bf16.mxu0 %v5962
        %6006 = vmatpush1.bf16.msra.mxu0 %v5961
        %6007 = vmatprep.subr.bf16.mxu0 %v5965
        %6008 = vmatpush1.bf16.msra.mxu0 %v5964
        %6009 = vmatprep.subr.bf16.mxu0 %v5968
        %6010 = vmatpush1.bf16.msra.mxu0 %v5967
        %6011 = vmatprep.subr.bf16.mxu0 %v5971
        %6012 = vmatpush1.bf16.msra.mxu0 %v5970
        %6013 = vmatprep.subr.bf16.mxu0 0
        %6014 = vmatpush1.bf16.msra.mxu0 0
        %6015 = vmatprep.subr.bf16.mxu0 0
        %6016 = vmatpush1.bf16.msra.mxu0 0
        %6017 = vmatprep.subr.bf16.mxu0 0
        %6018 = vmatpush1.bf16.msra.mxu0 0
        %6019 = vmatprep.subr.bf16.mxu0 0
        %6020 = vmatpush1.bf16.msra.mxu0 0
        %6021 = vmatprep.subr.bf16.mxu0 0
        %6022 = vmatpush1.bf16.msra.mxu0 0
        %6023 = vmatprep.subr.bf16.mxu0 0
        %6024 = vmatpush1.bf16.msra.mxu0 0
        %6025 = vmatprep.subr.bf16.mxu0 0
        %6026 = vmatpush1.bf16.msra.mxu0 0
        %6027 = vmatprep.subr.bf16.mxu0 0
        %6028 = vmatpush1.bf16.msra.mxu0 0
        %6029 = vmatprep.mubr.bf16.mxu0 0
        %6030 = vmatmul.mubr.bf16.gmra.mrb[0].mxu0 %v5809
        %v6031 = vpop.f32.mrb[0].mxu0
        %v6032 = vadd.f32 0.0, %v6031
        %v6033 = vpop.f32.mrb[0].mxu0
        %v6034 = vadd.f32 0.0, %v6033
        %v6035 = vpop.f32.mrb[0].mxu0
        %v6036 = vadd.f32 0.0, %v6035
        %v6037 = vpop.f32.mrb[0].mxu0
        %v6038 = vadd.f32 0.0, %v6037
        %6039 = vmatprep.mubr.bf16.mxu0 0
        %6040 = vmatmul.mubr.bf16.gmra.mrb[0].mxu0 %v5810
        %v6041 = vpop.f32.mrb[0].mxu0
        %v6042 = vpop.f32.mrb[0].mxu0
        %v6043 = vpop.f32.mrb[0].mxu0
        %v6044 = vadd.f32 0.0, %v6043
        %v6045 = vpop.f32.mrb[0].mxu0
        %v6046 = vadd.f32 0.0, %v6045
        %6047 = vmatprep.mubr.bf16.mxu0 0
        %6048 = vmatmul.mubr.bf16.gmra.mrb[0].mxu0 %v5811
        %v6049 = vpop.f32.mrb[0].mxu0
        %v6050 = vadd.f32 0.0, %v6049
        %v6051 = vpop.f32.mrb[0].mxu0
        %v6052 = vadd.f32 0.0, %v6051
        %v6053 = vpop.f32.mrb[0].mxu0
        %v6054 = vpop.f32.mrb[0].mxu0
        %6055 = vmatprep.mubr.bf16.mxu0 0
        %6056 = vmatmul.mubr.bf16.gmra.mrb[0].mxu0 %v5812
        %v6057 = vpop.f32.mrb[0].mxu0
        %v6058 = vadd.f32 0.0, %v6057
        %v6059 = vpop.f32.mrb[0].mxu0
        %v6060 = vadd.f32 0.0, %v6059
        %v6061 = vpop.f32.mrb[0].mxu0
        %v6062 = vadd.f32 0.0, %v6061
        %v6063 = vpop.f32.mrb[0].mxu0
        %v6064 = vadd.f32 0.0, %v6063
        %6065 = vmatprep.mubr.bf16.mxu0 0
        %6066 = vmatmul.mubr.bf16.gmra.mrb[0].mxu0 %v5813
        %v6067 = vpop.f32.mrb[0].mxu0
        %v6068 = vpop.f32.mrb[0].mxu0
        %v6069 = vpop.f32.mrb[0].mxu0
        %v6070 = vadd.f32 0.0, %v6069
        %v6071 = vpop.f32.mrb[0].mxu0
        %v6072 = vadd.f32 0.0, %v6071
        %6073 = vmatprep.mubr.bf16.mxu0 0
        %6074 = vmatmul.mubr.bf16.gmra.mrb[0].mxu0 %v5814
        %v6075 = vpop.f32.mrb[0].mxu0
        %v6076 = vadd.f32 0.0, %v6075
        %v6077 = vpop.f32.mrb[0].mxu0
        %v6078 = vadd.f32 0.0, %v6077
        %v6079 = vpop.f32.mrb[0].mxu0
        %v6080 = vpop.f32.mrb[0].mxu0
        %6081 = vmatprep.mubr.bf16.mxu0 0
        %6082 = vmatmul.mubr.bf16.gmra.mrb[0].mxu0 %v5815
        %v6083 = vpop.f32.mrb[0].mxu0
        %v6084 = vadd.f32 0.0, %v6083
        %v6085 = vpop.f32.mrb[0].mxu0
        %v6086 = vadd.f32 0.0, %v6085
        %v6087 = vpop.f32.mrb[0].mxu0
        %v6088 = vadd.f32 0.0, %v6087
        %v6089 = vpop.f32.mrb[0].mxu0
        %v6090 = vadd.f32 0.0, %v6089
        %6091 = vmatprep.mubr.bf16.mxu0 0
        %6092 = vmatmul.mubr.bf16.gmra.mrb[0].mxu0 %v5816
        %v6093 = vpop.f32.mrb[0].mxu0
        %v6094 = vpop.f32.mrb[0].mxu0
        %v6095 = vpop.f32.mrb[0].mxu0
        %v6096 = vadd.f32 0.0, %v6095
        %v6097 = vpop.f32.mrb[0].mxu0
        %v6098 = vadd.f32 0.0, %v6097
        %6099 = vmatprep.mubr.bf16.mxu0 0
        %6100 = vmatmul.mubr.bf16.gmra.mrb[0].mxu0 %v5817
        %v6101 = vpop.f32.mrb[0].mxu0
        %v6102 = vadd.f32 0.0, %v6101
        %v6103 = vpop.f32.mrb[0].mxu0
        %v6104 = vadd.f32 0.0, %v6103
        %v6105 = vpop.f32.mrb[0].mxu0
        %v6106 = vpop.f32.mrb[0].mxu0
        %6107 = vmatprep.mubr.bf16.mxu0 0
        %6108 = vmatmul.mubr.bf16.gmra.mrb[0].mxu0 %v5818
        %v6109 = vpop.f32.mrb[0].mxu0
        %v6110 = vadd.f32 0.0, %v6109
        %v6111 = vpop.f32.mrb[0].mxu0
        %v6112 = vadd.f32 0.0, %v6111
        %v6113 = vpop.f32.mrb[0].mxu0
        %v6114 = vadd.f32 0.0, %v6113
        %v6115 = vpop.f32.mrb[0].mxu0
        %v6116 = vadd.f32 0.0, %v6115
        %6117 = vmatprep.mubr.bf16.mxu0 0
        %6118 = vmatmul.mubr.bf16.gmra.mrb[0].mxu0 %v5819
        %v6119 = vpop.f32.mrb[0].mxu0
        %v6120 = vpop.f32.mrb[0].mxu0
        %v6121 = vpop.f32.mrb[0].mxu0
        %v6122 = vadd.f32 0.0, %v6121
        %v6123 = vpop.f32.mrb[0].mxu0
        %v6124 = vadd.f32 0.0, %v6123
        %6125 = vmatprep.mubr.bf16.mxu0 0
        %6126 = vmatmul.mubr.bf16.gmra.mrb[0].mxu0 %v5820
        %v6127 = vpop.f32.mrb[0].mxu0
        %v6128 = vadd.f32 0.0, %v6127
        %v6129 = vpop.f32.mrb[0].mxu0
        %v6130 = vadd.f32 0.0, %v6129
        %v6131 = vpop.f32.mrb[0].mxu0
        %v6132 = vpop.f32.mrb[0].mxu0
        %6133 = vmatprep.mubr.bf16.mxu0 0
        %6134 = vmatmul.mubr.bf16.gmra.mrb[0].mxu0 %v5821
        %v6135 = vpop.f32.mrb[0].mxu0
        %v6136 = vadd.f32 0.0, %v6135
        %v6137 = vpop.f32.mrb[0].mxu0
        %v6138 = vadd.f32 0.0, %v6137
        %v6139 = vpop.f32.mrb[0].mxu0
        %v6140 = vadd.f32 0.0, %v6139
        %v6141 = vpop.f32.mrb[0].mxu0
        %v6142 = vadd.f32 0.0, %v6141
        %6143 = vmatprep.mubr.bf16.mxu0 0
        %6144 = vmatmul.mubr.bf16.gmra.mrb[0].mxu0 %v5822
        %v6145 = vpop.f32.mrb[0].mxu0
        %v6146 = vpop.f32.mrb[0].mxu0
        %v6147 = vpop.f32.mrb[0].mxu0
        %v6148 = vadd.f32 0.0, %v6147
        %v6149 = vpop.f32.mrb[0].mxu0
        %v6150 = vadd.f32 0.0, %v6149
        %6151 = vmatprep.mubr.bf16.mxu0 0
        %6152 = vmatmul.mubr.bf16.gmra.mrb[0].mxu0 %v5823
        %v6153 = vpop.f32.mrb[0].mxu0
        %v6154 = vadd.f32 0.0, %v6153
        %v6155 = vpop.f32.mrb[0].mxu0
        %v6156 = vadd.f32 0.0, %v6155
        %v6157 = vpop.f32.mrb[0].mxu0
        %v6158 = vpop.f32.mrb[0].mxu0
        %6159 = vmatprep.mubr.bf16.mxu0 0
        %6160 = vmatmul.mubr.bf16.gmra.mrb[0].mxu0 %v5824
        %v6161 = vpop.f32.mrb[0].mxu0
        %v6162 = vadd.f32 0.0, %v6161
        %v6163 = vpop.f32.mrb[0].mxu0
        %v6164 = vadd.f32 0.0, %v6163
        %v6165 = vpop.f32.mrb[0].mxu0
        %v6166 = vadd.f32 0.0, %v6165
        %v6167 = vpop.f32.mrb[0].mxu0
        %v6168 = vadd.f32 0.0, %v6167
        %6169 = vmatprep.mubr.bf16.mxu0 0
        %6170 = vmatmul.mubr.bf16.gmra.mrb[0].mxu0 %v5825
        %v6171 = vpop.f32.mrb[0].mxu0
        %v6172 = vpop.f32.mrb[0].mxu0
        %v6173 = vpop.f32.mrb[0].mxu0
        %v6174 = vadd.f32 0.0, %v6173
        %v6175 = vpop.f32.mrb[0].mxu0
        %v6176 = vadd.f32 0.0, %v6175
        %6177 = vmatprep.mubr.bf16.mxu0 0
        %6178 = vmatmul.mubr.bf16.gmra.mrb[0].mxu0 %v5826
        %v6179 = vpop.f32.mrb[0].mxu0
        %v6180 = vadd.f32 0.0, %v6179
        %v6181 = vpop.f32.mrb[0].mxu0
        %v6182 = vadd.f32 0.0, %v6181
        %v6183 = vpop.f32.mrb[0].mxu0
        %v6184 = vpop.f32.mrb[0].mxu0
        %6185 = vmatprep.mubr.bf16.mxu0 0
        %6186 = vmatmul.mubr.bf16.gmra.mrb[0].mxu0 %v5827
        %v6187 = vpop.f32.mrb[0].mxu0
        %v6188 = vadd.f32 0.0, %v6187
        %v6189 = vpop.f32.mrb[0].mxu0
        %v6190 = vadd.f32 0.0, %v6189
        %v6191 = vpop.f32.mrb[0].mxu0
        %v6192 = vadd.f32 0.0, %v6191
        %v6193 = vpop.f32.mrb[0].mxu0
        %v6194 = vadd.f32 0.0, %v6193
        %6195 = vmatprep.mubr.bf16.mxu0 0
        %6196 = vmatmul.mubr.bf16.gmra.mrb[0].mxu0 %v5828
        %v6197 = vpop.f32.mrb[0].mxu0
        %v6198 = vpop.f32.mrb[0].mxu0
        %v6199 = vpop.f32.mrb[0].mxu0
        %v6200 = vadd.f32 0.0, %v6199
        %v6201 = vpop.f32.mrb[0].mxu0
        %v6202 = vadd.f32 0.0, %v6201
        %6203 = vmatprep.mubr.bf16.mxu0 0
        %6204 = vmatmul.mubr.bf16.gmra.mrb[0].mxu0 %v5829
        %v6205 = vpop.f32.mrb[0].mxu0
        %v6206 = vadd.f32 0.0, %v6205
        %v6207 = vpop.f32.mrb[0].mxu0
        %v6208 = vadd.f32 0.0, %v6207
        %v6209 = vpop.f32.mrb[0].mxu0
        %v6210 = vpop.f32.mrb[0].mxu0
        %6211 = vmatprep.mubr.bf16.mxu0 0
        %6212 = vmatmul.mubr.bf16.gmra.mrb[0].mxu0 %v5830
        %v6213 = vpop.f32.mrb[0].mxu0
        %v6214 = vadd.f32 0.0, %v6213
        %v6215 = vpop.f32.mrb[0].mxu0
        %v6216 = vadd.f32 0.0, %v6215
        %v6217 = vpop.f32.mrb[0].mxu0
        %v6218 = vadd.f32 0.0, %v6217
        %v6219 = vpop.f32.mrb[0].mxu0
        %v6220 = vadd.f32 0.0, %v6219
        %6221 = vmatprep.mubr.bf16.mxu0 0
        %6222 = vmatmul.mubr.bf16.gmra.mrb[0].mxu0 %v5831
        %v6223 = vpop.f32.mrb[0].mxu0
        %v6224 = vpop.f32.mrb[0].mxu0
        %v6225 = vpop.f32.mrb[0].mxu0
        %v6226 = vpop.f32.mrb[0].mxu0
        %v6227 = vadd.f32 0.0, %v6226
        %6228 = vmatprep.mubr.bf16.mxu0 0
        %6229 = vmatmul.mubr.bf16.gmra.mrb[0].mxu0 %v5832
        %v6230 = vpop.f32.mrb[0].mxu0
        %v6231 = vpop.f32.mrb[0].mxu0
        %v6232 = vadd.f32 0.0, %v6231
        %v6233 = vpop.f32.mrb[0].mxu0
        %v6234 = vpop.f32.mrb[0].mxu0
        %6235 = vmatprep.mubr.bf16.mxu0 0
        %6236 = vmatmul.mubr.bf16.gmra.mrb[0].mxu0 %v5833
        %v6237 = vpop.f32.mrb[0].mxu0
        %v6238 = vpop.f32.mrb[0].mxu0
        %v6239 = vpop.f32.mrb[0].mxu0
        %v6240 = vpop.f32.mrb[0].mxu0
        %6241 = vmatprep.mubr.bf16.mxu0 0
        %6242 = vmatmul.mubr.bf16.gmra.mrb[0].mxu0 %v5834
        %v6243 = vpop.f32.mrb[0].mxu0
        %v6244 = vpop.f32.mrb[0].mxu0
        %v6245 = vpop.f32.mrb[0].mxu0
        %v6246 = vadd.f32 0.0, %v6245
        %v6247 = vpop.f32.mrb[0].mxu0
        %6248 = vmatprep.mubr.bf16.mxu0 0
        %6249 = vmatmul.mubr.bf16.gmra.mrb[0].mxu0 %v5835
        %v6250 = vpop.f32.mrb[0].mxu0
        %v6251 = vadd.f32 0.0, %v6250
        %v6252 = vpop.f32.mrb[0].mxu0
        %v6253 = vpop.f32.mrb[0].mxu0
        %v6254 = vpop.f32.mrb[0].mxu0
        %6255 = vdwg.mxu0
        %6256 = vmatprep.subr.bf16.mxu0 0
        %6257 = vmatpush1.bf16.msra.mxu0 %v5951
        %6258 = vmatprep.subr.bf16.mxu0 0
        %6259 = vmatpush1.bf16.msra.mxu0 %v5954
        %6260 = vmatprep.subr.bf16.mxu0 0
        %6261 = vmatpush1.bf16.msra.mxu0 %v5957
        %6262 = vmatprep.subr.bf16.mxu0 0
        %6263 = vmatpush1.bf16.msra.mxu0 %v5960
        %6264 = vmatprep.subr.bf16.mxu0 0
        %6265 = vmatpush1.bf16.msra.mxu0 %v5963
        %6266 = vmatprep.subr.bf16.mxu0 0
        %6267 = vmatpush1.bf16.msra.mxu0 %v5966
        %6268 = vmatprep.subr.bf16.mxu0 0
        %6269 = vmatpush1.bf16.msra.mxu0 %v5969
        %6270 = vmatprep.subr.bf16.mxu0 0
        %6271 = vmatpush1.bf16.msra.mxu0 %v5972
        %6272 = vmatprep.subr.bf16.mxu0 0
        %6273 = vmatpush1.bf16.msra.mxu0 0
        %6274 = vmatprep.subr.bf16.mxu0 0
        %6275 = vmatpush1.bf16.msra.mxu0 0
        %6276 = vmatprep.subr.bf16.mxu0 0
        %6277 = vmatpush1.bf16.msra.mxu0 0
        %6278 = vmatprep.subr.bf16.mxu0 0
        %6279 = vmatpush1.bf16.msra.mxu0 0
        %6280 = vmatprep.subr.bf16.mxu0 0
        %6281 = vmatpush1.bf16.msra.mxu0 0
        %6282 = vmatprep.subr.bf16.mxu0 0
        %6283 = vmatpush1.bf16.msra.mxu0 0
        %6284 = vmatprep.subr.bf16.mxu0 0
        %6285 = vmatpush1.bf16.msra.mxu0 0
        %6286 = vmatprep.subr.bf16.mxu0 0
        %6287 = vmatpush1.bf16.msra.mxu0 0
        %6288 = vmatprep.mubr.bf16.mxu0 0
        %6289 = vmatmul.mubr.bf16.gmra.mrb[0].mxu0 %v5809
        %v6290 = vpop.f32.mrb[0].mxu0
        %v6291 = vpop.f32.mrb[0].mxu0
        %v6292 = vpop.f32.mrb[0].mxu0
        %v6293 = vpop.f32.mrb[0].mxu0
        %6294 = vmatprep.mubr.bf16.mxu0 0
        %6295 = vmatmul.mubr.bf16.gmra.mrb[0].mxu0 %v5810
        %v6296 = vpop.f32.mrb[0].mxu0
        %v6297 = vpop.f32.mrb[0].mxu0
        %v6298 = vpop.f32.mrb[0].mxu0
        %v6299 = vadd.f32 0.0, %v6298
        %v6300 = vpop.f32.mrb[0].mxu0
        %6301 = vmatprep.mubr.bf16.mxu0 0
        %6302 = vmatmul.mubr.bf16.gmra.mrb[0].mxu0 %v5811
        %v6303 = vpop.f32.mrb[0].mxu0
        %v6304 = vadd.f32 0.0, %v6303
        %v6305 = vpop.f32.mrb[0].mxu0
        %v6306 = vpop.f32.mrb[0].mxu0
        %v6307 = vpop.f32.mrb[0].mxu0
        %6308 = vmatprep.mubr.bf16.mxu0 0
        %6309 = vmatmul.mubr.bf16.gmra.mrb[0].mxu0 %v5812
        %v6310 = vpop.f32.mrb[0].mxu0
        %v6311 = vadd.f32 0.0, %v6310
        %v6312 = vpop.f32.mrb[0].mxu0
        %v6313 = vpop.f32.mrb[0].mxu0
        %v6314 = vadd.f32 0.0, %v6313
        %v6315 = vpop.f32.mrb[0].mxu0
        %6316 = vmatprep.mubr.bf16.mxu0 0
        %6317 = vmatmul.mubr.bf16.gmra.mrb[0].mxu0 %v5813
        %v6318 = vpop.f32.mrb[0].mxu0
        %v6319 = vpop.f32.mrb[0].mxu0
        %v6320 = vpop.f32.mrb[0].mxu0
        %v6321 = vadd.f32 0.0, %v6320
        %v6322 = vpop.f32.mrb[0].mxu0
        %6323 = vmatprep.mubr.bf16.mxu0 0
        %6324 = vmatmul.mubr.bf16.gmra.mrb[0].mxu0 %v5814
        %v6325 = vpop.f32.mrb[0].mxu0
        %v6326 = vadd.f32 0.0, %v6325
        %v6327 = vpop.f32.mrb[0].mxu0
        %v6328 = vpop.f32.mrb[0].mxu0
        %v6329 = vpop.f32.mrb[0].mxu0
        %6330 = vmatprep.mubr.bf16.mxu0 0
        %6331 = vmatmul.mubr.bf16.gmra.mrb[0].mxu0 %v5815
        %v6332 = vpop.f32.mrb[0].mxu0
        %v6333 = vadd.f32 0.0, %v6332
        %v6334 = vpop.f32.mrb[0].mxu0
        %v6335 = vpop.f32.mrb[0].mxu0
        %v6336 = vadd.f32 0.0, %v6335
        %v6337 = vpop.f32.mrb[0].mxu0
        %6338 = vmatprep.mubr.bf16.mxu0 0
        %6339 = vmatmul.mubr.bf16.gmra.mrb[0].mxu0 %v5816
        %v6340 = vpop.f32.mrb[0].mxu0
        %v6341 = vpop.f32.mrb[0].mxu0
        %v6342 = vpop.f32.mrb[0].mxu0
        %v6343 = vadd.f32 0.0, %v6342
        %v6344 = vpop.f32.mrb[0].mxu0
        %6345 = vmatprep.mubr.bf16.mxu0 0
        %6346 = vmatmul.mubr.bf16.gmra.mrb[0].mxu0 %v5817
        %v6347 = vpop.f32.mrb[0].mxu0
        %v6348 = vadd.f32 0.0, %v6347
        %v6349 = vpop.f32.mrb[0].mxu0
        %v6350 = vpop.f32.mrb[0].mxu0
        %v6351 = vpop.f32.mrb[0].mxu0
        %6352 = vmatprep.mubr.bf16.mxu0 0
        %6353 = vmatmul.mubr.bf16.gmra.mrb[0].mxu0 %v5818
        %v6354 = vpop.f32.mrb[0].mxu0
        %v6355 = vadd.f32 0.0, %v6354
        %v6356 = vpop.f32.mrb[0].mxu0
        %v6357 = vpop.f32.mrb[0].mxu0
        %v6358 = vadd.f32 0.0, %v6357
        %v6359 = vpop.f32.mrb[0].mxu0
        %6360 = vmatprep.mubr.bf16.mxu0 0
        %6361 = vmatmul.mubr.bf16.gmra.mrb[0].mxu0 %v5819
        %v6362 = vpop.f32.mrb[0].mxu0
        %v6363 = vpop.f32.mrb[0].mxu0
        %v6364 = vpop.f32.mrb[0].mxu0
        %v6365 = vadd.f32 0.0, %v6364
        %v6366 = vpop.f32.mrb[0].mxu0
        %6367 = vmatprep.mubr.bf16.mxu0 0
        %6368 = vmatmul.mubr.bf16.gmra.mrb[0].mxu0 %v5820
        %v6369 = vpop.f32.mrb[0].mxu0
        %v6370 = vadd.f32 0.0, %v6369
        %v6371 = vpop.f32.mrb[0].mxu0
        %v6372 = vpop.f32.mrb[0].mxu0
        %v6373 = vpop.f32.mrb[0].mxu0
        %6374 = vmatprep.mubr.bf16.mxu0 0
        %6375 = vmatmul.mubr.bf16.gmra.mrb[0].mxu0 %v5821
        %v6376 = vpop.f32.mrb[0].mxu0
        %v6377 = vadd.f32 0.0, %v6376
        %v6378 = vpop.f32.mrb[0].mxu0
        %v6379 = vpop.f32.mrb[0].mxu0
        %v6380 = vadd.f32 0.0, %v6379
        %v6381 = vpop.f32.mrb[0].mxu0
        %6382 = vmatprep.mubr.bf16.mxu0 0
        %6383 = vmatmul.mubr.bf16.gmra.mrb[0].mxu0 %v5822
        %v6384 = vpop.f32.mrb[0].mxu0
        %v6385 = vpop.f32.mrb[0].mxu0
        %v6386 = vpop.f32.mrb[0].mxu0
        %v6387 = vadd.f32 0.0, %v6386
        %v6388 = vpop.f32.mrb[0].mxu0
        %6389 = vmatprep.mubr.bf16.mxu0 0
        %6390 = vmatmul.mubr.bf16.gmra.mrb[0].mxu0 %v5823
        %v6391 = vpop.f32.mrb[0].mxu0
        %v6392 = vadd.f32 0.0, %v6391
        %v6393 = vpop.f32.mrb[0].mxu0
        %v6394 = vpop.f32.mrb[0].mxu0
        %v6395 = vpop.f32.mrb[0].mxu0
        %6396 = vmatprep.mubr.bf16.mxu0 0
        %6397 = vmatmul.mubr.bf16.gmra.mrb[0].mxu0 %v5824
        %v6398 = vpop.f32.mrb[0].mxu0
        %v6399 = vadd.f32 0.0, %v6398
        %v6400 = vpop.f32.mrb[0].mxu0
        %v6401 = vpop.f32.mrb[0].mxu0
        %v6402 = vadd.f32 0.0, %v6401
        %v6403 = vpop.f32.mrb[0].mxu0
        %6404 = vmatprep.mubr.bf16.mxu0 0
        %6405 = vmatmul.mubr.bf16.gmra.mrb[0].mxu0 %v5825
        %v6406 = vpop.f32.mrb[0].mxu0
        %v6407 = vpop.f32.mrb[0].mxu0
        %v6408 = vpop.f32.mrb[0].mxu0
        %v6409 = vadd.f32 0.0, %v6408
        %v6410 = vpop.f32.mrb[0].mxu0
        %6411 = vmatprep.mubr.bf16.mxu0 0
        %6412 = vmatmul.mubr.bf16.gmra.mrb[0].mxu0 %v5826
        %v6413 = vpop.f32.mrb[0].mxu0
        %v6414 = vadd.f32 0.0, %v6413
        %v6415 = vpop.f32.mrb[0].mxu0
        %v6416 = vpop.f32.mrb[0].mxu0
        %v6417 = vpop.f32.mrb[0].mxu0
        %6418 = vmatprep.mubr.bf16.mxu0 0
        %6419 = vmatmul.mubr.bf16.gmra.mrb[0].mxu0 %v5827
        %v6420 = vpop.f32.mrb[0].mxu0
        %v6421 = vadd.f32 0.0, %v6420
        %v6422 = vpop.f32.mrb[0].mxu0
        %v6423 = vpop.f32.mrb[0].mxu0
        %v6424 = vadd.f32 0.0, %v6423
        %v6425 = vpop.f32.mrb[0].mxu0
        %6426 = vmatprep.mubr.bf16.mxu0 0
        %6427 = vmatmul.mubr.bf16.gmra.mrb[0].mxu0 %v5828
        %v6428 = vpop.f32.mrb[0].mxu0
        %v6429 = vpop.f32.mrb[0].mxu0
        %v6430 = vpop.f32.mrb[0].mxu0
        %v6431 = vadd.f32 0.0, %v6430
        %v6432 = vpop.f32.mrb[0].mxu0
        %6433 = vmatprep.mubr.bf16.mxu0 0
        %6434 = vmatmul.mubr.bf16.gmra.mrb[0].mxu0 %v5829
        %v6435 = vpop.f32.mrb[0].mxu0
        %v6436 = vadd.f32 0.0, %v6435
        %v6437 = vpop.f32.mrb[0].mxu0
        %v6438 = vpop.f32.mrb[0].mxu0
        %v6439 = vpop.f32.mrb[0].mxu0
        %6440 = vmatprep.mubr.bf16.mxu0 0
        %6441 = vmatmul.mubr.bf16.gmra.mrb[0].mxu0 %v5830
        %v6442 = vpop.f32.mrb[0].mxu0
        %v6443 = vadd.f32 0.0, %v6442
        %v6444 = vpop.f32.mrb[0].mxu0
        %v6445 = vpop.f32.mrb[0].mxu0
        %v6446 = vadd.f32 0.0, %v6445
        %v6447 = vpop.f32.mrb[0].mxu0
        %6448 = vmatprep.mubr.bf16.mxu0 0
        %6449 = vmatmul.mubr.bf16.gmra.mrb[0].mxu0 %v5831
        %v6450 = vpop.f32.mrb[0].mxu0
        %v6451 = vpop.f32.mrb[0].mxu0
        %v6452 = vpop.f32.mrb[0].mxu0
        %v6453 = vadd.f32 0.0, %v6452
        %v6454 = vpop.f32.mrb[0].mxu0
        %6455 = vmatprep.mubr.bf16.mxu0 0
        %6456 = vmatmul.mubr.bf16.gmra.mrb[0].mxu0 %v5832
        %v6457 = vpop.f32.mrb[0].mxu0
        %v6458 = vadd.f32 0.0, %v6457
        %v6459 = vpop.f32.mrb[0].mxu0
        %v6460 = vpop.f32.mrb[0].mxu0
        %v6461 = vpop.f32.mrb[0].mxu0
        %6462 = vmatprep.mubr.bf16.mxu0 0
        %6463 = vmatmul.mubr.bf16.gmra.mrb[0].mxu0 %v5833
        %v6464 = vpop.f32.mrb[0].mxu0
        %v6465 = vadd.f32 0.0, %v6464
        %v6466 = vpop.f32.mrb[0].mxu0
        %v6467 = vpop.f32.mrb[0].mxu0
        %v6468 = vadd.f32 0.0, %v6467
        %v6469 = vpop.f32.mrb[0].mxu0
        %6470 = vmatprep.mubr.bf16.mxu0 0
        %6471 = vmatmul.mubr.bf16.gmra.mrb[0].mxu0 %v5834
        %v6472 = vpop.f32.mrb[0].mxu0
        %v6473 = vpop.f32.mrb[0].mxu0
        %v6474 = vpop.f32.mrb[0].mxu0
        %v6475 = vpop.f32.mrb[0].mxu0
        %6476 = vmatprep.mubr.bf16.mxu0 0
        %6477 = vmatmul.mubr.bf16.gmra.mrb[0].mxu0 %v5835
        %v6478 = vpop.f32.mrb[0].mxu0
        %v6479 = vpop.f32.mrb[0].mxu0
        %v6480 = vpop.f32.mrb[0].mxu0
        %v6481 = vpop.f32.mrb[0].mxu0
        %6482 = vdwg.mxu0
        %v6515 = vunpack.c.l.b16 %v5777
        %v6516 = vunpack.c.h.b16 %v5777
        %v6517 = vunpack.c.l.b16 %v5778
        %v6518 = vunpack.c.l.b16 %v5779
        %v6519 = vunpack.c.h.b16 %v5779
        %v6520 = vunpack.c.l.b16 %v5780
        %v6521 = vunpack.c.l.b16 %v5781
        %v6522 = vunpack.c.h.b16 %v5781
        %v6523 = vunpack.c.l.b16 %v5782
        %v6524 = vunpack.c.l.b16 %v5783
        %v6525 = vunpack.c.h.b16 %v5783
        %v6526 = vunpack.c.l.b16 %v5784
        %v6527 = vunpack.c.l.b16 %v5785
        %v6528 = vunpack.c.h.b16 %v5785
        %v6529 = vunpack.c.l.b16 %v5786
        %v6530 = vunpack.c.l.b16 %v5787
        %v6531 = vunpack.c.h.b16 %v5787
        %v6532 = vunpack.c.l.b16 %v5788
        %v6533 = vunpack.c.l.b16 %v5789
        %v6534 = vunpack.c.h.b16 %v5789
        %v6535 = vunpack.c.l.b16 %v5790
        %v6536 = vunpack.c.l.b16 %v5791
        %v6537 = vunpack.c.h.b16 %v5791
        %v6538 = vunpack.c.l.b16 %v5792
        %v6539 = vunpack.c.l.b16 %v5793
        %v6540 = vunpack.c.h.b16 %v5793
        %v6541 = vunpack.c.l.b16 %v5794
        %v6542 = vunpack.c.l.b16 %v5795
        %v6543 = vunpack.c.h.b16 %v5795
        %v6544 = vunpack.c.l.b16 %v5796
        %v6545 = vunpack.c.l.b16 %v5797
        %v6546 = vunpack.c.h.b16 %v5797
        %v6547 = vunpack.c.l.b16 %v5798
        %v6548 = vunpack.c.l.b16 %v5799
        %v6549 = vunpack.c.h.b16 %v5799
        %v6550 = vunpack.c.l.b16 %v5800
        %v6551 = vunpack.c.l.b16 %v5801
        %v6552 = vunpack.c.h.b16 %v5801
        %v6553 = vunpack.c.l.b16 %v5802
        %v6554 = vunpack.c.l.b16 %v5803
        %v6555 = vunpack.c.h.b16 %v5803
        %v6556 = vunpack.c.l.b16 %v5804
        %v6557 = vunpack.c.l.b16 %v5805
        %v6558 = vunpack.c.h.b16 %v5805
        %v6559 = vunpack.c.l.b16 %v5806
        %v6560 = vunpack.c.l.b16 %v5807
        %v6561 = vunpack.c.h.b16 %v5807
        %v6562 = vunpack.c.l.b16 %v5808
        %v6563 = vpack.c.b16 %v6518, %v6515
        %v6564 = vpack.c.b16 %v6519, %v6516
        %v6565 = vpack.c.b16 %v6520, %v6517
        %v6566 = vpack.c.b16 %v6524, %v6521
        %v6567 = vpack.c.b16 %v6525, %v6522
        %v6568 = vpack.c.b16 %v6526, %v6523
        %v6569 = vpack.c.b16 %v6530, %v6527
        %v6570 = vpack.c.b16 %v6531, %v6528
        %v6571 = vpack.c.b16 %v6532, %v6529
        %v6572 = vpack.c.b16 %v6536, %v6533
        %v6573 = vpack.c.b16 %v6537, %v6534
        %v6574 = vpack.c.b16 %v6538, %v6535
        %v6575 = vpack.c.b16 %v6542, %v6539
        %v6576 = vpack.c.b16 %v6543, %v6540
        %v6577 = vpack.c.b16 %v6544, %v6541
        %v6578 = vpack.c.b16 %v6548, %v6545
        %v6579 = vpack.c.b16 %v6549, %v6546
        %v6580 = vpack.c.b16 %v6550, %v6547
        %v6581 = vpack.c.b16 %v6554, %v6551
        %v6582 = vpack.c.b16 %v6555, %v6552
        %v6583 = vpack.c.b16 %v6556, %v6553
        %v6584 = vpack.c.b16 %v6560, %v6557
        %v6585 = vpack.c.b16 %v6561, %v6558
        %v6586 = vpack.c.b16 %v6562, %v6559
        %6611 = vmatprep.subr.bf16.mxu0 %v6564
        %6612 = vmatpush1.bf16.msra.mxu0 %v6563
        %6613 = vmatprep.subr.bf16.mxu0 %v6567
        %6614 = vmatpush1.bf16.msra.mxu0 %v6566
        %6615 = vmatprep.subr.bf16.mxu0 %v6570
        %6616 = vmatpush1.bf16.msra.mxu0 %v6569
        %6617 = vmatprep.subr.bf16.mxu0 %v6573
        %6618 = vmatpush1.bf16.msra.mxu0 %v6572
        %6619 = vmatprep.subr.bf16.mxu0 %v6576
        %6620 = vmatpush1.bf16.msra.mxu0 %v6575
        %6621 = vmatprep.subr.bf16.mxu0 %v6579
        %6622 = vmatpush1.bf16.msra.mxu0 %v6578
        %6623 = vmatprep.subr.bf16.mxu0 %v6582
        %6624 = vmatpush1.bf16.msra.mxu0 %v6581
        %6625 = vmatprep.subr.bf16.mxu0 %v6585
        %6626 = vmatpush1.bf16.msra.mxu0 %v6584
        %6627 = vmatprep.subr.bf16.mxu0 0
        %6628 = vmatpush1.bf16.msra.mxu0 0
        %6629 = vmatprep.subr.bf16.mxu0 0
        %6630 = vmatpush1.bf16.msra.mxu0 0
        %6631 = vmatprep.subr.bf16.mxu0 0
        %6632 = vmatpush1.bf16.msra.mxu0 0
        %6633 = vmatprep.subr.bf16.mxu0 0
        %6634 = vmatpush1.bf16.msra.mxu0 0
        %6635 = vmatprep.subr.bf16.mxu0 0
        %6636 = vmatpush1.bf16.msra.mxu0 0
        %6637 = vmatprep.subr.bf16.mxu0 0
        %6638 = vmatpush1.bf16.msra.mxu0 0
        %6639 = vmatprep.subr.bf16.mxu0 0
        %6640 = vmatpush1.bf16.msra.mxu0 0
        %6641 = vmatprep.subr.bf16.mxu0 0
        %6642 = vmatpush1.bf16.msra.mxu0 0
        %6643 = vmatprep.mubr.bf16.mxu0 0
        %6644 = vmatmul.mubr.bf16.gmra.mrb[0].mxu0 %v5750
        %v6645 = vpop.f32.mrb[0].mxu0
        %v6646 = vadd.f32 %v6032, %v6645
        %v6647 = vpop.f32.mrb[0].mxu0
        %v6648 = vadd.f32 %v6034, %v6647
        %v6649 = vpop.f32.mrb[0].mxu0
        %v6650 = vadd.f32 %v6036, %v6649
        %v6651 = vpop.f32.mrb[0].mxu0
        %v6652 = vadd.f32 %v6038, %v6651
        %6653 = vmatprep.mubr.bf16.mxu0 0
        %6654 = vmatmul.mubr.bf16.gmra.mrb[0].mxu0 %v5751
        %v6655 = vpop.f32.mrb[0].mxu0
        %v6656 = vpop.f32.mrb[0].mxu0
        %v6657 = vpop.f32.mrb[0].mxu0
        %v6658 = vadd.f32 %v6044, %v6657
        %v6659 = vpop.f32.mrb[0].mxu0
        %v6660 = vadd.f32 %v6046, %v6659
        %6661 = vmatprep.mubr.bf16.mxu0 0
        %6662 = vmatmul.mubr.bf16.gmra.mrb[0].mxu0 %v5752
        %v6663 = vpop.f32.mrb[0].mxu0
        %v6664 = vadd.f32 %v6050, %v6663
        %v6665 = vpop.f32.mrb[0].mxu0
        %v6666 = vadd.f32 %v6052, %v6665
        %v6667 = vpop.f32.mrb[0].mxu0
        %v6668 = vpop.f32.mrb[0].mxu0
        %6669 = vmatprep.mubr.bf16.mxu0 0
        %6670 = vmatmul.mubr.bf16.gmra.mrb[0].mxu0 %v5753
        %v6671 = vpop.f32.mrb[0].mxu0
        %v6672 = vadd.f32 %v6058, %v6671
        %v6673 = vpop.f32.mrb[0].mxu0
        %v6674 = vadd.f32 %v6060, %v6673
        %v6675 = vpop.f32.mrb[0].mxu0
        %v6676 = vadd.f32 %v6062, %v6675
        %v6677 = vpop.f32.mrb[0].mxu0
        %v6678 = vadd.f32 %v6064, %v6677
        %6679 = vmatprep.mubr.bf16.mxu0 0
        %6680 = vmatmul.mubr.bf16.gmra.mrb[0].mxu0 %v5754
        %v6681 = vpop.f32.mrb[0].mxu0
        %v6682 = vpop.f32.mrb[0].mxu0
        %v6683 = vpop.f32.mrb[0].mxu0
        %v6684 = vadd.f32 %v6070, %v6683
        %v6685 = vpop.f32.mrb[0].mxu0
        %v6686 = vadd.f32 %v6072, %v6685
        %6687 = vmatprep.mubr.bf16.mxu0 0
        %6688 = vmatmul.mubr.bf16.gmra.mrb[0].mxu0 %v5755
        %v6689 = vpop.f32.mrb[0].mxu0
        %v6690 = vadd.f32 %v6076, %v6689
        %v6691 = vpop.f32.mrb[0].mxu0
        %v6692 = vadd.f32 %v6078, %v6691
        %v6693 = vpop.f32.mrb[0].mxu0
        %v6694 = vpop.f32.mrb[0].mxu0
        %6695 = vmatprep.mubr.bf16.mxu0 0
        %6696 = vmatmul.mubr.bf16.gmra.mrb[0].mxu0 %v5756
        %v6697 = vpop.f32.mrb[0].mxu0
        %v6698 = vadd.f32 %v6084, %v6697
        %v6699 = vpop.f32.mrb[0].mxu0
        %v6700 = vadd.f32 %v6086, %v6699
        %v6701 = vpop.f32.mrb[0].mxu0
        %v6702 = vadd.f32 %v6088, %v6701
        %v6703 = vpop.f32.mrb[0].mxu0
        %v6704 = vadd.f32 %v6090, %v6703
        %6705 = vmatprep.mubr.bf16.mxu0 0
        %6706 = vmatmul.mubr.bf16.gmra.mrb[0].mxu0 %v5757
        %v6707 = vpop.f32.mrb[0].mxu0
        %v6708 = vpop.f32.mrb[0].mxu0
        %v6709 = vpop.f32.mrb[0].mxu0
        %v6710 = vadd.f32 %v6096, %v6709
        %v6711 = vpop.f32.mrb[0].mxu0
        %v6712 = vadd.f32 %v6098, %v6711
        %6713 = vmatprep.mubr.bf16.mxu0 0
        %6714 = vmatmul.mubr.bf16.gmra.mrb[0].mxu0 %v5758
        %v6715 = vpop.f32.mrb[0].mxu0
        %v6716 = vadd.f32 %v6102, %v6715
        %v6717 = vpop.f32.mrb[0].mxu0
        %v6718 = vadd.f32 %v6104, %v6717
        %v6719 = vpop.f32.mrb[0].mxu0
        %v6720 = vpop.f32.mrb[0].mxu0
        %6721 = vmatprep.mubr.bf16.mxu0 0
        %6722 = vmatmul.mubr.bf16.gmra.mrb[0].mxu0 %v5759
        %v6723 = vpop.f32.mrb[0].mxu0
        %v6724 = vadd.f32 %v6110, %v6723
        %v6725 = vpop.f32.mrb[0].mxu0
        %v6726 = vadd.f32 %v6112, %v6725
        %v6727 = vpop.f32.mrb[0].mxu0
        %v6728 = vadd.f32 %v6114, %v6727
        %v6729 = vpop.f32.mrb[0].mxu0
        %v6730 = vadd.f32 %v6116, %v6729
        %6731 = vmatprep.mubr.bf16.mxu0 0
        %6732 = vmatmul.mubr.bf16.gmra.mrb[0].mxu0 %v5760
        %v6733 = vpop.f32.mrb[0].mxu0
        %v6734 = vpop.f32.mrb[0].mxu0
        %v6735 = vpop.f32.mrb[0].mxu0
        %v6736 = vadd.f32 %v6122, %v6735
        %v6737 = vpop.f32.mrb[0].mxu0
        %v6738 = vadd.f32 %v6124, %v6737
        %6739 = vmatprep.mubr.bf16.mxu0 0
        %6740 = vmatmul.mubr.bf16.gmra.mrb[0].mxu0 %v5761
        %v6741 = vpop.f32.mrb[0].mxu0
        %v6742 = vadd.f32 %v6128, %v6741
        %v6743 = vpop.f32.mrb[0].mxu0
        %v6744 = vadd.f32 %v6130, %v6743
        %v6745 = vpop.f32.mrb[0].mxu0
        %v6746 = vpop.f32.mrb[0].mxu0
        %6747 = vmatprep.mubr.bf16.mxu0 0
        %6748 = vmatmul.mubr.bf16.gmra.mrb[0].mxu0 %v5762
        %v6749 = vpop.f32.mrb[0].mxu0
        %v6750 = vadd.f32 %v6136, %v6749
        %v6751 = vpop.f32.mrb[0].mxu0
        %v6752 = vadd.f32 %v6138, %v6751
        %v6753 = vpop.f32.mrb[0].mxu0
        %v6754 = vadd.f32 %v6140, %v6753
        %v6755 = vpop.f32.mrb[0].mxu0
        %v6756 = vadd.f32 %v6142, %v6755
        %6757 = vmatprep.mubr.bf16.mxu0 0
        %6758 = vmatmul.mubr.bf16.gmra.mrb[0].mxu0 %v5763
        %v6759 = vpop.f32.mrb[0].mxu0
        %v6760 = vpop.f32.mrb[0].mxu0
        %v6761 = vpop.f32.mrb[0].mxu0
        %v6762 = vadd.f32 %v6148, %v6761
        %v6763 = vpop.f32.mrb[0].mxu0
        %v6764 = vadd.f32 %v6150, %v6763
        %6765 = vmatprep.mubr.bf16.mxu0 0
        %6766 = vmatmul.mubr.bf16.gmra.mrb[0].mxu0 %v5764
        %v6767 = vpop.f32.mrb[0].mxu0
        %v6768 = vadd.f32 %v6154, %v6767
        %v6769 = vpop.f32.mrb[0].mxu0
        %v6770 = vadd.f32 %v6156, %v6769
        %v6771 = vpop.f32.mrb[0].mxu0
        %v6772 = vpop.f32.mrb[0].mxu0
        %6773 = vmatprep.mubr.bf16.mxu0 0
        %6774 = vmatmul.mubr.bf16.gmra.mrb[0].mxu0 %v5765
        %v6775 = vpop.f32.mrb[0].mxu0
        %v6776 = vadd.f32 %v6162, %v6775
        %v6777 = vpop.f32.mrb[0].mxu0
        %v6778 = vadd.f32 %v6164, %v6777
        %v6779 = vpop.f32.mrb[0].mxu0
        %v6780 = vadd.f32 %v6166, %v6779
        %v6781 = vpop.f32.mrb[0].mxu0
        %v6782 = vadd.f32 %v6168, %v6781
        %6783 = vmatprep.mubr.bf16.mxu0 0
        %6784 = vmatmul.mubr.bf16.gmra.mrb[0].mxu0 %v5766
        %v6785 = vpop.f32.mrb[0].mxu0
        %v6786 = vpop.f32.mrb[0].mxu0
        %v6787 = vpop.f32.mrb[0].mxu0
        %v6788 = vadd.f32 %v6174, %v6787
        %v6789 = vpop.f32.mrb[0].mxu0
        %v6790 = vadd.f32 %v6176, %v6789
        %6791 = vmatprep.mubr.bf16.mxu0 0
        %6792 = vmatmul.mubr.bf16.gmra.mrb[0].mxu0 %v5767
        %v6793 = vpop.f32.mrb[0].mxu0
        %v6794 = vadd.f32 %v6180, %v6793
        %v6795 = vpop.f32.mrb[0].mxu0
        %v6796 = vadd.f32 %v6182, %v6795
        %v6797 = vpop.f32.mrb[0].mxu0
        %v6798 = vpop.f32.mrb[0].mxu0
        %6799 = vmatprep.mubr.bf16.mxu0 0
        %6800 = vmatmul.mubr.bf16.gmra.mrb[0].mxu0 %v5768
        %v6801 = vpop.f32.mrb[0].mxu0
        %v6802 = vadd.f32 %v6188, %v6801
        %v6803 = vpop.f32.mrb[0].mxu0
        %v6804 = vadd.f32 %v6190, %v6803
        %v6805 = vpop.f32.mrb[0].mxu0
        %v6806 = vadd.f32 %v6192, %v6805
        %v6807 = vpop.f32.mrb[0].mxu0
        %v6808 = vadd.f32 %v6194, %v6807
        %6809 = vmatprep.mubr.bf16.mxu0 0
        %6810 = vmatmul.mubr.bf16.gmra.mrb[0].mxu0 %v5769
        %v6811 = vpop.f32.mrb[0].mxu0
        %v6812 = vpop.f32.mrb[0].mxu0
        %v6813 = vpop.f32.mrb[0].mxu0
        %v6814 = vadd.f32 %v6200, %v6813
        %v6815 = vpop.f32.mrb[0].mxu0
        %v6816 = vadd.f32 %v6202, %v6815
        %6817 = vmatprep.mubr.bf16.mxu0 0
        %6818 = vmatmul.mubr.bf16.gmra.mrb[0].mxu0 %v5770
        %v6819 = vpop.f32.mrb[0].mxu0
        %v6820 = vadd.f32 %v6206, %v6819
        %v6821 = vpop.f32.mrb[0].mxu0
        %v6822 = vadd.f32 %v6208, %v6821
        %v6823 = vpop.f32.mrb[0].mxu0
        %v6824 = vpop.f32.mrb[0].mxu0
        %6825 = vmatprep.mubr.bf16.mxu0 0
        %6826 = vmatmul.mubr.bf16.gmra.mrb[0].mxu0 %v5771
        %v6827 = vpop.f32.mrb[0].mxu0
        %v6828 = vadd.f32 %v6214, %v6827
        %v6829 = vpop.f32.mrb[0].mxu0
        %v6830 = vadd.f32 %v6216, %v6829
        %v6831 = vpop.f32.mrb[0].mxu0
        %v6832 = vadd.f32 %v6218, %v6831
        %v6833 = vpop.f32.mrb[0].mxu0
        %v6834 = vadd.f32 %v6220, %v6833
        %6835 = vmatprep.mubr.bf16.mxu0 0
        %6836 = vmatmul.mubr.bf16.gmra.mrb[0].mxu0 %v5772
        %v6837 = vpop.f32.mrb[0].mxu0
        %v6838 = vpop.f32.mrb[0].mxu0
        %v6839 = vpop.f32.mrb[0].mxu0
        %v6840 = vpop.f32.mrb[0].mxu0
        %v6841 = vadd.f32 %v6227, %v6840
        %6842 = vmatprep.mubr.bf16.mxu0 0
        %6843 = vmatmul.mubr.bf16.gmra.mrb[0].mxu0 %v5773
        %v6844 = vpop.f32.mrb[0].mxu0
        %v6845 = vpop.f32.mrb[0].mxu0
        %v6846 = vadd.f32 %v6232, %v6845
        %v6847 = vpop.f32.mrb[0].mxu0
        %v6848 = vpop.f32.mrb[0].mxu0
        %6849 = vmatprep.mubr.bf16.mxu0 0
        %6850 = vmatmul.mubr.bf16.gmra.mrb[0].mxu0 %v5774
        %v6851 = vpop.f32.mrb[0].mxu0
        %v6852 = vpop.f32.mrb[0].mxu0
        %v6853 = vpop.f32.mrb[0].mxu0
        %v6854 = vpop.f32.mrb[0].mxu0
        %6855 = vmatprep.mubr.bf16.mxu0 0
        %6856 = vmatmul.mubr.bf16.gmra.mrb[0].mxu0 %v5775
        %v6857 = vpop.f32.mrb[0].mxu0
        %v6858 = vpop.f32.mrb[0].mxu0
        %v6859 = vpop.f32.mrb[0].mxu0
        %v6860 = vadd.f32 %v6246, %v6859
        %v6861 = vpop.f32.mrb[0].mxu0
        %6862 = vmatprep.mubr.bf16.mxu0 0
        %6863 = vmatmul.mubr.bf16.gmra.mrb[0].mxu0 %v5776
        %v6864 = vpop.f32.mrb[0].mxu0
        %v6865 = vadd.f32 %v6251, %v6864
        %v6866 = vpop.f32.mrb[0].mxu0
        %v6867 = vpop.f32.mrb[0].mxu0
        %v6868 = vpop.f32.mrb[0].mxu0
        %6869 = vdwg.mxu0
        %6870 = vmatprep.subr.bf16.mxu0 0
        %6871 = vmatpush1.bf16.msra.mxu0 %v6565
        %6872 = vmatprep.subr.bf16.mxu0 0
        %6873 = vmatpush1.bf16.msra.mxu0 %v6568
        %6874 = vmatprep.subr.bf16.mxu0 0
        %6875 = vmatpush1.bf16.msra.mxu0 %v6571
        %6876 = vmatprep.subr.bf16.mxu0 0
        %6877 = vmatpush1.bf16.msra.mxu0 %v6574
        %6878 = vmatprep.subr.bf16.mxu0 0
        %6879 = vmatpush1.bf16.msra.mxu0 %v6577
        %6880 = vmatprep.subr.bf16.mxu0 0
        %6881 = vmatpush1.bf16.msra.mxu0 %v6580
        %6882 = vmatprep.subr.bf16.mxu0 0
        %6883 = vmatpush1.bf16.msra.mxu0 %v6583
        %6884 = vmatprep.subr.bf16.mxu0 0
        %6885 = vmatpush1.bf16.msra.mxu0 %v6586
        %6886 = vmatprep.subr.bf16.mxu0 0
        %6887 = vmatpush1.bf16.msra.mxu0 0
        %6888 = vmatprep.subr.bf16.mxu0 0
        %6889 = vmatpush1.bf16.msra.mxu0 0
        %6890 = vmatprep.subr.bf16.mxu0 0
        %6891 = vmatpush1.bf16.msra.mxu0 0
        %6892 = vmatprep.subr.bf16.mxu0 0
        %6893 = vmatpush1.bf16.msra.mxu0 0
        %6894 = vmatprep.subr.bf16.mxu0 0
        %6895 = vmatpush1.bf16.msra.mxu0 0
        %6896 = vmatprep.subr.bf16.mxu0 0
        %6897 = vmatpush1.bf16.msra.mxu0 0
        %6898 = vmatprep.subr.bf16.mxu0 0
        %6899 = vmatpush1.bf16.msra.mxu0 0
        %6900 = vmatprep.subr.bf16.mxu0 0
        %6901 = vmatpush1.bf16.msra.mxu0 0
        %6902 = vmatprep.mubr.bf16.mxu0 0
        %6903 = vmatmul.mubr.bf16.gmra.mrb[0].mxu0 %v5750
        %v6904 = vpop.f32.mrb[0].mxu0
        %v6905 = vpop.f32.mrb[0].mxu0
        %v6906 = vpop.f32.mrb[0].mxu0
        %v6907 = vpop.f32.mrb[0].mxu0
        %6908 = vmatprep.mubr.bf16.mxu0 0
        %6909 = vmatmul.mubr.bf16.gmra.mrb[0].mxu0 %v5751
        %v6910 = vpop.f32.mrb[0].mxu0
        %v6911 = vpop.f32.mrb[0].mxu0
        %v6912 = vpop.f32.mrb[0].mxu0
        %v6913 = vadd.f32 %v6299, %v6912
        %v6914 = vpop.f32.mrb[0].mxu0
        %6915 = vmatprep.mubr.bf16.mxu0 0
        %6916 = vmatmul.mubr.bf16.gmra.mrb[0].mxu0 %v5752
        %v6917 = vpop.f32.mrb[0].mxu0
        %v6918 = vadd.f32 %v6304, %v6917
        %v6919 = vpop.f32.mrb[0].mxu0
        %v6920 = vpop.f32.mrb[0].mxu0
        %v6921 = vpop.f32.mrb[0].mxu0
        %6922 = vmatprep.mubr.bf16.mxu0 0
        %6923 = vmatmul.mubr.bf16.gmra.mrb[0].mxu0 %v5753
        %v6924 = vpop.f32.mrb[0].mxu0
        %v6925 = vadd.f32 %v6311, %v6924
        %v6926 = vpop.f32.mrb[0].mxu0
        %v6927 = vpop.f32.mrb[0].mxu0
        %v6928 = vadd.f32 %v6314, %v6927
        %v6929 = vpop.f32.mrb[0].mxu0
        %6930 = vmatprep.mubr.bf16.mxu0 0
        %6931 = vmatmul.mubr.bf16.gmra.mrb[0].mxu0 %v5754
        %v6932 = vpop.f32.mrb[0].mxu0
        %v6933 = vpop.f32.mrb[0].mxu0
        %v6934 = vpop.f32.mrb[0].mxu0
        %v6935 = vadd.f32 %v6321, %v6934
        %v6936 = vpop.f32.mrb[0].mxu0
        %6937 = vmatprep.mubr.bf16.mxu0 0
        %6938 = vmatmul.mubr.bf16.gmra.mrb[0].mxu0 %v5755
        %v6939 = vpop.f32.mrb[0].mxu0
        %v6940 = vadd.f32 %v6326, %v6939
        %v6941 = vpop.f32.mrb[0].mxu0
        %v6942 = vpop.f32.mrb[0].mxu0
        %v6943 = vpop.f32.mrb[0].mxu0
        %6944 = vmatprep.mubr.bf16.mxu0 0
        %6945 = vmatmul.mubr.bf16.gmra.mrb[0].mxu0 %v5756
        %v6946 = vpop.f32.mrb[0].mxu0
        %v6947 = vadd.f32 %v6333, %v6946
        %v6948 = vpop.f32.mrb[0].mxu0
        %v6949 = vpop.f32.mrb[0].mxu0
        %v6950 = vadd.f32 %v6336, %v6949
        %v6951 = vpop.f32.mrb[0].mxu0
        %6952 = vmatprep.mubr.bf16.mxu0 0
        %6953 = vmatmul.mubr.bf16.gmra.mrb[0].mxu0 %v5757
        %v6954 = vpop.f32.mrb[0].mxu0
        %v6955 = vpop.f32.mrb[0].mxu0
        %v6956 = vpop.f32.mrb[0].mxu0
        %v6957 = vadd.f32 %v6343, %v6956
        %v6958 = vpop.f32.mrb[0].mxu0
        %6959 = vmatprep.mubr.bf16.mxu0 0
        %6960 = vmatmul.mubr.bf16.gmra.mrb[0].mxu0 %v5758
        %v6961 = vpop.f32.mrb[0].mxu0
        %v6962 = vadd.f32 %v6348, %v6961
        %v6963 = vpop.f32.mrb[0].mxu0
        %v6964 = vpop.f32.mrb[0].mxu0
        %v6965 = vpop.f32.mrb[0].mxu0
        %6966 = vmatprep.mubr.bf16.mxu0 0
        %6967 = vmatmul.mubr.bf16.gmra.mrb[0].mxu0 %v5759
        %v6968 = vpop.f32.mrb[0].mxu0
        %v6969 = vadd.f32 %v6355, %v6968
        %v6970 = vpop.f32.mrb[0].mxu0
        %v6971 = vpop.f32.mrb[0].mxu0
        %v6972 = vadd.f32 %v6358, %v6971
        %v6973 = vpop.f32.mrb[0].mxu0
        %6974 = vmatprep.mubr.bf16.mxu0 0
        %6975 = vmatmul.mubr.bf16.gmra.mrb[0].mxu0 %v5760
        %v6976 = vpop.f32.mrb[0].mxu0
        %v6977 = vpop.f32.mrb[0].mxu0
        %v6978 = vpop.f32.mrb[0].mxu0
        %v6979 = vadd.f32 %v6365, %v6978
        %v6980 = vpop.f32.mrb[0].mxu0
        %6981 = vmatprep.mubr.bf16.mxu0 0
        %6982 = vmatmul.mubr.bf16.gmra.mrb[0].mxu0 %v5761
        %v6983 = vpop.f32.mrb[0].mxu0
        %v6984 = vadd.f32 %v6370, %v6983
        %v6985 = vpop.f32.mrb[0].mxu0
        %v6986 = vpop.f32.mrb[0].mxu0
        %v6987 = vpop.f32.mrb[0].mxu0
        %6988 = vmatprep.mubr.bf16.mxu0 0
        %6989 = vmatmul.mubr.bf16.gmra.mrb[0].mxu0 %v5762
        %v6990 = vpop.f32.mrb[0].mxu0
        %v6991 = vadd.f32 %v6377, %v6990
        %v6992 = vpop.f32.mrb[0].mxu0
        %v6993 = vpop.f32.mrb[0].mxu0
        %v6994 = vadd.f32 %v6380, %v6993
        %v6995 = vpop.f32.mrb[0].mxu0
        %6996 = vmatprep.mubr.bf16.mxu0 0
        %6997 = vmatmul.mubr.bf16.gmra.mrb[0].mxu0 %v5763
        %v6998 = vpop.f32.mrb[0].mxu0
        %v6999 = vpop.f32.mrb[0].mxu0
        %v7000 = vpop.f32.mrb[0].mxu0
        %v7001 = vadd.f32 %v6387, %v7000
        %v7002 = vpop.f32.mrb[0].mxu0
        %7003 = vmatprep.mubr.bf16.mxu0 0
        %7004 = vmatmul.mubr.bf16.gmra.mrb[0].mxu0 %v5764
        %v7005 = vpop.f32.mrb[0].mxu0
        %v7006 = vadd.f32 %v6392, %v7005
        %v7007 = vpop.f32.mrb[0].mxu0
        %v7008 = vpop.f32.mrb[0].mxu0
        %v7009 = vpop.f32.mrb[0].mxu0
        %7010 = vmatprep.mubr.bf16.mxu0 0
        %7011 = vmatmul.mubr.bf16.gmra.mrb[0].mxu0 %v5765
        %v7012 = vpop.f32.mrb[0].mxu0
        %v7013 = vadd.f32 %v6399, %v7012
        %v7014 = vpop.f32.mrb[0].mxu0
        %v7015 = vpop.f32.mrb[0].mxu0
        %v7016 = vadd.f32 %v6402, %v7015
        %v7017 = vpop.f32.mrb[0].mxu0
        %7018 = vmatprep.mubr.bf16.mxu0 0
        %7019 = vmatmul.mubr.bf16.gmra.mrb[0].mxu0 %v5766
        %v7020 = vpop.f32.mrb[0].mxu0
        %v7021 = vpop.f32.mrb[0].mxu0
        %v7022 = vpop.f32.mrb[0].mxu0
        %v7023 = vadd.f32 %v6409, %v7022
        %v7024 = vpop.f32.mrb[0].mxu0
        %7025 = vmatprep.mubr.bf16.mxu0 0
        %7026 = vmatmul.mubr.bf16.gmra.mrb[0].mxu0 %v5767
        %v7027 = vpop.f32.mrb[0].mxu0
        %v7028 = vadd.f32 %v6414, %v7027
        %v7029 = vpop.f32.mrb[0].mxu0
        %v7030 = vpop.f32.mrb[0].mxu0
        %v7031 = vpop.f32.mrb[0].mxu0
        %7032 = vmatprep.mubr.bf16.mxu0 0
        %7033 = vmatmul.mubr.bf16.gmra.mrb[0].mxu0 %v5768
        %v7034 = vpop.f32.mrb[0].mxu0
        %v7035 = vadd.f32 %v6421, %v7034
        %v7036 = vpop.f32.mrb[0].mxu0
        %v7037 = vpop.f32.mrb[0].mxu0
        %v7038 = vadd.f32 %v6424, %v7037
        %v7039 = vpop.f32.mrb[0].mxu0
        %7040 = vmatprep.mubr.bf16.mxu0 0
        %7041 = vmatmul.mubr.bf16.gmra.mrb[0].mxu0 %v5769
        %v7042 = vpop.f32.mrb[0].mxu0
        %v7043 = vpop.f32.mrb[0].mxu0
        %v7044 = vpop.f32.mrb[0].mxu0
        %v7045 = vadd.f32 %v6431, %v7044
        %v7046 = vpop.f32.mrb[0].mxu0
        %7047 = vmatprep.mubr.bf16.mxu0 0
        %7048 = vmatmul.mubr.bf16.gmra.mrb[0].mxu0 %v5770
        %v7049 = vpop.f32.mrb[0].mxu0
        %v7050 = vadd.f32 %v6436, %v7049
        %v7051 = vpop.f32.mrb[0].mxu0
        %v7052 = vpop.f32.mrb[0].mxu0
        %v7053 = vpop.f32.mrb[0].mxu0
        %7054 = vmatprep.mubr.bf16.mxu0 0
        %7055 = vmatmul.mubr.bf16.gmra.mrb[0].mxu0 %v5771
        %v7056 = vpop.f32.mrb[0].mxu0
        %v7057 = vadd.f32 %v6443, %v7056
        %v7058 = vpop.f32.mrb[0].mxu0
        %v7059 = vpop.f32.mrb[0].mxu0
        %v7060 = vadd.f32 %v6446, %v7059
        %v7061 = vpop.f32.mrb[0].mxu0
        %7062 = vmatprep.mubr.bf16.mxu0 0
        %7063 = vmatmul.mubr.bf16.gmra.mrb[0].mxu0 %v5772
        %v7064 = vpop.f32.mrb[0].mxu0
        %v7065 = vpop.f32.mrb[0].mxu0
        %v7066 = vpop.f32.mrb[0].mxu0
        %v7067 = vadd.f32 %v6453, %v7066
        %v7068 = vpop.f32.mrb[0].mxu0
        %7069 = vmatprep.mubr.bf16.mxu0 0
        %7070 = vmatmul.mubr.bf16.gmra.mrb[0].mxu0 %v5773
        %v7071 = vpop.f32.mrb[0].mxu0
        %v7072 = vadd.f32 %v6458, %v7071
        %v7073 = vpop.f32.mrb[0].mxu0
        %v7074 = vpop.f32.mrb[0].mxu0
        %v7075 = vpop.f32.mrb[0].mxu0
        %7076 = vmatprep.mubr.bf16.mxu0 0
        %7077 = vmatmul.mubr.bf16.gmra.mrb[0].mxu0 %v5774
        %v7078 = vpop.f32.mrb[0].mxu0
        %v7079 = vadd.f32 %v6465, %v7078
        %v7080 = vpop.f32.mrb[0].mxu0
        %v7081 = vpop.f32.mrb[0].mxu0
        %v7082 = vadd.f32 %v6468, %v7081
        %v7083 = vpop.f32.mrb[0].mxu0
        %7084 = vmatprep.mubr.bf16.mxu0 0
        %7085 = vmatmul.mubr.bf16.gmra.mrb[0].mxu0 %v5775
        %v7086 = vpop.f32.mrb[0].mxu0
        %v7087 = vpop.f32.mrb[0].mxu0
        %v7088 = vpop.f32.mrb[0].mxu0
        %v7089 = vpop.f32.mrb[0].mxu0
        %7090 = vmatprep.mubr.bf16.mxu0 0
        %7091 = vmatmul.mubr.bf16.gmra.mrb[0].mxu0 %v5776
        %v7092 = vpop.f32.mrb[0].mxu0
        %v7093 = vpop.f32.mrb[0].mxu0
        %v7094 = vpop.f32.mrb[0].mxu0
        %v7095 = vpop.f32.mrb[0].mxu0
        %7096 = vdwg.mxu0
        %v7097 = vpack.c.bf16 %v5747, %v5748
        %v7098 = vpack.c.bf16 %v5745, %v5746
        %v7099 = vpack.c.bf16 %v5743, %v5744
        %v7100 = vpack.c.bf16 %v5741, %v5742
        %v7101 = vpack.c.bf16 %v5739, %v5740
        %v7102 = vpack.c.bf16 %v5737, %v5738
        %v7103 = vpack.c.bf16 %v5735, %v5736
        %v7104 = vpack.c.bf16 %v5733, %v5734
        %v7105 = vpack.c.bf16 %v5731, %v5732
        %v7106 = vpack.c.bf16 %v5729, %v5730
        %v7107 = vpack.c.bf16 %v5727, %v5728
        %v7108 = vpack.c.bf16 %v5725, %v5726
        %v7109 = vpack.c.bf16 %v5723, %v5724
        %v7110 = vpack.c.bf16 %v5721, %v5722
        %v7111 = vpack.c.bf16 %v5719, %v5720
        %v7112 = vpack.c.bf16 %v5717, %v5718
        %v7113 = vpack.c.bf16 %v5715, %v5716
        %v7114 = vpack.c.bf16 %v5713, %v5714
        %v7115 = vpack.c.bf16 %v5711, %v5712
        %v7116 = vpack.c.bf16 %v5709, %v5710
        %v7117 = vpack.c.bf16 %v5707, %v5708
        %v7118 = vpack.c.bf16 %v5705, %v5706
        %v7119 = vpack.c.bf16 %v5703, %v5704
        %v7120 = vpack.c.bf16 %v5701, %v5702
        %v7121 = vpack.c.bf16 %v5699, %v5700
        %v7122 = vpack.c.bf16 %v5697, %v5698
        %v7123 = vpack.c.bf16 %v5749, %v5696
        %s7124 = scalar_lea.vmem [#allocation14], 384
        %v7125 = vld [vmem:[%s7124] sm:$0xff]
        %v7126 = vld [vmem:[%s7124 + $0x8] sm:$0xf]
        %v7127 = vld [vmem:[%s7124 + $0xc] sm:$0xff]
        %v7128 = vld [vmem:[%s7124 + $0x14] sm:$0xf]
        %v7129 = vld [vmem:[%s7124 + $0x18] sm:$0xff]
        %v7130 = vld [vmem:[%s7124 + $0x20] sm:$0xf]
        %v7131 = vld [vmem:[%s7124 + $0x24] sm:$0xff]
        %v7132 = vld [vmem:[%s7124 + $0x2c] sm:$0xf]
        %v7133 = vld [vmem:[%s7124 + $0x30] sm:$0xff]
        %v7134 = vld [vmem:[%s7124 + $0x38] sm:$0xf]
        %v7135 = vld [vmem:[%s7124 + $0x3c] sm:$0xff]
        %v7136 = vld [vmem:[%s7124 + $0x44] sm:$0xf]
        %v7137 = vld [vmem:[%s7124 + $0x48] sm:$0xff]
        %v7138 = vld [vmem:[%s7124 + $0x50] sm:$0xf]
        %v7139 = vld [vmem:[%s7124 + $0x54] sm:$0xff]
        %v7140 = vld [vmem:[%s7124 + $0x5c] sm:$0xf]
        %v7141 = vld [vmem:[%s7124 + $0x60] sm:$0xff]
        %v7142 = vld [vmem:[%s7124 + $0x68] sm:$0xf]
        %v7143 = vld [vmem:[%s7124 + $0x6c] sm:$0xff]
        %v7144 = vld [vmem:[%s7124 + $0x74] sm:$0xf]
        %v7145 = vld [vmem:[%s7124 + $0x78] sm:$0xff]
        %v7146 = vld [vmem:[%s7124 + $0x80] sm:$0xf]
        %v7147 = vld [vmem:[%s7124 + $0x84] sm:$0xff]
        %v7148 = vld [vmem:[%s7124 + $0x8c] sm:$0xf]
        %v7149 = vld [vmem:[%s7124 + $0x90] sm:$0xff]
        %v7150 = vld [vmem:[%s7124 + $0x98] sm:$0xf]
        %v7151 = vld [vmem:[%s7124 + $0x9c] sm:$0xff]
        %v7152 = vld [vmem:[%s7124 + $0xa4] sm:$0xf]
        %v7153 = vld [vmem:[%s7124 + $0xa8] sm:$0xff]
        %v7154 = vld [vmem:[%s7124 + $0xb0] sm:$0xf]
        %v7155 = vld [vmem:[%s7124 + $0xb4] sm:$0xff]
        %v7156 = vld [vmem:[%s7124 + $0xbc] sm:$0xf]
        %v7189 = vunpack.c.l.b16 %v7125
        %v7190 = vunpack.c.h.b16 %v7125
        %v7191 = vunpack.c.l.b16 %v7126
        %v7192 = vunpack.c.l.b16 %v7127
        %v7193 = vunpack.c.h.b16 %v7127
        %v7194 = vunpack.c.l.b16 %v7128
        %v7195 = vunpack.c.l.b16 %v7129
        %v7196 = vunpack.c.h.b16 %v7129
        %v7197 = vunpack.c.l.b16 %v7130
        %v7198 = vunpack.c.l.b16 %v7131
        %v7199 = vunpack.c.h.b16 %v7131
        %v7200 = vunpack.c.l.b16 %v7132
        %v7201 = vunpack.c.l.b16 %v7133
        %v7202 = vunpack.c.h.b16 %v7133
        %v7203 = vunpack.c.l.b16 %v7134
        %v7204 = vunpack.c.l.b16 %v7135
        %v7205 = vunpack.c.h.b16 %v7135
        %v7206 = vunpack.c.l.b16 %v7136
        %v7207 = vunpack.c.l.b16 %v7137
        %v7208 = vunpack.c.h.b16 %v7137
        %v7209 = vunpack.c.l.b16 %v7138
        %v7210 = vunpack.c.l.b16 %v7139
        %v7211 = vunpack.c.h.b16 %v7139
        %v7212 = vunpack.c.l.b16 %v7140
        %v7213 = vunpack.c.l.b16 %v7141
        %v7214 = vunpack.c.h.b16 %v7141
        %v7215 = vunpack.c.l.b16 %v7142
        %v7216 = vunpack.c.l.b16 %v7143
        %v7217 = vunpack.c.h.b16 %v7143
        %v7218 = vunpack.c.l.b16 %v7144
        %v7219 = vunpack.c.l.b16 %v7145
        %v7220 = vunpack.c.h.b16 %v7145
        %v7221 = vunpack.c.l.b16 %v7146
        %v7222 = vunpack.c.l.b16 %v7147
        %v7223 = vunpack.c.h.b16 %v7147
        %v7224 = vunpack.c.l.b16 %v7148
        %v7225 = vunpack.c.l.b16 %v7149
        %v7226 = vunpack.c.h.b16 %v7149
        %v7227 = vunpack.c.l.b16 %v7150
        %v7228 = vunpack.c.l.b16 %v7151
        %v7229 = vunpack.c.h.b16 %v7151
        %v7230 = vunpack.c.l.b16 %v7152
        %v7231 = vunpack.c.l.b16 %v7153
        %v7232 = vunpack.c.h.b16 %v7153
        %v7233 = vunpack.c.l.b16 %v7154
        %v7234 = vunpack.c.l.b16 %v7155
        %v7235 = vunpack.c.h.b16 %v7155
        %v7236 = vunpack.c.l.b16 %v7156
        %v7237 = vpack.c.b16 %v7192, %v7189
        %v7238 = vpack.c.b16 %v7193, %v7190
        %v7239 = vpack.c.b16 %v7194, %v7191
        %v7240 = vpack.c.b16 %v7198, %v7195
        %v7241 = vpack.c.b16 %v7199, %v7196
        %v7242 = vpack.c.b16 %v7200, %v7197
        %v7243 = vpack.c.b16 %v7204, %v7201
        %v7244 = vpack.c.b16 %v7205, %v7202
        %v7245 = vpack.c.b16 %v7206, %v7203
        %v7246 = vpack.c.b16 %v7210, %v7207
        %v7247 = vpack.c.b16 %v7211, %v7208
        %v7248 = vpack.c.b16 %v7212, %v7209
        %v7249 = vpack.c.b16 %v7216, %v7213
        %v7250 = vpack.c.b16 %v7217, %v7214
        %v7251 = vpack.c.b16 %v7218, %v7215
        %v7252 = vpack.c.b16 %v7222, %v7219
        %v7253 = vpack.c.b16 %v7223, %v7220
        %v7254 = vpack.c.b16 %v7224, %v7221
        %v7255 = vpack.c.b16 %v7228, %v7225
        %v7256 = vpack.c.b16 %v7229, %v7226
        %v7257 = vpack.c.b16 %v7230, %v7227
        %v7258 = vpack.c.b16 %v7234, %v7231
        %v7259 = vpack.c.b16 %v7235, %v7232
        %v7260 = vpack.c.b16 %v7236, %v7233
        %7285 = vmatprep.subr.bf16.mxu0 %v7238
        %7286 = vmatpush1.bf16.msra.mxu0 %v7237
        %7287 = vmatprep.subr.bf16.mxu0 %v7241
        %7288 = vmatpush1.bf16.msra.mxu0 %v7240
        %7289 = vmatprep.subr.bf16.mxu0 %v7244
        %7290 = vmatpush1.bf16.msra.mxu0 %v7243
        %7291 = vmatprep.subr.bf16.mxu0 %v7247
        %7292 = vmatpush1.bf16.msra.mxu0 %v7246
        %7293 = vmatprep.subr.bf16.mxu0 %v7250
        %7294 = vmatpush1.bf16.msra.mxu0 %v7249
        %7295 = vmatprep.subr.bf16.mxu0 %v7253
        %7296 = vmatpush1.bf16.msra.mxu0 %v7252
        %7297 = vmatprep.subr.bf16.mxu0 %v7256
        %7298 = vmatpush1.bf16.msra.mxu0 %v7255
        %7299 = vmatprep.subr.bf16.mxu0 %v7259
        %7300 = vmatpush1.bf16.msra.mxu0 %v7258
        %7301 = vmatprep.subr.bf16.mxu0 0
        %7302 = vmatpush1.bf16.msra.mxu0 0
        %7303 = vmatprep.subr.bf16.mxu0 0
        %7304 = vmatpush1.bf16.msra.mxu0 0
        %7305 = vmatprep.subr.bf16.mxu0 0
        %7306 = vmatpush1.bf16.msra.mxu0 0
        %7307 = vmatprep.subr.bf16.mxu0 0
        %7308 = vmatpush1.bf16.msra.mxu0 0
        %7309 = vmatprep.subr.bf16.mxu0 0
        %7310 = vmatpush1.bf16.msra.mxu0 0
        %7311 = vmatprep.subr.bf16.mxu0 0
        %7312 = vmatpush1.bf16.msra.mxu0 0
        %7313 = vmatprep.subr.bf16.mxu0 0
        %7314 = vmatpush1.bf16.msra.mxu0 0
        %7315 = vmatprep.subr.bf16.mxu0 0
        %7316 = vmatpush1.bf16.msra.mxu0 0
        %7317 = vmatprep.mubr.bf16.mxu0 0
        %7318 = vmatmul.mubr.bf16.gmra.mrb[0].mxu0 %v7097
        %v7319 = vpop.f32.mrb[0].mxu0
        %v7320 = vadd.f32 0.0, %v7319
        %v7321 = vpop.f32.mrb[0].mxu0
        %v7322 = vadd.f32 0.0, %v7321
        %v7323 = vpop.f32.mrb[0].mxu0
        %v7324 = vadd.f32 0.0, %v7323
        %v7325 = vpop.f32.mrb[0].mxu0
        %v7326 = vadd.f32 0.0, %v7325
        %7327 = vmatprep.mubr.bf16.mxu0 0
        %7328 = vmatmul.mubr.bf16.gmra.mrb[0].mxu0 %v7098
        %v7329 = vpop.f32.mrb[0].mxu0
        %v7330 = vpop.f32.mrb[0].mxu0
        %v7331 = vpop.f32.mrb[0].mxu0
        %v7332 = vadd.f32 0.0, %v7331
        %v7333 = vpop.f32.mrb[0].mxu0
        %v7334 = vadd.f32 0.0, %v7333
        %7335 = vmatprep.mubr.bf16.mxu0 0
        %7336 = vmatmul.mubr.bf16.gmra.mrb[0].mxu0 %v7099
        %v7337 = vpop.f32.mrb[0].mxu0
        %v7338 = vadd.f32 0.0, %v7337
        %v7339 = vpop.f32.mrb[0].mxu0
        %v7340 = vadd.f32 0.0, %v7339
        %v7341 = vpop.f32.mrb[0].mxu0
        %v7342 = vpop.f32.mrb[0].mxu0
        %7343 = vmatprep.mubr.bf16.mxu0 0
        %7344 = vmatmul.mubr.bf16.gmra.mrb[0].mxu0 %v7100
        %v7345 = vpop.f32.mrb[0].mxu0
        %v7346 = vadd.f32 0.0, %v7345
        %v7347 = vpop.f32.mrb[0].mxu0
        %v7348 = vadd.f32 0.0, %v7347
        %v7349 = vpop.f32.mrb[0].mxu0
        %v7350 = vadd.f32 0.0, %v7349
        %v7351 = vpop.f32.mrb[0].mxu0
        %v7352 = vadd.f32 0.0, %v7351
        %7353 = vmatprep.mubr.bf16.mxu0 0
        %7354 = vmatmul.mubr.bf16.gmra.mrb[0].mxu0 %v7101
        %v7355 = vpop.f32.mrb[0].mxu0
        %v7356 = vpop.f32.mrb[0].mxu0
        %v7357 = vpop.f32.mrb[0].mxu0
        %v7358 = vadd.f32 0.0, %v7357
        %v7359 = vpop.f32.mrb[0].mxu0
        %v7360 = vadd.f32 0.0, %v7359
        %7361 = vmatprep.mubr.bf16.mxu0 0
        %7362 = vmatmul.mubr.bf16.gmra.mrb[0].mxu0 %v7102
        %v7363 = vpop.f32.mrb[0].mxu0
        %v7364 = vadd.f32 0.0, %v7363
        %v7365 = vpop.f32.mrb[0].mxu0
        %v7366 = vadd.f32 0.0, %v7365
        %v7367 = vpop.f32.mrb[0].mxu0
        %v7368 = vpop.f32.mrb[0].mxu0
        %7369 = vmatprep.mubr.bf16.mxu0 0
        %7370 = vmatmul.mubr.bf16.gmra.mrb[0].mxu0 %v7103
        %v7371 = vpop.f32.mrb[0].mxu0
        %v7372 = vadd.f32 0.0, %v7371
        %v7373 = vpop.f32.mrb[0].mxu0
        %v7374 = vadd.f32 0.0, %v7373
        %v7375 = vpop.f32.mrb[0].mxu0
        %v7376 = vadd.f32 0.0, %v7375
        %v7377 = vpop.f32.mrb[0].mxu0
        %v7378 = vadd.f32 0.0, %v7377
        %7379 = vmatprep.mubr.bf16.mxu0 0
        %7380 = vmatmul.mubr.bf16.gmra.mrb[0].mxu0 %v7104
        %v7381 = vpop.f32.mrb[0].mxu0
        %v7382 = vpop.f32.mrb[0].mxu0
        %v7383 = vpop.f32.mrb[0].mxu0
        %v7384 = vadd.f32 0.0, %v7383
        %v7385 = vpop.f32.mrb[0].mxu0
        %v7386 = vadd.f32 0.0, %v7385
        %7387 = vmatprep.mubr.bf16.mxu0 0
        %7388 = vmatmul.mubr.bf16.gmra.mrb[0].mxu0 %v7105
        %v7389 = vpop.f32.mrb[0].mxu0
        %v7390 = vadd.f32 0.0, %v7389
        %v7391 = vpop.f32.mrb[0].mxu0
        %v7392 = vadd.f32 0.0, %v7391
        %v7393 = vpop.f32.mrb[0].mxu0
        %v7394 = vpop.f32.mrb[0].mxu0
        %7395 = vmatprep.mubr.bf16.mxu0 0
        %7396 = vmatmul.mubr.bf16.gmra.mrb[0].mxu0 %v7106
        %v7397 = vpop.f32.mrb[0].mxu0
        %v7398 = vadd.f32 0.0, %v7397
        %v7399 = vpop.f32.mrb[0].mxu0
        %v7400 = vadd.f32 0.0, %v7399
        %v7401 = vpop.f32.mrb[0].mxu0
        %v7402 = vadd.f32 0.0, %v7401
        %v7403 = vpop.f32.mrb[0].mxu0
        %v7404 = vadd.f32 0.0, %v7403
        %7405 = vmatprep.mubr.bf16.mxu0 0
        %7406 = vmatmul.mubr.bf16.gmra.mrb[0].mxu0 %v7107
        %v7407 = vpop.f32.mrb[0].mxu0
        %v7408 = vpop.f32.mrb[0].mxu0
        %v7409 = vpop.f32.mrb[0].mxu0
        %v7410 = vadd.f32 0.0, %v7409
        %v7411 = vpop.f32.mrb[0].mxu0
        %v7412 = vadd.f32 0.0, %v7411
        %7413 = vmatprep.mubr.bf16.mxu0 0
        %7414 = vmatmul.mubr.bf16.gmra.mrb[0].mxu0 %v7108
        %v7415 = vpop.f32.mrb[0].mxu0
        %v7416 = vadd.f32 0.0, %v7415
        %v7417 = vpop.f32.mrb[0].mxu0
        %v7418 = vadd.f32 0.0, %v7417
        %v7419 = vpop.f32.mrb[0].mxu0
        %v7420 = vpop.f32.mrb[0].mxu0
        %7421 = vmatprep.mubr.bf16.mxu0 0
        %7422 = vmatmul.mubr.bf16.gmra.mrb[0].mxu0 %v7109
        %v7423 = vpop.f32.mrb[0].mxu0
        %v7424 = vadd.f32 0.0, %v7423
        %v7425 = vpop.f32.mrb[0].mxu0
        %v7426 = vadd.f32 0.0, %v7425
        %v7427 = vpop.f32.mrb[0].mxu0
        %v7428 = vadd.f32 0.0, %v7427
        %v7429 = vpop.f32.mrb[0].mxu0
        %v7430 = vadd.f32 0.0, %v7429
        %7431 = vmatprep.mubr.bf16.mxu0 0
        %7432 = vmatmul.mubr.bf16.gmra.mrb[0].mxu0 %v7110
        %v7433 = vpop.f32.mrb[0].mxu0
        %v7434 = vpop.f32.mrb[0].mxu0
        %v7435 = vpop.f32.mrb[0].mxu0
        %v7436 = vadd.f32 0.0, %v7435
        %v7437 = vpop.f32.mrb[0].mxu0
        %v7438 = vadd.f32 0.0, %v7437
        %7439 = vmatprep.mubr.bf16.mxu0 0
        %7440 = vmatmul.mubr.bf16.gmra.mrb[0].mxu0 %v7111
        %v7441 = vpop.f32.mrb[0].mxu0
        %v7442 = vadd.f32 0.0, %v7441
        %v7443 = vpop.f32.mrb[0].mxu0
        %v7444 = vadd.f32 0.0, %v7443
        %v7445 = vpop.f32.mrb[0].mxu0
        %v7446 = vpop.f32.mrb[0].mxu0
        %7447 = vmatprep.mubr.bf16.mxu0 0
        %7448 = vmatmul.mubr.bf16.gmra.mrb[0].mxu0 %v7112
        %v7449 = vpop.f32.mrb[0].mxu0
        %v7450 = vadd.f32 0.0, %v7449
        %v7451 = vpop.f32.mrb[0].mxu0
        %v7452 = vadd.f32 0.0, %v7451
        %v7453 = vpop.f32.mrb[0].mxu0
        %v7454 = vadd.f32 0.0, %v7453
        %v7455 = vpop.f32.mrb[0].mxu0
        %v7456 = vadd.f32 0.0, %v7455
        %7457 = vmatprep.mubr.bf16.mxu0 0
        %7458 = vmatmul.mubr.bf16.gmra.mrb[0].mxu0 %v7113
        %v7459 = vpop.f32.mrb[0].mxu0
        %v7460 = vpop.f32.mrb[0].mxu0
        %v7461 = vpop.f32.mrb[0].mxu0
        %v7462 = vadd.f32 0.0, %v7461
        %v7463 = vpop.f32.mrb[0].mxu0
        %v7464 = vadd.f32 0.0, %v7463
        %7465 = vmatprep.mubr.bf16.mxu0 0
        %7466 = vmatmul.mubr.bf16.gmra.mrb[0].mxu0 %v7114
        %v7467 = vpop.f32.mrb[0].mxu0
        %v7468 = vadd.f32 0.0, %v7467
        %v7469 = vpop.f32.mrb[0].mxu0
        %v7470 = vadd.f32 0.0, %v7469
        %v7471 = vpop.f32.mrb[0].mxu0
        %v7472 = vpop.f32.mrb[0].mxu0
        %7473 = vmatprep.mubr.bf16.mxu0 0
        %7474 = vmatmul.mubr.bf16.gmra.mrb[0].mxu0 %v7115
        %v7475 = vpop.f32.mrb[0].mxu0
        %v7476 = vadd.f32 0.0, %v7475
        %v7477 = vpop.f32.mrb[0].mxu0
        %v7478 = vadd.f32 0.0, %v7477
        %v7479 = vpop.f32.mrb[0].mxu0
        %v7480 = vadd.f32 0.0, %v7479
        %v7481 = vpop.f32.mrb[0].mxu0
        %v7482 = vadd.f32 0.0, %v7481
        %7483 = vmatprep.mubr.bf16.mxu0 0
        %7484 = vmatmul.mubr.bf16.gmra.mrb[0].mxu0 %v7116
        %v7485 = vpop.f32.mrb[0].mxu0
        %v7486 = vpop.f32.mrb[0].mxu0
        %v7487 = vpop.f32.mrb[0].mxu0
        %v7488 = vadd.f32 0.0, %v7487
        %v7489 = vpop.f32.mrb[0].mxu0
        %v7490 = vadd.f32 0.0, %v7489
        %7491 = vmatprep.mubr.bf16.mxu0 0
        %7492 = vmatmul.mubr.bf16.gmra.mrb[0].mxu0 %v7117
        %v7493 = vpop.f32.mrb[0].mxu0
        %v7494 = vadd.f32 0.0, %v7493
        %v7495 = vpop.f32.mrb[0].mxu0
        %v7496 = vadd.f32 0.0, %v7495
        %v7497 = vpop.f32.mrb[0].mxu0
        %v7498 = vpop.f32.mrb[0].mxu0
        %7499 = vmatprep.mubr.bf16.mxu0 0
        %7500 = vmatmul.mubr.bf16.gmra.mrb[0].mxu0 %v7118
        %v7501 = vpop.f32.mrb[0].mxu0
        %v7502 = vadd.f32 0.0, %v7501
        %v7503 = vpop.f32.mrb[0].mxu0
        %v7504 = vadd.f32 0.0, %v7503
        %v7505 = vpop.f32.mrb[0].mxu0
        %v7506 = vadd.f32 0.0, %v7505
        %v7507 = vpop.f32.mrb[0].mxu0
        %v7508 = vadd.f32 0.0, %v7507
        %7509 = vmatprep.mubr.bf16.mxu0 0
        %7510 = vmatmul.mubr.bf16.gmra.mrb[0].mxu0 %v7119
        %v7511 = vpop.f32.mrb[0].mxu0
        %v7512 = vpop.f32.mrb[0].mxu0
        %v7513 = vpop.f32.mrb[0].mxu0
        %v7514 = vpop.f32.mrb[0].mxu0
        %v7515 = vadd.f32 0.0, %v7514
        %7516 = vmatprep.mubr.bf16.mxu0 0
        %7517 = vmatmul.mubr.bf16.gmra.mrb[0].mxu0 %v7120
        %v7518 = vpop.f32.mrb[0].mxu0
        %v7519 = vpop.f32.mrb[0].mxu0
        %v7520 = vadd.f32 0.0, %v7519
        %v7521 = vpop.f32.mrb[0].mxu0
        %v7522 = vpop.f32.mrb[0].mxu0
        %7523 = vmatprep.mubr.bf16.mxu0 0
        %7524 = vmatmul.mubr.bf16.gmra.mrb[0].mxu0 %v7121
        %v7525 = vpop.f32.mrb[0].mxu0
        %v7526 = vpop.f32.mrb[0].mxu0
        %v7527 = vpop.f32.mrb[0].mxu0
        %v7528 = vpop.f32.mrb[0].mxu0
        %7529 = vmatprep.mubr.bf16.mxu0 0
        %7530 = vmatmul.mubr.bf16.gmra.mrb[0].mxu0 %v7122
        %v7531 = vpop.f32.mrb[0].mxu0
        %v7532 = vpop.f32.mrb[0].mxu0
        %v7533 = vpop.f32.mrb[0].mxu0
        %v7534 = vadd.f32 0.0, %v7533
        %v7535 = vpop.f32.mrb[0].mxu0
        %7536 = vmatprep.mubr.bf16.mxu0 0
        %7537 = vmatmul.mubr.bf16.gmra.mrb[0].mxu0 %v7123
        %v7538 = vpop.f32.mrb[0].mxu0
        %v7539 = vadd.f32 0.0, %v7538
        %v7540 = vpop.f32.mrb[0].mxu0
        %v7541 = vpop.f32.mrb[0].mxu0
        %v7542 = vpop.f32.mrb[0].mxu0
        %7543 = vdwg.mxu0
        %7544 = vmatprep.subr.bf16.mxu0 0
        %7545 = vmatpush1.bf16.msra.mxu0 %v7239
        %7546 = vmatprep.subr.bf16.mxu0 0
        %7547 = vmatpush1.bf16.msra.mxu0 %v7242
        %7548 = vmatprep.subr.bf16.mxu0 0
        %7549 = vmatpush1.bf16.msra.mxu0 %v7245
        %7550 = vmatprep.subr.bf16.mxu0 0
        %7551 = vmatpush1.bf16.msra.mxu0 %v7248
        %7552 = vmatprep.subr.bf16.mxu0 0
        %7553 = vmatpush1.bf16.msra.mxu0 %v7251
        %7554 = vmatprep.subr.bf16.mxu0 0
        %7555 = vmatpush1.bf16.msra.mxu0 %v7254
        %7556 = vmatprep.subr.bf16.mxu0 0
        %7557 = vmatpush1.bf16.msra.mxu0 %v7257
        %7558 = vmatprep.subr.bf16.mxu0 0
        %7559 = vmatpush1.bf16.msra.mxu0 %v7260
        %7560 = vmatprep.subr.bf16.mxu0 0
        %7561 = vmatpush1.bf16.msra.mxu0 0
        %7562 = vmatprep.subr.bf16.mxu0 0
        %7563 = vmatpush1.bf16.msra.mxu0 0
        %7564 = vmatprep.subr.bf16.mxu0 0
        %7565 = vmatpush1.bf16.msra.mxu0 0
        %7566 = vmatprep.subr.bf16.mxu0 0
        %7567 = vmatpush1.bf16.msra.mxu0 0
        %7568 = vmatprep.subr.bf16.mxu0 0
        %7569 = vmatpush1.bf16.msra.mxu0 0
        %7570 = vmatprep.subr.bf16.mxu0 0
        %7571 = vmatpush1.bf16.msra.mxu0 0
        %7572 = vmatprep.subr.bf16.mxu0 0
        %7573 = vmatpush1.bf16.msra.mxu0 0
        %7574 = vmatprep.subr.bf16.mxu0 0
        %7575 = vmatpush1.bf16.msra.mxu0 0
        %7576 = vmatprep.mubr.bf16.mxu0 0
        %7577 = vmatmul.mubr.bf16.gmra.mrb[0].mxu0 %v7097
        %v7578 = vpop.f32.mrb[0].mxu0
        %v7579 = vpop.f32.mrb[0].mxu0
        %v7580 = vpop.f32.mrb[0].mxu0
        %v7581 = vpop.f32.mrb[0].mxu0
        %7582 = vmatprep.mubr.bf16.mxu0 0
        %7583 = vmatmul.mubr.bf16.gmra.mrb[0].mxu0 %v7098
        %v7584 = vpop.f32.mrb[0].mxu0
        %v7585 = vpop.f32.mrb[0].mxu0
        %v7586 = vpop.f32.mrb[0].mxu0
        %v7587 = vadd.f32 0.0, %v7586
        %v7588 = vpop.f32.mrb[0].mxu0
        %7589 = vmatprep.mubr.bf16.mxu0 0
        %7590 = vmatmul.mubr.bf16.gmra.mrb[0].mxu0 %v7099
        %v7591 = vpop.f32.mrb[0].mxu0
        %v7592 = vadd.f32 0.0, %v7591
        %v7593 = vpop.f32.mrb[0].mxu0
        %v7594 = vpop.f32.mrb[0].mxu0
        %v7595 = vpop.f32.mrb[0].mxu0
        %7596 = vmatprep.mubr.bf16.mxu0 0
        %7597 = vmatmul.mubr.bf16.gmra.mrb[0].mxu0 %v7100
        %v7598 = vpop.f32.mrb[0].mxu0
        %v7599 = vadd.f32 0.0, %v7598
        %v7600 = vpop.f32.mrb[0].mxu0
        %v7601 = vpop.f32.mrb[0].mxu0
        %v7602 = vadd.f32 0.0, %v7601
        %v7603 = vpop.f32.mrb[0].mxu0
        %7604 = vmatprep.mubr.bf16.mxu0 0
        %7605 = vmatmul.mubr.bf16.gmra.mrb[0].mxu0 %v7101
        %v7606 = vpop.f32.mrb[0].mxu0
        %v7607 = vpop.f32.mrb[0].mxu0
        %v7608 = vpop.f32.mrb[0].mxu0
        %v7609 = vadd.f32 0.0, %v7608
        %v7610 = vpop.f32.mrb[0].mxu0
        %7611 = vmatprep.mubr.bf16.mxu0 0
        %7612 = vmatmul.mubr.bf16.gmra.mrb[0].mxu0 %v7102
        %v7613 = vpop.f32.mrb[0].mxu0
        %v7614 = vadd.f32 0.0, %v7613
        %v7615 = vpop.f32.mrb[0].mxu0
        %v7616 = vpop.f32.mrb[0].mxu0
        %v7617 = vpop.f32.mrb[0].mxu0
        %7618 = vmatprep.mubr.bf16.mxu0 0
        %7619 = vmatmul.mubr.bf16.gmra.mrb[0].mxu0 %v7103
        %v7620 = vpop.f32.mrb[0].mxu0
        %v7621 = vadd.f32 0.0, %v7620
        %v7622 = vpop.f32.mrb[0].mxu0
        %v7623 = vpop.f32.mrb[0].mxu0
        %v7624 = vadd.f32 0.0, %v7623
        %v7625 = vpop.f32.mrb[0].mxu0
        %7626 = vmatprep.mubr.bf16.mxu0 0
        %7627 = vmatmul.mubr.bf16.gmra.mrb[0].mxu0 %v7104
        %v7628 = vpop.f32.mrb[0].mxu0
        %v7629 = vpop.f32.mrb[0].mxu0
        %v7630 = vpop.f32.mrb[0].mxu0
        %v7631 = vadd.f32 0.0, %v7630
        %v7632 = vpop.f32.mrb[0].mxu0
        %7633 = vmatprep.mubr.bf16.mxu0 0
        %7634 = vmatmul.mubr.bf16.gmra.mrb[0].mxu0 %v7105
        %v7635 = vpop.f32.mrb[0].mxu0
        %v7636 = vadd.f32 0.0, %v7635
        %v7637 = vpop.f32.mrb[0].mxu0
        %v7638 = vpop.f32.mrb[0].mxu0
        %v7639 = vpop.f32.mrb[0].mxu0
        %7640 = vmatprep.mubr.bf16.mxu0 0
        %7641 = vmatmul.mubr.bf16.gmra.mrb[0].mxu0 %v7106
        %v7642 = vpop.f32.mrb[0].mxu0
        %v7643 = vadd.f32 0.0, %v7642
        %v7644 = vpop.f32.mrb[0].mxu0
        %v7645 = vpop.f32.mrb[0].mxu0
        %v7646 = vadd.f32 0.0, %v7645
        %v7647 = vpop.f32.mrb[0].mxu0
        %7648 = vmatprep.mubr.bf16.mxu0 0
        %7649 = vmatmul.mubr.bf16.gmra.mrb[0].mxu0 %v7107
        %v7650 = vpop.f32.mrb[0].mxu0
        %v7651 = vpop.f32.mrb[0].mxu0
        %v7652 = vpop.f32.mrb[0].mxu0
        %v7653 = vadd.f32 0.0, %v7652
        %v7654 = vpop.f32.mrb[0].mxu0
        %7655 = vmatprep.mubr.bf16.mxu0 0
        %7656 = vmatmul.mubr.bf16.gmra.mrb[0].mxu0 %v7108
        %v7657 = vpop.f32.mrb[0].mxu0
        %v7658 = vadd.f32 0.0, %v7657
        %v7659 = vpop.f32.mrb[0].mxu0
        %v7660 = vpop.f32.mrb[0].mxu0
        %v7661 = vpop.f32.mrb[0].mxu0
        %7662 = vmatprep.mubr.bf16.mxu0 0
        %7663 = vmatmul.mubr.bf16.gmra.mrb[0].mxu0 %v7109
        %v7664 = vpop.f32.mrb[0].mxu0
        %v7665 = vadd.f32 0.0, %v7664
        %v7666 = vpop.f32.mrb[0].mxu0
        %v7667 = vpop.f32.mrb[0].mxu0
        %v7668 = vadd.f32 0.0, %v7667
        %v7669 = vpop.f32.mrb[0].mxu0
        %7670 = vmatprep.mubr.bf16.mxu0 0
        %7671 = vmatmul.mubr.bf16.gmra.mrb[0].mxu0 %v7110
        %v7672 = vpop.f32.mrb[0].mxu0
        %v7673 = vpop.f32.mrb[0].mxu0
        %v7674 = vpop.f32.mrb[0].mxu0
        %v7675 = vadd.f32 0.0, %v7674
        %v7676 = vpop.f32.mrb[0].mxu0
        %7677 = vmatprep.mubr.bf16.mxu0 0
        %7678 = vmatmul.mubr.bf16.gmra.mrb[0].mxu0 %v7111
        %v7679 = vpop.f32.mrb[0].mxu0
        %v7680 = vadd.f32 0.0, %v7679
        %v7681 = vpop.f32.mrb[0].mxu0
        %v7682 = vpop.f32.mrb[0].mxu0
        %v7683 = vpop.f32.mrb[0].mxu0
        %7684 = vmatprep.mubr.bf16.mxu0 0
        %7685 = vmatmul.mubr.bf16.gmra.mrb[0].mxu0 %v7112
        %v7686 = vpop.f32.mrb[0].mxu0
        %v7687 = vadd.f32 0.0, %v7686
        %v7688 = vpop.f32.mrb[0].mxu0
        %v7689 = vpop.f32.mrb[0].mxu0
        %v7690 = vadd.f32 0.0, %v7689
        %v7691 = vpop.f32.mrb[0].mxu0
        %7692 = vmatprep.mubr.bf16.mxu0 0
        %7693 = vmatmul.mubr.bf16.gmra.mrb[0].mxu0 %v7113
        %v7694 = vpop.f32.mrb[0].mxu0
        %v7695 = vpop.f32.mrb[0].mxu0
        %v7696 = vpop.f32.mrb[0].mxu0
        %v7697 = vadd.f32 0.0, %v7696
        %v7698 = vpop.f32.mrb[0].mxu0
        %7699 = vmatprep.mubr.bf16.mxu0 0
        %7700 = vmatmul.mubr.bf16.gmra.mrb[0].mxu0 %v7114
        %v7701 = vpop.f32.mrb[0].mxu0
        %v7702 = vadd.f32 0.0, %v7701
        %v7703 = vpop.f32.mrb[0].mxu0
        %v7704 = vpop.f32.mrb[0].mxu0
        %v7705 = vpop.f32.mrb[0].mxu0
        %7706 = vmatprep.mubr.bf16.mxu0 0
        %7707 = vmatmul.mubr.bf16.gmra.mrb[0].mxu0 %v7115
        %v7708 = vpop.f32.mrb[0].mxu0
        %v7709 = vadd.f32 0.0, %v7708
        %v7710 = vpop.f32.mrb[0].mxu0
        %v7711 = vpop.f32.mrb[0].mxu0
        %v7712 = vadd.f32 0.0, %v7711
        %v7713 = vpop.f32.mrb[0].mxu0
        %7714 = vmatprep.mubr.bf16.mxu0 0
        %7715 = vmatmul.mubr.bf16.gmra.mrb[0].mxu0 %v7116
        %v7716 = vpop.f32.mrb[0].mxu0
        %v7717 = vpop.f32.mrb[0].mxu0
        %v7718 = vpop.f32.mrb[0].mxu0
        %v7719 = vadd.f32 0.0, %v7718
        %v7720 = vpop.f32.mrb[0].mxu0
        %7721 = vmatprep.mubr.bf16.mxu0 0
        %7722 = vmatmul.mubr.bf16.gmra.mrb[0].mxu0 %v7117
        %v7723 = vpop.f32.mrb[0].mxu0
        %v7724 = vadd.f32 0.0, %v7723
        %v7725 = vpop.f32.mrb[0].mxu0
        %v7726 = vpop.f32.mrb[0].mxu0
        %v7727 = vpop.f32.mrb[0].mxu0
        %7728 = vmatprep.mubr.bf16.mxu0 0
        %7729 = vmatmul.mubr.bf16.gmra.mrb[0].mxu0 %v7118
        %v7730 = vpop.f32.mrb[0].mxu0
        %v7731 = vadd.f32 0.0, %v7730
        %v7732 = vpop.f32.mrb[0].mxu0
        %v7733 = vpop.f32.mrb[0].mxu0
        %v7734 = vadd.f32 0.0, %v7733
        %v7735 = vpop.f32.mrb[0].mxu0
        %7736 = vmatprep.mubr.bf16.mxu0 0
        %7737 = vmatmul.mubr.bf16.gmra.mrb[0].mxu0 %v7119
        %v7738 = vpop.f32.mrb[0].mxu0
        %v7739 = vpop.f32.mrb[0].mxu0
        %v7740 = vpop.f32.mrb[0].mxu0
        %v7741 = vadd.f32 0.0, %v7740
        %v7742 = vpop.f32.mrb[0].mxu0
        %7743 = vmatprep.mubr.bf16.mxu0 0
        %7744 = vmatmul.mubr.bf16.gmra.mrb[0].mxu0 %v7120
        %v7745 = vpop.f32.mrb[0].mxu0
        %v7746 = vadd.f32 0.0, %v7745
        %v7747 = vpop.f32.mrb[0].mxu0
        %v7748 = vpop.f32.mrb[0].mxu0
        %v7749 = vpop.f32.mrb[0].mxu0
        %7750 = vmatprep.mubr.bf16.mxu0 0
        %7751 = vmatmul.mubr.bf16.gmra.mrb[0].mxu0 %v7121
        %v7752 = vpop.f32.mrb[0].mxu0
        %v7753 = vadd.f32 0.0, %v7752
        %v7754 = vpop.f32.mrb[0].mxu0
        %v7755 = vpop.f32.mrb[0].mxu0
        %v7756 = vadd.f32 0.0, %v7755
        %v7757 = vpop.f32.mrb[0].mxu0
        %7758 = vmatprep.mubr.bf16.mxu0 0
        %7759 = vmatmul.mubr.bf16.gmra.mrb[0].mxu0 %v7122
        %v7760 = vpop.f32.mrb[0].mxu0
        %v7761 = vpop.f32.mrb[0].mxu0
        %v7762 = vpop.f32.mrb[0].mxu0
        %v7763 = vpop.f32.mrb[0].mxu0
        %7764 = vmatprep.mubr.bf16.mxu0 0
        %7765 = vmatmul.mubr.bf16.gmra.mrb[0].mxu0 %v7123
        %v7766 = vpop.f32.mrb[0].mxu0
        %v7767 = vpop.f32.mrb[0].mxu0
        %v7768 = vpop.f32.mrb[0].mxu0
        %v7769 = vpop.f32.mrb[0].mxu0
        %7770 = vdwg.mxu0
        %v7771 = vadd.f32 %v6646, %v7320
        %v7772 = vadd.f32 %v6648, %v7322
        %v7773 = vadd.f32 %v6650, %v7324
        %v7774 = vadd.f32 %v6652, %v7326
        %v7775 = vadd.f32 %v6658, %v7332
        %v7776 = vadd.f32 %v6660, %v7334
        %v7777 = vadd.f32 %v6913, %v7587
        %v7778 = vadd.f32 %v6664, %v7338
        %v7779 = vadd.f32 %v6666, %v7340
        %v7780 = vadd.f32 %v6918, %v7592
        %v7781 = vadd.f32 %v6672, %v7346
        %v7782 = vadd.f32 %v6674, %v7348
        %v7783 = vadd.f32 %v6925, %v7599
        %v7784 = vadd.f32 %v6676, %v7350
        %v7785 = vadd.f32 %v6678, %v7352
        %v7786 = vadd.f32 %v6928, %v7602
        %v7787 = vadd.f32 %v6684, %v7358
        %v7788 = vadd.f32 %v6686, %v7360
        %v7789 = vadd.f32 %v6935, %v7609
        %v7790 = vadd.f32 %v6690, %v7364
        %v7791 = vadd.f32 %v6692, %v7366
        %v7792 = vadd.f32 %v6940, %v7614
        %v7793 = vadd.f32 %v6698, %v7372
        %v7794 = vadd.f32 %v6700, %v7374
        %v7795 = vadd.f32 %v6947, %v7621
        %v7796 = vadd.f32 %v6702, %v7376
        %v7797 = vadd.f32 %v6704, %v7378
        %v7798 = vadd.f32 %v6950, %v7624
        %v7799 = vadd.f32 %v6710, %v7384
        %v7800 = vadd.f32 %v6712, %v7386
        %v7801 = vadd.f32 %v6957, %v7631
        %v7802 = vadd.f32 %v6716, %v7390
        %v7803 = vadd.f32 %v6718, %v7392
        %v7804 = vadd.f32 %v6962, %v7636
        %v7805 = vadd.f32 %v6724, %v7398
        %v7806 = vadd.f32 %v6726, %v7400
        %v7807 = vadd.f32 %v6969, %v7643
        %v7808 = vadd.f32 %v6728, %v7402
        %v7809 = vadd.f32 %v6730, %v7404
        %v7810 = vadd.f32 %v6972, %v7646
        %v7811 = vadd.f32 %v6736, %v7410
        %v7812 = vadd.f32 %v6738, %v7412
        %v7813 = vadd.f32 %v6979, %v7653
        %v7814 = vadd.f32 %v6742, %v7416
        %v7815 = vadd.f32 %v6744, %v7418
        %v7816 = vadd.f32 %v6984, %v7658
        %v7817 = vadd.f32 %v6750, %v7424
        %v7818 = vadd.f32 %v6752, %v7426
        %v7819 = vadd.f32 %v6991, %v7665
        %v7820 = vadd.f32 %v6754, %v7428
        %v7821 = vadd.f32 %v6756, %v7430
        %v7822 = vadd.f32 %v6994, %v7668
        %v7823 = vadd.f32 %v6762, %v7436
        %v7824 = vadd.f32 %v6764, %v7438
        %v7825 = vadd.f32 %v7001, %v7675
        %v7826 = vadd.f32 %v6768, %v7442
        %v7827 = vadd.f32 %v6770, %v7444
        %v7828 = vadd.f32 %v7006, %v7680
        %v7829 = vadd.f32 %v6776, %v7450
        %v7830 = vadd.f32 %v6778, %v7452
        %v7831 = vadd.f32 %v7013, %v7687
        %v7832 = vadd.f32 %v6780, %v7454
        %v7833 = vadd.f32 %v6782, %v7456
        %v7834 = vadd.f32 %v7016, %v7690
        %v7835 = vadd.f32 %v6788, %v7462
        %v7836 = vadd.f32 %v6790, %v7464
        %v7837 = vadd.f32 %v7023, %v7697
        %v7838 = vadd.f32 %v6794, %v7468
        %v7839 = vadd.f32 %v6796, %v7470
        %v7840 = vadd.f32 %v7028, %v7702
        %v7841 = vadd.f32 %v6802, %v7476
        %v7842 = vadd.f32 %v6804, %v7478
        %v7843 = vadd.f32 %v7035, %v7709
        %v7844 = vadd.f32 %v6806, %v7480
        %v7845 = vadd.f32 %v6808, %v7482
        %v7846 = vadd.f32 %v7038, %v7712
        %v7847 = vadd.f32 %v6814, %v7488
        %v7848 = vadd.f32 %v6816, %v7490
        %v7849 = vadd.f32 %v7045, %v7719
        %v7850 = vadd.f32 %v6820, %v7494
        %v7851 = vadd.f32 %v6822, %v7496
        %v7852 = vadd.f32 %v7050, %v7724
        %v7853 = vadd.f32 %v6828, %v7502
        %v7854 = vadd.f32 %v6830, %v7504
        %v7855 = vadd.f32 %v7057, %v7731
        %v7856 = vadd.f32 %v6832, %v7506
        %v7857 = vadd.f32 %v6834, %v7508
        %v7858 = vadd.f32 %v7060, %v7734
        %v7859 = vadd.f32 %v6841, %v7515
        %v7860 = vadd.f32 %v7067, %v7741
        %v7861 = vadd.f32 %v6846, %v7520
        %v7862 = vadd.f32 %v7072, %v7746
        %v7863 = vadd.f32 %v7079, %v7753
        %v7864 = vadd.f32 %v7082, %v7756
        %v7865 = vadd.f32 %v6860, %v7534
        %v7866 = vadd.f32 %v6865, %v7539
        %v7867 = vadd.f32 %v7772, %v7865
        %v7868 = vadd.f32 %v7774, %v7866
        %v7869 = vadd.f32 %v7776, %v7771
        %v7870 = vadd.f32 %v7779, %v7773
        %v7871 = vadd.f32 %v7782, %v7775
        %v7872 = vadd.f32 %v7785, %v7778
        %v7873 = vadd.f32 %v7788, %v7781
        %v7874 = vadd.f32 %v7791, %v7784
        %v7875 = vadd.f32 %v7794, %v7787
        %v7876 = vadd.f32 %v7797, %v7790
        %v7877 = vadd.f32 %v7800, %v7793
        %v7878 = vadd.f32 %v7803, %v7796
        %v7879 = vadd.f32 %v7806, %v7799
        %v7880 = vadd.f32 %v7809, %v7802
        %v7881 = vadd.f32 %v7812, %v7805
        %v7882 = vadd.f32 %v7815, %v7808
        %v7883 = vadd.f32 %v7818, %v7811
        %v7884 = vadd.f32 %v7821, %v7814
        %v7885 = vadd.f32 %v7824, %v7817
        %v7886 = vadd.f32 %v7827, %v7820
        %v7887 = vadd.f32 %v7830, %v7823
        %v7888 = vadd.f32 %v7833, %v7826
        %v7889 = vadd.f32 %v7836, %v7829
        %v7890 = vadd.f32 %v7839, %v7832
        %v7891 = vadd.f32 %v7842, %v7835
        %v7892 = vadd.f32 %v7845, %v7838
        %v7893 = vadd.f32 %v7848, %v7841
        %v7894 = vadd.f32 %v7851, %v7844
        %v7895 = vadd.f32 %v7854, %v7847
        %v7896 = vadd.f32 %v7857, %v7850
        %v7897 = vadd.f32 %v7859, %v7853
        %v7898 = vadd.f32 %v7861, %v7856
        %v7899 = vadd.f32 %v7867, %v7777
        %v7900 = vadd.f32 %v7868, %v7780
        %v7901 = vadd.f32 %v7869, %v7783
        %v7902 = vadd.f32 %v7870, %v7786
        %v7903 = vadd.f32 %v7871, %v7789
        %v7904 = vadd.f32 %v7872, %v7792
        %v7905 = vadd.f32 %v7873, %v7795
        %v7906 = vadd.f32 %v7874, %v7798
        %v7907 = vadd.f32 %v7875, %v7801
        %v7908 = vadd.f32 %v7876, %v7804
        %v7909 = vadd.f32 %v7877, %v7807
        %v7910 = vadd.f32 %v7878, %v7810
        %v7911 = vadd.f32 %v7879, %v7813
        %v7912 = vadd.f32 %v7880, %v7816
        %v7913 = vadd.f32 %v7881, %v7819
        %v7914 = vadd.f32 %v7882, %v7822
        %v7915 = vadd.f32 %v7883, %v7825
        %v7916 = vadd.f32 %v7884, %v7828
        %v7917 = vadd.f32 %v7885, %v7831
        %v7918 = vadd.f32 %v7886, %v7834
        %v7919 = vadd.f32 %v7887, %v7837
        %v7920 = vadd.f32 %v7888, %v7840
        %v7921 = vadd.f32 %v7889, %v7843
        %v7922 = vadd.f32 %v7890, %v7846
        %v7923 = vadd.f32 %v7891, %v7849
        %v7924 = vadd.f32 %v7892, %v7852
        %v7925 = vadd.f32 %v7893, %v7855
        %v7926 = vadd.f32 %v7894, %v7858
        %v7927 = vadd.f32 %v7895, %v7860
        %v7928 = vadd.f32 %v7896, %v7862
        %v7929 = vadd.f32 %v7897, %v7863
        %v7930 = vadd.f32 %v7898, %v7864
        %v7932 = vlaneseq
        %v7933 = vshrl.u32 %v7932, 7
        %v7934 = vsub.s32 0, %v7933
        %v7935 = vrot.slane %v5478, %v7934
        %v7937 = vmul.f32 %v7899, %v7935
        %v7938 = vmul.f32 %v7900, %v7935
        %v7939 = vmul.f32 %v7901, %v7935
        %v7940 = vmul.f32 %v7902, %v7935
        %v7941 = vmul.f32 %v7903, %v7935
        %v7942 = vmul.f32 %v7904, %v7935
        %v7943 = vmul.f32 %v7905, %v7935
        %v7944 = vmul.f32 %v7906, %v7935
        %v7945 = vmul.f32 %v7907, %v7935
        %v7946 = vmul.f32 %v7908, %v7935
        %v7947 = vmul.f32 %v7909, %v7935
        %v7948 = vmul.f32 %v7910, %v7935
        %v7949 = vmul.f32 %v7911, %v7935
        %v7950 = vmul.f32 %v7912, %v7935
        %v7951 = vmul.f32 %v7913, %v7935
        %v7952 = vmul.f32 %v7914, %v7935
        %v7953 = vmul.f32 %v7915, %v7935
        %v7954 = vmul.f32 %v7916, %v7935
        %v7955 = vmul.f32 %v7917, %v7935
        %v7956 = vmul.f32 %v7918, %v7935
        %v7957 = vmul.f32 %v7919, %v7935
        %v7958 = vmul.f32 %v7920, %v7935
        %v7959 = vmul.f32 %v7921, %v7935
        %v7960 = vmul.f32 %v7922, %v7935
        %v7961 = vmul.f32 %v7923, %v7935
        %v7962 = vmul.f32 %v7924, %v7935
        %v7963 = vmul.f32 %v7925, %v7935
        %v7964 = vmul.f32 %v7926, %v7935
        %v7965 = vmul.f32 %v7927, %v7935
        %v7966 = vmul.f32 %v7928, %v7935
        %v7967 = vmul.f32 %v7929, %v7935
        %v7968 = vmul.f32 %v7930, %v7935
        %v7970 = vlaneseq
        %v7971 = vshrl.u32 %v7970, 7
        %v7972 = vsub.s32 0, %v7971
        %v7973 = vrot.slane %v5479, %v7972
        %v7975 = vadd.f32 %v7937, %v7973
        %v7976 = vadd.f32 %v7938, %v7973
        %v7977 = vadd.f32 %v7939, %v7973
        %v7978 = vadd.f32 %v7940, %v7973
        %v7979 = vadd.f32 %v7941, %v7973
        %v7980 = vadd.f32 %v7942, %v7973
        %v7981 = vadd.f32 %v7943, %v7973
        %v7982 = vadd.f32 %v7944, %v7973
        %v7983 = vadd.f32 %v7945, %v7973
        %v7984 = vadd.f32 %v7946, %v7973
        %v7985 = vadd.f32 %v7947, %v7973
        %v7986 = vadd.f32 %v7948, %v7973
        %v7987 = vadd.f32 %v7949, %v7973
        %v7988 = vadd.f32 %v7950, %v7973
        %v7989 = vadd.f32 %v7951, %v7973
        %v7990 = vadd.f32 %v7952, %v7973
        %v7991 = vadd.f32 %v7953, %v7973
        %v7992 = vadd.f32 %v7954, %v7973
        %v7993 = vadd.f32 %v7955, %v7973
        %v7994 = vadd.f32 %v7956, %v7973
        %v7995 = vadd.f32 %v7957, %v7973
        %v7996 = vadd.f32 %v7958, %v7973
        %v7997 = vadd.f32 %v7959, %v7973
        %v7998 = vadd.f32 %v7960, %v7973
        %v7999 = vadd.f32 %v7961, %v7973
        %v8000 = vadd.f32 %v7962, %v7973
        %v8001 = vadd.f32 %v7963, %v7973
        %v8002 = vadd.f32 %v7964, %v7973
        %v8003 = vadd.f32 %v7965, %v7973
        %v8004 = vadd.f32 %v7966, %v7973
        %v8005 = vadd.f32 %v7967, %v7973
        %v8006 = vadd.f32 %v7968, %v7973
        %v8007 = vmax.f32 %v7975, 0.0
        %v8008 = vmax.f32 %v7976, 0.0
        %v8009 = vmax.f32 %v7977, 0.0
        %v8010 = vmax.f32 %v7978, 0.0
        %v8011 = vmax.f32 %v7979, 0.0
        %v8012 = vmax.f32 %v7980, 0.0
        %v8013 = vmax.f32 %v7981, 0.0
        %v8014 = vmax.f32 %v7982, 0.0
        %v8015 = vmax.f32 %v7983, 0.0
        %v8016 = vmax.f32 %v7984, 0.0
        %v8017 = vmax.f32 %v7985, 0.0
        %v8018 = vmax.f32 %v7986, 0.0
        %v8019 = vmax.f32 %v7987, 0.0
        %v8020 = vmax.f32 %v7988, 0.0
        %v8021 = vmax.f32 %v7989, 0.0
        %v8022 = vmax.f32 %v7990, 0.0
        %v8023 = vmax.f32 %v7991, 0.0
        %v8024 = vmax.f32 %v7992, 0.0
        %v8025 = vmax.f32 %v7993, 0.0
        %v8026 = vmax.f32 %v7994, 0.0
        %v8027 = vmax.f32 %v7995, 0.0
        %v8028 = vmax.f32 %v7996, 0.0
        %v8029 = vmax.f32 %v7997, 0.0
        %v8030 = vmax.f32 %v7998, 0.0
        %v8031 = vmax.f32 %v7999, 0.0
        %v8032 = vmax.f32 %v8000, 0.0
        %v8033 = vmax.f32 %v8001, 0.0
        %v8034 = vmax.f32 %v8002, 0.0
        %v8035 = vmax.f32 %v8003, 0.0
        %v8036 = vmax.f32 %v8004, 0.0
        %v8037 = vmax.f32 %v8005, 0.0
        %v8038 = vmax.f32 %v8006, 0.0
        %8039 = vst [vmem:[%s442] sm:$0xff] %v8007
        %8040 = vst [vmem:[%s442 + $0x8] sm:$0xff] %v8008
        %8041 = vst [vmem:[%s442 + $0x10] sm:$0xff] %v8009
        %8042 = vst [vmem:[%s442 + $0x18] sm:$0xff] %v8010
        %8043 = vst [vmem:[%s442 + $0x20] sm:$0xff] %v8011
        %8044 = vst [vmem:[%s442 + $0x28] sm:$0xff] %v8012
        %8045 = vst [vmem:[%s442 + $0x30] sm:$0xff] %v8013
        %8046 = vst [vmem:[%s442 + $0x38] sm:$0xff] %v8014
        %8047 = vst [vmem:[%s442 + $0x40] sm:$0xff] %v8015
        %8048 = vst [vmem:[%s442 + $0x48] sm:$0xff] %v8016
        %8049 = vst [vmem:[%s442 + $0x50] sm:$0xff] %v8017
        %8050 = vst [vmem:[%s442 + $0x58] sm:$0xff] %v8018
        %8051 = vst [vmem:[%s442 + $0x60] sm:$0xff] %v8019
        %8052 = vst [vmem:[%s442 + $0x68] sm:$0xff] %v8020
        %8053 = vst [vmem:[%s442 + $0x70] sm:$0xff] %v8021
        %8054 = vst [vmem:[%s442 + $0x78] sm:$0xff] %v8022
        %8055 = vst [vmem:[%s442 + $0x80] sm:$0xff] %v8023
        %8056 = vst [vmem:[%s442 + $0x88] sm:$0xff] %v8024
        %8057 = vst [vmem:[%s442 + $0x90] sm:$0xff] %v8025
        %8058 = vst [vmem:[%s442 + $0x98] sm:$0xff] %v8026
        %8059 = vst [vmem:[%s442 + $0xa0] sm:$0xff] %v8027
        %8060 = vst [vmem:[%s442 + $0xa8] sm:$0xff] %v8028
        %8061 = vst [vmem:[%s442 + $0xb0] sm:$0xff] %v8029
        %8062 = vst [vmem:[%s442 + $0xb8] sm:$0xff] %v8030
        %8063 = vst [vmem:[%s442 + $0xc0] sm:$0xff] %v8031
        %8064 = vst [vmem:[%s442 + $0xc8] sm:$0xff] %v8032
        %8065 = vst [vmem:[%s442 + $0xd0] sm:$0xff] %v8033
        %8066 = vst [vmem:[%s442 + $0xd8] sm:$0xff] %v8034
        %8067 = vst [vmem:[%s442 + $0xe0] sm:$0xff] %v8035
        %8068 = vst [vmem:[%s442 + $0xe8] sm:$0xff] %v8036
        %8069 = vst [vmem:[%s442 + $0xf0] sm:$0xff] %v8037
        %8070 = vst [vmem:[%s442 + $0xf8] sm:$0xff] %v8038
        %s8071 = sand.u32 %s217, 1
        %s8072 = scalar_lea.sflag [#allocation7], %s8071
        %s8073 = sand.u32 %s217, 1
        %s8074 = smul.addr %s8073, 256
        %s8075 = scalar_lea.vmem [#allocation19], %s8074
        // Predicated region
        $region85: #{tpu_custom_call.1} parent=51 // pred_check
          %p8076 = pneg %p227
        $region86: #{tpu_custom_call.1} parent=51 // pred_check_branch
          %8078 = sbr.rel (%p8076) target = $region88
        $region87: #{tpu_custom_call.1} parent=51 // pred_region
          %s8080 = ssub.s32 4096, 4096
          %8081 = vsyncadd %s8072, %s8080
          %s8082 = smul.addr %s31, 32
          %s8083 = smul.addr %s8082, 128
          %s8084 = scalar_lea.hbm %s8, %s8083
          %s8085 = sshll.u32 %s8075, 4
          %s8086 = int_to_ptr.vmem [resolvable:$true] %s8085
          %8091 = dma.vmem_to_hbm [thread:$0]  %s8086, 4096, %s8084, %s8072, 128, 128, 8
        $region88: #{tpu_custom_call.1} parent=51 // pred_fallthru
          _
      $region52: #{tpu_custom_call.1} parent=5 // pred_fallthru
        _
      %p8092 = scmp.le.s32.totalorder 2, %s26
      // Predicated region
      $region89: #{tpu_custom_call.1} parent=5 // pred_check
        %p8093 = pneg %p8092
      $region90: #{tpu_custom_call.1} parent=5 // pred_check_branch
        %8095 = sbr.rel (%p8093) target = $region92
      $region91: #{tpu_custom_call.1} parent=5 // pred_region
        %s8096 = ssub.s32 %s26, 2
        // Predicated region
        $region93: #{tpu_custom_call.1} parent=91 // pred_check
          %p8097 = pneg %p233
        $region94: #{tpu_custom_call.1} parent=91 // pred_check_branch
          %8099 = sbr.rel (%p8097) target = $region96
        $region95: #{tpu_custom_call.1} parent=91 // pred_region
          %s8100 = sand.u32 %s218, 1
          %s8101 = scalar_lea.sflag [#allocation7], %s8100
          %s8102 = sand.u32 %s218, 1
          %s8103 = smul.addr %s8102, 256
          %s8104 = scalar_lea.vmem [#allocation19], %s8103
          %8105 = dma.done %s8101, 4096
        $region96: #{tpu_custom_call.1} parent=91 // pred_fallthru
          _
      $region92: #{tpu_custom_call.1} parent=5 // pred_fallthru
        _
    $region6: #{tpu_custom_call.1} parent=1 // loop_footer
      %s30 = sadd.s32 1, %s26
    $region7: #{tpu_custom_call.1} parent=1 // loop_footer_branch
      %25 = sbr.rel target = $region3
    $region8: #{tpu_custom_call.1} parent=1 // loop_exit
      _
    %8106 = vsyncpa [#allocation6], 1
    %s8107 = scalar_lea.sflag [#allocation6], 1
    %8108 = vsyncpa %s8107, 1
    %8109 = vsyncpa [#allocation9], 1
    %s8110 = scalar_lea.sflag [#allocation9], 1
    %8111 = vsyncpa %s8110, 1
    %8112 = vsyncpa [#allocation12], 1
    %8113 = vsyncpa [#allocation15], 1
    %8114 = vsyncpa [#allocation18], 1
    %8115 = vsyncpa [#allocation7], 1
    %s8116 = scalar_lea.sflag [#allocation7], 1
    %8117 = vsyncpa %s8116, 1

</llo_original>
